<compile_context>
chip_gen: v7x
topology: tpu7x:2x2x1
jax: 0.10.0
libtpu: 0.0.40
codegen_flags: <defaults>
</compile_context>

<pallas_src>
import jax
import jax.numpy as jnp
from jax import lax
from jax.experimental import pallas as pl
from jax.experimental.pallas import tpu as pltpu


NB = 128        # samples per grid step, mapped to the vreg lane dimension
OUT_PAD = 128   # class logits padded to a full lane tile of rows


# ------------------------------ Pallas kernel ------------------------------ #

def _lenet_kernel(x_ref, w1_ref, b1_ref, w2_ref, b2_ref,
                  w3_ref, b3_ref, w4_ref, b4_ref, w5_ref, b5_ref,
                  o_ref, flat_ref, p1_ref):
    # x_ref   : (28, 28, NB) VMEM  -- one batch block, batch in lanes
    # w1_ref  : (54,)  SMEM        -- conv1, idx = (i*3+j)*6 + oc
    # b1_ref  : (6,)   SMEM
    # w2_ref  : (864,) SMEM        -- conv2, idx = ((i*3+j)*6 + c)*16 + oc
    # b2_ref  : (16,)  SMEM
    # w3_ref  : (128, 1280) VMEM   -- fc1, col = (c*5+h)*16 + 2*w (rest zero)
    # b3/4/5  : (128, 1) VMEM      -- biases, rows = output features
    # w4/w5   : (128, 128) VMEM
    # o_ref   : (128, NB)          -- log-probs, classes in rows 0..9
    # flat_ref: (1280, NB) VMEM scratch -- flattened fc1 input
    # p1_ref  : (78, 13, NB) VMEM scratch -- 6 pooled conv1 planes (13 rows each)

    x = x_ref[...]                                         # (28, 28, NB)
    # column-shifted views (unit-stride sublane slices), shared by all oc
    xw = [x[:, j:j + 26, :] for j in range(3)]             # each (28, 26, NB)

    # -------- conv1 (1->6, 3x3, valid) + ReLU + 2x2 maxpool --------
    def conv1_body(oc, carry):
        acc = jnp.full((26, 26, NB), b1_ref[oc], jnp.float32)
        for j in range(3):
            xj = xw[j]
            for i in range(3):
                acc = acc + xj[i:i + 26] * w1_ref[(i * 3 + j) * 6 + oc]
        y = jnp.maximum(acc, 0.0)                          # (26, 26, NB)
        # pool rows (leading dim): pure tile relabel + elementwise max
        y4 = y.reshape(13, 2, 26, NB)
        yh = jnp.maximum(y4[:, 0], y4[:, 1])               # (13, 26, NB)
        # pool cols (sublane dim): pairwise max, valid result at even cols
        pw = jnp.maximum(yh[:, 0:25, :], yh[:, 1:26, :])   # (13, 25, NB)
        # compact the 13 valid (even) columns
        cols = [pw[:, 2 * s:2 * s + 1, :] for s in range(13)]
        p1 = jnp.concatenate(cols, axis=1)                 # (13, 13, NB)
        p1_ref[pl.ds(oc * 13, 13)] = p1
        return carry

    lax.fori_loop(0, 6, conv1_body, 0)

    # column-shifted slabs of the 6 pooled planes (hoisted out of the oc loop)
    slabs = []
    for c in range(6):
        pc = p1_ref[pl.ds(c * 13, 13)]                     # (13, 13, NB)
        for j in range(3):
            slabs.append(pc[:, j:j + 11, :])               # (13, 11, NB)

    # -------- conv2 (6->16, 3x3, valid) + ReLU + 2x2 maxpool + flatten --------
    def conv2_body(oc, carry):
        acc = jnp.full((11, 11, NB), b2_ref[oc], jnp.float32)
        for c in range(6):
            for j in range(3):
                s = slabs[c * 3 + j]
                for i in range(3):
                    acc = acc + s[i:i + 11] * w2_ref[((i * 3 + j) * 6 + c) * 16 + oc]
        y = jnp.maximum(acc, 0.0)                          # (11, 11, NB)
        # pool rows: floor(11/2) = 5 -> rows 0..9
        y4 = y[0:10].reshape(5, 2, 11, NB)
        yh = jnp.maximum(y4[:, 0], y4[:, 1])               # (5, 11, NB)
        # pool cols: pairwise max; valid results at cols 0,2,4,6,8 (stride-2
        # selection is folded into the fc1 weight layout as zero columns)
        m2 = jnp.maximum(yh[:, 0:9, :], yh[:, 1:10, :])    # (5, 9, NB)
        m2p = jnp.concatenate(
            [m2, jnp.zeros((5, 7, NB), jnp.float32)], axis=1)   # (5, 16, NB)
        for h in range(5):
            base = pl.multiple_of((oc * 5 + h) * 16, 16)
            flat_ref[pl.ds(base, 16), :] = m2p[h]          # tile-aligned store
        return carry

    lax.fori_loop(0, 16, conv2_body, 0)

    # -------- fc1 / fc2 / fc3 as MXU matmuls (batch in the N / lane dim) --------
    flat = flat_ref[...]                                   # (1280, NB)
    a3 = jnp.maximum(
        jnp.dot(w3_ref[...], flat, preferred_element_type=jnp.float32)
        + b3_ref[...], 0.0)                                # (128, NB)
    a4 = jnp.maximum(
        jnp.dot(w4_ref[...], a3, preferred_element_type=jnp.float32)
        + b4_ref[...], 0.0)                                # (128, NB)
    logits = (jnp.dot(w5_ref[...], a4, preferred_element_type=jnp.float32)
              + b5_ref[...])                               # (128, NB)

    # masked log_softmax over the 10 real classes (rows)
    row = lax.broadcasted_iota(jnp.int32, (OUT_PAD, NB), 0)
    logits = jnp.where(row < 10, logits, -1e30)
    m = jnp.max(logits, axis=0, keepdims=True)             # (1, NB)
    lse = m + jnp.log(jnp.sum(jnp.exp(logits - m), axis=0, keepdims=True))
    o_ref[...] = logits - lse                              # (128, NB)


# ------------------------------ Pallas wrapper ------------------------------ #

def lenet_pallas(pp, x_lanes):
    """x_lanes: (G, 28, 28, NB) f32 -> (G, 128, NB) padded log-probabilities."""
    g = x_lanes.shape[0]
    return pl.pallas_call(
        _lenet_kernel,
        out_shape=jax.ShapeDtypeStruct((g, OUT_PAD, NB), jnp.float32),
        grid=(g,),
        in_specs=[
            pl.BlockSpec((None, 28, 28, NB), lambda n: (n, 0, 0, 0)),     # x block
            pl.BlockSpec(memory_space=pltpu.MemorySpace.SMEM),            # conv1 w
            pl.BlockSpec(memory_space=pltpu.MemorySpace.SMEM),            # conv1 b
            pl.BlockSpec(memory_space=pltpu.MemorySpace.SMEM),            # conv2 w
            pl.BlockSpec(memory_space=pltpu.MemorySpace.SMEM),            # conv2 b
            pl.BlockSpec((128, 1280), lambda n: (0, 0)),                  # fc1 w
            pl.BlockSpec((128, 1),    lambda n: (0, 0)),                  # fc1 b
            pl.BlockSpec((128, 128),  lambda n: (0, 0)),                  # fc2 w
            pl.BlockSpec((128, 1),    lambda n: (0, 0)),                  # fc2 b
            pl.BlockSpec((128, 128),  lambda n: (0, 0)),                  # fc3 w
            pl.BlockSpec((128, 1),    lambda n: (0, 0)),                  # fc3 b
        ],
        out_specs=pl.BlockSpec((None, OUT_PAD, NB), lambda n: (n, 0, 0)),
        scratch_shapes=[
            pltpu.VMEM((1280, NB), jnp.float32),   # flattened fc1 input
            pltpu.VMEM((78, 13, NB), jnp.float32), # pooled conv1 planes (6 x 13 rows)
        ],
        compiler_params=pltpu.CompilerParams(
            dimension_semantics=("parallel",),
            vmem_limit_bytes=32 * 1024 * 1024),
    )(x_lanes, pp["w1"], pp["b1"], pp["w2"], pp["b2"],
      pp["w3"], pp["b3"], pp["w4"], pp["b4"], pp["w5"], pp["b5"])


@jax.jit
def convnet_forward(prepped_params, x):
    """x: (B, 1, 28, 28) f32 -> (B, 10) log-probabilities."""
    b = x.shape[0]
    g = (b + NB - 1) // NB
    bpad = g * NB
    xs = x.reshape(b, 28, 28)
    xs = jnp.pad(xs, ((0, bpad - b), (0, 0), (0, 0)))
    x_lanes = xs.reshape(g, NB, 28, 28).transpose(0, 2, 3, 1)   # (G, 28, 28, NB)
    out = lenet_pallas(prepped_params, x_lanes)                  # (G, 128, NB)
    out = out[:, :10, :].transpose(0, 2, 1).reshape(bpad, 10)
    return out[:b]


# --------------------------- Parameter construction ------------------------- #

def _uniform(key, shape, bound):
    return jax.random.uniform(key, shape, jnp.float32, -bound, bound)


def init_params(key):
    """Raw parameters in PyTorch layout (Conv2d OIHW, Linear (out, in))."""
    ks = jax.random.split(key, 10)
    p = {}
    fan = 1 * 3 * 3
    p["conv1_w"] = _uniform(ks[0], (6, 1, 3, 3), 1.0 / jnp.sqrt(fan))
    p["conv1_b"] = _uniform(ks[1], (6,), 1.0 / jnp.sqrt(fan))
    fan = 6 * 3 * 3
    p["conv2_w"] = _uniform(ks[2], (16, 6, 3, 3), 1.0 / jnp.sqrt(fan))
    p["conv2_b"] = _uniform(ks[3], (16,), 1.0 / jnp.sqrt(fan))
    fan = 400
    p["fc1_w"] = _uniform(ks[4], (120, 400), 1.0 / jnp.sqrt(fan))
    p["fc1_b"] = _uniform(ks[5], (120,), 1.0 / jnp.sqrt(fan))
    fan = 120
    p["fc2_w"] = _uniform(ks[6], (84, 120), 1.0 / jnp.sqrt(fan))
    p["fc2_b"] = _uniform(ks[7], (84,), 1.0 / jnp.sqrt(fan))
    fan = 84
    p["fc3_w"] = _uniform(ks[8], (10, 84), 1.0 / jnp.sqrt(fan))
    p["fc3_b"] = _uniform(ks[9], (10,), 1.0 / jnp.sqrt(fan))
    # bn1 is declared in the PyTorch module but never used in forward() -> omitted.
    return p


def prepare_params(p):
    """One-time re-layout so no transposes/reshapes/pads run inside the forward."""
    # conv1: (6,1,3,3)[oc,0,i,j] -> flat[(i*3+j)*6 + oc]
    w1 = p["conv1_w"][:, 0].transpose(1, 2, 0).reshape(-1)            # (54,)
    b1 = p["conv1_b"]                                                 # (6,)
    # conv2: (16,6,3,3)[oc,c,i,j] -> flat[((i*3+j)*6 + c)*16 + oc]
    w2 = p["conv2_w"].transpose(2, 3, 1, 0).reshape(-1)               # (864,)
    b2 = p["conv2_b"]                                                 # (16,)
    # fc1: (120,400), PyTorch col = c*25 + h*5 + w
    #   -> (128, 1280): col' = (c*5+h)*16 + 2*w; odd / >=10 columns stay zero,
    #      matching the pair-max "wide" pooled layout written by the kernel.
    w3 = jnp.zeros((128, 16, 5, 16), jnp.float32)
    w3 = w3.at[:120, :, :, 0:10:2].set(p["fc1_w"].reshape(120, 16, 5, 5))
    w3 = w3.reshape(128, 1280)
    b3 = jnp.pad(p["fc1_b"], (0, 8)).reshape(128, 1)
    # fc2: (84,120) -> (128,128); fc3: (10,84) -> (128,128)  (rows=out, cols=in)
    w4 = jnp.pad(p["fc2_w"], ((0, 44), (0, 8)))
    b4 = jnp.pad(p["fc2_b"], (0, 44)).reshape(128, 1)
    w5 = jnp.pad(p["fc3_w"], ((0, 118), (0, 44)))
    b5 = jnp.pad(p["fc3_b"], (0, 118)).reshape(128, 1)
    return dict(w1=w1, b1=b1, w2=w2, b2=b2, w3=w3, b3=b3,
                w4=w4, b4=b4, w5=w5, b5=b5)


# ------------------------------ Pure-JAX reference --------------------------- #

def reference_forward(p, x):
    hp = lax.Precision.HIGHEST
    y = lax.conv_general_dilated(x, p["conv1_w"], (1, 1), "VALID",
                                 dimension_numbers=("NCHW", "OIHW", "NCHW"),
                                 precision=hp)
    y = jax.nn.relu(y + p["conv1_b"][None, :, None, None])
    y = lax.reduce_window(y, -jnp.inf, lax.max, (1, 1, 2, 2), (1, 1, 2, 2), "VALID")
    y = lax.conv_general_dilated(y, p["conv2_w"], (1, 1), "VALID",
                                 dimension_numbers=("NCHW", "OIHW", "NCHW"),
                                 precision=hp)
    y = jax.nn.relu(y + p["conv2_b"][None, :, None, None])
    y = lax.reduce_window(y, -jnp.inf, lax.max, (1, 1, 2, 2), (1, 1, 2, 2), "VALID")
    y = y.reshape(y.shape[0], -1)                                   # NCHW flatten
    y = jax.nn.relu(jnp.dot(y, p["fc1_w"].T, precision=hp) + p["fc1_b"])
    y = jax.nn.relu(jnp.dot(y, p["fc2_w"].T, precision=hp) + p["fc2_b"])
    y = jnp.dot(y, p["fc3_w"].T, precision=hp) + p["fc3_b"]
    return jax.nn.log_softmax(y, axis=-1)


# ---------------------------------- main ------------------------------------ #

if __name__ == "__main__":
    key = jax.random.PRNGKey(0)
    pkey, xkey = jax.random.split(key)

    params = init_params(pkey)
    prepped = prepare_params(params)        # one-time layout (outside the jitted fwd)

    # MNIST-like input: batch=2, 1 channel, 28x28 (so fc1 sees 16*5*5).
    x = jax.random.normal(xkey, (2, 1, 28, 28), dtype=jnp.float32)

    out = jax.block_until_ready(convnet_forward(prepped, x))

    assert out.shape == (2, 10), out.shape
    assert out.dtype == jnp.float32
    # log_softmax rows must sum to 1 in probability space
    assert bool(jnp.allclose(jnp.exp(out).sum(axis=1), 1.0, atol=1e-5))
    # Match the pure-JAX reference of the original PyTorch module
    ref = reference_forward(params, x)
    assert bool(jnp.allclose(out, ref, atol=2e-3, rtol=2e-3)), \
        float(jnp.max(jnp.abs(out - ref)))

    print("KERNEL_OK")
</pallas_src>

<mosaic_0001>
module attributes {stable_mosaic.version = 11 : i64} {
  func.func @_lenet_kernel(%arg0: i32, %arg1: memref<1x28x28x128xf32, #tpu.memory_space<vmem>>, %arg2: memref<54xf32, #tpu.memory_space<smem>>, %arg3: memref<6xf32, #tpu.memory_space<smem>>, %arg4: memref<864xf32, #tpu.memory_space<smem>>, %arg5: memref<16xf32, #tpu.memory_space<smem>>, %arg6: memref<128x1280xf32, #tpu.memory_space<vmem>>, %arg7: memref<128x1xf32, #tpu.memory_space<vmem>>, %arg8: memref<128x128xf32, #tpu.memory_space<vmem>>, %arg9: memref<128x1xf32, #tpu.memory_space<vmem>>, %arg10: memref<128x128xf32, #tpu.memory_space<vmem>>, %arg11: memref<128x1xf32, #tpu.memory_space<vmem>>, %arg12: memref<1x128x128xf32, #tpu.memory_space<vmem>>, %arg13: memref<1280x128xf32, #tpu.memory_space<vmem>>, %arg14: memref<78x13x128xf32, #tpu.memory_space<vmem>>) attributes {dimension_semantics = [#tpu.dimension_semantics<parallel>], iteration_bounds = array<i64: 1>, scalar_prefetch = 0 : i64, scratch_operands = 2 : i64, tpu.core_type = #tpu.core_type<tc>, window_params = [{transform_indices = @transform_0, window_bounds = array<i64: 1, 28, 28, 128>}, {transform_indices = @transform_1, window_bounds = array<i64: 54>}, {transform_indices = @transform_2, window_bounds = array<i64: 6>}, {transform_indices = @transform_3, window_bounds = array<i64: 864>}, {transform_indices = @transform_4, window_bounds = array<i64: 16>}, {pipeline_mode = #tpu.pipeline_mode<synchronous>, transform_indices = @transform_5, window_bounds = array<i64: 128, 1280>}, {pipeline_mode = #tpu.pipeline_mode<synchronous>, transform_indices = @transform_6, window_bounds = array<i64: 128, 1>}, {pipeline_mode = #tpu.pipeline_mode<synchronous>, transform_indices = @transform_7, window_bounds = array<i64: 128, 128>}, {pipeline_mode = #tpu.pipeline_mode<synchronous>, transform_indices = @transform_8, window_bounds = array<i64: 128, 1>}, {pipeline_mode = #tpu.pipeline_mode<synchronous>, transform_indices = @transform_9, window_bounds = array<i64: 128, 128>}, {pipeline_mode = #tpu.pipeline_mode<synchronous>, transform_indices = @transform_10, window_bounds = array<i64: 128, 1>}, {transform_indices = @transform_11, window_bounds = array<i64: 1, 128, 128>}]} {
    %c0 = arith.constant 0 : index
    %c0_0 = arith.constant 0 : index
    %c0_1 = arith.constant 0 : index
    %c0_2 = arith.constant 0 : index
    %0 = vector.load %arg1[%c0, %c0_0, %c0_1, %c0_2] : memref<1x28x28x128xf32, #tpu.memory_space<vmem>>, vector<1x28x28x128xf32>
    %1 = vector.shape_cast %0 : vector<1x28x28x128xf32> to vector<28x28x128xf32>
    %2 = vector.extract_strided_slice %1 {offsets = [0, 0, 0], sizes = [28, 26, 128], strides = [1, 1, 1]} : vector<28x28x128xf32> to vector<28x26x128xf32>
    %3 = vector.extract_strided_slice %1 {offsets = [0, 1, 0], sizes = [28, 26, 128], strides = [1, 1, 1]} : vector<28x28x128xf32> to vector<28x26x128xf32>
    %4 = vector.extract_strided_slice %1 {offsets = [0, 2, 0], sizes = [28, 26, 128], strides = [1, 1, 1]} : vector<28x28x128xf32> to vector<28x26x128xf32>
    %c0_i32 = arith.constant 0 : i32
    %c6_i32 = arith.constant 6 : i32
    %5 = arith.addi %c0_i32, %c6_i32 : i32
    %c1_i32 = arith.constant 1 : i32
    scf.for %arg15 = %c0_i32 to %5 step %c1_i32  : i32 {
      %70 = arith.index_cast %arg15 : i32 to index
      %71 = memref.load %arg3[%70] : memref<6xf32, #tpu.memory_space<smem>>
      %72 = vector.broadcast %71 : f32 to vector<26x26x128xf32>
      %73 = vector.extract_strided_slice %2 {offsets = [0, 0, 0], sizes = [26, 26, 128], strides = [1, 1, 1]} : vector<28x26x128xf32> to vector<26x26x128xf32>
      %c0_i32_44 = arith.constant 0 : i32
      %74 = arith.addi %c0_i32_44, %arg15 : i32
      %75 = arith.index_cast %74 : i32 to index
      %76 = memref.load %arg2[%75] : memref<54xf32, #tpu.memory_space<smem>>
      %77 = vector.broadcast %76 : f32 to vector<26x26x128xf32>
      %78 = arith.mulf %73, %77 : vector<26x26x128xf32>
      %79 = arith.addf %72, %78 : vector<26x26x128xf32>
      %80 = vector.extract_strided_slice %2 {offsets = [1, 0, 0], sizes = [26, 26, 128], strides = [1, 1, 1]} : vector<28x26x128xf32> to vector<26x26x128xf32>
      %c18_i32 = arith.constant 18 : i32
      %81 = arith.addi %c18_i32, %arg15 : i32
      %82 = arith.index_cast %81 : i32 to index
      %83 = memref.load %arg2[%82] : memref<54xf32, #tpu.memory_space<smem>>
      %84 = vector.broadcast %83 : f32 to vector<26x26x128xf32>
      %85 = arith.mulf %80, %84 : vector<26x26x128xf32>
      %86 = arith.addf %79, %85 : vector<26x26x128xf32>
      %87 = vector.extract_strided_slice %2 {offsets = [2, 0, 0], sizes = [26, 26, 128], strides = [1, 1, 1]} : vector<28x26x128xf32> to vector<26x26x128xf32>
      %c36_i32 = arith.constant 36 : i32
      %88 = arith.addi %c36_i32, %arg15 : i32
      %89 = arith.index_cast %88 : i32 to index
      %90 = memref.load %arg2[%89] : memref<54xf32, #tpu.memory_space<smem>>
      %91 = vector.broadcast %90 : f32 to vector<26x26x128xf32>
      %92 = arith.mulf %87, %91 : vector<26x26x128xf32>
      %93 = arith.addf %86, %92 : vector<26x26x128xf32>
      %94 = vector.extract_strided_slice %3 {offsets = [0, 0, 0], sizes = [26, 26, 128], strides = [1, 1, 1]} : vector<28x26x128xf32> to vector<26x26x128xf32>
      %c6_i32_45 = arith.constant 6 : i32
      %95 = arith.addi %c6_i32_45, %arg15 : i32
      %96 = arith.index_cast %95 : i32 to index
      %97 = memref.load %arg2[%96] : memref<54xf32, #tpu.memory_space<smem>>
      %98 = vector.broadcast %97 : f32 to vector<26x26x128xf32>
      %99 = arith.mulf %94, %98 : vector<26x26x128xf32>
      %100 = arith.addf %93, %99 : vector<26x26x128xf32>
      %101 = vector.extract_strided_slice %3 {offsets = [1, 0, 0], sizes = [26, 26, 128], strides = [1, 1, 1]} : vector<28x26x128xf32> to vector<26x26x128xf32>
      %c24_i32 = arith.constant 24 : i32
      %102 = arith.addi %c24_i32, %arg15 : i32
      %103 = arith.index_cast %102 : i32 to index
      %104 = memref.load %arg2[%103] : memref<54xf32, #tpu.memory_space<smem>>
      %105 = vector.broadcast %104 : f32 to vector<26x26x128xf32>
      %106 = arith.mulf %101, %105 : vector<26x26x128xf32>
      %107 = arith.addf %100, %106 : vector<26x26x128xf32>
      %108 = vector.extract_strided_slice %3 {offsets = [2, 0, 0], sizes = [26, 26, 128], strides = [1, 1, 1]} : vector<28x26x128xf32> to vector<26x26x128xf32>
      %c42_i32 = arith.constant 42 : i32
      %109 = arith.addi %c42_i32, %arg15 : i32
      %110 = arith.index_cast %109 : i32 to index
      %111 = memref.load %arg2[%110] : memref<54xf32, #tpu.memory_space<smem>>
      %112 = vector.broadcast %111 : f32 to vector<26x26x128xf32>
      %113 = arith.mulf %108, %112 : vector<26x26x128xf32>
      %114 = arith.addf %107, %113 : vector<26x26x128xf32>
      %115 = vector.extract_strided_slice %4 {offsets = [0, 0, 0], sizes = [26, 26, 128], strides = [1, 1, 1]} : vector<28x26x128xf32> to vector<26x26x128xf32>
      %c12_i32 = arith.constant 12 : i32
      %116 = arith.addi %c12_i32, %arg15 : i32
      %117 = arith.index_cast %116 : i32 to index
      %118 = memref.load %arg2[%117] : memref<54xf32, #tpu.memory_space<smem>>
      %119 = vector.broadcast %118 : f32 to vector<26x26x128xf32>
      %120 = arith.mulf %115, %119 : vector<26x26x128xf32>
      %121 = arith.addf %114, %120 : vector<26x26x128xf32>
      %122 = vector.extract_strided_slice %4 {offsets = [1, 0, 0], sizes = [26, 26, 128], strides = [1, 1, 1]} : vector<28x26x128xf32> to vector<26x26x128xf32>
      %c30_i32 = arith.constant 30 : i32
      %123 = arith.addi %c30_i32, %arg15 : i32
      %124 = arith.index_cast %123 : i32 to index
      %125 = memref.load %arg2[%124] : memref<54xf32, #tpu.memory_space<smem>>
      %126 = vector.broadcast %125 : f32 to vector<26x26x128xf32>
      %127 = arith.mulf %122, %126 : vector<26x26x128xf32>
      %128 = arith.addf %121, %127 : vector<26x26x128xf32>
      %129 = vector.extract_strided_slice %4 {offsets = [2, 0, 0], sizes = [26, 26, 128], strides = [1, 1, 1]} : vector<28x26x128xf32> to vector<26x26x128xf32>
      %c48_i32 = arith.constant 48 : i32
      %130 = arith.addi %c48_i32, %arg15 : i32
      %131 = arith.index_cast %130 : i32 to index
      %132 = memref.load %arg2[%131] : memref<54xf32, #tpu.memory_space<smem>>
      %133 = vector.broadcast %132 : f32 to vector<26x26x128xf32>
      %134 = arith.mulf %129, %133 : vector<26x26x128xf32>
      %135 = arith.addf %128, %134 : vector<26x26x128xf32>
      %cst_46 = arith.constant 0.000000e+00 : f32
      %136 = vector.broadcast %cst_46 : f32 to vector<26x26x128xf32>
      %137 = arith.maximumf %135, %136 : vector<26x26x128xf32>
      %138 = vector.shape_cast %137 : vector<26x26x128xf32> to vector<13x2x26x128xf32>
      %139 = vector.extract_strided_slice %138 {offsets = [0, 0, 0, 0], sizes = [13, 1, 26, 128], strides = [1, 1, 1, 1]} : vector<13x2x26x128xf32> to vector<13x1x26x128xf32>
      %140 = vector.shape_cast %139 : vector<13x1x26x128xf32> to vector<13x26x128xf32>
      %141 = vector.extract_strided_slice %138 {offsets = [0, 1, 0, 0], sizes = [13, 1, 26, 128], strides = [1, 1, 1, 1]} : vector<13x2x26x128xf32> to vector<13x1x26x128xf32>
      %142 = vector.shape_cast %141 : vector<13x1x26x128xf32> to vector<13x26x128xf32>
      %143 = arith.maximumf %140, %142 : vector<13x26x128xf32>
      %144 = vector.extract_strided_slice %143 {offsets = [0, 0, 0], sizes = [13, 25, 128], strides = [1, 1, 1]} : vector<13x26x128xf32> to vector<13x25x128xf32>
      %145 = vector.extract_strided_slice %143 {offsets = [0, 1, 0], sizes = [13, 25, 128], strides = [1, 1, 1]} : vector<13x26x128xf32> to vector<13x25x128xf32>
      %146 = arith.maximumf %144, %145 : vector<13x25x128xf32>
      %147 = vector.extract_strided_slice %146 {offsets = [0, 0, 0], sizes = [13, 1, 128], strides = [1, 1, 1]} : vector<13x25x128xf32> to vector<13x1x128xf32>
      %148 = vector.extract_strided_slice %146 {offsets = [0, 2, 0], sizes = [13, 1, 128], strides = [1, 1, 1]} : vector<13x25x128xf32> to vector<13x1x128xf32>
      %149 = vector.extract_strided_slice %146 {offsets = [0, 4, 0], sizes = [13, 1, 128], strides = [1, 1, 1]} : vector<13x25x128xf32> to vector<13x1x128xf32>
      %150 = vector.extract_strided_slice %146 {offsets = [0, 6, 0], sizes = [13, 1, 128], strides = [1, 1, 1]} : vector<13x25x128xf32> to vector<13x1x128xf32>
      %151 = vector.extract_strided_slice %146 {offsets = [0, 8, 0], sizes = [13, 1, 128], strides = [1, 1, 1]} : vector<13x25x128xf32> to vector<13x1x128xf32>
      %152 = vector.extract_strided_slice %146 {offsets = [0, 10, 0], sizes = [13, 1, 128], strides = [1, 1, 1]} : vector<13x25x128xf32> to vector<13x1x128xf32>
      %153 = vector.extract_strided_slice %146 {offsets = [0, 12, 0], sizes = [13, 1, 128], strides = [1, 1, 1]} : vector<13x25x128xf32> to vector<13x1x128xf32>
      %154 = vector.extract_strided_slice %146 {offsets = [0, 14, 0], sizes = [13, 1, 128], strides = [1, 1, 1]} : vector<13x25x128xf32> to vector<13x1x128xf32>
      %155 = vector.extract_strided_slice %146 {offsets = [0, 16, 0], sizes = [13, 1, 128], strides = [1, 1, 1]} : vector<13x25x128xf32> to vector<13x1x128xf32>
      %156 = vector.extract_strided_slice %146 {offsets = [0, 18, 0], sizes = [13, 1, 128], strides = [1, 1, 1]} : vector<13x25x128xf32> to vector<13x1x128xf32>
      %157 = vector.extract_strided_slice %146 {offsets = [0, 20, 0], sizes = [13, 1, 128], strides = [1, 1, 1]} : vector<13x25x128xf32> to vector<13x1x128xf32>
      %158 = vector.extract_strided_slice %146 {offsets = [0, 22, 0], sizes = [13, 1, 128], strides = [1, 1, 1]} : vector<13x25x128xf32> to vector<13x1x128xf32>
      %159 = vector.extract_strided_slice %146 {offsets = [0, 24, 0], sizes = [13, 1, 128], strides = [1, 1, 1]} : vector<13x25x128xf32> to vector<13x1x128xf32>
      %160 = tpu.concatenate %147, %148, %149, %150, %151, %152, %153, %154, %155, %156, %157, %158, %159 in 1 : vector<13x1x128xf32>, vector<13x1x128xf32>, vector<13x1x128xf32>, vector<13x1x128xf32>, vector<13x1x128xf32>, vector<13x1x128xf32>, vector<13x1x128xf32>, vector<13x1x128xf32>, vector<13x1x128xf32>, vector<13x1x128xf32>, vector<13x1x128xf32>, vector<13x1x128xf32>, vector<13x1x128xf32> -> vector<13x13x128xf32>
      %c13_i32 = arith.constant 13 : i32
      %161 = arith.muli %arg15, %c13_i32 : i32
      %162 = arith.index_cast %161 : i32 to index
      %c0_47 = arith.constant 0 : index
      %c0_48 = arith.constant 0 : index
      %163 = vector.load %arg14[%162, %c0_47, %c0_48] : memref<78x13x128xf32, #tpu.memory_space<vmem>>, vector<13x13x128xf32>
      tpu.vector_store %arg14[%162, %c0_47, %c0_48], %160 {strides = array<i32>} : memref<78x13x128xf32, #tpu.memory_space<vmem>>, vector<13x13x128xf32>,
    }
    %c6_i32_3 = arith.constant 6 : i32
    %c0_4 = arith.constant 0 : index
    %c0_5 = arith.constant 0 : index
    %c0_6 = arith.constant 0 : index
    %6 = vector.load %arg14[%c0_4, %c0_5, %c0_6] : memref<78x13x128xf32, #tpu.memory_space<vmem>>, vector<13x13x128xf32>
    %7 = vector.extract_strided_slice %6 {offsets = [0, 0, 0], sizes = [13, 11, 128], strides = [1, 1, 1]} : vector<13x13x128xf32> to vector<13x11x128xf32>
    %8 = vector.extract_strided_slice %6 {offsets = [0, 1, 0], sizes = [13, 11, 128], strides = [1, 1, 1]} : vector<13x13x128xf32> to vector<13x11x128xf32>
    %9 = vector.extract_strided_slice %6 {offsets = [0, 2, 0], sizes = [13, 11, 128], strides = [1, 1, 1]} : vector<13x13x128xf32> to vector<13x11x128xf32>
    %c13 = arith.constant 13 : index
    %c0_7 = arith.constant 0 : index
    %c0_8 = arith.constant 0 : index
    %10 = vector.load %arg14[%c13, %c0_7, %c0_8] : memref<78x13x128xf32, #tpu.memory_space<vmem>>, vector<13x13x128xf32>
    %11 = vector.extract_strided_slice %10 {offsets = [0, 0, 0], sizes = [13, 11, 128], strides = [1, 1, 1]} : vector<13x13x128xf32> to vector<13x11x128xf32>
    %12 = vector.extract_strided_slice %10 {offsets = [0, 1, 0], sizes = [13, 11, 128], strides = [1, 1, 1]} : vector<13x13x128xf32> to vector<13x11x128xf32>
    %13 = vector.extract_strided_slice %10 {offsets = [0, 2, 0], sizes = [13, 11, 128], strides = [1, 1, 1]} : vector<13x13x128xf32> to vector<13x11x128xf32>
    %c26 = arith.constant 26 : index
    %c0_9 = arith.constant 0 : index
    %c0_10 = arith.constant 0 : index
    %14 = vector.load %arg14[%c26, %c0_9, %c0_10] : memref<78x13x128xf32, #tpu.memory_space<vmem>>, vector<13x13x128xf32>
    %15 = vector.extract_strided_slice %14 {offsets = [0, 0, 0], sizes = [13, 11, 128], strides = [1, 1, 1]} : vector<13x13x128xf32> to vector<13x11x128xf32>
    %16 = vector.extract_strided_slice %14 {offsets = [0, 1, 0], sizes = [13, 11, 128], strides = [1, 1, 1]} : vector<13x13x128xf32> to vector<13x11x128xf32>
    %17 = vector.extract_strided_slice %14 {offsets = [0, 2, 0], sizes = [13, 11, 128], strides = [1, 1, 1]} : vector<13x13x128xf32> to vector<13x11x128xf32>
    %c39 = arith.constant 39 : index
    %c0_11 = arith.constant 0 : index
    %c0_12 = arith.constant 0 : index
    %18 = vector.load %arg14[%c39, %c0_11, %c0_12] : memref<78x13x128xf32, #tpu.memory_space<vmem>>, vector<13x13x128xf32>
    %19 = vector.extract_strided_slice %18 {offsets = [0, 0, 0], sizes = [13, 11, 128], strides = [1, 1, 1]} : vector<13x13x128xf32> to vector<13x11x128xf32>
    %20 = vector.extract_strided_slice %18 {offsets = [0, 1, 0], sizes = [13, 11, 128], strides = [1, 1, 1]} : vector<13x13x128xf32> to vector<13x11x128xf32>
    %21 = vector.extract_strided_slice %18 {offsets = [0, 2, 0], sizes = [13, 11, 128], strides = [1, 1, 1]} : vector<13x13x128xf32> to vector<13x11x128xf32>
    %c52 = arith.constant 52 : index
    %c0_13 = arith.constant 0 : index
    %c0_14 = arith.constant 0 : index
    %22 = vector.load %arg14[%c52, %c0_13, %c0_14] : memref<78x13x128xf32, #tpu.memory_space<vmem>>, vector<13x13x128xf32>
    %23 = vector.extract_strided_slice %22 {offsets = [0, 0, 0], sizes = [13, 11, 128], strides = [1, 1, 1]} : vector<13x13x128xf32> to vector<13x11x128xf32>
    %24 = vector.extract_strided_slice %22 {offsets = [0, 1, 0], sizes = [13, 11, 128], strides = [1, 1, 1]} : vector<13x13x128xf32> to vector<13x11x128xf32>
    %25 = vector.extract_strided_slice %22 {offsets = [0, 2, 0], sizes = [13, 11, 128], strides = [1, 1, 1]} : vector<13x13x128xf32> to vector<13x11x128xf32>
    %c65 = arith.constant 65 : index
    %c0_15 = arith.constant 0 : index
    %c0_16 = arith.constant 0 : index
    %26 = vector.load %arg14[%c65, %c0_15, %c0_16] : memref<78x13x128xf32, #tpu.memory_space<vmem>>, vector<13x13x128xf32>
    %27 = vector.extract_strided_slice %26 {offsets = [0, 0, 0], sizes = [13, 11, 128], strides = [1, 1, 1]} : vector<13x13x128xf32> to vector<13x11x128xf32>
    %28 = vector.extract_strided_slice %26 {offsets = [0, 1, 0], sizes = [13, 11, 128], strides = [1, 1, 1]} : vector<13x13x128xf32> to vector<13x11x128xf32>
    %29 = vector.extract_strided_slice %26 {offsets = [0, 2, 0], sizes = [13, 11, 128], strides = [1, 1, 1]} : vector<13x13x128xf32> to vector<13x11x128xf32>
    %c0_i32_17 = arith.constant 0 : i32
    %c16_i32 = arith.constant 16 : i32
    %30 = arith.addi %c0_i32_17, %c16_i32 : i32
    %c1_i32_18 = arith.constant 1 : i32
    scf.for %arg15 = %c0_i32_17 to %30 step %c1_i32_18  : i32 {
      %70 = arith.index_cast %arg15 : i32 to index
      %71 = memref.load %arg5[%70] : memref<16xf32, #tpu.memory_space<smem>>
      %72 = vector.broadcast %71 : f32 to vector<11x11x128xf32>
      %73 = vector.extract_strided_slice %7 {offsets = [0, 0, 0], sizes = [11, 11, 128], strides = [1, 1, 1]} : vector<13x11x128xf32> to vector<11x11x128xf32>
      %c0_i32_44 = arith.constant 0 : i32
      %74 = arith.addi %c0_i32_44, %arg15 : i32
      %75 = arith.index_cast %74 : i32 to index
      %76 = memref.load %arg4[%75] : memref<864xf32, #tpu.memory_space<smem>>
      %77 = vector.broadcast %76 : f32 to vector<11x11x128xf32>
      %78 = arith.mulf %73, %77 : vector<11x11x128xf32>
      %79 = arith.addf %72, %78 : vector<11x11x128xf32>
      %80 = vector.extract_strided_slice %7 {offsets = [1, 0, 0], sizes = [11, 11, 128], strides = [1, 1, 1]} : vector<13x11x128xf32> to vector<11x11x128xf32>
      %c288_i32 = arith.constant 288 : i32
      %81 = arith.addi %c288_i32, %arg15 : i32
      %82 = arith.index_cast %81 : i32 to index
      %83 = memref.load %arg4[%82] : memref<864xf32, #tpu.memory_space<smem>>
      %84 = vector.broadcast %83 : f32 to vector<11x11x128xf32>
      %85 = arith.mulf %80, %84 : vector<11x11x128xf32>
      %86 = arith.addf %79, %85 : vector<11x11x128xf32>
      %87 = vector.extract_strided_slice %7 {offsets = [2, 0, 0], sizes = [11, 11, 128], strides = [1, 1, 1]} : vector<13x11x128xf32> to vector<11x11x128xf32>
      %c576_i32 = arith.constant 576 : i32
      %88 = arith.addi %c576_i32, %arg15 : i32
      %89 = arith.index_cast %88 : i32 to index
      %90 = memref.load %arg4[%89] : memref<864xf32, #tpu.memory_space<smem>>
      %91 = vector.broadcast %90 : f32 to vector<11x11x128xf32>
      %92 = arith.mulf %87, %91 : vector<11x11x128xf32>
      %93 = arith.addf %86, %92 : vector<11x11x128xf32>
      %94 = vector.extract_strided_slice %8 {offsets = [0, 0, 0], sizes = [11, 11, 128], strides = [1, 1, 1]} : vector<13x11x128xf32> to vector<11x11x128xf32>
      %c96_i32 = arith.constant 96 : i32
      %95 = arith.addi %c96_i32, %arg15 : i32
      %96 = arith.index_cast %95 : i32 to index
      %97 = memref.load %arg4[%96] : memref<864xf32, #tpu.memory_space<smem>>
      %98 = vector.broadcast %97 : f32 to vector<11x11x128xf32>
      %99 = arith.mulf %94, %98 : vector<11x11x128xf32>
      %100 = arith.addf %93, %99 : vector<11x11x128xf32>
      %101 = vector.extract_strided_slice %8 {offsets = [1, 0, 0], sizes = [11, 11, 128], strides = [1, 1, 1]} : vector<13x11x128xf32> to vector<11x11x128xf32>
      %c384_i32 = arith.constant 384 : i32
      %102 = arith.addi %c384_i32, %arg15 : i32
      %103 = arith.index_cast %102 : i32 to index
      %104 = memref.load %arg4[%103] : memref<864xf32, #tpu.memory_space<smem>>
      %105 = vector.broadcast %104 : f32 to vector<11x11x128xf32>
      %106 = arith.mulf %101, %105 : vector<11x11x128xf32>
      %107 = arith.addf %100, %106 : vector<11x11x128xf32>
      %108 = vector.extract_strided_slice %8 {offsets = [2, 0, 0], sizes = [11, 11, 128], strides = [1, 1, 1]} : vector<13x11x128xf32> to vector<11x11x128xf32>
      %c672_i32 = arith.constant 672 : i32
      %109 = arith.addi %c672_i32, %arg15 : i32
      %110 = arith.index_cast %109 : i32 to index
      %111 = memref.load %arg4[%110] : memref<864xf32, #tpu.memory_space<smem>>
      %112 = vector.broadcast %111 : f32 to vector<11x11x128xf32>
      %113 = arith.mulf %108, %112 : vector<11x11x128xf32>
      %114 = arith.addf %107, %113 : vector<11x11x128xf32>
      %115 = vector.extract_strided_slice %9 {offsets = [0, 0, 0], sizes = [11, 11, 128], strides = [1, 1, 1]} : vector<13x11x128xf32> to vector<11x11x128xf32>
      %c192_i32 = arith.constant 192 : i32
      %116 = arith.addi %c192_i32, %arg15 : i32
      %117 = arith.index_cast %116 : i32 to index
      %118 = memref.load %arg4[%117] : memref<864xf32, #tpu.memory_space<smem>>
      %119 = vector.broadcast %118 : f32 to vector<11x11x128xf32>
      %120 = arith.mulf %115, %119 : vector<11x11x128xf32>
      %121 = arith.addf %114, %120 : vector<11x11x128xf32>
      %122 = vector.extract_strided_slice %9 {offsets = [1, 0, 0], sizes = [11, 11, 128], strides = [1, 1, 1]} : vector<13x11x128xf32> to vector<11x11x128xf32>
      %c480_i32 = arith.constant 480 : i32
      %123 = arith.addi %c480_i32, %arg15 : i32
      %124 = arith.index_cast %123 : i32 to index
      %125 = memref.load %arg4[%124] : memref<864xf32, #tpu.memory_space<smem>>
      %126 = vector.broadcast %125 : f32 to vector<11x11x128xf32>
      %127 = arith.mulf %122, %126 : vector<11x11x128xf32>
      %128 = arith.addf %121, %127 : vector<11x11x128xf32>
      %129 = vector.extract_strided_slice %9 {offsets = [2, 0, 0], sizes = [11, 11, 128], strides = [1, 1, 1]} : vector<13x11x128xf32> to vector<11x11x128xf32>
      %c768_i32 = arith.constant 768 : i32
      %130 = arith.addi %c768_i32, %arg15 : i32
      %131 = arith.index_cast %130 : i32 to index
      %132 = memref.load %arg4[%131] : memref<864xf32, #tpu.memory_space<smem>>
      %133 = vector.broadcast %132 : f32 to vector<11x11x128xf32>
      %134 = arith.mulf %129, %133 : vector<11x11x128xf32>
      %135 = arith.addf %128, %134 : vector<11x11x128xf32>
      %136 = vector.extract_strided_slice %11 {offsets = [0, 0, 0], sizes = [11, 11, 128], strides = [1, 1, 1]} : vector<13x11x128xf32> to vector<11x11x128xf32>
      %c16_i32_45 = arith.constant 16 : i32
      %137 = arith.addi %c16_i32_45, %arg15 : i32
      %138 = arith.index_cast %137 : i32 to index
      %139 = memref.load %arg4[%138] : memref<864xf32, #tpu.memory_space<smem>>
      %140 = vector.broadcast %139 : f32 to vector<11x11x128xf32>
      %141 = arith.mulf %136, %140 : vector<11x11x128xf32>
      %142 = arith.addf %135, %141 : vector<11x11x128xf32>
      %143 = vector.extract_strided_slice %11 {offsets = [1, 0, 0], sizes = [11, 11, 128], strides = [1, 1, 1]} : vector<13x11x128xf32> to vector<11x11x128xf32>
      %c304_i32 = arith.constant 304 : i32
      %144 = arith.addi %c304_i32, %arg15 : i32
      %145 = arith.index_cast %144 : i32 to index
      %146 = memref.load %arg4[%145] : memref<864xf32, #tpu.memory_space<smem>>
      %147 = vector.broadcast %146 : f32 to vector<11x11x128xf32>
      %148 = arith.mulf %143, %147 : vector<11x11x128xf32>
      %149 = arith.addf %142, %148 : vector<11x11x128xf32>
      %150 = vector.extract_strided_slice %11 {offsets = [2, 0, 0], sizes = [11, 11, 128], strides = [1, 1, 1]} : vector<13x11x128xf32> to vector<11x11x128xf32>
      %c592_i32 = arith.constant 592 : i32
      %151 = arith.addi %c592_i32, %arg15 : i32
      %152 = arith.index_cast %151 : i32 to index
      %153 = memref.load %arg4[%152] : memref<864xf32, #tpu.memory_space<smem>>
      %154 = vector.broadcast %153 : f32 to vector<11x11x128xf32>
      %155 = arith.mulf %150, %154 : vector<11x11x128xf32>
      %156 = arith.addf %149, %155 : vector<11x11x128xf32>
      %157 = vector.extract_strided_slice %12 {offsets = [0, 0, 0], sizes = [11, 11, 128], strides = [1, 1, 1]} : vector<13x11x128xf32> to vector<11x11x128xf32>
      %c112_i32 = arith.constant 112 : i32
      %158 = arith.addi %c112_i32, %arg15 : i32
      %159 = arith.index_cast %158 : i32 to index
      %160 = memref.load %arg4[%159] : memref<864xf32, #tpu.memory_space<smem>>
      %161 = vector.broadcast %160 : f32 to vector<11x11x128xf32>
      %162 = arith.mulf %157, %161 : vector<11x11x128xf32>
      %163 = arith.addf %156, %162 : vector<11x11x128xf32>
      %164 = vector.extract_strided_slice %12 {offsets = [1, 0, 0], sizes = [11, 11, 128], strides = [1, 1, 1]} : vector<13x11x128xf32> to vector<11x11x128xf32>
      %c400_i32 = arith.constant 400 : i32
      %165 = arith.addi %c400_i32, %arg15 : i32
      %166 = arith.index_cast %165 : i32 to index
      %167 = memref.load %arg4[%166] : memref<864xf32, #tpu.memory_space<smem>>
      %168 = vector.broadcast %167 : f32 to vector<11x11x128xf32>
      %169 = arith.mulf %164, %168 : vector<11x11x128xf32>
      %170 = arith.addf %163, %169 : vector<11x11x128xf32>
      %171 = vector.extract_strided_slice %12 {offsets = [2, 0, 0], sizes = [11, 11, 128], strides = [1, 1, 1]} : vector<13x11x128xf32> to vector<11x11x128xf32>
      %c688_i32 = arith.constant 688 : i32
      %172 = arith.addi %c688_i32, %arg15 : i32
      %173 = arith.index_cast %172 : i32 to index
      %174 = memref.load %arg4[%173] : memref<864xf32, #tpu.memory_space<smem>>
      %175 = vector.broadcast %174 : f32 to vector<11x11x128xf32>
      %176 = arith.mulf %171, %175 : vector<11x11x128xf32>
      %177 = arith.addf %170, %176 : vector<11x11x128xf32>
      %178 = vector.extract_strided_slice %13 {offsets = [0, 0, 0], sizes = [11, 11, 128], strides = [1, 1, 1]} : vector<13x11x128xf32> to vector<11x11x128xf32>
      %c208_i32 = arith.constant 208 : i32
      %179 = arith.addi %c208_i32, %arg15 : i32
      %180 = arith.index_cast %179 : i32 to index
      %181 = memref.load %arg4[%180] : memref<864xf32, #tpu.memory_space<smem>>
      %182 = vector.broadcast %181 : f32 to vector<11x11x128xf32>
      %183 = arith.mulf %178, %182 : vector<11x11x128xf32>
      %184 = arith.addf %177, %183 : vector<11x11x128xf32>
      %185 = vector.extract_strided_slice %13 {offsets = [1, 0, 0], sizes = [11, 11, 128], strides = [1, 1, 1]} : vector<13x11x128xf32> to vector<11x11x128xf32>
      %c496_i32 = arith.constant 496 : i32
      %186 = arith.addi %c496_i32, %arg15 : i32
      %187 = arith.index_cast %186 : i32 to index
      %188 = memref.load %arg4[%187] : memref<864xf32, #tpu.memory_space<smem>>
      %189 = vector.broadcast %188 : f32 to vector<11x11x128xf32>
      %190 = arith.mulf %185, %189 : vector<11x11x128xf32>
      %191 = arith.addf %184, %190 : vector<11x11x128xf32>
      %192 = vector.extract_strided_slice %13 {offsets = [2, 0, 0], sizes = [11, 11, 128], strides = [1, 1, 1]} : vector<13x11x128xf32> to vector<11x11x128xf32>
      %c784_i32 = arith.constant 784 : i32
      %193 = arith.addi %c784_i32, %arg15 : i32
      %194 = arith.index_cast %193 : i32 to index
      %195 = memref.load %arg4[%194] : memref<864xf32, #tpu.memory_space<smem>>
      %196 = vector.broadcast %195 : f32 to vector<11x11x128xf32>
      %197 = arith.mulf %192, %196 : vector<11x11x128xf32>
      %198 = arith.addf %191, %197 : vector<11x11x128xf32>
      %199 = vector.extract_strided_slice %15 {offsets = [0, 0, 0], sizes = [11, 11, 128], strides = [1, 1, 1]} : vector<13x11x128xf32> to vector<11x11x128xf32>
      %c32_i32 = arith.constant 32 : i32
      %200 = arith.addi %c32_i32, %arg15 : i32
      %201 = arith.index_cast %200 : i32 to index
      %202 = memref.load %arg4[%201] : memref<864xf32, #tpu.memory_space<smem>>
      %203 = vector.broadcast %202 : f32 to vector<11x11x128xf32>
      %204 = arith.mulf %199, %203 : vector<11x11x128xf32>
      %205 = arith.addf %198, %204 : vector<11x11x128xf32>
      %206 = vector.extract_strided_slice %15 {offsets = [1, 0, 0], sizes = [11, 11, 128], strides = [1, 1, 1]} : vector<13x11x128xf32> to vector<11x11x128xf32>
      %c320_i32 = arith.constant 320 : i32
      %207 = arith.addi %c320_i32, %arg15 : i32
      %208 = arith.index_cast %207 : i32 to index
      %209 = memref.load %arg4[%208] : memref<864xf32, #tpu.memory_space<smem>>
      %210 = vector.broadcast %209 : f32 to vector<11x11x128xf32>
      %211 = arith.mulf %206, %210 : vector<11x11x128xf32>
      %212 = arith.addf %205, %211 : vector<11x11x128xf32>
      %213 = vector.extract_strided_slice %15 {offsets = [2, 0, 0], sizes = [11, 11, 128], strides = [1, 1, 1]} : vector<13x11x128xf32> to vector<11x11x128xf32>
      %c608_i32 = arith.constant 608 : i32
      %214 = arith.addi %c608_i32, %arg15 : i32
      %215 = arith.index_cast %214 : i32 to index
      %216 = memref.load %arg4[%215] : memref<864xf32, #tpu.memory_space<smem>>
      %217 = vector.broadcast %216 : f32 to vector<11x11x128xf32>
      %218 = arith.mulf %213, %217 : vector<11x11x128xf32>
      %219 = arith.addf %212, %218 : vector<11x11x128xf32>
      %220 = vector.extract_strided_slice %16 {offsets = [0, 0, 0], sizes = [11, 11, 128], strides = [1, 1, 1]} : vector<13x11x128xf32> to vector<11x11x128xf32>
      %c128_i32 = arith.constant 128 : i32
      %221 = arith.addi %c128_i32, %arg15 : i32
      %222 = arith.index_cast %221 : i32 to index
      %223 = memref.load %arg4[%222] : memref<864xf32, #tpu.memory_space<smem>>
      %224 = vector.broadcast %223 : f32 to vector<11x11x128xf32>
      %225 = arith.mulf %220, %224 : vector<11x11x128xf32>
      %226 = arith.addf %219, %225 : vector<11x11x128xf32>
      %227 = vector.extract_strided_slice %16 {offsets = [1, 0, 0], sizes = [11, 11, 128], strides = [1, 1, 1]} : vector<13x11x128xf32> to vector<11x11x128xf32>
      %c416_i32 = arith.constant 416 : i32
      %228 = arith.addi %c416_i32, %arg15 : i32
      %229 = arith.index_cast %228 : i32 to index
      %230 = memref.load %arg4[%229] : memref<864xf32, #tpu.memory_space<smem>>
      %231 = vector.broadcast %230 : f32 to vector<11x11x128xf32>
      %232 = arith.mulf %227, %231 : vector<11x11x128xf32>
      %233 = arith.addf %226, %232 : vector<11x11x128xf32>
      %234 = vector.extract_strided_slice %16 {offsets = [2, 0, 0], sizes = [11, 11, 128], strides = [1, 1, 1]} : vector<13x11x128xf32> to vector<11x11x128xf32>
      %c704_i32 = arith.constant 704 : i32
      %235 = arith.addi %c704_i32, %arg15 : i32
      %236 = arith.index_cast %235 : i32 to index
      %237 = memref.load %arg4[%236] : memref<864xf32, #tpu.memory_space<smem>>
      %238 = vector.broadcast %237 : f32 to vector<11x11x128xf32>
      %239 = arith.mulf %234, %238 : vector<11x11x128xf32>
      %240 = arith.addf %233, %239 : vector<11x11x128xf32>
      %241 = vector.extract_strided_slice %17 {offsets = [0, 0, 0], sizes = [11, 11, 128], strides = [1, 1, 1]} : vector<13x11x128xf32> to vector<11x11x128xf32>
      %c224_i32 = arith.constant 224 : i32
      %242 = arith.addi %c224_i32, %arg15 : i32
      %243 = arith.index_cast %242 : i32 to index
      %244 = memref.load %arg4[%243] : memref<864xf32, #tpu.memory_space<smem>>
      %245 = vector.broadcast %244 : f32 to vector<11x11x128xf32>
      %246 = arith.mulf %241, %245 : vector<11x11x128xf32>
      %247 = arith.addf %240, %246 : vector<11x11x128xf32>
      %248 = vector.extract_strided_slice %17 {offsets = [1, 0, 0], sizes = [11, 11, 128], strides = [1, 1, 1]} : vector<13x11x128xf32> to vector<11x11x128xf32>
      %c512_i32 = arith.constant 512 : i32
      %249 = arith.addi %c512_i32, %arg15 : i32
      %250 = arith.index_cast %249 : i32 to index
      %251 = memref.load %arg4[%250] : memref<864xf32, #tpu.memory_space<smem>>
      %252 = vector.broadcast %251 : f32 to vector<11x11x128xf32>
      %253 = arith.mulf %248, %252 : vector<11x11x128xf32>
      %254 = arith.addf %247, %253 : vector<11x11x128xf32>
      %255 = vector.extract_strided_slice %17 {offsets = [2, 0, 0], sizes = [11, 11, 128], strides = [1, 1, 1]} : vector<13x11x128xf32> to vector<11x11x128xf32>
      %c800_i32 = arith.constant 800 : i32
      %256 = arith.addi %c800_i32, %arg15 : i32
      %257 = arith.index_cast %256 : i32 to index
      %258 = memref.load %arg4[%257] : memref<864xf32, #tpu.memory_space<smem>>
      %259 = vector.broadcast %258 : f32 to vector<11x11x128xf32>
      %260 = arith.mulf %255, %259 : vector<11x11x128xf32>
      %261 = arith.addf %254, %260 : vector<11x11x128xf32>
      %262 = vector.extract_strided_slice %19 {offsets = [0, 0, 0], sizes = [11, 11, 128], strides = [1, 1, 1]} : vector<13x11x128xf32> to vector<11x11x128xf32>
      %c48_i32 = arith.constant 48 : i32
      %263 = arith.addi %c48_i32, %arg15 : i32
      %264 = arith.index_cast %263 : i32 to index
      %265 = memref.load %arg4[%264] : memref<864xf32, #tpu.memory_space<smem>>
      %266 = vector.broadcast %265 : f32 to vector<11x11x128xf32>
      %267 = arith.mulf %262, %266 : vector<11x11x128xf32>
      %268 = arith.addf %261, %267 : vector<11x11x128xf32>
      %269 = vector.extract_strided_slice %19 {offsets = [1, 0, 0], sizes = [11, 11, 128], strides = [1, 1, 1]} : vector<13x11x128xf32> to vector<11x11x128xf32>
      %c336_i32 = arith.constant 336 : i32
      %270 = arith.addi %c336_i32, %arg15 : i32
      %271 = arith.index_cast %270 : i32 to index
      %272 = memref.load %arg4[%271] : memref<864xf32, #tpu.memory_space<smem>>
      %273 = vector.broadcast %272 : f32 to vector<11x11x128xf32>
      %274 = arith.mulf %269, %273 : vector<11x11x128xf32>
      %275 = arith.addf %268, %274 : vector<11x11x128xf32>
      %276 = vector.extract_strided_slice %19 {offsets = [2, 0, 0], sizes = [11, 11, 128], strides = [1, 1, 1]} : vector<13x11x128xf32> to vector<11x11x128xf32>
      %c624_i32 = arith.constant 624 : i32
      %277 = arith.addi %c624_i32, %arg15 : i32
      %278 = arith.index_cast %277 : i32 to index
      %279 = memref.load %arg4[%278] : memref<864xf32, #tpu.memory_space<smem>>
      %280 = vector.broadcast %279 : f32 to vector<11x11x128xf32>
      %281 = arith.mulf %276, %280 : vector<11x11x128xf32>
      %282 = arith.addf %275, %281 : vector<11x11x128xf32>
      %283 = vector.extract_strided_slice %20 {offsets = [0, 0, 0], sizes = [11, 11, 128], strides = [1, 1, 1]} : vector<13x11x128xf32> to vector<11x11x128xf32>
      %c144_i32 = arith.constant 144 : i32
      %284 = arith.addi %c144_i32, %arg15 : i32
      %285 = arith.index_cast %284 : i32 to index
      %286 = memref.load %arg4[%285] : memref<864xf32, #tpu.memory_space<smem>>
      %287 = vector.broadcast %286 : f32 to vector<11x11x128xf32>
      %288 = arith.mulf %283, %287 : vector<11x11x128xf32>
      %289 = arith.addf %282, %288 : vector<11x11x128xf32>
      %290 = vector.extract_strided_slice %20 {offsets = [1, 0, 0], sizes = [11, 11, 128], strides = [1, 1, 1]} : vector<13x11x128xf32> to vector<11x11x128xf32>
      %c432_i32 = arith.constant 432 : i32
      %291 = arith.addi %c432_i32, %arg15 : i32
      %292 = arith.index_cast %291 : i32 to index
      %293 = memref.load %arg4[%292] : memref<864xf32, #tpu.memory_space<smem>>
      %294 = vector.broadcast %293 : f32 to vector<11x11x128xf32>
      %295 = arith.mulf %290, %294 : vector<11x11x128xf32>
      %296 = arith.addf %289, %295 : vector<11x11x128xf32>
      %297 = vector.extract_strided_slice %20 {offsets = [2, 0, 0], sizes = [11, 11, 128], strides = [1, 1, 1]} : vector<13x11x128xf32> to vector<11x11x128xf32>
      %c720_i32 = arith.constant 720 : i32
      %298 = arith.addi %c720_i32, %arg15 : i32
      %299 = arith.index_cast %298 : i32 to index
      %300 = memref.load %arg4[%299] : memref<864xf32, #tpu.memory_space<smem>>
      %301 = vector.broadcast %300 : f32 to vector<11x11x128xf32>
      %302 = arith.mulf %297, %301 : vector<11x11x128xf32>
      %303 = arith.addf %296, %302 : vector<11x11x128xf32>
      %304 = vector.extract_strided_slice %21 {offsets = [0, 0, 0], sizes = [11, 11, 128], strides = [1, 1, 1]} : vector<13x11x128xf32> to vector<11x11x128xf32>
      %c240_i32 = arith.constant 240 : i32
      %305 = arith.addi %c240_i32, %arg15 : i32
      %306 = arith.index_cast %305 : i32 to index
      %307 = memref.load %arg4[%306] : memref<864xf32, #tpu.memory_space<smem>>
      %308 = vector.broadcast %307 : f32 to vector<11x11x128xf32>
      %309 = arith.mulf %304, %308 : vector<11x11x128xf32>
      %310 = arith.addf %303, %309 : vector<11x11x128xf32>
      %311 = vector.extract_strided_slice %21 {offsets = [1, 0, 0], sizes = [11, 11, 128], strides = [1, 1, 1]} : vector<13x11x128xf32> to vector<11x11x128xf32>
      %c528_i32 = arith.constant 528 : i32
      %312 = arith.addi %c528_i32, %arg15 : i32
      %313 = arith.index_cast %312 : i32 to index
      %314 = memref.load %arg4[%313] : memref<864xf32, #tpu.memory_space<smem>>
      %315 = vector.broadcast %314 : f32 to vector<11x11x128xf32>
      %316 = arith.mulf %311, %315 : vector<11x11x128xf32>
      %317 = arith.addf %310, %316 : vector<11x11x128xf32>
      %318 = vector.extract_strided_slice %21 {offsets = [2, 0, 0], sizes = [11, 11, 128], strides = [1, 1, 1]} : vector<13x11x128xf32> to vector<11x11x128xf32>
      %c816_i32 = arith.constant 816 : i32
      %319 = arith.addi %c816_i32, %arg15 : i32
      %320 = arith.index_cast %319 : i32 to index
      %321 = memref.load %arg4[%320] : memref<864xf32, #tpu.memory_space<smem>>
      %322 = vector.broadcast %321 : f32 to vector<11x11x128xf32>
      %323 = arith.mulf %318, %322 : vector<11x11x128xf32>
      %324 = arith.addf %317, %323 : vector<11x11x128xf32>
      %325 = vector.extract_strided_slice %23 {offsets = [0, 0, 0], sizes = [11, 11, 128], strides = [1, 1, 1]} : vector<13x11x128xf32> to vector<11x11x128xf32>
      %c64_i32 = arith.constant 64 : i32
      %326 = arith.addi %c64_i32, %arg15 : i32
      %327 = arith.index_cast %326 : i32 to index
      %328 = memref.load %arg4[%327] : memref<864xf32, #tpu.memory_space<smem>>
      %329 = vector.broadcast %328 : f32 to vector<11x11x128xf32>
      %330 = arith.mulf %325, %329 : vector<11x11x128xf32>
      %331 = arith.addf %324, %330 : vector<11x11x128xf32>
      %332 = vector.extract_strided_slice %23 {offsets = [1, 0, 0], sizes = [11, 11, 128], strides = [1, 1, 1]} : vector<13x11x128xf32> to vector<11x11x128xf32>
      %c352_i32 = arith.constant 352 : i32
      %333 = arith.addi %c352_i32, %arg15 : i32
      %334 = arith.index_cast %333 : i32 to index
      %335 = memref.load %arg4[%334] : memref<864xf32, #tpu.memory_space<smem>>
      %336 = vector.broadcast %335 : f32 to vector<11x11x128xf32>
      %337 = arith.mulf %332, %336 : vector<11x11x128xf32>
      %338 = arith.addf %331, %337 : vector<11x11x128xf32>
      %339 = vector.extract_strided_slice %23 {offsets = [2, 0, 0], sizes = [11, 11, 128], strides = [1, 1, 1]} : vector<13x11x128xf32> to vector<11x11x128xf32>
      %c640_i32 = arith.constant 640 : i32
      %340 = arith.addi %c640_i32, %arg15 : i32
      %341 = arith.index_cast %340 : i32 to index
      %342 = memref.load %arg4[%341] : memref<864xf32, #tpu.memory_space<smem>>
      %343 = vector.broadcast %342 : f32 to vector<11x11x128xf32>
      %344 = arith.mulf %339, %343 : vector<11x11x128xf32>
      %345 = arith.addf %338, %344 : vector<11x11x128xf32>
      %346 = vector.extract_strided_slice %24 {offsets = [0, 0, 0], sizes = [11, 11, 128], strides = [1, 1, 1]} : vector<13x11x128xf32> to vector<11x11x128xf32>
      %c160_i32 = arith.constant 160 : i32
      %347 = arith.addi %c160_i32, %arg15 : i32
      %348 = arith.index_cast %347 : i32 to index
      %349 = memref.load %arg4[%348] : memref<864xf32, #tpu.memory_space<smem>>
      %350 = vector.broadcast %349 : f32 to vector<11x11x128xf32>
      %351 = arith.mulf %346, %350 : vector<11x11x128xf32>
      %352 = arith.addf %345, %351 : vector<11x11x128xf32>
      %353 = vector.extract_strided_slice %24 {offsets = [1, 0, 0], sizes = [11, 11, 128], strides = [1, 1, 1]} : vector<13x11x128xf32> to vector<11x11x128xf32>
      %c448_i32 = arith.constant 448 : i32
      %354 = arith.addi %c448_i32, %arg15 : i32
      %355 = arith.index_cast %354 : i32 to index
      %356 = memref.load %arg4[%355] : memref<864xf32, #tpu.memory_space<smem>>
      %357 = vector.broadcast %356 : f32 to vector<11x11x128xf32>
      %358 = arith.mulf %353, %357 : vector<11x11x128xf32>
      %359 = arith.addf %352, %358 : vector<11x11x128xf32>
      %360 = vector.extract_strided_slice %24 {offsets = [2, 0, 0], sizes = [11, 11, 128], strides = [1, 1, 1]} : vector<13x11x128xf32> to vector<11x11x128xf32>
      %c736_i32 = arith.constant 736 : i32
      %361 = arith.addi %c736_i32, %arg15 : i32
      %362 = arith.index_cast %361 : i32 to index
      %363 = memref.load %arg4[%362] : memref<864xf32, #tpu.memory_space<smem>>
      %364 = vector.broadcast %363 : f32 to vector<11x11x128xf32>
      %365 = arith.mulf %360, %364 : vector<11x11x128xf32>
      %366 = arith.addf %359, %365 : vector<11x11x128xf32>
      %367 = vector.extract_strided_slice %25 {offsets = [0, 0, 0], sizes = [11, 11, 128], strides = [1, 1, 1]} : vector<13x11x128xf32> to vector<11x11x128xf32>
      %c256_i32 = arith.constant 256 : i32
      %368 = arith.addi %c256_i32, %arg15 : i32
      %369 = arith.index_cast %368 : i32 to index
      %370 = memref.load %arg4[%369] : memref<864xf32, #tpu.memory_space<smem>>
      %371 = vector.broadcast %370 : f32 to vector<11x11x128xf32>
      %372 = arith.mulf %367, %371 : vector<11x11x128xf32>
      %373 = arith.addf %366, %372 : vector<11x11x128xf32>
      %374 = vector.extract_strided_slice %25 {offsets = [1, 0, 0], sizes = [11, 11, 128], strides = [1, 1, 1]} : vector<13x11x128xf32> to vector<11x11x128xf32>
      %c544_i32 = arith.constant 544 : i32
      %375 = arith.addi %c544_i32, %arg15 : i32
      %376 = arith.index_cast %375 : i32 to index
      %377 = memref.load %arg4[%376] : memref<864xf32, #tpu.memory_space<smem>>
      %378 = vector.broadcast %377 : f32 to vector<11x11x128xf32>
      %379 = arith.mulf %374, %378 : vector<11x11x128xf32>
      %380 = arith.addf %373, %379 : vector<11x11x128xf32>
      %381 = vector.extract_strided_slice %25 {offsets = [2, 0, 0], sizes = [11, 11, 128], strides = [1, 1, 1]} : vector<13x11x128xf32> to vector<11x11x128xf32>
      %c832_i32 = arith.constant 832 : i32
      %382 = arith.addi %c832_i32, %arg15 : i32
      %383 = arith.index_cast %382 : i32 to index
      %384 = memref.load %arg4[%383] : memref<864xf32, #tpu.memory_space<smem>>
      %385 = vector.broadcast %384 : f32 to vector<11x11x128xf32>
      %386 = arith.mulf %381, %385 : vector<11x11x128xf32>
      %387 = arith.addf %380, %386 : vector<11x11x128xf32>
      %388 = vector.extract_strided_slice %27 {offsets = [0, 0, 0], sizes = [11, 11, 128], strides = [1, 1, 1]} : vector<13x11x128xf32> to vector<11x11x128xf32>
      %c80_i32 = arith.constant 80 : i32
      %389 = arith.addi %c80_i32, %arg15 : i32
      %390 = arith.index_cast %389 : i32 to index
      %391 = memref.load %arg4[%390] : memref<864xf32, #tpu.memory_space<smem>>
      %392 = vector.broadcast %391 : f32 to vector<11x11x128xf32>
      %393 = arith.mulf %388, %392 : vector<11x11x128xf32>
      %394 = arith.addf %387, %393 : vector<11x11x128xf32>
      %395 = vector.extract_strided_slice %27 {offsets = [1, 0, 0], sizes = [11, 11, 128], strides = [1, 1, 1]} : vector<13x11x128xf32> to vector<11x11x128xf32>
      %c368_i32 = arith.constant 368 : i32
      %396 = arith.addi %c368_i32, %arg15 : i32
      %397 = arith.index_cast %396 : i32 to index
      %398 = memref.load %arg4[%397] : memref<864xf32, #tpu.memory_space<smem>>
      %399 = vector.broadcast %398 : f32 to vector<11x11x128xf32>
      %400 = arith.mulf %395, %399 : vector<11x11x128xf32>
      %401 = arith.addf %394, %400 : vector<11x11x128xf32>
      %402 = vector.extract_strided_slice %27 {offsets = [2, 0, 0], sizes = [11, 11, 128], strides = [1, 1, 1]} : vector<13x11x128xf32> to vector<11x11x128xf32>
      %c656_i32 = arith.constant 656 : i32
      %403 = arith.addi %c656_i32, %arg15 : i32
      %404 = arith.index_cast %403 : i32 to index
      %405 = memref.load %arg4[%404] : memref<864xf32, #tpu.memory_space<smem>>
      %406 = vector.broadcast %405 : f32 to vector<11x11x128xf32>
      %407 = arith.mulf %402, %406 : vector<11x11x128xf32>
      %408 = arith.addf %401, %407 : vector<11x11x128xf32>
      %409 = vector.extract_strided_slice %28 {offsets = [0, 0, 0], sizes = [11, 11, 128], strides = [1, 1, 1]} : vector<13x11x128xf32> to vector<11x11x128xf32>
      %c176_i32 = arith.constant 176 : i32
      %410 = arith.addi %c176_i32, %arg15 : i32
      %411 = arith.index_cast %410 : i32 to index
      %412 = memref.load %arg4[%411] : memref<864xf32, #tpu.memory_space<smem>>
      %413 = vector.broadcast %412 : f32 to vector<11x11x128xf32>
      %414 = arith.mulf %409, %413 : vector<11x11x128xf32>
      %415 = arith.addf %408, %414 : vector<11x11x128xf32>
      %416 = vector.extract_strided_slice %28 {offsets = [1, 0, 0], sizes = [11, 11, 128], strides = [1, 1, 1]} : vector<13x11x128xf32> to vector<11x11x128xf32>
      %c464_i32 = arith.constant 464 : i32
      %417 = arith.addi %c464_i32, %arg15 : i32
      %418 = arith.index_cast %417 : i32 to index
      %419 = memref.load %arg4[%418] : memref<864xf32, #tpu.memory_space<smem>>
      %420 = vector.broadcast %419 : f32 to vector<11x11x128xf32>
      %421 = arith.mulf %416, %420 : vector<11x11x128xf32>
      %422 = arith.addf %415, %421 : vector<11x11x128xf32>
      %423 = vector.extract_strided_slice %28 {offsets = [2, 0, 0], sizes = [11, 11, 128], strides = [1, 1, 1]} : vector<13x11x128xf32> to vector<11x11x128xf32>
      %c752_i32 = arith.constant 752 : i32
      %424 = arith.addi %c752_i32, %arg15 : i32
      %425 = arith.index_cast %424 : i32 to index
      %426 = memref.load %arg4[%425] : memref<864xf32, #tpu.memory_space<smem>>
      %427 = vector.broadcast %426 : f32 to vector<11x11x128xf32>
      %428 = arith.mulf %423, %427 : vector<11x11x128xf32>
      %429 = arith.addf %422, %428 : vector<11x11x128xf32>
      %430 = vector.extract_strided_slice %29 {offsets = [0, 0, 0], sizes = [11, 11, 128], strides = [1, 1, 1]} : vector<13x11x128xf32> to vector<11x11x128xf32>
      %c272_i32 = arith.constant 272 : i32
      %431 = arith.addi %c272_i32, %arg15 : i32
      %432 = arith.index_cast %431 : i32 to index
      %433 = memref.load %arg4[%432] : memref<864xf32, #tpu.memory_space<smem>>
      %434 = vector.broadcast %433 : f32 to vector<11x11x128xf32>
      %435 = arith.mulf %430, %434 : vector<11x11x128xf32>
      %436 = arith.addf %429, %435 : vector<11x11x128xf32>
      %437 = vector.extract_strided_slice %29 {offsets = [1, 0, 0], sizes = [11, 11, 128], strides = [1, 1, 1]} : vector<13x11x128xf32> to vector<11x11x128xf32>
      %c560_i32 = arith.constant 560 : i32
      %438 = arith.addi %c560_i32, %arg15 : i32
      %439 = arith.index_cast %438 : i32 to index
      %440 = memref.load %arg4[%439] : memref<864xf32, #tpu.memory_space<smem>>
      %441 = vector.broadcast %440 : f32 to vector<11x11x128xf32>
      %442 = arith.mulf %437, %441 : vector<11x11x128xf32>
      %443 = arith.addf %436, %442 : vector<11x11x128xf32>
      %444 = vector.extract_strided_slice %29 {offsets = [2, 0, 0], sizes = [11, 11, 128], strides = [1, 1, 1]} : vector<13x11x128xf32> to vector<11x11x128xf32>
      %c848_i32 = arith.constant 848 : i32
      %445 = arith.addi %c848_i32, %arg15 : i32
      %446 = arith.index_cast %445 : i32 to index
      %447 = memref.load %arg4[%446] : memref<864xf32, #tpu.memory_space<smem>>
      %448 = vector.broadcast %447 : f32 to vector<11x11x128xf32>
      %449 = arith.mulf %444, %448 : vector<11x11x128xf32>
      %450 = arith.addf %443, %449 : vector<11x11x128xf32>
      %cst_46 = arith.constant 0.000000e+00 : f32
      %451 = vector.broadcast %cst_46 : f32 to vector<11x11x128xf32>
      %452 = arith.maximumf %450, %451 : vector<11x11x128xf32>
      %453 = vector.extract_strided_slice %452 {offsets = [0, 0, 0], sizes = [10, 11, 128], strides = [1, 1, 1]} : vector<11x11x128xf32> to vector<10x11x128xf32>
      %454 = vector.shape_cast %453 : vector<10x11x128xf32> to vector<5x2x11x128xf32>
      %455 = vector.extract_strided_slice %454 {offsets = [0, 0, 0, 0], sizes = [5, 1, 11, 128], strides = [1, 1, 1, 1]} : vector<5x2x11x128xf32> to vector<5x1x11x128xf32>
      %456 = vector.shape_cast %455 : vector<5x1x11x128xf32> to vector<5x11x128xf32>
      %457 = vector.extract_strided_slice %454 {offsets = [0, 1, 0, 0], sizes = [5, 1, 11, 128], strides = [1, 1, 1, 1]} : vector<5x2x11x128xf32> to vector<5x1x11x128xf32>
      %458 = vector.shape_cast %457 : vector<5x1x11x128xf32> to vector<5x11x128xf32>
      %459 = arith.maximumf %456, %458 : vector<5x11x128xf32>
      %460 = vector.extract_strided_slice %459 {offsets = [0, 0, 0], sizes = [5, 9, 128], strides = [1, 1, 1]} : vector<5x11x128xf32> to vector<5x9x128xf32>
      %461 = vector.extract_strided_slice %459 {offsets = [0, 1, 0], sizes = [5, 9, 128], strides = [1, 1, 1]} : vector<5x11x128xf32> to vector<5x9x128xf32>
      %462 = arith.maximumf %460, %461 : vector<5x9x128xf32>
      %cst_47 = arith.constant 0.000000e+00 : f32
      %463 = vector.broadcast %cst_47 : f32 to vector<5x7x128xf32>
      %464 = tpu.concatenate %462, %463 in 1 : vector<5x9x128xf32>, vector<5x7x128xf32> -> vector<5x16x128xf32>
      %c5_i32 = arith.constant 5 : i32
      %465 = arith.muli %arg15, %c5_i32 : i32
      %c0_i32_48 = arith.constant 0 : i32
      %466 = arith.addi %465, %c0_i32_48 : i32
      %c16_i32_49 = arith.constant 16 : i32
      %467 = arith.muli %466, %c16_i32_49 : i32
      %468 = tpu.assume_multiple %467, 16 : i32
      %469 = vector.extract_strided_slice %464 {offsets = [0, 0, 0], sizes = [1, 16, 128], strides = [1, 1, 1]} : vector<5x16x128xf32> to vector<1x16x128xf32>
      %470 = vector.shape_cast %469 : vector<1x16x128xf32> to vector<16x128xf32>
      %471 = arith.index_cast %468 : i32 to index
      %c0_50 = arith.constant 0 : index
      %472 = vector.load %arg13[%471, %c0_50] : memref<1280x128xf32, #tpu.memory_space<vmem>>, vector<16x128xf32>
      tpu.vector_store %arg13[%471, %c0_50], %470 {strides = array<i32>} : memref<1280x128xf32, #tpu.memory_space<vmem>>, vector<16x128xf32>,
      %c5_i32_51 = arith.constant 5 : i32
      %473 = arith.muli %arg15, %c5_i32_51 : i32
      %c1_i32_52 = arith.constant 1 : i32
      %474 = arith.addi %473, %c1_i32_52 : i32
      %c16_i32_53 = arith.constant 16 : i32
      %475 = arith.muli %474, %c16_i32_53 : i32
      %476 = tpu.assume_multiple %475, 16 : i32
      %477 = vector.extract_strided_slice %464 {offsets = [1, 0, 0], sizes = [1, 16, 128], strides = [1, 1, 1]} : vector<5x16x128xf32> to vector<1x16x128xf32>
      %478 = vector.shape_cast %477 : vector<1x16x128xf32> to vector<16x128xf32>
      %479 = arith.index_cast %476 : i32 to index
      %c0_54 = arith.constant 0 : index
      %480 = vector.load %arg13[%479, %c0_54] : memref<1280x128xf32, #tpu.memory_space<vmem>>, vector<16x128xf32>
      tpu.vector_store %arg13[%479, %c0_54], %478 {strides = array<i32>} : memref<1280x128xf32, #tpu.memory_space<vmem>>, vector<16x128xf32>,
      %c5_i32_55 = arith.constant 5 : i32
      %481 = arith.muli %arg15, %c5_i32_55 : i32
      %c2_i32 = arith.constant 2 : i32
      %482 = arith.addi %481, %c2_i32 : i32
      %c16_i32_56 = arith.constant 16 : i32
      %483 = arith.muli %482, %c16_i32_56 : i32
      %484 = tpu.assume_multiple %483, 16 : i32
      %485 = vector.extract_strided_slice %464 {offsets = [2, 0, 0], sizes = [1, 16, 128], strides = [1, 1, 1]} : vector<5x16x128xf32> to vector<1x16x128xf32>
      %486 = vector.shape_cast %485 : vector<1x16x128xf32> to vector<16x128xf32>
      %487 = arith.index_cast %484 : i32 to index
      %c0_57 = arith.constant 0 : index
      %488 = vector.load %arg13[%487, %c0_57] : memref<1280x128xf32, #tpu.memory_space<vmem>>, vector<16x128xf32>
      tpu.vector_store %arg13[%487, %c0_57], %486 {strides = array<i32>} : memref<1280x128xf32, #tpu.memory_space<vmem>>, vector<16x128xf32>,
      %c5_i32_58 = arith.constant 5 : i32
      %489 = arith.muli %arg15, %c5_i32_58 : i32
      %c3_i32 = arith.constant 3 : i32
      %490 = arith.addi %489, %c3_i32 : i32
      %c16_i32_59 = arith.constant 16 : i32
      %491 = arith.muli %490, %c16_i32_59 : i32
      %492 = tpu.assume_multiple %491, 16 : i32
      %493 = vector.extract_strided_slice %464 {offsets = [3, 0, 0], sizes = [1, 16, 128], strides = [1, 1, 1]} : vector<5x16x128xf32> to vector<1x16x128xf32>
      %494 = vector.shape_cast %493 : vector<1x16x128xf32> to vector<16x128xf32>
      %495 = arith.index_cast %492 : i32 to index
      %c0_60 = arith.constant 0 : index
      %496 = vector.load %arg13[%495, %c0_60] : memref<1280x128xf32, #tpu.memory_space<vmem>>, vector<16x128xf32>
      tpu.vector_store %arg13[%495, %c0_60], %494 {strides = array<i32>} : memref<1280x128xf32, #tpu.memory_space<vmem>>, vector<16x128xf32>,
      %c5_i32_61 = arith.constant 5 : i32
      %497 = arith.muli %arg15, %c5_i32_61 : i32
      %c4_i32 = arith.constant 4 : i32
      %498 = arith.addi %497, %c4_i32 : i32
      %c16_i32_62 = arith.constant 16 : i32
      %499 = arith.muli %498, %c16_i32_62 : i32
      %500 = tpu.assume_multiple %499, 16 : i32
      %501 = vector.extract_strided_slice %464 {offsets = [4, 0, 0], sizes = [1, 16, 128], strides = [1, 1, 1]} : vector<5x16x128xf32> to vector<1x16x128xf32>
      %502 = vector.shape_cast %501 : vector<1x16x128xf32> to vector<16x128xf32>
      %503 = arith.index_cast %500 : i32 to index
      %c0_63 = arith.constant 0 : index
      %504 = vector.load %arg13[%503, %c0_63] : memref<1280x128xf32, #tpu.memory_space<vmem>>, vector<16x128xf32>
      tpu.vector_store %arg13[%503, %c0_63], %502 {strides = array<i32>} : memref<1280x128xf32, #tpu.memory_space<vmem>>, vector<16x128xf32>,
    }
    %c16_i32_19 = arith.constant 16 : i32
    %c0_20 = arith.constant 0 : index
    %c0_21 = arith.constant 0 : index
    %31 = vector.load %arg13[%c0_20, %c0_21] : memref<1280x128xf32, #tpu.memory_space<vmem>>, vector<1280x128xf32>
    %c0_22 = arith.constant 0 : index
    %c0_23 = arith.constant 0 : index
    %32 = vector.load %arg6[%c0_22, %c0_23] : memref<128x1280xf32, #tpu.memory_space<vmem>>, vector<128x1280xf32>
    %cst = arith.constant dense<0.000000e+00> : vector<128x128xf32>
    %33 = tpu.matmul %32, %31, %cst {dimension_numbers = #tpu.dot_dimension_numbers<[1], [0], [0], [1], [0, 0, 1, 1], [], []>} : vector<128x1280xf32>, vector<1280x128xf32>, vector<128x128xf32> -> vector<128x128xf32>
    %c0_24 = arith.constant 0 : index
    %c0_25 = arith.constant 0 : index
    %34 = vector.load %arg7[%c0_24, %c0_25] : memref<128x1xf32, #tpu.memory_space<vmem>>, vector<128x1xf32>
    %35 = vector.broadcast %34 : vector<128x1xf32> to vector<128x128xf32>
    %36 = arith.addf %33, %35 : vector<128x128xf32>
    %cst_26 = arith.constant 0.000000e+00 : f32
    %37 = vector.broadcast %cst_26 : f32 to vector<128x128xf32>
    %38 = arith.maximumf %36, %37 : vector<128x128xf32>
    %c0_27 = arith.constant 0 : index
    %c0_28 = arith.constant 0 : index
    %39 = vector.load %arg8[%c0_27, %c0_28] : memref<128x128xf32, #tpu.memory_space<vmem>>, vector<128x128xf32>
    %cst_29 = arith.constant dense<0.000000e+00> : vector<128x128xf32>
    %40 = tpu.matmul %39, %38, %cst_29 {dimension_numbers = #tpu.dot_dimension_numbers<[1], [0], [0], [1], [0, 0, 1, 1], [], []>} : vector<128x128xf32>, vector<128x128xf32>, vector<128x128xf32> -> vector<128x128xf32>
    %c0_30 = arith.constant 0 : index
    %c0_31 = arith.constant 0 : index
    %41 = vector.load %arg9[%c0_30, %c0_31] : memref<128x1xf32, #tpu.memory_space<vmem>>, vector<128x1xf32>
    %42 = vector.broadcast %41 : vector<128x1xf32> to vector<128x128xf32>
    %43 = arith.addf %40, %42 : vector<128x128xf32>
    %cst_32 = arith.constant 0.000000e+00 : f32
    %44 = vector.broadcast %cst_32 : f32 to vector<128x128xf32>
    %45 = arith.maximumf %43, %44 : vector<128x128xf32>
    %c0_33 = arith.constant 0 : index
    %c0_34 = arith.constant 0 : index
    %46 = vector.load %arg10[%c0_33, %c0_34] : memref<128x128xf32, #tpu.memory_space<vmem>>, vector<128x128xf32>
    %cst_35 = arith.constant dense<0.000000e+00> : vector<128x128xf32>
    %47 = tpu.matmul %46, %45, %cst_35 {dimension_numbers = #tpu.dot_dimension_numbers<[1], [0], [0], [1], [0, 0, 1, 1], [], []>} : vector<128x128xf32>, vector<128x128xf32>, vector<128x128xf32> -> vector<128x128xf32>
    %c0_36 = arith.constant 0 : index
    %c0_37 = arith.constant 0 : index
    %48 = vector.load %arg11[%c0_36, %c0_37] : memref<128x1xf32, #tpu.memory_space<vmem>>, vector<128x1xf32>
    %49 = vector.broadcast %48 : vector<128x1xf32> to vector<128x128xf32>
    %50 = arith.addf %47, %49 : vector<128x128xf32>
    %51 = tpu.iota {dimensions = array<i32: 0>} : vector<128x128xi32>
    %c10_i32 = arith.constant 10 : i32
    %52 = vector.broadcast %c10_i32 : i32 to vector<128x128xi32>
    %53 = arith.cmpi slt, %51, %52 : vector<128x128xi32>
    %cst_38 = arith.constant -1.000000e+30 : f32
    %54 = vector.broadcast %cst_38 : f32 to vector<128x128xf32>
    %55 = arith.select %53, %50, %54 : vector<128x128xi1>, vector<128x128xf32>
    %cst_39 = arith.constant dense<0xFF800000> : vector<128xf32>
    %56 = vector.multi_reduction <maximumf>, %55, %cst_39 [0] : vector<128x128xf32> to vector<128xf32>
    %57 = vector.shape_cast %56 : vector<128xf32> to vector<1x128xf32>
    %58 = vector.broadcast %57 : vector<1x128xf32> to vector<128x128xf32>
    %59 = arith.subf %55, %58 : vector<128x128xf32>
    %60 = math.exp %59 : vector<128x128xf32>
    %cst_40 = arith.constant dense<0.000000e+00> : vector<128xf32>
    %61 = vector.multi_reduction <add>, %60, %cst_40 [0] : vector<128x128xf32> to vector<128xf32>
    %62 = vector.shape_cast %61 : vector<128xf32> to vector<1x128xf32>
    %63 = math.log %62 : vector<1x128xf32>
    %64 = arith.addf %57, %63 : vector<1x128xf32>
    %65 = vector.broadcast %64 : vector<1x128xf32> to vector<128x128xf32>
    %66 = arith.subf %55, %65 : vector<128x128xf32>
    %c0_41 = arith.constant 0 : index
    %c0_42 = arith.constant 0 : index
    %c0_43 = arith.constant 0 : index
    %67 = vector.load %arg12[%c0_41, %c0_42, %c0_43] : memref<1x128x128xf32, #tpu.memory_space<vmem>>, vector<1x128x128xf32>
    %68 = vector.shape_cast %67 : vector<1x128x128xf32> to vector<128x128xf32>
    %69 = vector.shape_cast %66 : vector<128x128xf32> to vector<1x128x128xf32>
    tpu.vector_store %arg12[%c0_41, %c0_42, %c0_43], %69 {strides = array<i32>} : memref<1x128x128xf32, #tpu.memory_space<vmem>>, vector<1x128x128xf32>,
    return
  }
  func.func @transform_0(%arg0: i32) -> (i32, i32, i32, i32) {
    %c0_i32 = arith.constant 0 : i32
    %c0_i32_0 = arith.constant 0 : i32
    %c0_i32_1 = arith.constant 0 : i32
    %c0_i32_2 = arith.constant 0 : i32
    return %arg0, %c0_i32, %c0_i32_0, %c0_i32_1 : i32, i32, i32, i32
  }
  func.func @transform_1(%arg0: i32) -> i32 {
    %c0_i32 = arith.constant 0 : i32
    %c0_i32_0 = arith.constant 0 : i32
    return %c0_i32 : i32
  }
  func.func @transform_2(%arg0: i32) -> i32 {
    %c0_i32 = arith.constant 0 : i32
    %c0_i32_0 = arith.constant 0 : i32
    return %c0_i32 : i32
  }
  func.func @transform_3(%arg0: i32) -> i32 {
    %c0_i32 = arith.constant 0 : i32
    %c0_i32_0 = arith.constant 0 : i32
    return %c0_i32 : i32
  }
  func.func @transform_4(%arg0: i32) -> i32 {
    %c0_i32 = arith.constant 0 : i32
    %c0_i32_0 = arith.constant 0 : i32
    return %c0_i32 : i32
  }
  func.func @transform_5(%arg0: i32) -> (i32, i32) {
    %c0_i32 = arith.constant 0 : i32
    %c0_i32_0 = arith.constant 0 : i32
    %c0_i32_1 = arith.constant 0 : i32
    return %c0_i32, %c0_i32_0 : i32, i32
  }
  func.func @transform_6(%arg0: i32) -> (i32, i32) {
    %c0_i32 = arith.constant 0 : i32
    %c0_i32_0 = arith.constant 0 : i32
    %c0_i32_1 = arith.constant 0 : i32
    return %c0_i32, %c0_i32_0 : i32, i32
  }
  func.func @transform_7(%arg0: i32) -> (i32, i32) {
    %c0_i32 = arith.constant 0 : i32
    %c0_i32_0 = arith.constant 0 : i32
    %c0_i32_1 = arith.constant 0 : i32
    return %c0_i32, %c0_i32_0 : i32, i32
  }
  func.func @transform_8(%arg0: i32) -> (i32, i32) {
    %c0_i32 = arith.constant 0 : i32
    %c0_i32_0 = arith.constant 0 : i32
    %c0_i32_1 = arith.constant 0 : i32
    return %c0_i32, %c0_i32_0 : i32, i32
  }
  func.func @transform_9(%arg0: i32) -> (i32, i32) {
    %c0_i32 = arith.constant 0 : i32
    %c0_i32_0 = arith.constant 0 : i32
    %c0_i32_1 = arith.constant 0 : i32
    return %c0_i32, %c0_i32_0 : i32, i32
  }
  func.func @transform_10(%arg0: i32) -> (i32, i32) {
    %c0_i32 = arith.constant 0 : i32
    %c0_i32_0 = arith.constant 0 : i32
    %c0_i32_1 = arith.constant 0 : i32
    return %c0_i32, %c0_i32_0 : i32, i32
  }
  func.func @transform_11(%arg0: i32) -> (i32, i32, i32) {
    %c0_i32 = arith.constant 0 : i32
    %c0_i32_0 = arith.constant 0 : i32
    %c0_i32_1 = arith.constant 0 : i32
    return %arg0, %c0_i32, %c0_i32_0 : i32, i32, i32
  }
}

</mosaic_0001>

<llo_original>
// kernel: convnet_forward.1
$region0: #{convnet_forward.1}
  #allocation0 [shape = 'u32[]', space=smem, size = 0x4, offset = 0x4, fixed_abs, tag = 'smem constant byte address 0x4 - core index']
  #allocation1 [shape = 'u32[144,128]{1,0:T(1,128)}', space=vmem, size = 0x12000, scoped, tag = 'internal scratch']
  #allocation2 [shape = 'f32[1280,128]{1,0:T(8,128)}', space=vmem, size = 0xa0000, scoped, tag = 'scratch operand']
  #allocation3 [shape = 'f32[78,13,128]{2,1,0:T(8,128)}', space=vmem, size = 0x9c000, scoped, tag = 'scratch operand']
  %s0 = inlined_call_operand.vmem [shape: f32[1,28,28,128], index: 0, kind: input, shape index: {}]
  %s1 = inlined_call_operand.vmem [shape: f32[54], index: 1, kind: input, shape index: {}]
  %s2 = inlined_call_operand.vmem [shape: f32[6], index: 2, kind: input, shape index: {}]
  %s3 = inlined_call_operand.vmem [shape: f32[864], index: 3, kind: input, shape index: {}]
  %s4 = inlined_call_operand.vmem [shape: f32[16], index: 4, kind: input, shape index: {}]
  %s5 = inlined_call_operand.vmem [shape: f32[128,1280], index: 5, kind: input, shape index: {}]
  %s6 = inlined_call_operand.vmem [shape: f32[128,1], index: 6, kind: input, shape index: {}]
  %s7 = inlined_call_operand.vmem [shape: f32[128,128], index: 7, kind: input, shape index: {}]
  %s8 = inlined_call_operand.vmem [shape: f32[128,1], index: 8, kind: input, shape index: {}]
  %s9 = inlined_call_operand.vmem [shape: f32[128,128], index: 9, kind: input, shape index: {}]
  %s10 = inlined_call_operand.vmem [shape: f32[128,1], index: 10, kind: input, shape index: {}]
  %s11 = inlined_call_operand.vmem [shape: f32[1,128,128], index: 11, kind: output, shape index: {}]
  %s12 = sld [smem:[#allocation0]]
  $region84: #{convnet_forward.1} parent=0
    _
  %s14 = ssub.s32 1, %s12
  %s15 = scalar_select 0, %s14, %s12
  $region1: #{convnet_forward.1} parent=0
    #allocation4 [shape = 'u8[512]{0}', space=smem, size = 0x200, scoped, tag = 'input window, operand 1, single buffered']
    #allocation5 [shape = 's32[1]{0}', space=sflag, size = 0x4, scoped, tag = 'scoped memory for convnet_forward.1']
    #allocation6 [shape = 'u8[512]{0}', space=smem, size = 0x200, scoped, tag = 'input window, operand 2, single buffered']
    #allocation7 [shape = 's32[1]{0}', space=sflag, size = 0x4, scoped, tag = 'scoped memory for convnet_forward.1']
    #allocation8 [shape = 'u8[3584]{0}', space=smem, size = 0xe00, scoped, tag = 'input window, operand 3, single buffered']
    #allocation9 [shape = 'u8[512]{0}', space=smem, size = 0x200, scoped, tag = 'input window, operand 4, single buffered']
    #allocation10 [shape = 's32[1]{0}', space=sflag, size = 0x4, scoped, tag = 'scoped memory for convnet_forward.1']
    %16 = vsyncpa [#allocation5], 0
    %17 = vsyncpa [#allocation7], 0
    %18 = vsyncpa [#allocation10], 0
    // Predicated region
    $region2: #{convnet_forward.1} parent=1 // pred_check
      _
    $region3: #{convnet_forward.1} parent=1 // pred_check_branch
      %20 = sbr.rel (0) target = $region5
    $region4: #{convnet_forward.1} parent=1 // pred_region
      _
    $region5: #{convnet_forward.1} parent=1 // pred_fallthru
      _
    // Predicated region
    $region6: #{convnet_forward.1} parent=1 // pred_check
      _
    $region7: #{convnet_forward.1} parent=1 // pred_check_branch
      %22 = sbr.rel (0) target = $region9
    $region8: #{convnet_forward.1} parent=1 // pred_region
      %s24 = ssub.s32 16, 16
      %25 = vsyncadd [#allocation5], %s24
      %s27 = sshll.u32 %s1, 4
      %s28 = int_to_ptr.vmem [resolvable:$true] %s27
      %30 = dma.vmem_to_smem %s28, 16, [#allocation4], [#allocation5]
    $region9: #{convnet_forward.1} parent=1 // pred_fallthru
      _
    // Predicated region
    $region10: #{convnet_forward.1} parent=1 // pred_check
      _
    $region11: #{convnet_forward.1} parent=1 // pred_check_branch
      %32 = sbr.rel (0) target = $region13
    $region12: #{convnet_forward.1} parent=1 // pred_region
      %s34 = ssub.s32 16, 16
      %35 = vsyncadd [#allocation7], %s34
      %s37 = sshll.u32 %s2, 4
      %s38 = int_to_ptr.vmem [resolvable:$true] %s37
      %40 = dma.vmem_to_smem %s38, 16, [#allocation6], [#allocation7]
    $region13: #{convnet_forward.1} parent=1 // pred_fallthru
      _
    // Predicated region
    $region14: #{convnet_forward.1} parent=1 // pred_check
      _
    $region15: #{convnet_forward.1} parent=1 // pred_check_branch
      %42 = sbr.rel (0) target = $region17
    $region16: #{convnet_forward.1} parent=1 // pred_region
      %s44 = ssub.s32 112, 112
      %45 = vsyncadd [#allocation7], %s44
      %s47 = sshll.u32 %s3, 4
      %s48 = int_to_ptr.vmem [resolvable:$true] %s47
      %50 = dma.vmem_to_smem %s48, 112, [#allocation8], [#allocation7]
    $region17: #{convnet_forward.1} parent=1 // pred_fallthru
      _
    // Predicated region
    $region18: #{convnet_forward.1} parent=1 // pred_check
      _
    $region19: #{convnet_forward.1} parent=1 // pred_check_branch
      %52 = sbr.rel (0) target = $region21
    $region20: #{convnet_forward.1} parent=1 // pred_region
      %s54 = ssub.s32 16, 16
      %55 = vsyncadd [#allocation10], %s54
      %s57 = sshll.u32 %s4, 4
      %s58 = int_to_ptr.vmem [resolvable:$true] %s57
      %60 = dma.vmem_to_smem %s58, 16, [#allocation9], [#allocation10]
    $region21: #{convnet_forward.1} parent=1 // pred_fallthru
      _
    // Predicated region
    $region22: #{convnet_forward.1} parent=1 // pred_check
      _
    $region23: #{convnet_forward.1} parent=1 // pred_check_branch
      %62 = sbr.rel (0) target = $region25
    $region24: #{convnet_forward.1} parent=1 // pred_region
      _
    $region25: #{convnet_forward.1} parent=1 // pred_fallthru
      _
    // Predicated region
    $region26: #{convnet_forward.1} parent=1 // pred_check
      _
    $region27: #{convnet_forward.1} parent=1 // pred_check_branch
      %64 = sbr.rel (0) target = $region29
    $region28: #{convnet_forward.1} parent=1 // pred_region
      _
    $region29: #{convnet_forward.1} parent=1 // pred_fallthru
      _
    // Predicated region
    $region30: #{convnet_forward.1} parent=1 // pred_check
      _
    $region31: #{convnet_forward.1} parent=1 // pred_check_branch
      %66 = sbr.rel (0) target = $region33
    $region32: #{convnet_forward.1} parent=1 // pred_region
      _
    $region33: #{convnet_forward.1} parent=1 // pred_fallthru
      _
    // Predicated region
    $region34: #{convnet_forward.1} parent=1 // pred_check
      _
    $region35: #{convnet_forward.1} parent=1 // pred_check_branch
      %68 = sbr.rel (0) target = $region37
    $region36: #{convnet_forward.1} parent=1 // pred_region
      _
    $region37: #{convnet_forward.1} parent=1 // pred_fallthru
      _
    // Predicated region
    $region38: #{convnet_forward.1} parent=1 // pred_check
      _
    $region39: #{convnet_forward.1} parent=1 // pred_check_branch
      %70 = sbr.rel (0) target = $region41
    $region40: #{convnet_forward.1} parent=1 // pred_region
      _
    $region41: #{convnet_forward.1} parent=1 // pred_fallthru
      _
    // Predicated region
    $region42: #{convnet_forward.1} parent=1 // pred_check
      _
    $region43: #{convnet_forward.1} parent=1 // pred_check_branch
      %72 = sbr.rel (0) target = $region45
    $region44: #{convnet_forward.1} parent=1 // pred_region
      _
    $region45: #{convnet_forward.1} parent=1 // pred_fallthru
      _
    // Predicated region
    $region46: #{convnet_forward.1} parent=1 // pred_check
      _
    $region47: #{convnet_forward.1} parent=1 // pred_check_branch
      %74 = sbr.rel (0) target = $region49
    $region48: #{convnet_forward.1} parent=1 // pred_region
      %75 = dma.done [#allocation5], 16
    $region49: #{convnet_forward.1} parent=1 // pred_fallthru
      _
    // Predicated region
    $region50: #{convnet_forward.1} parent=1 // pred_check
      _
    $region51: #{convnet_forward.1} parent=1 // pred_check_branch
      %77 = sbr.rel (0) target = $region53
    $region52: #{convnet_forward.1} parent=1 // pred_region
      %78 = dma.done [#allocation7], 16
    $region53: #{convnet_forward.1} parent=1 // pred_fallthru
      _
    // Predicated region
    $region54: #{convnet_forward.1} parent=1 // pred_check
      _
    $region55: #{convnet_forward.1} parent=1 // pred_check_branch
      %80 = sbr.rel (0) target = $region57
    $region56: #{convnet_forward.1} parent=1 // pred_region
      %81 = dma.done [#allocation7], 112
    $region57: #{convnet_forward.1} parent=1 // pred_fallthru
      _
    // Predicated region
    $region58: #{convnet_forward.1} parent=1 // pred_check
      _
    $region59: #{convnet_forward.1} parent=1 // pred_check_branch
      %83 = sbr.rel (0) target = $region61
    $region60: #{convnet_forward.1} parent=1 // pred_region
      %84 = dma.done [#allocation10], 16
    $region61: #{convnet_forward.1} parent=1 // pred_fallthru
      _
    %85 = sfence
    %v86 = vld [vmem:[%s0] sm:$0xff]
    %v87 = vld [vmem:[%s0 + $0x8] sm:$0xff]
    %v88 = vld [vmem:[%s0 + $0x10] sm:$0xff]
    %v89 = vld [vmem:[%s0 + $0x18] sm:$0xf]
    %v90 = vld [vmem:[%s0 + $0x20] sm:$0xff]
    %v91 = vld [vmem:[%s0 + $0x28] sm:$0xff]
    %v92 = vld [vmem:[%s0 + $0x30] sm:$0xff]
    %v93 = vld [vmem:[%s0 + $0x38] sm:$0xf]
    %v94 = vld [vmem:[%s0 + $0x40] sm:$0xff]
    %v95 = vld [vmem:[%s0 + $0x48] sm:$0xff]
    %v96 = vld [vmem:[%s0 + $0x50] sm:$0xff]
    %v97 = vld [vmem:[%s0 + $0x58] sm:$0xf]
    %v98 = vld [vmem:[%s0 + $0x60] sm:$0xff]
    %v99 = vld [vmem:[%s0 + $0x68] sm:$0xff]
    %v100 = vld [vmem:[%s0 + $0x70] sm:$0xff]
    %v101 = vld [vmem:[%s0 + $0x78] sm:$0xf]
    %v102 = vld [vmem:[%s0 + $0x80] sm:$0xff]
    %v103 = vld [vmem:[%s0 + $0x88] sm:$0xff]
    %v104 = vld [vmem:[%s0 + $0x90] sm:$0xff]
    %v105 = vld [vmem:[%s0 + $0x98] sm:$0xf]
    %v106 = vld [vmem:[%s0 + $0xa0] sm:$0xff]
    %v107 = vld [vmem:[%s0 + $0xa8] sm:$0xff]
    %v108 = vld [vmem:[%s0 + $0xb0] sm:$0xff]
    %v109 = vld [vmem:[%s0 + $0xb8] sm:$0xf]
    %v110 = vld [vmem:[%s0 + $0xc0] sm:$0xff]
    %v111 = vld [vmem:[%s0 + $0xc8] sm:$0xff]
    %v112 = vld [vmem:[%s0 + $0xd0] sm:$0xff]
    %v113 = vld [vmem:[%s0 + $0xd8] sm:$0xf]
    %v114 = vld [vmem:[%s0 + $0xe0] sm:$0xff]
    %v115 = vld [vmem:[%s0 + $0xe8] sm:$0xff]
    %v116 = vld [vmem:[%s0 + $0xf0] sm:$0xff]
    %v117 = vld [vmem:[%s0 + $0xf8] sm:$0xf]
    %v118 = vld [vmem:[%s0 + $0x100] sm:$0xff]
    %v119 = vld [vmem:[%s0 + $0x108] sm:$0xff]
    %v120 = vld [vmem:[%s0 + $0x110] sm:$0xff]
    %v121 = vld [vmem:[%s0 + $0x118] sm:$0xf]
    %v122 = vld [vmem:[%s0 + $0x120] sm:$0xff]
    %v123 = vld [vmem:[%s0 + $0x128] sm:$0xff]
    %v124 = vld [vmem:[%s0 + $0x130] sm:$0xff]
    %v125 = vld [vmem:[%s0 + $0x138] sm:$0xf]
    %v126 = vld [vmem:[%s0 + $0x140] sm:$0xff]
    %v127 = vld [vmem:[%s0 + $0x148] sm:$0xff]
    %v128 = vld [vmem:[%s0 + $0x150] sm:$0xff]
    %v129 = vld [vmem:[%s0 + $0x158] sm:$0xf]
    %v130 = vld [vmem:[%s0 + $0x160] sm:$0xff]
    %v131 = vld [vmem:[%s0 + $0x168] sm:$0xff]
    %v132 = vld [vmem:[%s0 + $0x170] sm:$0xff]
    %v133 = vld [vmem:[%s0 + $0x178] sm:$0xf]
    %v134 = vld [vmem:[%s0 + $0x180] sm:$0xff]
    %v135 = vld [vmem:[%s0 + $0x188] sm:$0xff]
    %v136 = vld [vmem:[%s0 + $0x190] sm:$0xff]
    %v137 = vld [vmem:[%s0 + $0x198] sm:$0xf]
    %v138 = vld [vmem:[%s0 + $0x1a0] sm:$0xff]
    %v139 = vld [vmem:[%s0 + $0x1a8] sm:$0xff]
    %v140 = vld [vmem:[%s0 + $0x1b0] sm:$0xff]
    %v141 = vld [vmem:[%s0 + $0x1b8] sm:$0xf]
    %v142 = vld [vmem:[%s0 + $0x1c0] sm:$0xff]
    %v143 = vld [vmem:[%s0 + $0x1c8] sm:$0xff]
    %v144 = vld [vmem:[%s0 + $0x1d0] sm:$0xff]
    %v145 = vld [vmem:[%s0 + $0x1d8] sm:$0xf]
    %v146 = vld [vmem:[%s0 + $0x1e0] sm:$0xff]
    %v147 = vld [vmem:[%s0 + $0x1e8] sm:$0xff]
    %v148 = vld [vmem:[%s0 + $0x1f0] sm:$0xff]
    %v149 = vld [vmem:[%s0 + $0x1f8] sm:$0xf]
    %v150 = vld [vmem:[%s0 + $0x200] sm:$0xff]
    %v151 = vld [vmem:[%s0 + $0x208] sm:$0xff]
    %v152 = vld [vmem:[%s0 + $0x210] sm:$0xff]
    %v153 = vld [vmem:[%s0 + $0x218] sm:$0xf]
    %v154 = vld [vmem:[%s0 + $0x220] sm:$0xff]
    %v155 = vld [vmem:[%s0 + $0x228] sm:$0xff]
    %v156 = vld [vmem:[%s0 + $0x230] sm:$0xff]
    %v157 = vld [vmem:[%s0 + $0x238] sm:$0xf]
    %v158 = vld [vmem:[%s0 + $0x240] sm:$0xff]
    %v159 = vld [vmem:[%s0 + $0x248] sm:$0xff]
    %v160 = vld [vmem:[%s0 + $0x250] sm:$0xff]
    %v161 = vld [vmem:[%s0 + $0x258] sm:$0xf]
    %v162 = vld [vmem:[%s0 + $0x260] sm:$0xff]
    %v163 = vld [vmem:[%s0 + $0x268] sm:$0xff]
    %v164 = vld [vmem:[%s0 + $0x270] sm:$0xff]
    %v165 = vld [vmem:[%s0 + $0x278] sm:$0xf]
    %v166 = vld [vmem:[%s0 + $0x280] sm:$0xff]
    %v167 = vld [vmem:[%s0 + $0x288] sm:$0xff]
    %v168 = vld [vmem:[%s0 + $0x290] sm:$0xff]
    %v169 = vld [vmem:[%s0 + $0x298] sm:$0xf]
    %v170 = vld [vmem:[%s0 + $0x2a0] sm:$0xff]
    %v171 = vld [vmem:[%s0 + $0x2a8] sm:$0xff]
    %v172 = vld [vmem:[%s0 + $0x2b0] sm:$0xff]
    %v173 = vld [vmem:[%s0 + $0x2b8] sm:$0xf]
    %v174 = vld [vmem:[%s0 + $0x2c0] sm:$0xff]
    %v175 = vld [vmem:[%s0 + $0x2c8] sm:$0xff]
    %v176 = vld [vmem:[%s0 + $0x2d0] sm:$0xff]
    %v177 = vld [vmem:[%s0 + $0x2d8] sm:$0xf]
    %v178 = vld [vmem:[%s0 + $0x2e0] sm:$0xff]
    %v179 = vld [vmem:[%s0 + $0x2e8] sm:$0xff]
    %v180 = vld [vmem:[%s0 + $0x2f0] sm:$0xff]
    %v181 = vld [vmem:[%s0 + $0x2f8] sm:$0xf]
    %v182 = vld [vmem:[%s0 + $0x300] sm:$0xff]
    %v183 = vld [vmem:[%s0 + $0x308] sm:$0xff]
    %v184 = vld [vmem:[%s0 + $0x310] sm:$0xff]
    %v185 = vld [vmem:[%s0 + $0x318] sm:$0xf]
    %v186 = vld [vmem:[%s0 + $0x320] sm:$0xff]
    %v187 = vld [vmem:[%s0 + $0x328] sm:$0xff]
    %v188 = vld [vmem:[%s0 + $0x330] sm:$0xff]
    %v189 = vld [vmem:[%s0 + $0x338] sm:$0xf]
    %v190 = vld [vmem:[%s0 + $0x340] sm:$0xff]
    %v191 = vld [vmem:[%s0 + $0x348] sm:$0xff]
    %v192 = vld [vmem:[%s0 + $0x350] sm:$0xff]
    %v193 = vld [vmem:[%s0 + $0x358] sm:$0xf]
    %v194 = vld [vmem:[%s0 + $0x360] sm:$0xff]
    %v195 = vld [vmem:[%s0 + $0x368] sm:$0xff]
    %v196 = vld [vmem:[%s0 + $0x370] sm:$0xff]
    %v197 = vld [vmem:[%s0 + $0x378] sm:$0xf]
    loop: start=0, step=1, limit=6
    $region62: #{convnet_forward.1} parent=1 // loop_pre_header
      _
    $region63: #{convnet_forward.1} parent=1 // loop_header
      %s199 = sphi 0, %s203
      %p200 = scmp.ge.s32.totalorder %s199, 6
    $region64: #{convnet_forward.1} parent=1 // loop_header_branch
      %202 = sbr.rel (%p200) target = $region68
    $region65: #{convnet_forward.1} parent=1 // loop_body
      %s204 = sld [smem:[#allocation6 + %s199]]
      %v205 = vstv %s204
      %s206 = sld [smem:[#allocation4 + %s199]]
      %v207 = vstv %s206
      %v208 = vmul.f32 %v86, %v207
      %v209 = vmul.f32 %v87, %v207
      %v210 = vmul.f32 %v88, %v207
      %v211 = vmul.f32 %v89, %v207
      %v212 = vmul.f32 %v90, %v207
      %v213 = vmul.f32 %v91, %v207
      %v214 = vmul.f32 %v92, %v207
      %v215 = vmul.f32 %v93, %v207
      %v216 = vmul.f32 %v94, %v207
      %v217 = vmul.f32 %v95, %v207
      %v218 = vmul.f32 %v96, %v207
      %v219 = vmul.f32 %v97, %v207
      %v220 = vmul.f32 %v98, %v207
      %v221 = vmul.f32 %v99, %v207
      %v222 = vmul.f32 %v100, %v207
      %v223 = vmul.f32 %v101, %v207
      %v224 = vmul.f32 %v102, %v207
      %v225 = vmul.f32 %v103, %v207
      %v226 = vmul.f32 %v104, %v207
      %v227 = vmul.f32 %v105, %v207
      %v228 = vmul.f32 %v106, %v207
      %v229 = vmul.f32 %v107, %v207
      %v230 = vmul.f32 %v108, %v207
      %v231 = vmul.f32 %v109, %v207
      %v232 = vmul.f32 %v110, %v207
      %v233 = vmul.f32 %v111, %v207
      %v234 = vmul.f32 %v112, %v207
      %v235 = vmul.f32 %v113, %v207
      %v236 = vmul.f32 %v114, %v207
      %v237 = vmul.f32 %v115, %v207
      %v238 = vmul.f32 %v116, %v207
      %v239 = vmul.f32 %v117, %v207
      %v240 = vmul.f32 %v118, %v207
      %v241 = vmul.f32 %v119, %v207
      %v242 = vmul.f32 %v120, %v207
      %v243 = vmul.f32 %v121, %v207
      %v244 = vmul.f32 %v122, %v207
      %v245 = vmul.f32 %v123, %v207
      %v246 = vmul.f32 %v124, %v207
      %v247 = vmul.f32 %v125, %v207
      %v248 = vmul.f32 %v126, %v207
      %v249 = vmul.f32 %v127, %v207
      %v250 = vmul.f32 %v128, %v207
      %v251 = vmul.f32 %v129, %v207
      %v252 = vmul.f32 %v130, %v207
      %v253 = vmul.f32 %v131, %v207
      %v254 = vmul.f32 %v132, %v207
      %v255 = vmul.f32 %v133, %v207
      %v256 = vmul.f32 %v134, %v207
      %v257 = vmul.f32 %v135, %v207
      %v258 = vmul.f32 %v136, %v207
      %v259 = vmul.f32 %v137, %v207
      %v260 = vmul.f32 %v138, %v207
      %v261 = vmul.f32 %v139, %v207
      %v262 = vmul.f32 %v140, %v207
      %v263 = vmul.f32 %v141, %v207
      %v264 = vmul.f32 %v142, %v207
      %v265 = vmul.f32 %v143, %v207
      %v266 = vmul.f32 %v144, %v207
      %v267 = vmul.f32 %v145, %v207
      %v268 = vmul.f32 %v146, %v207
      %v269 = vmul.f32 %v147, %v207
      %v270 = vmul.f32 %v148, %v207
      %v271 = vmul.f32 %v149, %v207
      %v272 = vmul.f32 %v150, %v207
      %v273 = vmul.f32 %v151, %v207
      %v274 = vmul.f32 %v152, %v207
      %v275 = vmul.f32 %v153, %v207
      %v276 = vmul.f32 %v154, %v207
      %v277 = vmul.f32 %v155, %v207
      %v278 = vmul.f32 %v156, %v207
      %v279 = vmul.f32 %v157, %v207
      %v280 = vmul.f32 %v158, %v207
      %v281 = vmul.f32 %v159, %v207
      %v282 = vmul.f32 %v160, %v207
      %v283 = vmul.f32 %v161, %v207
      %v284 = vmul.f32 %v162, %v207
      %v285 = vmul.f32 %v163, %v207
      %v286 = vmul.f32 %v164, %v207
      %v287 = vmul.f32 %v165, %v207
      %v288 = vmul.f32 %v166, %v207
      %v289 = vmul.f32 %v167, %v207
      %v290 = vmul.f32 %v168, %v207
      %v291 = vmul.f32 %v169, %v207
      %v292 = vmul.f32 %v170, %v207
      %v293 = vmul.f32 %v171, %v207
      %v294 = vmul.f32 %v172, %v207
      %v295 = vmul.f32 %v173, %v207
      %v296 = vmul.f32 %v174, %v207
      %v297 = vmul.f32 %v175, %v207
      %v298 = vmul.f32 %v176, %v207
      %v299 = vmul.f32 %v177, %v207
      %v300 = vmul.f32 %v178, %v207
      %v301 = vmul.f32 %v179, %v207
      %v302 = vmul.f32 %v180, %v207
      %v303 = vmul.f32 %v181, %v207
      %v304 = vmul.f32 %v182, %v207
      %v305 = vmul.f32 %v183, %v207
      %v306 = vmul.f32 %v184, %v207
      %v307 = vmul.f32 %v185, %v207
      %v308 = vmul.f32 %v186, %v207
      %v309 = vmul.f32 %v187, %v207
      %v310 = vmul.f32 %v188, %v207
      %v311 = vmul.f32 %v189, %v207
      %v312 = vadd.f32 %v205, %v208
      %v313 = vadd.f32 %v205, %v209
      %v314 = vadd.f32 %v205, %v210
      %v315 = vadd.f32 %v205, %v211
      %v316 = vadd.f32 %v205, %v212
      %v317 = vadd.f32 %v205, %v213
      %v318 = vadd.f32 %v205, %v214
      %v319 = vadd.f32 %v205, %v215
      %v320 = vadd.f32 %v205, %v216
      %v321 = vadd.f32 %v205, %v217
      %v322 = vadd.f32 %v205, %v218
      %v323 = vadd.f32 %v205, %v219
      %v324 = vadd.f32 %v205, %v220
      %v325 = vadd.f32 %v205, %v221
      %v326 = vadd.f32 %v205, %v222
      %v327 = vadd.f32 %v205, %v223
      %v328 = vadd.f32 %v205, %v224
      %v329 = vadd.f32 %v205, %v225
      %v330 = vadd.f32 %v205, %v226
      %v331 = vadd.f32 %v205, %v227
      %v332 = vadd.f32 %v205, %v228
      %v333 = vadd.f32 %v205, %v229
      %v334 = vadd.f32 %v205, %v230
      %v335 = vadd.f32 %v205, %v231
      %v336 = vadd.f32 %v205, %v232
      %v337 = vadd.f32 %v205, %v233
      %v338 = vadd.f32 %v205, %v234
      %v339 = vadd.f32 %v205, %v235
      %v340 = vadd.f32 %v205, %v236
      %v341 = vadd.f32 %v205, %v237
      %v342 = vadd.f32 %v205, %v238
      %v343 = vadd.f32 %v205, %v239
      %v344 = vadd.f32 %v205, %v240
      %v345 = vadd.f32 %v205, %v241
      %v346 = vadd.f32 %v205, %v242
      %v347 = vadd.f32 %v205, %v243
      %v348 = vadd.f32 %v205, %v244
      %v349 = vadd.f32 %v205, %v245
      %v350 = vadd.f32 %v205, %v246
      %v351 = vadd.f32 %v205, %v247
      %v352 = vadd.f32 %v205, %v248
      %v353 = vadd.f32 %v205, %v249
      %v354 = vadd.f32 %v205, %v250
      %v355 = vadd.f32 %v205, %v251
      %v356 = vadd.f32 %v205, %v252
      %v357 = vadd.f32 %v205, %v253
      %v358 = vadd.f32 %v205, %v254
      %v359 = vadd.f32 %v205, %v255
      %v360 = vadd.f32 %v205, %v256
      %v361 = vadd.f32 %v205, %v257
      %v362 = vadd.f32 %v205, %v258
      %v363 = vadd.f32 %v205, %v259
      %v364 = vadd.f32 %v205, %v260
      %v365 = vadd.f32 %v205, %v261
      %v366 = vadd.f32 %v205, %v262
      %v367 = vadd.f32 %v205, %v263
      %v368 = vadd.f32 %v205, %v264
      %v369 = vadd.f32 %v205, %v265
      %v370 = vadd.f32 %v205, %v266
      %v371 = vadd.f32 %v205, %v267
      %v372 = vadd.f32 %v205, %v268
      %v373 = vadd.f32 %v205, %v269
      %v374 = vadd.f32 %v205, %v270
      %v375 = vadd.f32 %v205, %v271
      %v376 = vadd.f32 %v205, %v272
      %v377 = vadd.f32 %v205, %v273
      %v378 = vadd.f32 %v205, %v274
      %v379 = vadd.f32 %v205, %v275
      %v380 = vadd.f32 %v205, %v276
      %v381 = vadd.f32 %v205, %v277
      %v382 = vadd.f32 %v205, %v278
      %v383 = vadd.f32 %v205, %v279
      %v384 = vadd.f32 %v205, %v280
      %v385 = vadd.f32 %v205, %v281
      %v386 = vadd.f32 %v205, %v282
      %v387 = vadd.f32 %v205, %v283
      %v388 = vadd.f32 %v205, %v284
      %v389 = vadd.f32 %v205, %v285
      %v390 = vadd.f32 %v205, %v286
      %v391 = vadd.f32 %v205, %v287
      %v392 = vadd.f32 %v205, %v288
      %v393 = vadd.f32 %v205, %v289
      %v394 = vadd.f32 %v205, %v290
      %v395 = vadd.f32 %v205, %v291
      %v396 = vadd.f32 %v205, %v292
      %v397 = vadd.f32 %v205, %v293
      %v398 = vadd.f32 %v205, %v294
      %v399 = vadd.f32 %v205, %v295
      %v400 = vadd.f32 %v205, %v296
      %v401 = vadd.f32 %v205, %v297
      %v402 = vadd.f32 %v205, %v298
      %v403 = vadd.f32 %v205, %v299
      %v404 = vadd.f32 %v205, %v300
      %v405 = vadd.f32 %v205, %v301
      %v406 = vadd.f32 %v205, %v302
      %v407 = vadd.f32 %v205, %v303
      %v408 = vadd.f32 %v205, %v304
      %v409 = vadd.f32 %v205, %v305
      %v410 = vadd.f32 %v205, %v306
      %v411 = vadd.f32 %v205, %v307
      %v412 = vadd.f32 %v205, %v308
      %v413 = vadd.f32 %v205, %v309
      %v414 = vadd.f32 %v205, %v310
      %v415 = vadd.f32 %v205, %v311
      %s416 = sadd.s32 %s199, 18
      %s417 = sld [smem:[#allocation4 + %s416]]
      %v418 = vstv %s417
      %v419 = vmul.f32 %v90, %v418
      %v420 = vmul.f32 %v91, %v418
      %v421 = vmul.f32 %v92, %v418
      %v422 = vmul.f32 %v93, %v418
      %v423 = vmul.f32 %v94, %v418
      %v424 = vmul.f32 %v95, %v418
      %v425 = vmul.f32 %v96, %v418
      %v426 = vmul.f32 %v97, %v418
      %v427 = vmul.f32 %v98, %v418
      %v428 = vmul.f32 %v99, %v418
      %v429 = vmul.f32 %v100, %v418
      %v430 = vmul.f32 %v101, %v418
      %v431 = vmul.f32 %v102, %v418
      %v432 = vmul.f32 %v103, %v418
      %v433 = vmul.f32 %v104, %v418
      %v434 = vmul.f32 %v105, %v418
      %v435 = vmul.f32 %v106, %v418
      %v436 = vmul.f32 %v107, %v418
      %v437 = vmul.f32 %v108, %v418
      %v438 = vmul.f32 %v109, %v418
      %v439 = vmul.f32 %v110, %v418
      %v440 = vmul.f32 %v111, %v418
      %v441 = vmul.f32 %v112, %v418
      %v442 = vmul.f32 %v113, %v418
      %v443 = vmul.f32 %v114, %v418
      %v444 = vmul.f32 %v115, %v418
      %v445 = vmul.f32 %v116, %v418
      %v446 = vmul.f32 %v117, %v418
      %v447 = vmul.f32 %v118, %v418
      %v448 = vmul.f32 %v119, %v418
      %v449 = vmul.f32 %v120, %v418
      %v450 = vmul.f32 %v121, %v418
      %v451 = vmul.f32 %v122, %v418
      %v452 = vmul.f32 %v123, %v418
      %v453 = vmul.f32 %v124, %v418
      %v454 = vmul.f32 %v125, %v418
      %v455 = vmul.f32 %v126, %v418
      %v456 = vmul.f32 %v127, %v418
      %v457 = vmul.f32 %v128, %v418
      %v458 = vmul.f32 %v129, %v418
      %v459 = vmul.f32 %v130, %v418
      %v460 = vmul.f32 %v131, %v418
      %v461 = vmul.f32 %v132, %v418
      %v462 = vmul.f32 %v133, %v418
      %v463 = vmul.f32 %v134, %v418
      %v464 = vmul.f32 %v135, %v418
      %v465 = vmul.f32 %v136, %v418
      %v466 = vmul.f32 %v137, %v418
      %v467 = vmul.f32 %v138, %v418
      %v468 = vmul.f32 %v139, %v418
      %v469 = vmul.f32 %v140, %v418
      %v470 = vmul.f32 %v141, %v418
      %v471 = vmul.f32 %v142, %v418
      %v472 = vmul.f32 %v143, %v418
      %v473 = vmul.f32 %v144, %v418
      %v474 = vmul.f32 %v145, %v418
      %v475 = vmul.f32 %v146, %v418
      %v476 = vmul.f32 %v147, %v418
      %v477 = vmul.f32 %v148, %v418
      %v478 = vmul.f32 %v149, %v418
      %v479 = vmul.f32 %v150, %v418
      %v480 = vmul.f32 %v151, %v418
      %v481 = vmul.f32 %v152, %v418
      %v482 = vmul.f32 %v153, %v418
      %v483 = vmul.f32 %v154, %v418
      %v484 = vmul.f32 %v155, %v418
      %v485 = vmul.f32 %v156, %v418
      %v486 = vmul.f32 %v157, %v418
      %v487 = vmul.f32 %v158, %v418
      %v488 = vmul.f32 %v159, %v418
      %v489 = vmul.f32 %v160, %v418
      %v490 = vmul.f32 %v161, %v418
      %v491 = vmul.f32 %v162, %v418
      %v492 = vmul.f32 %v163, %v418
      %v493 = vmul.f32 %v164, %v418
      %v494 = vmul.f32 %v165, %v418
      %v495 = vmul.f32 %v166, %v418
      %v496 = vmul.f32 %v167, %v418
      %v497 = vmul.f32 %v168, %v418
      %v498 = vmul.f32 %v169, %v418
      %v499 = vmul.f32 %v170, %v418
      %v500 = vmul.f32 %v171, %v418
      %v501 = vmul.f32 %v172, %v418
      %v502 = vmul.f32 %v173, %v418
      %v503 = vmul.f32 %v174, %v418
      %v504 = vmul.f32 %v175, %v418
      %v505 = vmul.f32 %v176, %v418
      %v506 = vmul.f32 %v177, %v418
      %v507 = vmul.f32 %v178, %v418
      %v508 = vmul.f32 %v179, %v418
      %v509 = vmul.f32 %v180, %v418
      %v510 = vmul.f32 %v181, %v418
      %v511 = vmul.f32 %v182, %v418
      %v512 = vmul.f32 %v183, %v418
      %v513 = vmul.f32 %v184, %v418
      %v514 = vmul.f32 %v185, %v418
      %v515 = vmul.f32 %v186, %v418
      %v516 = vmul.f32 %v187, %v418
      %v517 = vmul.f32 %v188, %v418
      %v518 = vmul.f32 %v189, %v418
      %v519 = vmul.f32 %v190, %v418
      %v520 = vmul.f32 %v191, %v418
      %v521 = vmul.f32 %v192, %v418
      %v522 = vmul.f32 %v193, %v418
      %v523 = vadd.f32 %v312, %v419
      %v524 = vadd.f32 %v313, %v420
      %v525 = vadd.f32 %v314, %v421
      %v526 = vadd.f32 %v315, %v422
      %v527 = vadd.f32 %v316, %v423
      %v528 = vadd.f32 %v317, %v424
      %v529 = vadd.f32 %v318, %v425
      %v530 = vadd.f32 %v319, %v426
      %v531 = vadd.f32 %v320, %v427
      %v532 = vadd.f32 %v321, %v428
      %v533 = vadd.f32 %v322, %v429
      %v534 = vadd.f32 %v323, %v430
      %v535 = vadd.f32 %v324, %v431
      %v536 = vadd.f32 %v325, %v432
      %v537 = vadd.f32 %v326, %v433
      %v538 = vadd.f32 %v327, %v434
      %v539 = vadd.f32 %v328, %v435
      %v540 = vadd.f32 %v329, %v436
      %v541 = vadd.f32 %v330, %v437
      %v542 = vadd.f32 %v331, %v438
      %v543 = vadd.f32 %v332, %v439
      %v544 = vadd.f32 %v333, %v440
      %v545 = vadd.f32 %v334, %v441
      %v546 = vadd.f32 %v335, %v442
      %v547 = vadd.f32 %v336, %v443
      %v548 = vadd.f32 %v337, %v444
      %v549 = vadd.f32 %v338, %v445
      %v550 = vadd.f32 %v339, %v446
      %v551 = vadd.f32 %v340, %v447
      %v552 = vadd.f32 %v341, %v448
      %v553 = vadd.f32 %v342, %v449
      %v554 = vadd.f32 %v343, %v450
      %v555 = vadd.f32 %v344, %v451
      %v556 = vadd.f32 %v345, %v452
      %v557 = vadd.f32 %v346, %v453
      %v558 = vadd.f32 %v347, %v454
      %v559 = vadd.f32 %v348, %v455
      %v560 = vadd.f32 %v349, %v456
      %v561 = vadd.f32 %v350, %v457
      %v562 = vadd.f32 %v351, %v458
      %v563 = vadd.f32 %v352, %v459
      %v564 = vadd.f32 %v353, %v460
      %v565 = vadd.f32 %v354, %v461
      %v566 = vadd.f32 %v355, %v462
      %v567 = vadd.f32 %v356, %v463
      %v568 = vadd.f32 %v357, %v464
      %v569 = vadd.f32 %v358, %v465
      %v570 = vadd.f32 %v359, %v466
      %v571 = vadd.f32 %v360, %v467
      %v572 = vadd.f32 %v361, %v468
      %v573 = vadd.f32 %v362, %v469
      %v574 = vadd.f32 %v363, %v470
      %v575 = vadd.f32 %v364, %v471
      %v576 = vadd.f32 %v365, %v472
      %v577 = vadd.f32 %v366, %v473
      %v578 = vadd.f32 %v367, %v474
      %v579 = vadd.f32 %v368, %v475
      %v580 = vadd.f32 %v369, %v476
      %v581 = vadd.f32 %v370, %v477
      %v582 = vadd.f32 %v371, %v478
      %v583 = vadd.f32 %v372, %v479
      %v584 = vadd.f32 %v373, %v480
      %v585 = vadd.f32 %v374, %v481
      %v586 = vadd.f32 %v375, %v482
      %v587 = vadd.f32 %v376, %v483
      %v588 = vadd.f32 %v377, %v484
      %v589 = vadd.f32 %v378, %v485
      %v590 = vadd.f32 %v379, %v486
      %v591 = vadd.f32 %v380, %v487
      %v592 = vadd.f32 %v381, %v488
      %v593 = vadd.f32 %v382, %v489
      %v594 = vadd.f32 %v383, %v490
      %v595 = vadd.f32 %v384, %v491
      %v596 = vadd.f32 %v385, %v492
      %v597 = vadd.f32 %v386, %v493
      %v598 = vadd.f32 %v387, %v494
      %v599 = vadd.f32 %v388, %v495
      %v600 = vadd.f32 %v389, %v496
      %v601 = vadd.f32 %v390, %v497
      %v602 = vadd.f32 %v391, %v498
      %v603 = vadd.f32 %v392, %v499
      %v604 = vadd.f32 %v393, %v500
      %v605 = vadd.f32 %v394, %v501
      %v606 = vadd.f32 %v395, %v502
      %v607 = vadd.f32 %v396, %v503
      %v608 = vadd.f32 %v397, %v504
      %v609 = vadd.f32 %v398, %v505
      %v610 = vadd.f32 %v399, %v506
      %v611 = vadd.f32 %v400, %v507
      %v612 = vadd.f32 %v401, %v508
      %v613 = vadd.f32 %v402, %v509
      %v614 = vadd.f32 %v403, %v510
      %v615 = vadd.f32 %v404, %v511
      %v616 = vadd.f32 %v405, %v512
      %v617 = vadd.f32 %v406, %v513
      %v618 = vadd.f32 %v407, %v514
      %v619 = vadd.f32 %v408, %v515
      %v620 = vadd.f32 %v409, %v516
      %v621 = vadd.f32 %v410, %v517
      %v622 = vadd.f32 %v411, %v518
      %v623 = vadd.f32 %v412, %v519
      %v624 = vadd.f32 %v413, %v520
      %v625 = vadd.f32 %v414, %v521
      %v626 = vadd.f32 %v415, %v522
      %s627 = sadd.s32 %s199, 36
      %s628 = sld [smem:[#allocation4 + %s627]]
      %v629 = vstv %s628
      %v630 = vmul.f32 %v94, %v629
      %v631 = vmul.f32 %v95, %v629
      %v632 = vmul.f32 %v96, %v629
      %v633 = vmul.f32 %v97, %v629
      %v634 = vmul.f32 %v98, %v629
      %v635 = vmul.f32 %v99, %v629
      %v636 = vmul.f32 %v100, %v629
      %v637 = vmul.f32 %v101, %v629
      %v638 = vmul.f32 %v102, %v629
      %v639 = vmul.f32 %v103, %v629
      %v640 = vmul.f32 %v104, %v629
      %v641 = vmul.f32 %v105, %v629
      %v642 = vmul.f32 %v106, %v629
      %v643 = vmul.f32 %v107, %v629
      %v644 = vmul.f32 %v108, %v629
      %v645 = vmul.f32 %v109, %v629
      %v646 = vmul.f32 %v110, %v629
      %v647 = vmul.f32 %v111, %v629
      %v648 = vmul.f32 %v112, %v629
      %v649 = vmul.f32 %v113, %v629
      %v650 = vmul.f32 %v114, %v629
      %v651 = vmul.f32 %v115, %v629
      %v652 = vmul.f32 %v116, %v629
      %v653 = vmul.f32 %v117, %v629
      %v654 = vmul.f32 %v118, %v629
      %v655 = vmul.f32 %v119, %v629
      %v656 = vmul.f32 %v120, %v629
      %v657 = vmul.f32 %v121, %v629
      %v658 = vmul.f32 %v122, %v629
      %v659 = vmul.f32 %v123, %v629
      %v660 = vmul.f32 %v124, %v629
      %v661 = vmul.f32 %v125, %v629
      %v662 = vmul.f32 %v126, %v629
      %v663 = vmul.f32 %v127, %v629
      %v664 = vmul.f32 %v128, %v629
      %v665 = vmul.f32 %v129, %v629
      %v666 = vmul.f32 %v130, %v629
      %v667 = vmul.f32 %v131, %v629
      %v668 = vmul.f32 %v132, %v629
      %v669 = vmul.f32 %v133, %v629
      %v670 = vmul.f32 %v134, %v629
      %v671 = vmul.f32 %v135, %v629
      %v672 = vmul.f32 %v136, %v629
      %v673 = vmul.f32 %v137, %v629
      %v674 = vmul.f32 %v138, %v629
      %v675 = vmul.f32 %v139, %v629
      %v676 = vmul.f32 %v140, %v629
      %v677 = vmul.f32 %v141, %v629
      %v678 = vmul.f32 %v142, %v629
      %v679 = vmul.f32 %v143, %v629
      %v680 = vmul.f32 %v144, %v629
      %v681 = vmul.f32 %v145, %v629
      %v682 = vmul.f32 %v146, %v629
      %v683 = vmul.f32 %v147, %v629
      %v684 = vmul.f32 %v148, %v629
      %v685 = vmul.f32 %v149, %v629
      %v686 = vmul.f32 %v150, %v629
      %v687 = vmul.f32 %v151, %v629
      %v688 = vmul.f32 %v152, %v629
      %v689 = vmul.f32 %v153, %v629
      %v690 = vmul.f32 %v154, %v629
      %v691 = vmul.f32 %v155, %v629
      %v692 = vmul.f32 %v156, %v629
      %v693 = vmul.f32 %v157, %v629
      %v694 = vmul.f32 %v158, %v629
      %v695 = vmul.f32 %v159, %v629
      %v696 = vmul.f32 %v160, %v629
      %v697 = vmul.f32 %v161, %v629
      %v698 = vmul.f32 %v162, %v629
      %v699 = vmul.f32 %v163, %v629
      %v700 = vmul.f32 %v164, %v629
      %v701 = vmul.f32 %v165, %v629
      %v702 = vmul.f32 %v166, %v629
      %v703 = vmul.f32 %v167, %v629
      %v704 = vmul.f32 %v168, %v629
      %v705 = vmul.f32 %v169, %v629
      %v706 = vmul.f32 %v170, %v629
      %v707 = vmul.f32 %v171, %v629
      %v708 = vmul.f32 %v172, %v629
      %v709 = vmul.f32 %v173, %v629
      %v710 = vmul.f32 %v174, %v629
      %v711 = vmul.f32 %v175, %v629
      %v712 = vmul.f32 %v176, %v629
      %v713 = vmul.f32 %v177, %v629
      %v714 = vmul.f32 %v178, %v629
      %v715 = vmul.f32 %v179, %v629
      %v716 = vmul.f32 %v180, %v629
      %v717 = vmul.f32 %v181, %v629
      %v718 = vmul.f32 %v182, %v629
      %v719 = vmul.f32 %v183, %v629
      %v720 = vmul.f32 %v184, %v629
      %v721 = vmul.f32 %v185, %v629
      %v722 = vmul.f32 %v186, %v629
      %v723 = vmul.f32 %v187, %v629
      %v724 = vmul.f32 %v188, %v629
      %v725 = vmul.f32 %v189, %v629
      %v726 = vmul.f32 %v190, %v629
      %v727 = vmul.f32 %v191, %v629
      %v728 = vmul.f32 %v192, %v629
      %v729 = vmul.f32 %v193, %v629
      %v730 = vmul.f32 %v194, %v629
      %v731 = vmul.f32 %v195, %v629
      %v732 = vmul.f32 %v196, %v629
      %v733 = vmul.f32 %v197, %v629
      %v734 = vadd.f32 %v523, %v630
      %v735 = vadd.f32 %v524, %v631
      %v736 = vadd.f32 %v525, %v632
      %v737 = vadd.f32 %v526, %v633
      %v738 = vadd.f32 %v527, %v634
      %v739 = vadd.f32 %v528, %v635
      %v740 = vadd.f32 %v529, %v636
      %v741 = vadd.f32 %v530, %v637
      %v742 = vadd.f32 %v531, %v638
      %v743 = vadd.f32 %v532, %v639
      %v744 = vadd.f32 %v533, %v640
      %v745 = vadd.f32 %v534, %v641
      %v746 = vadd.f32 %v535, %v642
      %v747 = vadd.f32 %v536, %v643
      %v748 = vadd.f32 %v537, %v644
      %v749 = vadd.f32 %v538, %v645
      %v750 = vadd.f32 %v539, %v646
      %v751 = vadd.f32 %v540, %v647
      %v752 = vadd.f32 %v541, %v648
      %v753 = vadd.f32 %v542, %v649
      %v754 = vadd.f32 %v543, %v650
      %v755 = vadd.f32 %v544, %v651
      %v756 = vadd.f32 %v545, %v652
      %v757 = vadd.f32 %v546, %v653
      %v758 = vadd.f32 %v547, %v654
      %v759 = vadd.f32 %v548, %v655
      %v760 = vadd.f32 %v549, %v656
      %v761 = vadd.f32 %v550, %v657
      %v762 = vadd.f32 %v551, %v658
      %v763 = vadd.f32 %v552, %v659
      %v764 = vadd.f32 %v553, %v660
      %v765 = vadd.f32 %v554, %v661
      %v766 = vadd.f32 %v555, %v662
      %v767 = vadd.f32 %v556, %v663
      %v768 = vadd.f32 %v557, %v664
      %v769 = vadd.f32 %v558, %v665
      %v770 = vadd.f32 %v559, %v666
      %v771 = vadd.f32 %v560, %v667
      %v772 = vadd.f32 %v561, %v668
      %v773 = vadd.f32 %v562, %v669
      %v774 = vadd.f32 %v563, %v670
      %v775 = vadd.f32 %v564, %v671
      %v776 = vadd.f32 %v565, %v672
      %v777 = vadd.f32 %v566, %v673
      %v778 = vadd.f32 %v567, %v674
      %v779 = vadd.f32 %v568, %v675
      %v780 = vadd.f32 %v569, %v676
      %v781 = vadd.f32 %v570, %v677
      %v782 = vadd.f32 %v571, %v678
      %v783 = vadd.f32 %v572, %v679
      %v784 = vadd.f32 %v573, %v680
      %v785 = vadd.f32 %v574, %v681
      %v786 = vadd.f32 %v575, %v682
      %v787 = vadd.f32 %v576, %v683
      %v788 = vadd.f32 %v577, %v684
      %v789 = vadd.f32 %v578, %v685
      %v790 = vadd.f32 %v579, %v686
      %v791 = vadd.f32 %v580, %v687
      %v792 = vadd.f32 %v581, %v688
      %v793 = vadd.f32 %v582, %v689
      %v794 = vadd.f32 %v583, %v690
      %v795 = vadd.f32 %v584, %v691
      %v796 = vadd.f32 %v585, %v692
      %v797 = vadd.f32 %v586, %v693
      %v798 = vadd.f32 %v587, %v694
      %v799 = vadd.f32 %v588, %v695
      %v800 = vadd.f32 %v589, %v696
      %v801 = vadd.f32 %v590, %v697
      %v802 = vadd.f32 %v591, %v698
      %v803 = vadd.f32 %v592, %v699
      %v804 = vadd.f32 %v593, %v700
      %v805 = vadd.f32 %v594, %v701
      %v806 = vadd.f32 %v595, %v702
      %v807 = vadd.f32 %v596, %v703
      %v808 = vadd.f32 %v597, %v704
      %v809 = vadd.f32 %v598, %v705
      %v810 = vadd.f32 %v599, %v706
      %v811 = vadd.f32 %v600, %v707
      %v812 = vadd.f32 %v601, %v708
      %v813 = vadd.f32 %v602, %v709
      %v814 = vadd.f32 %v603, %v710
      %v815 = vadd.f32 %v604, %v711
      %v816 = vadd.f32 %v605, %v712
      %v817 = vadd.f32 %v606, %v713
      %v818 = vadd.f32 %v607, %v714
      %v819 = vadd.f32 %v608, %v715
      %v820 = vadd.f32 %v609, %v716
      %v821 = vadd.f32 %v610, %v717
      %v822 = vadd.f32 %v611, %v718
      %v823 = vadd.f32 %v612, %v719
      %v824 = vadd.f32 %v613, %v720
      %v825 = vadd.f32 %v614, %v721
      %v826 = vadd.f32 %v615, %v722
      %v827 = vadd.f32 %v616, %v723
      %v828 = vadd.f32 %v617, %v724
      %v829 = vadd.f32 %v618, %v725
      %v830 = vadd.f32 %v619, %v726
      %v831 = vadd.f32 %v620, %v727
      %v832 = vadd.f32 %v621, %v728
      %v833 = vadd.f32 %v622, %v729
      %v834 = vadd.f32 %v623, %v730
      %v835 = vadd.f32 %v624, %v731
      %v836 = vadd.f32 %v625, %v732
      %v837 = vadd.f32 %v626, %v733
      %s838 = sadd.s32 %s199, 6
      %s839 = sld [smem:[#allocation4 + %s838]]
      %v840 = vstv %s839
      %v841 = vmul.f32 %v86, %v840
      %v842 = vmul.f32 %v87, %v840
      %v843 = vmul.f32 %v88, %v840
      %v844 = vmul.f32 %v89, %v840
      %v845 = vmul.f32 %v90, %v840
      %v846 = vmul.f32 %v91, %v840
      %v847 = vmul.f32 %v92, %v840
      %v848 = vmul.f32 %v93, %v840
      %v849 = vmul.f32 %v94, %v840
      %v850 = vmul.f32 %v95, %v840
      %v851 = vmul.f32 %v96, %v840
      %v852 = vmul.f32 %v97, %v840
      %v853 = vmul.f32 %v98, %v840
      %v854 = vmul.f32 %v99, %v840
      %v855 = vmul.f32 %v100, %v840
      %v856 = vmul.f32 %v101, %v840
      %v857 = vmul.f32 %v102, %v840
      %v858 = vmul.f32 %v103, %v840
      %v859 = vmul.f32 %v104, %v840
      %v860 = vmul.f32 %v105, %v840
      %v861 = vmul.f32 %v106, %v840
      %v862 = vmul.f32 %v107, %v840
      %v863 = vmul.f32 %v108, %v840
      %v864 = vmul.f32 %v109, %v840
      %v865 = vmul.f32 %v110, %v840
      %v866 = vmul.f32 %v111, %v840
      %v867 = vmul.f32 %v112, %v840
      %v868 = vmul.f32 %v113, %v840
      %v869 = vmul.f32 %v114, %v840
      %v870 = vmul.f32 %v115, %v840
      %v871 = vmul.f32 %v116, %v840
      %v872 = vmul.f32 %v117, %v840
      %v873 = vmul.f32 %v118, %v840
      %v874 = vmul.f32 %v119, %v840
      %v875 = vmul.f32 %v120, %v840
      %v876 = vmul.f32 %v121, %v840
      %v877 = vmul.f32 %v122, %v840
      %v878 = vmul.f32 %v123, %v840
      %v879 = vmul.f32 %v124, %v840
      %v880 = vmul.f32 %v125, %v840
      %v881 = vmul.f32 %v126, %v840
      %v882 = vmul.f32 %v127, %v840
      %v883 = vmul.f32 %v128, %v840
      %v884 = vmul.f32 %v129, %v840
      %v885 = vmul.f32 %v130, %v840
      %v886 = vmul.f32 %v131, %v840
      %v887 = vmul.f32 %v132, %v840
      %v888 = vmul.f32 %v133, %v840
      %v889 = vmul.f32 %v134, %v840
      %v890 = vmul.f32 %v135, %v840
      %v891 = vmul.f32 %v136, %v840
      %v892 = vmul.f32 %v137, %v840
      %v893 = vmul.f32 %v138, %v840
      %v894 = vmul.f32 %v139, %v840
      %v895 = vmul.f32 %v140, %v840
      %v896 = vmul.f32 %v141, %v840
      %v897 = vmul.f32 %v142, %v840
      %v898 = vmul.f32 %v143, %v840
      %v899 = vmul.f32 %v144, %v840
      %v900 = vmul.f32 %v145, %v840
      %v901 = vmul.f32 %v146, %v840
      %v902 = vmul.f32 %v147, %v840
      %v903 = vmul.f32 %v148, %v840
      %v904 = vmul.f32 %v149, %v840
      %v905 = vmul.f32 %v150, %v840
      %v906 = vmul.f32 %v151, %v840
      %v907 = vmul.f32 %v152, %v840
      %v908 = vmul.f32 %v153, %v840
      %v909 = vmul.f32 %v154, %v840
      %v910 = vmul.f32 %v155, %v840
      %v911 = vmul.f32 %v156, %v840
      %v912 = vmul.f32 %v157, %v840
      %v913 = vmul.f32 %v158, %v840
      %v914 = vmul.f32 %v159, %v840
      %v915 = vmul.f32 %v160, %v840
      %v916 = vmul.f32 %v161, %v840
      %v917 = vmul.f32 %v162, %v840
      %v918 = vmul.f32 %v163, %v840
      %v919 = vmul.f32 %v164, %v840
      %v920 = vmul.f32 %v165, %v840
      %v921 = vmul.f32 %v166, %v840
      %v922 = vmul.f32 %v167, %v840
      %v923 = vmul.f32 %v168, %v840
      %v924 = vmul.f32 %v169, %v840
      %v925 = vmul.f32 %v170, %v840
      %v926 = vmul.f32 %v171, %v840
      %v927 = vmul.f32 %v172, %v840
      %v928 = vmul.f32 %v173, %v840
      %v929 = vmul.f32 %v174, %v840
      %v930 = vmul.f32 %v175, %v840
      %v931 = vmul.f32 %v176, %v840
      %v932 = vmul.f32 %v177, %v840
      %v933 = vmul.f32 %v178, %v840
      %v934 = vmul.f32 %v179, %v840
      %v935 = vmul.f32 %v180, %v840
      %v936 = vmul.f32 %v181, %v840
      %v937 = vmul.f32 %v182, %v840
      %v938 = vmul.f32 %v183, %v840
      %v939 = vmul.f32 %v184, %v840
      %v940 = vmul.f32 %v185, %v840
      %v941 = vmul.f32 %v186, %v840
      %v942 = vmul.f32 %v187, %v840
      %v943 = vmul.f32 %v188, %v840
      %v944 = vmul.f32 %v189, %v840
      %vm1049 = vcmask 1046528
      %v1050 = vrot.slane %v841, 1
      %v1051 = vrot.slane %v842, 1
      %v1052 = vsel %vm1049, %v1050, %v1051
      %v1053 = vrot.slane %v843, 1
      %v1054 = vsel %vm1049, %v1051, %v1053
      %v1055 = vrot.slane %v844, 1
      %v1056 = vsel %vm1049, %v1053, %v1055
      %v1057 = vrot.slane %v845, 1
      %v1058 = vrot.slane %v846, 1
      %v1059 = vsel %vm1049, %v1057, %v1058
      %v1060 = vrot.slane %v847, 1
      %v1061 = vsel %vm1049, %v1058, %v1060
      %v1062 = vrot.slane %v848, 1
      %v1063 = vsel %vm1049, %v1060, %v1062
      %v1064 = vrot.slane %v849, 1
      %v1065 = vrot.slane %v850, 1
      %v1066 = vsel %vm1049, %v1064, %v1065
      %v1067 = vrot.slane %v851, 1
      %v1068 = vsel %vm1049, %v1065, %v1067
      %v1069 = vrot.slane %v852, 1
      %v1070 = vsel %vm1049, %v1067, %v1069
      %v1071 = vrot.slane %v853, 1
      %v1072 = vrot.slane %v854, 1
      %v1073 = vsel %vm1049, %v1071, %v1072
      %v1074 = vrot.slane %v855, 1
      %v1075 = vsel %vm1049, %v1072, %v1074
      %v1076 = vrot.slane %v856, 1
      %v1077 = vsel %vm1049, %v1074, %v1076
      %v1078 = vrot.slane %v857, 1
      %v1079 = vrot.slane %v858, 1
      %v1080 = vsel %vm1049, %v1078, %v1079
      %v1081 = vrot.slane %v859, 1
      %v1082 = vsel %vm1049, %v1079, %v1081
      %v1083 = vrot.slane %v860, 1
      %v1084 = vsel %vm1049, %v1081, %v1083
      %v1085 = vrot.slane %v861, 1
      %v1086 = vrot.slane %v862, 1
      %v1087 = vsel %vm1049, %v1085, %v1086
      %v1088 = vrot.slane %v863, 1
      %v1089 = vsel %vm1049, %v1086, %v1088
      %v1090 = vrot.slane %v864, 1
      %v1091 = vsel %vm1049, %v1088, %v1090
      %v1092 = vrot.slane %v865, 1
      %v1093 = vrot.slane %v866, 1
      %v1094 = vsel %vm1049, %v1092, %v1093
      %v1095 = vrot.slane %v867, 1
      %v1096 = vsel %vm1049, %v1093, %v1095
      %v1097 = vrot.slane %v868, 1
      %v1098 = vsel %vm1049, %v1095, %v1097
      %v1099 = vrot.slane %v869, 1
      %v1100 = vrot.slane %v870, 1
      %v1101 = vsel %vm1049, %v1099, %v1100
      %v1102 = vrot.slane %v871, 1
      %v1103 = vsel %vm1049, %v1100, %v1102
      %v1104 = vrot.slane %v872, 1
      %v1105 = vsel %vm1049, %v1102, %v1104
      %v1106 = vrot.slane %v873, 1
      %v1107 = vrot.slane %v874, 1
      %v1108 = vsel %vm1049, %v1106, %v1107
      %v1109 = vrot.slane %v875, 1
      %v1110 = vsel %vm1049, %v1107, %v1109
      %v1111 = vrot.slane %v876, 1
      %v1112 = vsel %vm1049, %v1109, %v1111
      %v1113 = vrot.slane %v877, 1
      %v1114 = vrot.slane %v878, 1
      %v1115 = vsel %vm1049, %v1113, %v1114
      %v1116 = vrot.slane %v879, 1
      %v1117 = vsel %vm1049, %v1114, %v1116
      %v1118 = vrot.slane %v880, 1
      %v1119 = vsel %vm1049, %v1116, %v1118
      %v1120 = vrot.slane %v881, 1
      %v1121 = vrot.slane %v882, 1
      %v1122 = vsel %vm1049, %v1120, %v1121
      %v1123 = vrot.slane %v883, 1
      %v1124 = vsel %vm1049, %v1121, %v1123
      %v1125 = vrot.slane %v884, 1
      %v1126 = vsel %vm1049, %v1123, %v1125
      %v1127 = vrot.slane %v885, 1
      %v1128 = vrot.slane %v886, 1
      %v1129 = vsel %vm1049, %v1127, %v1128
      %v1130 = vrot.slane %v887, 1
      %v1131 = vsel %vm1049, %v1128, %v1130
      %v1132 = vrot.slane %v888, 1
      %v1133 = vsel %vm1049, %v1130, %v1132
      %v1134 = vrot.slane %v889, 1
      %v1135 = vrot.slane %v890, 1
      %v1136 = vsel %vm1049, %v1134, %v1135
      %v1137 = vrot.slane %v891, 1
      %v1138 = vsel %vm1049, %v1135, %v1137
      %v1139 = vrot.slane %v892, 1
      %v1140 = vsel %vm1049, %v1137, %v1139
      %v1141 = vrot.slane %v893, 1
      %v1142 = vrot.slane %v894, 1
      %v1143 = vsel %vm1049, %v1141, %v1142
      %v1144 = vrot.slane %v895, 1
      %v1145 = vsel %vm1049, %v1142, %v1144
      %v1146 = vrot.slane %v896, 1
      %v1147 = vsel %vm1049, %v1144, %v1146
      %v1148 = vrot.slane %v897, 1
      %v1149 = vrot.slane %v898, 1
      %v1150 = vsel %vm1049, %v1148, %v1149
      %v1151 = vrot.slane %v899, 1
      %v1152 = vsel %vm1049, %v1149, %v1151
      %v1153 = vrot.slane %v900, 1
      %v1154 = vsel %vm1049, %v1151, %v1153
      %v1155 = vrot.slane %v901, 1
      %v1156 = vrot.slane %v902, 1
      %v1157 = vsel %vm1049, %v1155, %v1156
      %v1158 = vrot.slane %v903, 1
      %v1159 = vsel %vm1049, %v1156, %v1158
      %v1160 = vrot.slane %v904, 1
      %v1161 = vsel %vm1049, %v1158, %v1160
      %v1162 = vrot.slane %v905, 1
      %v1163 = vrot.slane %v906, 1
      %v1164 = vsel %vm1049, %v1162, %v1163
      %v1165 = vrot.slane %v907, 1
      %v1166 = vsel %vm1049, %v1163, %v1165
      %v1167 = vrot.slane %v908, 1
      %v1168 = vsel %vm1049, %v1165, %v1167
      %v1169 = vrot.slane %v909, 1
      %v1170 = vrot.slane %v910, 1
      %v1171 = vsel %vm1049, %v1169, %v1170
      %v1172 = vrot.slane %v911, 1
      %v1173 = vsel %vm1049, %v1170, %v1172
      %v1174 = vrot.slane %v912, 1
      %v1175 = vsel %vm1049, %v1172, %v1174
      %v1176 = vrot.slane %v913, 1
      %v1177 = vrot.slane %v914, 1
      %v1178 = vsel %vm1049, %v1176, %v1177
      %v1179 = vrot.slane %v915, 1
      %v1180 = vsel %vm1049, %v1177, %v1179
      %v1181 = vrot.slane %v916, 1
      %v1182 = vsel %vm1049, %v1179, %v1181
      %v1183 = vrot.slane %v917, 1
      %v1184 = vrot.slane %v918, 1
      %v1185 = vsel %vm1049, %v1183, %v1184
      %v1186 = vrot.slane %v919, 1
      %v1187 = vsel %vm1049, %v1184, %v1186
      %v1188 = vrot.slane %v920, 1
      %v1189 = vsel %vm1049, %v1186, %v1188
      %v1190 = vrot.slane %v921, 1
      %v1191 = vrot.slane %v922, 1
      %v1192 = vsel %vm1049, %v1190, %v1191
      %v1193 = vrot.slane %v923, 1
      %v1194 = vsel %vm1049, %v1191, %v1193
      %v1195 = vrot.slane %v924, 1
      %v1196 = vsel %vm1049, %v1193, %v1195
      %v1197 = vrot.slane %v925, 1
      %v1198 = vrot.slane %v926, 1
      %v1199 = vsel %vm1049, %v1197, %v1198
      %v1200 = vrot.slane %v927, 1
      %v1201 = vsel %vm1049, %v1198, %v1200
      %v1202 = vrot.slane %v928, 1
      %v1203 = vsel %vm1049, %v1200, %v1202
      %v1204 = vrot.slane %v929, 1
      %v1205 = vrot.slane %v930, 1
      %v1206 = vsel %vm1049, %v1204, %v1205
      %v1207 = vrot.slane %v931, 1
      %v1208 = vsel %vm1049, %v1205, %v1207
      %v1209 = vrot.slane %v932, 1
      %v1210 = vsel %vm1049, %v1207, %v1209
      %v1211 = vrot.slane %v933, 1
      %v1212 = vrot.slane %v934, 1
      %v1213 = vsel %vm1049, %v1211, %v1212
      %v1214 = vrot.slane %v935, 1
      %v1215 = vsel %vm1049, %v1212, %v1214
      %v1216 = vrot.slane %v936, 1
      %v1217 = vsel %vm1049, %v1214, %v1216
      %v1218 = vrot.slane %v937, 1
      %v1219 = vrot.slane %v938, 1
      %v1220 = vsel %vm1049, %v1218, %v1219
      %v1221 = vrot.slane %v939, 1
      %v1222 = vsel %vm1049, %v1219, %v1221
      %v1223 = vrot.slane %v940, 1
      %v1224 = vsel %vm1049, %v1221, %v1223
      %v1225 = vrot.slane %v941, 1
      %v1226 = vrot.slane %v942, 1
      %v1227 = vsel %vm1049, %v1225, %v1226
      %v1228 = vrot.slane %v943, 1
      %v1229 = vsel %vm1049, %v1226, %v1228
      %v1230 = vrot.slane %v944, 1
      %v1231 = vsel %vm1049, %v1228, %v1230
      %v1336 = vadd.f32 %v734, %v1052
      %v1337 = vadd.f32 %v735, %v1054
      %v1338 = vadd.f32 %v736, %v1056
      %v1339 = vadd.f32 %v737, %v1055
      %v1340 = vadd.f32 %v738, %v1059
      %v1341 = vadd.f32 %v739, %v1061
      %v1342 = vadd.f32 %v740, %v1063
      %v1343 = vadd.f32 %v741, %v1062
      %v1344 = vadd.f32 %v742, %v1066
      %v1345 = vadd.f32 %v743, %v1068
      %v1346 = vadd.f32 %v744, %v1070
      %v1347 = vadd.f32 %v745, %v1069
      %v1348 = vadd.f32 %v746, %v1073
      %v1349 = vadd.f32 %v747, %v1075
      %v1350 = vadd.f32 %v748, %v1077
      %v1351 = vadd.f32 %v749, %v1076
      %v1352 = vadd.f32 %v750, %v1080
      %v1353 = vadd.f32 %v751, %v1082
      %v1354 = vadd.f32 %v752, %v1084
      %v1355 = vadd.f32 %v753, %v1083
      %v1356 = vadd.f32 %v754, %v1087
      %v1357 = vadd.f32 %v755, %v1089
      %v1358 = vadd.f32 %v756, %v1091
      %v1359 = vadd.f32 %v757, %v1090
      %v1360 = vadd.f32 %v758, %v1094
      %v1361 = vadd.f32 %v759, %v1096
      %v1362 = vadd.f32 %v760, %v1098
      %v1363 = vadd.f32 %v761, %v1097
      %v1364 = vadd.f32 %v762, %v1101
      %v1365 = vadd.f32 %v763, %v1103
      %v1366 = vadd.f32 %v764, %v1105
      %v1367 = vadd.f32 %v765, %v1104
      %v1368 = vadd.f32 %v766, %v1108
      %v1369 = vadd.f32 %v767, %v1110
      %v1370 = vadd.f32 %v768, %v1112
      %v1371 = vadd.f32 %v769, %v1111
      %v1372 = vadd.f32 %v770, %v1115
      %v1373 = vadd.f32 %v771, %v1117
      %v1374 = vadd.f32 %v772, %v1119
      %v1375 = vadd.f32 %v773, %v1118
      %v1376 = vadd.f32 %v774, %v1122
      %v1377 = vadd.f32 %v775, %v1124
      %v1378 = vadd.f32 %v776, %v1126
      %v1379 = vadd.f32 %v777, %v1125
      %v1380 = vadd.f32 %v778, %v1129
      %v1381 = vadd.f32 %v779, %v1131
      %v1382 = vadd.f32 %v780, %v1133
      %v1383 = vadd.f32 %v781, %v1132
      %v1384 = vadd.f32 %v782, %v1136
      %v1385 = vadd.f32 %v783, %v1138
      %v1386 = vadd.f32 %v784, %v1140
      %v1387 = vadd.f32 %v785, %v1139
      %v1388 = vadd.f32 %v786, %v1143
      %v1389 = vadd.f32 %v787, %v1145
      %v1390 = vadd.f32 %v788, %v1147
      %v1391 = vadd.f32 %v789, %v1146
      %v1392 = vadd.f32 %v790, %v1150
      %v1393 = vadd.f32 %v791, %v1152
      %v1394 = vadd.f32 %v792, %v1154
      %v1395 = vadd.f32 %v793, %v1153
      %v1396 = vadd.f32 %v794, %v1157
      %v1397 = vadd.f32 %v795, %v1159
      %v1398 = vadd.f32 %v796, %v1161
      %v1399 = vadd.f32 %v797, %v1160
      %v1400 = vadd.f32 %v798, %v1164
      %v1401 = vadd.f32 %v799, %v1166
      %v1402 = vadd.f32 %v800, %v1168
      %v1403 = vadd.f32 %v801, %v1167
      %v1404 = vadd.f32 %v802, %v1171
      %v1405 = vadd.f32 %v803, %v1173
      %v1406 = vadd.f32 %v804, %v1175
      %v1407 = vadd.f32 %v805, %v1174
      %v1408 = vadd.f32 %v806, %v1178
      %v1409 = vadd.f32 %v807, %v1180
      %v1410 = vadd.f32 %v808, %v1182
      %v1411 = vadd.f32 %v809, %v1181
      %v1412 = vadd.f32 %v810, %v1185
      %v1413 = vadd.f32 %v811, %v1187
      %v1414 = vadd.f32 %v812, %v1189
      %v1415 = vadd.f32 %v813, %v1188
      %v1416 = vadd.f32 %v814, %v1192
      %v1417 = vadd.f32 %v815, %v1194
      %v1418 = vadd.f32 %v816, %v1196
      %v1419 = vadd.f32 %v817, %v1195
      %v1420 = vadd.f32 %v818, %v1199
      %v1421 = vadd.f32 %v819, %v1201
      %v1422 = vadd.f32 %v820, %v1203
      %v1423 = vadd.f32 %v821, %v1202
      %v1424 = vadd.f32 %v822, %v1206
      %v1425 = vadd.f32 %v823, %v1208
      %v1426 = vadd.f32 %v824, %v1210
      %v1427 = vadd.f32 %v825, %v1209
      %v1428 = vadd.f32 %v826, %v1213
      %v1429 = vadd.f32 %v827, %v1215
      %v1430 = vadd.f32 %v828, %v1217
      %v1431 = vadd.f32 %v829, %v1216
      %v1432 = vadd.f32 %v830, %v1220
      %v1433 = vadd.f32 %v831, %v1222
      %v1434 = vadd.f32 %v832, %v1224
      %v1435 = vadd.f32 %v833, %v1223
      %v1436 = vadd.f32 %v834, %v1227
      %v1437 = vadd.f32 %v835, %v1229
      %v1438 = vadd.f32 %v836, %v1231
      %v1439 = vadd.f32 %v837, %v1230
      %s1440 = sadd.s32 %s199, 24
      %s1441 = sld [smem:[#allocation4 + %s1440]]
      %v1442 = vstv %s1441
      %v1443 = vmul.f32 %v90, %v1442
      %v1444 = vmul.f32 %v91, %v1442
      %v1445 = vmul.f32 %v92, %v1442
      %v1446 = vmul.f32 %v93, %v1442
      %v1447 = vmul.f32 %v94, %v1442
      %v1448 = vmul.f32 %v95, %v1442
      %v1449 = vmul.f32 %v96, %v1442
      %v1450 = vmul.f32 %v97, %v1442
      %v1451 = vmul.f32 %v98, %v1442
      %v1452 = vmul.f32 %v99, %v1442
      %v1453 = vmul.f32 %v100, %v1442
      %v1454 = vmul.f32 %v101, %v1442
      %v1455 = vmul.f32 %v102, %v1442
      %v1456 = vmul.f32 %v103, %v1442
      %v1457 = vmul.f32 %v104, %v1442
      %v1458 = vmul.f32 %v105, %v1442
      %v1459 = vmul.f32 %v106, %v1442
      %v1460 = vmul.f32 %v107, %v1442
      %v1461 = vmul.f32 %v108, %v1442
      %v1462 = vmul.f32 %v109, %v1442
      %v1463 = vmul.f32 %v110, %v1442
      %v1464 = vmul.f32 %v111, %v1442
      %v1465 = vmul.f32 %v112, %v1442
      %v1466 = vmul.f32 %v113, %v1442
      %v1467 = vmul.f32 %v114, %v1442
      %v1468 = vmul.f32 %v115, %v1442
      %v1469 = vmul.f32 %v116, %v1442
      %v1470 = vmul.f32 %v117, %v1442
      %v1471 = vmul.f32 %v118, %v1442
      %v1472 = vmul.f32 %v119, %v1442
      %v1473 = vmul.f32 %v120, %v1442
      %v1474 = vmul.f32 %v121, %v1442
      %v1475 = vmul.f32 %v122, %v1442
      %v1476 = vmul.f32 %v123, %v1442
      %v1477 = vmul.f32 %v124, %v1442
      %v1478 = vmul.f32 %v125, %v1442
      %v1479 = vmul.f32 %v126, %v1442
      %v1480 = vmul.f32 %v127, %v1442
      %v1481 = vmul.f32 %v128, %v1442
      %v1482 = vmul.f32 %v129, %v1442
      %v1483 = vmul.f32 %v130, %v1442
      %v1484 = vmul.f32 %v131, %v1442
      %v1485 = vmul.f32 %v132, %v1442
      %v1486 = vmul.f32 %v133, %v1442
      %v1487 = vmul.f32 %v134, %v1442
      %v1488 = vmul.f32 %v135, %v1442
      %v1489 = vmul.f32 %v136, %v1442
      %v1490 = vmul.f32 %v137, %v1442
      %v1491 = vmul.f32 %v138, %v1442
      %v1492 = vmul.f32 %v139, %v1442
      %v1493 = vmul.f32 %v140, %v1442
      %v1494 = vmul.f32 %v141, %v1442
      %v1495 = vmul.f32 %v142, %v1442
      %v1496 = vmul.f32 %v143, %v1442
      %v1497 = vmul.f32 %v144, %v1442
      %v1498 = vmul.f32 %v145, %v1442
      %v1499 = vmul.f32 %v146, %v1442
      %v1500 = vmul.f32 %v147, %v1442
      %v1501 = vmul.f32 %v148, %v1442
      %v1502 = vmul.f32 %v149, %v1442
      %v1503 = vmul.f32 %v150, %v1442
      %v1504 = vmul.f32 %v151, %v1442
      %v1505 = vmul.f32 %v152, %v1442
      %v1506 = vmul.f32 %v153, %v1442
      %v1507 = vmul.f32 %v154, %v1442
      %v1508 = vmul.f32 %v155, %v1442
      %v1509 = vmul.f32 %v156, %v1442
      %v1510 = vmul.f32 %v157, %v1442
      %v1511 = vmul.f32 %v158, %v1442
      %v1512 = vmul.f32 %v159, %v1442
      %v1513 = vmul.f32 %v160, %v1442
      %v1514 = vmul.f32 %v161, %v1442
      %v1515 = vmul.f32 %v162, %v1442
      %v1516 = vmul.f32 %v163, %v1442
      %v1517 = vmul.f32 %v164, %v1442
      %v1518 = vmul.f32 %v165, %v1442
      %v1519 = vmul.f32 %v166, %v1442
      %v1520 = vmul.f32 %v167, %v1442
      %v1521 = vmul.f32 %v168, %v1442
      %v1522 = vmul.f32 %v169, %v1442
      %v1523 = vmul.f32 %v170, %v1442
      %v1524 = vmul.f32 %v171, %v1442
      %v1525 = vmul.f32 %v172, %v1442
      %v1526 = vmul.f32 %v173, %v1442
      %v1527 = vmul.f32 %v174, %v1442
      %v1528 = vmul.f32 %v175, %v1442
      %v1529 = vmul.f32 %v176, %v1442
      %v1530 = vmul.f32 %v177, %v1442
      %v1531 = vmul.f32 %v178, %v1442
      %v1532 = vmul.f32 %v179, %v1442
      %v1533 = vmul.f32 %v180, %v1442
      %v1534 = vmul.f32 %v181, %v1442
      %v1535 = vmul.f32 %v182, %v1442
      %v1536 = vmul.f32 %v183, %v1442
      %v1537 = vmul.f32 %v184, %v1442
      %v1538 = vmul.f32 %v185, %v1442
      %v1539 = vmul.f32 %v186, %v1442
      %v1540 = vmul.f32 %v187, %v1442
      %v1541 = vmul.f32 %v188, %v1442
      %v1542 = vmul.f32 %v189, %v1442
      %v1543 = vmul.f32 %v190, %v1442
      %v1544 = vmul.f32 %v191, %v1442
      %v1545 = vmul.f32 %v192, %v1442
      %v1546 = vmul.f32 %v193, %v1442
      %v1651 = vrot.slane %v1443, 1
      %v1652 = vrot.slane %v1444, 1
      %v1653 = vsel %vm1049, %v1651, %v1652
      %v1654 = vrot.slane %v1445, 1
      %v1655 = vsel %vm1049, %v1652, %v1654
      %v1656 = vrot.slane %v1446, 1
      %v1657 = vsel %vm1049, %v1654, %v1656
      %v1658 = vrot.slane %v1447, 1
      %v1659 = vrot.slane %v1448, 1
      %v1660 = vsel %vm1049, %v1658, %v1659
      %v1661 = vrot.slane %v1449, 1
      %v1662 = vsel %vm1049, %v1659, %v1661
      %v1663 = vrot.slane %v1450, 1
      %v1664 = vsel %vm1049, %v1661, %v1663
      %v1665 = vrot.slane %v1451, 1
      %v1666 = vrot.slane %v1452, 1
      %v1667 = vsel %vm1049, %v1665, %v1666
      %v1668 = vrot.slane %v1453, 1
      %v1669 = vsel %vm1049, %v1666, %v1668
      %v1670 = vrot.slane %v1454, 1
      %v1671 = vsel %vm1049, %v1668, %v1670
      %v1672 = vrot.slane %v1455, 1
      %v1673 = vrot.slane %v1456, 1
      %v1674 = vsel %vm1049, %v1672, %v1673
      %v1675 = vrot.slane %v1457, 1
      %v1676 = vsel %vm1049, %v1673, %v1675
      %v1677 = vrot.slane %v1458, 1
      %v1678 = vsel %vm1049, %v1675, %v1677
      %v1679 = vrot.slane %v1459, 1
      %v1680 = vrot.slane %v1460, 1
      %v1681 = vsel %vm1049, %v1679, %v1680
      %v1682 = vrot.slane %v1461, 1
      %v1683 = vsel %vm1049, %v1680, %v1682
      %v1684 = vrot.slane %v1462, 1
      %v1685 = vsel %vm1049, %v1682, %v1684
      %v1686 = vrot.slane %v1463, 1
      %v1687 = vrot.slane %v1464, 1
      %v1688 = vsel %vm1049, %v1686, %v1687
      %v1689 = vrot.slane %v1465, 1
      %v1690 = vsel %vm1049, %v1687, %v1689
      %v1691 = vrot.slane %v1466, 1
      %v1692 = vsel %vm1049, %v1689, %v1691
      %v1693 = vrot.slane %v1467, 1
      %v1694 = vrot.slane %v1468, 1
      %v1695 = vsel %vm1049, %v1693, %v1694
      %v1696 = vrot.slane %v1469, 1
      %v1697 = vsel %vm1049, %v1694, %v1696
      %v1698 = vrot.slane %v1470, 1
      %v1699 = vsel %vm1049, %v1696, %v1698
      %v1700 = vrot.slane %v1471, 1
      %v1701 = vrot.slane %v1472, 1
      %v1702 = vsel %vm1049, %v1700, %v1701
      %v1703 = vrot.slane %v1473, 1
      %v1704 = vsel %vm1049, %v1701, %v1703
      %v1705 = vrot.slane %v1474, 1
      %v1706 = vsel %vm1049, %v1703, %v1705
      %v1707 = vrot.slane %v1475, 1
      %v1708 = vrot.slane %v1476, 1
      %v1709 = vsel %vm1049, %v1707, %v1708
      %v1710 = vrot.slane %v1477, 1
      %v1711 = vsel %vm1049, %v1708, %v1710
      %v1712 = vrot.slane %v1478, 1
      %v1713 = vsel %vm1049, %v1710, %v1712
      %v1714 = vrot.slane %v1479, 1
      %v1715 = vrot.slane %v1480, 1
      %v1716 = vsel %vm1049, %v1714, %v1715
      %v1717 = vrot.slane %v1481, 1
      %v1718 = vsel %vm1049, %v1715, %v1717
      %v1719 = vrot.slane %v1482, 1
      %v1720 = vsel %vm1049, %v1717, %v1719
      %v1721 = vrot.slane %v1483, 1
      %v1722 = vrot.slane %v1484, 1
      %v1723 = vsel %vm1049, %v1721, %v1722
      %v1724 = vrot.slane %v1485, 1
      %v1725 = vsel %vm1049, %v1722, %v1724
      %v1726 = vrot.slane %v1486, 1
      %v1727 = vsel %vm1049, %v1724, %v1726
      %v1728 = vrot.slane %v1487, 1
      %v1729 = vrot.slane %v1488, 1
      %v1730 = vsel %vm1049, %v1728, %v1729
      %v1731 = vrot.slane %v1489, 1
      %v1732 = vsel %vm1049, %v1729, %v1731
      %v1733 = vrot.slane %v1490, 1
      %v1734 = vsel %vm1049, %v1731, %v1733
      %v1735 = vrot.slane %v1491, 1
      %v1736 = vrot.slane %v1492, 1
      %v1737 = vsel %vm1049, %v1735, %v1736
      %v1738 = vrot.slane %v1493, 1
      %v1739 = vsel %vm1049, %v1736, %v1738
      %v1740 = vrot.slane %v1494, 1
      %v1741 = vsel %vm1049, %v1738, %v1740
      %v1742 = vrot.slane %v1495, 1
      %v1743 = vrot.slane %v1496, 1
      %v1744 = vsel %vm1049, %v1742, %v1743
      %v1745 = vrot.slane %v1497, 1
      %v1746 = vsel %vm1049, %v1743, %v1745
      %v1747 = vrot.slane %v1498, 1
      %v1748 = vsel %vm1049, %v1745, %v1747
      %v1749 = vrot.slane %v1499, 1
      %v1750 = vrot.slane %v1500, 1
      %v1751 = vsel %vm1049, %v1749, %v1750
      %v1752 = vrot.slane %v1501, 1
      %v1753 = vsel %vm1049, %v1750, %v1752
      %v1754 = vrot.slane %v1502, 1
      %v1755 = vsel %vm1049, %v1752, %v1754
      %v1756 = vrot.slane %v1503, 1
      %v1757 = vrot.slane %v1504, 1
      %v1758 = vsel %vm1049, %v1756, %v1757
      %v1759 = vrot.slane %v1505, 1
      %v1760 = vsel %vm1049, %v1757, %v1759
      %v1761 = vrot.slane %v1506, 1
      %v1762 = vsel %vm1049, %v1759, %v1761
      %v1763 = vrot.slane %v1507, 1
      %v1764 = vrot.slane %v1508, 1
      %v1765 = vsel %vm1049, %v1763, %v1764
      %v1766 = vrot.slane %v1509, 1
      %v1767 = vsel %vm1049, %v1764, %v1766
      %v1768 = vrot.slane %v1510, 1
      %v1769 = vsel %vm1049, %v1766, %v1768
      %v1770 = vrot.slane %v1511, 1
      %v1771 = vrot.slane %v1512, 1
      %v1772 = vsel %vm1049, %v1770, %v1771
      %v1773 = vrot.slane %v1513, 1
      %v1774 = vsel %vm1049, %v1771, %v1773
      %v1775 = vrot.slane %v1514, 1
      %v1776 = vsel %vm1049, %v1773, %v1775
      %v1777 = vrot.slane %v1515, 1
      %v1778 = vrot.slane %v1516, 1
      %v1779 = vsel %vm1049, %v1777, %v1778
      %v1780 = vrot.slane %v1517, 1
      %v1781 = vsel %vm1049, %v1778, %v1780
      %v1782 = vrot.slane %v1518, 1
      %v1783 = vsel %vm1049, %v1780, %v1782
      %v1784 = vrot.slane %v1519, 1
      %v1785 = vrot.slane %v1520, 1
      %v1786 = vsel %vm1049, %v1784, %v1785
      %v1787 = vrot.slane %v1521, 1
      %v1788 = vsel %vm1049, %v1785, %v1787
      %v1789 = vrot.slane %v1522, 1
      %v1790 = vsel %vm1049, %v1787, %v1789
      %v1791 = vrot.slane %v1523, 1
      %v1792 = vrot.slane %v1524, 1
      %v1793 = vsel %vm1049, %v1791, %v1792
      %v1794 = vrot.slane %v1525, 1
      %v1795 = vsel %vm1049, %v1792, %v1794
      %v1796 = vrot.slane %v1526, 1
      %v1797 = vsel %vm1049, %v1794, %v1796
      %v1798 = vrot.slane %v1527, 1
      %v1799 = vrot.slane %v1528, 1
      %v1800 = vsel %vm1049, %v1798, %v1799
      %v1801 = vrot.slane %v1529, 1
      %v1802 = vsel %vm1049, %v1799, %v1801
      %v1803 = vrot.slane %v1530, 1
      %v1804 = vsel %vm1049, %v1801, %v1803
      %v1805 = vrot.slane %v1531, 1
      %v1806 = vrot.slane %v1532, 1
      %v1807 = vsel %vm1049, %v1805, %v1806
      %v1808 = vrot.slane %v1533, 1
      %v1809 = vsel %vm1049, %v1806, %v1808
      %v1810 = vrot.slane %v1534, 1
      %v1811 = vsel %vm1049, %v1808, %v1810
      %v1812 = vrot.slane %v1535, 1
      %v1813 = vrot.slane %v1536, 1
      %v1814 = vsel %vm1049, %v1812, %v1813
      %v1815 = vrot.slane %v1537, 1
      %v1816 = vsel %vm1049, %v1813, %v1815
      %v1817 = vrot.slane %v1538, 1
      %v1818 = vsel %vm1049, %v1815, %v1817
      %v1819 = vrot.slane %v1539, 1
      %v1820 = vrot.slane %v1540, 1
      %v1821 = vsel %vm1049, %v1819, %v1820
      %v1822 = vrot.slane %v1541, 1
      %v1823 = vsel %vm1049, %v1820, %v1822
      %v1824 = vrot.slane %v1542, 1
      %v1825 = vsel %vm1049, %v1822, %v1824
      %v1826 = vrot.slane %v1543, 1
      %v1827 = vrot.slane %v1544, 1
      %v1828 = vsel %vm1049, %v1826, %v1827
      %v1829 = vrot.slane %v1545, 1
      %v1830 = vsel %vm1049, %v1827, %v1829
      %v1831 = vrot.slane %v1546, 1
      %v1832 = vsel %vm1049, %v1829, %v1831
      %v1937 = vadd.f32 %v1336, %v1653
      %v1938 = vadd.f32 %v1337, %v1655
      %v1939 = vadd.f32 %v1338, %v1657
      %v1940 = vadd.f32 %v1339, %v1656
      %v1941 = vadd.f32 %v1340, %v1660
      %v1942 = vadd.f32 %v1341, %v1662
      %v1943 = vadd.f32 %v1342, %v1664
      %v1944 = vadd.f32 %v1343, %v1663
      %v1945 = vadd.f32 %v1344, %v1667
      %v1946 = vadd.f32 %v1345, %v1669
      %v1947 = vadd.f32 %v1346, %v1671
      %v1948 = vadd.f32 %v1347, %v1670
      %v1949 = vadd.f32 %v1348, %v1674
      %v1950 = vadd.f32 %v1349, %v1676
      %v1951 = vadd.f32 %v1350, %v1678
      %v1952 = vadd.f32 %v1351, %v1677
      %v1953 = vadd.f32 %v1352, %v1681
      %v1954 = vadd.f32 %v1353, %v1683
      %v1955 = vadd.f32 %v1354, %v1685
      %v1956 = vadd.f32 %v1355, %v1684
      %v1957 = vadd.f32 %v1356, %v1688
      %v1958 = vadd.f32 %v1357, %v1690
      %v1959 = vadd.f32 %v1358, %v1692
      %v1960 = vadd.f32 %v1359, %v1691
      %v1961 = vadd.f32 %v1360, %v1695
      %v1962 = vadd.f32 %v1361, %v1697
      %v1963 = vadd.f32 %v1362, %v1699
      %v1964 = vadd.f32 %v1363, %v1698
      %v1965 = vadd.f32 %v1364, %v1702
      %v1966 = vadd.f32 %v1365, %v1704
      %v1967 = vadd.f32 %v1366, %v1706
      %v1968 = vadd.f32 %v1367, %v1705
      %v1969 = vadd.f32 %v1368, %v1709
      %v1970 = vadd.f32 %v1369, %v1711
      %v1971 = vadd.f32 %v1370, %v1713
      %v1972 = vadd.f32 %v1371, %v1712
      %v1973 = vadd.f32 %v1372, %v1716
      %v1974 = vadd.f32 %v1373, %v1718
      %v1975 = vadd.f32 %v1374, %v1720
      %v1976 = vadd.f32 %v1375, %v1719
      %v1977 = vadd.f32 %v1376, %v1723
      %v1978 = vadd.f32 %v1377, %v1725
      %v1979 = vadd.f32 %v1378, %v1727
      %v1980 = vadd.f32 %v1379, %v1726
      %v1981 = vadd.f32 %v1380, %v1730
      %v1982 = vadd.f32 %v1381, %v1732
      %v1983 = vadd.f32 %v1382, %v1734
      %v1984 = vadd.f32 %v1383, %v1733
      %v1985 = vadd.f32 %v1384, %v1737
      %v1986 = vadd.f32 %v1385, %v1739
      %v1987 = vadd.f32 %v1386, %v1741
      %v1988 = vadd.f32 %v1387, %v1740
      %v1989 = vadd.f32 %v1388, %v1744
      %v1990 = vadd.f32 %v1389, %v1746
      %v1991 = vadd.f32 %v1390, %v1748
      %v1992 = vadd.f32 %v1391, %v1747
      %v1993 = vadd.f32 %v1392, %v1751
      %v1994 = vadd.f32 %v1393, %v1753
      %v1995 = vadd.f32 %v1394, %v1755
      %v1996 = vadd.f32 %v1395, %v1754
      %v1997 = vadd.f32 %v1396, %v1758
      %v1998 = vadd.f32 %v1397, %v1760
      %v1999 = vadd.f32 %v1398, %v1762
      %v2000 = vadd.f32 %v1399, %v1761
      %v2001 = vadd.f32 %v1400, %v1765
      %v2002 = vadd.f32 %v1401, %v1767
      %v2003 = vadd.f32 %v1402, %v1769
      %v2004 = vadd.f32 %v1403, %v1768
      %v2005 = vadd.f32 %v1404, %v1772
      %v2006 = vadd.f32 %v1405, %v1774
      %v2007 = vadd.f32 %v1406, %v1776
      %v2008 = vadd.f32 %v1407, %v1775
      %v2009 = vadd.f32 %v1408, %v1779
      %v2010 = vadd.f32 %v1409, %v1781
      %v2011 = vadd.f32 %v1410, %v1783
      %v2012 = vadd.f32 %v1411, %v1782
      %v2013 = vadd.f32 %v1412, %v1786
      %v2014 = vadd.f32 %v1413, %v1788
      %v2015 = vadd.f32 %v1414, %v1790
      %v2016 = vadd.f32 %v1415, %v1789
      %v2017 = vadd.f32 %v1416, %v1793
      %v2018 = vadd.f32 %v1417, %v1795
      %v2019 = vadd.f32 %v1418, %v1797
      %v2020 = vadd.f32 %v1419, %v1796
      %v2021 = vadd.f32 %v1420, %v1800
      %v2022 = vadd.f32 %v1421, %v1802
      %v2023 = vadd.f32 %v1422, %v1804
      %v2024 = vadd.f32 %v1423, %v1803
      %v2025 = vadd.f32 %v1424, %v1807
      %v2026 = vadd.f32 %v1425, %v1809
      %v2027 = vadd.f32 %v1426, %v1811
      %v2028 = vadd.f32 %v1427, %v1810
      %v2029 = vadd.f32 %v1428, %v1814
      %v2030 = vadd.f32 %v1429, %v1816
      %v2031 = vadd.f32 %v1430, %v1818
      %v2032 = vadd.f32 %v1431, %v1817
      %v2033 = vadd.f32 %v1432, %v1821
      %v2034 = vadd.f32 %v1433, %v1823
      %v2035 = vadd.f32 %v1434, %v1825
      %v2036 = vadd.f32 %v1435, %v1824
      %v2037 = vadd.f32 %v1436, %v1828
      %v2038 = vadd.f32 %v1437, %v1830
      %v2039 = vadd.f32 %v1438, %v1832
      %v2040 = vadd.f32 %v1439, %v1831
      %s2041 = sadd.s32 %s199, 42
      %s2042 = sld [smem:[#allocation4 + %s2041]]
      %v2043 = vstv %s2042
      %v2044 = vmul.f32 %v94, %v2043
      %v2045 = vmul.f32 %v95, %v2043
      %v2046 = vmul.f32 %v96, %v2043
      %v2047 = vmul.f32 %v97, %v2043
      %v2048 = vmul.f32 %v98, %v2043
      %v2049 = vmul.f32 %v99, %v2043
      %v2050 = vmul.f32 %v100, %v2043
      %v2051 = vmul.f32 %v101, %v2043
      %v2052 = vmul.f32 %v102, %v2043
      %v2053 = vmul.f32 %v103, %v2043
      %v2054 = vmul.f32 %v104, %v2043
      %v2055 = vmul.f32 %v105, %v2043
      %v2056 = vmul.f32 %v106, %v2043
      %v2057 = vmul.f32 %v107, %v2043
      %v2058 = vmul.f32 %v108, %v2043
      %v2059 = vmul.f32 %v109, %v2043
      %v2060 = vmul.f32 %v110, %v2043
      %v2061 = vmul.f32 %v111, %v2043
      %v2062 = vmul.f32 %v112, %v2043
      %v2063 = vmul.f32 %v113, %v2043
      %v2064 = vmul.f32 %v114, %v2043
      %v2065 = vmul.f32 %v115, %v2043
      %v2066 = vmul.f32 %v116, %v2043
      %v2067 = vmul.f32 %v117, %v2043
      %v2068 = vmul.f32 %v118, %v2043
      %v2069 = vmul.f32 %v119, %v2043
      %v2070 = vmul.f32 %v120, %v2043
      %v2071 = vmul.f32 %v121, %v2043
      %v2072 = vmul.f32 %v122, %v2043
      %v2073 = vmul.f32 %v123, %v2043
      %v2074 = vmul.f32 %v124, %v2043
      %v2075 = vmul.f32 %v125, %v2043
      %v2076 = vmul.f32 %v126, %v2043
      %v2077 = vmul.f32 %v127, %v2043
      %v2078 = vmul.f32 %v128, %v2043
      %v2079 = vmul.f32 %v129, %v2043
      %v2080 = vmul.f32 %v130, %v2043
      %v2081 = vmul.f32 %v131, %v2043
      %v2082 = vmul.f32 %v132, %v2043
      %v2083 = vmul.f32 %v133, %v2043
      %v2084 = vmul.f32 %v134, %v2043
      %v2085 = vmul.f32 %v135, %v2043
      %v2086 = vmul.f32 %v136, %v2043
      %v2087 = vmul.f32 %v137, %v2043
      %v2088 = vmul.f32 %v138, %v2043
      %v2089 = vmul.f32 %v139, %v2043
      %v2090 = vmul.f32 %v140, %v2043
      %v2091 = vmul.f32 %v141, %v2043
      %v2092 = vmul.f32 %v142, %v2043
      %v2093 = vmul.f32 %v143, %v2043
      %v2094 = vmul.f32 %v144, %v2043
      %v2095 = vmul.f32 %v145, %v2043
      %v2096 = vmul.f32 %v146, %v2043
      %v2097 = vmul.f32 %v147, %v2043
      %v2098 = vmul.f32 %v148, %v2043
      %v2099 = vmul.f32 %v149, %v2043
      %v2100 = vmul.f32 %v150, %v2043
      %v2101 = vmul.f32 %v151, %v2043
      %v2102 = vmul.f32 %v152, %v2043
      %v2103 = vmul.f32 %v153, %v2043
      %v2104 = vmul.f32 %v154, %v2043
      %v2105 = vmul.f32 %v155, %v2043
      %v2106 = vmul.f32 %v156, %v2043
      %v2107 = vmul.f32 %v157, %v2043
      %v2108 = vmul.f32 %v158, %v2043
      %v2109 = vmul.f32 %v159, %v2043
      %v2110 = vmul.f32 %v160, %v2043
      %v2111 = vmul.f32 %v161, %v2043
      %v2112 = vmul.f32 %v162, %v2043
      %v2113 = vmul.f32 %v163, %v2043
      %v2114 = vmul.f32 %v164, %v2043
      %v2115 = vmul.f32 %v165, %v2043
      %v2116 = vmul.f32 %v166, %v2043
      %v2117 = vmul.f32 %v167, %v2043
      %v2118 = vmul.f32 %v168, %v2043
      %v2119 = vmul.f32 %v169, %v2043
      %v2120 = vmul.f32 %v170, %v2043
      %v2121 = vmul.f32 %v171, %v2043
      %v2122 = vmul.f32 %v172, %v2043
      %v2123 = vmul.f32 %v173, %v2043
      %v2124 = vmul.f32 %v174, %v2043
      %v2125 = vmul.f32 %v175, %v2043
      %v2126 = vmul.f32 %v176, %v2043
      %v2127 = vmul.f32 %v177, %v2043
      %v2128 = vmul.f32 %v178, %v2043
      %v2129 = vmul.f32 %v179, %v2043
      %v2130 = vmul.f32 %v180, %v2043
      %v2131 = vmul.f32 %v181, %v2043
      %v2132 = vmul.f32 %v182, %v2043
      %v2133 = vmul.f32 %v183, %v2043
      %v2134 = vmul.f32 %v184, %v2043
      %v2135 = vmul.f32 %v185, %v2043
      %v2136 = vmul.f32 %v186, %v2043
      %v2137 = vmul.f32 %v187, %v2043
      %v2138 = vmul.f32 %v188, %v2043
      %v2139 = vmul.f32 %v189, %v2043
      %v2140 = vmul.f32 %v190, %v2043
      %v2141 = vmul.f32 %v191, %v2043
      %v2142 = vmul.f32 %v192, %v2043
      %v2143 = vmul.f32 %v193, %v2043
      %v2144 = vmul.f32 %v194, %v2043
      %v2145 = vmul.f32 %v195, %v2043
      %v2146 = vmul.f32 %v196, %v2043
      %v2147 = vmul.f32 %v197, %v2043
      %v2252 = vrot.slane %v2044, 1
      %v2253 = vrot.slane %v2045, 1
      %v2254 = vsel %vm1049, %v2252, %v2253
      %v2255 = vrot.slane %v2046, 1
      %v2256 = vsel %vm1049, %v2253, %v2255
      %v2257 = vrot.slane %v2047, 1
      %v2258 = vsel %vm1049, %v2255, %v2257
      %v2259 = vrot.slane %v2048, 1
      %v2260 = vrot.slane %v2049, 1
      %v2261 = vsel %vm1049, %v2259, %v2260
      %v2262 = vrot.slane %v2050, 1
      %v2263 = vsel %vm1049, %v2260, %v2262
      %v2264 = vrot.slane %v2051, 1
      %v2265 = vsel %vm1049, %v2262, %v2264
      %v2266 = vrot.slane %v2052, 1
      %v2267 = vrot.slane %v2053, 1
      %v2268 = vsel %vm1049, %v2266, %v2267
      %v2269 = vrot.slane %v2054, 1
      %v2270 = vsel %vm1049, %v2267, %v2269
      %v2271 = vrot.slane %v2055, 1
      %v2272 = vsel %vm1049, %v2269, %v2271
      %v2273 = vrot.slane %v2056, 1
      %v2274 = vrot.slane %v2057, 1
      %v2275 = vsel %vm1049, %v2273, %v2274
      %v2276 = vrot.slane %v2058, 1
      %v2277 = vsel %vm1049, %v2274, %v2276
      %v2278 = vrot.slane %v2059, 1
      %v2279 = vsel %vm1049, %v2276, %v2278
      %v2280 = vrot.slane %v2060, 1
      %v2281 = vrot.slane %v2061, 1
      %v2282 = vsel %vm1049, %v2280, %v2281
      %v2283 = vrot.slane %v2062, 1
      %v2284 = vsel %vm1049, %v2281, %v2283
      %v2285 = vrot.slane %v2063, 1
      %v2286 = vsel %vm1049, %v2283, %v2285
      %v2287 = vrot.slane %v2064, 1
      %v2288 = vrot.slane %v2065, 1
      %v2289 = vsel %vm1049, %v2287, %v2288
      %v2290 = vrot.slane %v2066, 1
      %v2291 = vsel %vm1049, %v2288, %v2290
      %v2292 = vrot.slane %v2067, 1
      %v2293 = vsel %vm1049, %v2290, %v2292
      %v2294 = vrot.slane %v2068, 1
      %v2295 = vrot.slane %v2069, 1
      %v2296 = vsel %vm1049, %v2294, %v2295
      %v2297 = vrot.slane %v2070, 1
      %v2298 = vsel %vm1049, %v2295, %v2297
      %v2299 = vrot.slane %v2071, 1
      %v2300 = vsel %vm1049, %v2297, %v2299
      %v2301 = vrot.slane %v2072, 1
      %v2302 = vrot.slane %v2073, 1
      %v2303 = vsel %vm1049, %v2301, %v2302
      %v2304 = vrot.slane %v2074, 1
      %v2305 = vsel %vm1049, %v2302, %v2304
      %v2306 = vrot.slane %v2075, 1
      %v2307 = vsel %vm1049, %v2304, %v2306
      %v2308 = vrot.slane %v2076, 1
      %v2309 = vrot.slane %v2077, 1
      %v2310 = vsel %vm1049, %v2308, %v2309
      %v2311 = vrot.slane %v2078, 1
      %v2312 = vsel %vm1049, %v2309, %v2311
      %v2313 = vrot.slane %v2079, 1
      %v2314 = vsel %vm1049, %v2311, %v2313
      %v2315 = vrot.slane %v2080, 1
      %v2316 = vrot.slane %v2081, 1
      %v2317 = vsel %vm1049, %v2315, %v2316
      %v2318 = vrot.slane %v2082, 1
      %v2319 = vsel %vm1049, %v2316, %v2318
      %v2320 = vrot.slane %v2083, 1
      %v2321 = vsel %vm1049, %v2318, %v2320
      %v2322 = vrot.slane %v2084, 1
      %v2323 = vrot.slane %v2085, 1
      %v2324 = vsel %vm1049, %v2322, %v2323
      %v2325 = vrot.slane %v2086, 1
      %v2326 = vsel %vm1049, %v2323, %v2325
      %v2327 = vrot.slane %v2087, 1
      %v2328 = vsel %vm1049, %v2325, %v2327
      %v2329 = vrot.slane %v2088, 1
      %v2330 = vrot.slane %v2089, 1
      %v2331 = vsel %vm1049, %v2329, %v2330
      %v2332 = vrot.slane %v2090, 1
      %v2333 = vsel %vm1049, %v2330, %v2332
      %v2334 = vrot.slane %v2091, 1
      %v2335 = vsel %vm1049, %v2332, %v2334
      %v2336 = vrot.slane %v2092, 1
      %v2337 = vrot.slane %v2093, 1
      %v2338 = vsel %vm1049, %v2336, %v2337
      %v2339 = vrot.slane %v2094, 1
      %v2340 = vsel %vm1049, %v2337, %v2339
      %v2341 = vrot.slane %v2095, 1
      %v2342 = vsel %vm1049, %v2339, %v2341
      %v2343 = vrot.slane %v2096, 1
      %v2344 = vrot.slane %v2097, 1
      %v2345 = vsel %vm1049, %v2343, %v2344
      %v2346 = vrot.slane %v2098, 1
      %v2347 = vsel %vm1049, %v2344, %v2346
      %v2348 = vrot.slane %v2099, 1
      %v2349 = vsel %vm1049, %v2346, %v2348
      %v2350 = vrot.slane %v2100, 1
      %v2351 = vrot.slane %v2101, 1
      %v2352 = vsel %vm1049, %v2350, %v2351
      %v2353 = vrot.slane %v2102, 1
      %v2354 = vsel %vm1049, %v2351, %v2353
      %v2355 = vrot.slane %v2103, 1
      %v2356 = vsel %vm1049, %v2353, %v2355
      %v2357 = vrot.slane %v2104, 1
      %v2358 = vrot.slane %v2105, 1
      %v2359 = vsel %vm1049, %v2357, %v2358
      %v2360 = vrot.slane %v2106, 1
      %v2361 = vsel %vm1049, %v2358, %v2360
      %v2362 = vrot.slane %v2107, 1
      %v2363 = vsel %vm1049, %v2360, %v2362
      %v2364 = vrot.slane %v2108, 1
      %v2365 = vrot.slane %v2109, 1
      %v2366 = vsel %vm1049, %v2364, %v2365
      %v2367 = vrot.slane %v2110, 1
      %v2368 = vsel %vm1049, %v2365, %v2367
      %v2369 = vrot.slane %v2111, 1
      %v2370 = vsel %vm1049, %v2367, %v2369
      %v2371 = vrot.slane %v2112, 1
      %v2372 = vrot.slane %v2113, 1
      %v2373 = vsel %vm1049, %v2371, %v2372
      %v2374 = vrot.slane %v2114, 1
      %v2375 = vsel %vm1049, %v2372, %v2374
      %v2376 = vrot.slane %v2115, 1
      %v2377 = vsel %vm1049, %v2374, %v2376
      %v2378 = vrot.slane %v2116, 1
      %v2379 = vrot.slane %v2117, 1
      %v2380 = vsel %vm1049, %v2378, %v2379
      %v2381 = vrot.slane %v2118, 1
      %v2382 = vsel %vm1049, %v2379, %v2381
      %v2383 = vrot.slane %v2119, 1
      %v2384 = vsel %vm1049, %v2381, %v2383
      %v2385 = vrot.slane %v2120, 1
      %v2386 = vrot.slane %v2121, 1
      %v2387 = vsel %vm1049, %v2385, %v2386
      %v2388 = vrot.slane %v2122, 1
      %v2389 = vsel %vm1049, %v2386, %v2388
      %v2390 = vrot.slane %v2123, 1
      %v2391 = vsel %vm1049, %v2388, %v2390
      %v2392 = vrot.slane %v2124, 1
      %v2393 = vrot.slane %v2125, 1
      %v2394 = vsel %vm1049, %v2392, %v2393
      %v2395 = vrot.slane %v2126, 1
      %v2396 = vsel %vm1049, %v2393, %v2395
      %v2397 = vrot.slane %v2127, 1
      %v2398 = vsel %vm1049, %v2395, %v2397
      %v2399 = vrot.slane %v2128, 1
      %v2400 = vrot.slane %v2129, 1
      %v2401 = vsel %vm1049, %v2399, %v2400
      %v2402 = vrot.slane %v2130, 1
      %v2403 = vsel %vm1049, %v2400, %v2402
      %v2404 = vrot.slane %v2131, 1
      %v2405 = vsel %vm1049, %v2402, %v2404
      %v2406 = vrot.slane %v2132, 1
      %v2407 = vrot.slane %v2133, 1
      %v2408 = vsel %vm1049, %v2406, %v2407
      %v2409 = vrot.slane %v2134, 1
      %v2410 = vsel %vm1049, %v2407, %v2409
      %v2411 = vrot.slane %v2135, 1
      %v2412 = vsel %vm1049, %v2409, %v2411
      %v2413 = vrot.slane %v2136, 1
      %v2414 = vrot.slane %v2137, 1
      %v2415 = vsel %vm1049, %v2413, %v2414
      %v2416 = vrot.slane %v2138, 1
      %v2417 = vsel %vm1049, %v2414, %v2416
      %v2418 = vrot.slane %v2139, 1
      %v2419 = vsel %vm1049, %v2416, %v2418
      %v2420 = vrot.slane %v2140, 1
      %v2421 = vrot.slane %v2141, 1
      %v2422 = vsel %vm1049, %v2420, %v2421
      %v2423 = vrot.slane %v2142, 1
      %v2424 = vsel %vm1049, %v2421, %v2423
      %v2425 = vrot.slane %v2143, 1
      %v2426 = vsel %vm1049, %v2423, %v2425
      %v2427 = vrot.slane %v2144, 1
      %v2428 = vrot.slane %v2145, 1
      %v2429 = vsel %vm1049, %v2427, %v2428
      %v2430 = vrot.slane %v2146, 1
      %v2431 = vsel %vm1049, %v2428, %v2430
      %v2432 = vrot.slane %v2147, 1
      %v2433 = vsel %vm1049, %v2430, %v2432
      %v2538 = vadd.f32 %v1937, %v2254
      %v2539 = vadd.f32 %v1938, %v2256
      %v2540 = vadd.f32 %v1939, %v2258
      %v2541 = vadd.f32 %v1940, %v2257
      %v2542 = vadd.f32 %v1941, %v2261
      %v2543 = vadd.f32 %v1942, %v2263
      %v2544 = vadd.f32 %v1943, %v2265
      %v2545 = vadd.f32 %v1944, %v2264
      %v2546 = vadd.f32 %v1945, %v2268
      %v2547 = vadd.f32 %v1946, %v2270
      %v2548 = vadd.f32 %v1947, %v2272
      %v2549 = vadd.f32 %v1948, %v2271
      %v2550 = vadd.f32 %v1949, %v2275
      %v2551 = vadd.f32 %v1950, %v2277
      %v2552 = vadd.f32 %v1951, %v2279
      %v2553 = vadd.f32 %v1952, %v2278
      %v2554 = vadd.f32 %v1953, %v2282
      %v2555 = vadd.f32 %v1954, %v2284
      %v2556 = vadd.f32 %v1955, %v2286
      %v2557 = vadd.f32 %v1956, %v2285
      %v2558 = vadd.f32 %v1957, %v2289
      %v2559 = vadd.f32 %v1958, %v2291
      %v2560 = vadd.f32 %v1959, %v2293
      %v2561 = vadd.f32 %v1960, %v2292
      %v2562 = vadd.f32 %v1961, %v2296
      %v2563 = vadd.f32 %v1962, %v2298
      %v2564 = vadd.f32 %v1963, %v2300
      %v2565 = vadd.f32 %v1964, %v2299
      %v2566 = vadd.f32 %v1965, %v2303
      %v2567 = vadd.f32 %v1966, %v2305
      %v2568 = vadd.f32 %v1967, %v2307
      %v2569 = vadd.f32 %v1968, %v2306
      %v2570 = vadd.f32 %v1969, %v2310
      %v2571 = vadd.f32 %v1970, %v2312
      %v2572 = vadd.f32 %v1971, %v2314
      %v2573 = vadd.f32 %v1972, %v2313
      %v2574 = vadd.f32 %v1973, %v2317
      %v2575 = vadd.f32 %v1974, %v2319
      %v2576 = vadd.f32 %v1975, %v2321
      %v2577 = vadd.f32 %v1976, %v2320
      %v2578 = vadd.f32 %v1977, %v2324
      %v2579 = vadd.f32 %v1978, %v2326
      %v2580 = vadd.f32 %v1979, %v2328
      %v2581 = vadd.f32 %v1980, %v2327
      %v2582 = vadd.f32 %v1981, %v2331
      %v2583 = vadd.f32 %v1982, %v2333
      %v2584 = vadd.f32 %v1983, %v2335
      %v2585 = vadd.f32 %v1984, %v2334
      %v2586 = vadd.f32 %v1985, %v2338
      %v2587 = vadd.f32 %v1986, %v2340
      %v2588 = vadd.f32 %v1987, %v2342
      %v2589 = vadd.f32 %v1988, %v2341
      %v2590 = vadd.f32 %v1989, %v2345
      %v2591 = vadd.f32 %v1990, %v2347
      %v2592 = vadd.f32 %v1991, %v2349
      %v2593 = vadd.f32 %v1992, %v2348
      %v2594 = vadd.f32 %v1993, %v2352
      %v2595 = vadd.f32 %v1994, %v2354
      %v2596 = vadd.f32 %v1995, %v2356
      %v2597 = vadd.f32 %v1996, %v2355
      %v2598 = vadd.f32 %v1997, %v2359
      %v2599 = vadd.f32 %v1998, %v2361
      %v2600 = vadd.f32 %v1999, %v2363
      %v2601 = vadd.f32 %v2000, %v2362
      %v2602 = vadd.f32 %v2001, %v2366
      %v2603 = vadd.f32 %v2002, %v2368
      %v2604 = vadd.f32 %v2003, %v2370
      %v2605 = vadd.f32 %v2004, %v2369
      %v2606 = vadd.f32 %v2005, %v2373
      %v2607 = vadd.f32 %v2006, %v2375
      %v2608 = vadd.f32 %v2007, %v2377
      %v2609 = vadd.f32 %v2008, %v2376
      %v2610 = vadd.f32 %v2009, %v2380
      %v2611 = vadd.f32 %v2010, %v2382
      %v2612 = vadd.f32 %v2011, %v2384
      %v2613 = vadd.f32 %v2012, %v2383
      %v2614 = vadd.f32 %v2013, %v2387
      %v2615 = vadd.f32 %v2014, %v2389
      %v2616 = vadd.f32 %v2015, %v2391
      %v2617 = vadd.f32 %v2016, %v2390
      %v2618 = vadd.f32 %v2017, %v2394
      %v2619 = vadd.f32 %v2018, %v2396
      %v2620 = vadd.f32 %v2019, %v2398
      %v2621 = vadd.f32 %v2020, %v2397
      %v2622 = vadd.f32 %v2021, %v2401
      %v2623 = vadd.f32 %v2022, %v2403
      %v2624 = vadd.f32 %v2023, %v2405
      %v2625 = vadd.f32 %v2024, %v2404
      %v2626 = vadd.f32 %v2025, %v2408
      %v2627 = vadd.f32 %v2026, %v2410
      %v2628 = vadd.f32 %v2027, %v2412
      %v2629 = vadd.f32 %v2028, %v2411
      %v2630 = vadd.f32 %v2029, %v2415
      %v2631 = vadd.f32 %v2030, %v2417
      %v2632 = vadd.f32 %v2031, %v2419
      %v2633 = vadd.f32 %v2032, %v2418
      %v2634 = vadd.f32 %v2033, %v2422
      %v2635 = vadd.f32 %v2034, %v2424
      %v2636 = vadd.f32 %v2035, %v2426
      %v2637 = vadd.f32 %v2036, %v2425
      %v2638 = vadd.f32 %v2037, %v2429
      %v2639 = vadd.f32 %v2038, %v2431
      %v2640 = vadd.f32 %v2039, %v2433
      %v2641 = vadd.f32 %v2040, %v2432
      %s2642 = sadd.s32 %s199, 12
      %s2643 = sld [smem:[#allocation4 + %s2642]]
      %v2644 = vstv %s2643
      %v2645 = vmul.f32 %v86, %v2644
      %v2646 = vmul.f32 %v87, %v2644
      %v2647 = vmul.f32 %v88, %v2644
      %v2648 = vmul.f32 %v89, %v2644
      %v2649 = vmul.f32 %v90, %v2644
      %v2650 = vmul.f32 %v91, %v2644
      %v2651 = vmul.f32 %v92, %v2644
      %v2652 = vmul.f32 %v93, %v2644
      %v2653 = vmul.f32 %v94, %v2644
      %v2654 = vmul.f32 %v95, %v2644
      %v2655 = vmul.f32 %v96, %v2644
      %v2656 = vmul.f32 %v97, %v2644
      %v2657 = vmul.f32 %v98, %v2644
      %v2658 = vmul.f32 %v99, %v2644
      %v2659 = vmul.f32 %v100, %v2644
      %v2660 = vmul.f32 %v101, %v2644
      %v2661 = vmul.f32 %v102, %v2644
      %v2662 = vmul.f32 %v103, %v2644
      %v2663 = vmul.f32 %v104, %v2644
      %v2664 = vmul.f32 %v105, %v2644
      %v2665 = vmul.f32 %v106, %v2644
      %v2666 = vmul.f32 %v107, %v2644
      %v2667 = vmul.f32 %v108, %v2644
      %v2668 = vmul.f32 %v109, %v2644
      %v2669 = vmul.f32 %v110, %v2644
      %v2670 = vmul.f32 %v111, %v2644
      %v2671 = vmul.f32 %v112, %v2644
      %v2672 = vmul.f32 %v113, %v2644
      %v2673 = vmul.f32 %v114, %v2644
      %v2674 = vmul.f32 %v115, %v2644
      %v2675 = vmul.f32 %v116, %v2644
      %v2676 = vmul.f32 %v117, %v2644
      %v2677 = vmul.f32 %v118, %v2644
      %v2678 = vmul.f32 %v119, %v2644
      %v2679 = vmul.f32 %v120, %v2644
      %v2680 = vmul.f32 %v121, %v2644
      %v2681 = vmul.f32 %v122, %v2644
      %v2682 = vmul.f32 %v123, %v2644
      %v2683 = vmul.f32 %v124, %v2644
      %v2684 = vmul.f32 %v125, %v2644
      %v2685 = vmul.f32 %v126, %v2644
      %v2686 = vmul.f32 %v127, %v2644
      %v2687 = vmul.f32 %v128, %v2644
      %v2688 = vmul.f32 %v129, %v2644
      %v2689 = vmul.f32 %v130, %v2644
      %v2690 = vmul.f32 %v131, %v2644
      %v2691 = vmul.f32 %v132, %v2644
      %v2692 = vmul.f32 %v133, %v2644
      %v2693 = vmul.f32 %v134, %v2644
      %v2694 = vmul.f32 %v135, %v2644
      %v2695 = vmul.f32 %v136, %v2644
      %v2696 = vmul.f32 %v137, %v2644
      %v2697 = vmul.f32 %v138, %v2644
      %v2698 = vmul.f32 %v139, %v2644
      %v2699 = vmul.f32 %v140, %v2644
      %v2700 = vmul.f32 %v141, %v2644
      %v2701 = vmul.f32 %v142, %v2644
      %v2702 = vmul.f32 %v143, %v2644
      %v2703 = vmul.f32 %v144, %v2644
      %v2704 = vmul.f32 %v145, %v2644
      %v2705 = vmul.f32 %v146, %v2644
      %v2706 = vmul.f32 %v147, %v2644
      %v2707 = vmul.f32 %v148, %v2644
      %v2708 = vmul.f32 %v149, %v2644
      %v2709 = vmul.f32 %v150, %v2644
      %v2710 = vmul.f32 %v151, %v2644
      %v2711 = vmul.f32 %v152, %v2644
      %v2712 = vmul.f32 %v153, %v2644
      %v2713 = vmul.f32 %v154, %v2644
      %v2714 = vmul.f32 %v155, %v2644
      %v2715 = vmul.f32 %v156, %v2644
      %v2716 = vmul.f32 %v157, %v2644
      %v2717 = vmul.f32 %v158, %v2644
      %v2718 = vmul.f32 %v159, %v2644
      %v2719 = vmul.f32 %v160, %v2644
      %v2720 = vmul.f32 %v161, %v2644
      %v2721 = vmul.f32 %v162, %v2644
      %v2722 = vmul.f32 %v163, %v2644
      %v2723 = vmul.f32 %v164, %v2644
      %v2724 = vmul.f32 %v165, %v2644
      %v2725 = vmul.f32 %v166, %v2644
      %v2726 = vmul.f32 %v167, %v2644
      %v2727 = vmul.f32 %v168, %v2644
      %v2728 = vmul.f32 %v169, %v2644
      %v2729 = vmul.f32 %v170, %v2644
      %v2730 = vmul.f32 %v171, %v2644
      %v2731 = vmul.f32 %v172, %v2644
      %v2732 = vmul.f32 %v173, %v2644
      %v2733 = vmul.f32 %v174, %v2644
      %v2734 = vmul.f32 %v175, %v2644
      %v2735 = vmul.f32 %v176, %v2644
      %v2736 = vmul.f32 %v177, %v2644
      %v2737 = vmul.f32 %v178, %v2644
      %v2738 = vmul.f32 %v179, %v2644
      %v2739 = vmul.f32 %v180, %v2644
      %v2740 = vmul.f32 %v181, %v2644
      %v2741 = vmul.f32 %v182, %v2644
      %v2742 = vmul.f32 %v183, %v2644
      %v2743 = vmul.f32 %v184, %v2644
      %v2744 = vmul.f32 %v185, %v2644
      %v2745 = vmul.f32 %v186, %v2644
      %v2746 = vmul.f32 %v187, %v2644
      %v2747 = vmul.f32 %v188, %v2644
      %v2748 = vmul.f32 %v189, %v2644
      %vm2853 = vcmask 1045504
      %v2854 = vrot.slane %v2645, 2
      %v2855 = vrot.slane %v2646, 2
      %v2856 = vsel %vm2853, %v2854, %v2855
      %v2857 = vrot.slane %v2647, 2
      %v2858 = vsel %vm2853, %v2855, %v2857
      %v2859 = vrot.slane %v2648, 2
      %v2860 = vsel %vm2853, %v2857, %v2859
      %v2861 = vrot.slane %v2649, 2
      %v2862 = vrot.slane %v2650, 2
      %v2863 = vsel %vm2853, %v2861, %v2862
      %v2864 = vrot.slane %v2651, 2
      %v2865 = vsel %vm2853, %v2862, %v2864
      %v2866 = vrot.slane %v2652, 2
      %v2867 = vsel %vm2853, %v2864, %v2866
      %v2868 = vrot.slane %v2653, 2
      %v2869 = vrot.slane %v2654, 2
      %v2870 = vsel %vm2853, %v2868, %v2869
      %v2871 = vrot.slane %v2655, 2
      %v2872 = vsel %vm2853, %v2869, %v2871
      %v2873 = vrot.slane %v2656, 2
      %v2874 = vsel %vm2853, %v2871, %v2873
      %v2875 = vrot.slane %v2657, 2
      %v2876 = vrot.slane %v2658, 2
      %v2877 = vsel %vm2853, %v2875, %v2876
      %v2878 = vrot.slane %v2659, 2
      %v2879 = vsel %vm2853, %v2876, %v2878
      %v2880 = vrot.slane %v2660, 2
      %v2881 = vsel %vm2853, %v2878, %v2880
      %v2882 = vrot.slane %v2661, 2
      %v2883 = vrot.slane %v2662, 2
      %v2884 = vsel %vm2853, %v2882, %v2883
      %v2885 = vrot.slane %v2663, 2
      %v2886 = vsel %vm2853, %v2883, %v2885
      %v2887 = vrot.slane %v2664, 2
      %v2888 = vsel %vm2853, %v2885, %v2887
      %v2889 = vrot.slane %v2665, 2
      %v2890 = vrot.slane %v2666, 2
      %v2891 = vsel %vm2853, %v2889, %v2890
      %v2892 = vrot.slane %v2667, 2
      %v2893 = vsel %vm2853, %v2890, %v2892
      %v2894 = vrot.slane %v2668, 2
      %v2895 = vsel %vm2853, %v2892, %v2894
      %v2896 = vrot.slane %v2669, 2
      %v2897 = vrot.slane %v2670, 2
      %v2898 = vsel %vm2853, %v2896, %v2897
      %v2899 = vrot.slane %v2671, 2
      %v2900 = vsel %vm2853, %v2897, %v2899
      %v2901 = vrot.slane %v2672, 2
      %v2902 = vsel %vm2853, %v2899, %v2901
      %v2903 = vrot.slane %v2673, 2
      %v2904 = vrot.slane %v2674, 2
      %v2905 = vsel %vm2853, %v2903, %v2904
      %v2906 = vrot.slane %v2675, 2
      %v2907 = vsel %vm2853, %v2904, %v2906
      %v2908 = vrot.slane %v2676, 2
      %v2909 = vsel %vm2853, %v2906, %v2908
      %v2910 = vrot.slane %v2677, 2
      %v2911 = vrot.slane %v2678, 2
      %v2912 = vsel %vm2853, %v2910, %v2911
      %v2913 = vrot.slane %v2679, 2
      %v2914 = vsel %vm2853, %v2911, %v2913
      %v2915 = vrot.slane %v2680, 2
      %v2916 = vsel %vm2853, %v2913, %v2915
      %v2917 = vrot.slane %v2681, 2
      %v2918 = vrot.slane %v2682, 2
      %v2919 = vsel %vm2853, %v2917, %v2918
      %v2920 = vrot.slane %v2683, 2
      %v2921 = vsel %vm2853, %v2918, %v2920
      %v2922 = vrot.slane %v2684, 2
      %v2923 = vsel %vm2853, %v2920, %v2922
      %v2924 = vrot.slane %v2685, 2
      %v2925 = vrot.slane %v2686, 2
      %v2926 = vsel %vm2853, %v2924, %v2925
      %v2927 = vrot.slane %v2687, 2
      %v2928 = vsel %vm2853, %v2925, %v2927
      %v2929 = vrot.slane %v2688, 2
      %v2930 = vsel %vm2853, %v2927, %v2929
      %v2931 = vrot.slane %v2689, 2
      %v2932 = vrot.slane %v2690, 2
      %v2933 = vsel %vm2853, %v2931, %v2932
      %v2934 = vrot.slane %v2691, 2
      %v2935 = vsel %vm2853, %v2932, %v2934
      %v2936 = vrot.slane %v2692, 2
      %v2937 = vsel %vm2853, %v2934, %v2936
      %v2938 = vrot.slane %v2693, 2
      %v2939 = vrot.slane %v2694, 2
      %v2940 = vsel %vm2853, %v2938, %v2939
      %v2941 = vrot.slane %v2695, 2
      %v2942 = vsel %vm2853, %v2939, %v2941
      %v2943 = vrot.slane %v2696, 2
      %v2944 = vsel %vm2853, %v2941, %v2943
      %v2945 = vrot.slane %v2697, 2
      %v2946 = vrot.slane %v2698, 2
      %v2947 = vsel %vm2853, %v2945, %v2946
      %v2948 = vrot.slane %v2699, 2
      %v2949 = vsel %vm2853, %v2946, %v2948
      %v2950 = vrot.slane %v2700, 2
      %v2951 = vsel %vm2853, %v2948, %v2950
      %v2952 = vrot.slane %v2701, 2
      %v2953 = vrot.slane %v2702, 2
      %v2954 = vsel %vm2853, %v2952, %v2953
      %v2955 = vrot.slane %v2703, 2
      %v2956 = vsel %vm2853, %v2953, %v2955
      %v2957 = vrot.slane %v2704, 2
      %v2958 = vsel %vm2853, %v2955, %v2957
      %v2959 = vrot.slane %v2705, 2
      %v2960 = vrot.slane %v2706, 2
      %v2961 = vsel %vm2853, %v2959, %v2960
      %v2962 = vrot.slane %v2707, 2
      %v2963 = vsel %vm2853, %v2960, %v2962
      %v2964 = vrot.slane %v2708, 2
      %v2965 = vsel %vm2853, %v2962, %v2964
      %v2966 = vrot.slane %v2709, 2
      %v2967 = vrot.slane %v2710, 2
      %v2968 = vsel %vm2853, %v2966, %v2967
      %v2969 = vrot.slane %v2711, 2
      %v2970 = vsel %vm2853, %v2967, %v2969
      %v2971 = vrot.slane %v2712, 2
      %v2972 = vsel %vm2853, %v2969, %v2971
      %v2973 = vrot.slane %v2713, 2
      %v2974 = vrot.slane %v2714, 2
      %v2975 = vsel %vm2853, %v2973, %v2974
      %v2976 = vrot.slane %v2715, 2
      %v2977 = vsel %vm2853, %v2974, %v2976
      %v2978 = vrot.slane %v2716, 2
      %v2979 = vsel %vm2853, %v2976, %v2978
      %v2980 = vrot.slane %v2717, 2
      %v2981 = vrot.slane %v2718, 2
      %v2982 = vsel %vm2853, %v2980, %v2981
      %v2983 = vrot.slane %v2719, 2
      %v2984 = vsel %vm2853, %v2981, %v2983
      %v2985 = vrot.slane %v2720, 2
      %v2986 = vsel %vm2853, %v2983, %v2985
      %v2987 = vrot.slane %v2721, 2
      %v2988 = vrot.slane %v2722, 2
      %v2989 = vsel %vm2853, %v2987, %v2988
      %v2990 = vrot.slane %v2723, 2
      %v2991 = vsel %vm2853, %v2988, %v2990
      %v2992 = vrot.slane %v2724, 2
      %v2993 = vsel %vm2853, %v2990, %v2992
      %v2994 = vrot.slane %v2725, 2
      %v2995 = vrot.slane %v2726, 2
      %v2996 = vsel %vm2853, %v2994, %v2995
      %v2997 = vrot.slane %v2727, 2
      %v2998 = vsel %vm2853, %v2995, %v2997
      %v2999 = vrot.slane %v2728, 2
      %v3000 = vsel %vm2853, %v2997, %v2999
      %v3001 = vrot.slane %v2729, 2
      %v3002 = vrot.slane %v2730, 2
      %v3003 = vsel %vm2853, %v3001, %v3002
      %v3004 = vrot.slane %v2731, 2
      %v3005 = vsel %vm2853, %v3002, %v3004
      %v3006 = vrot.slane %v2732, 2
      %v3007 = vsel %vm2853, %v3004, %v3006
      %v3008 = vrot.slane %v2733, 2
      %v3009 = vrot.slane %v2734, 2
      %v3010 = vsel %vm2853, %v3008, %v3009
      %v3011 = vrot.slane %v2735, 2
      %v3012 = vsel %vm2853, %v3009, %v3011
      %v3013 = vrot.slane %v2736, 2
      %v3014 = vsel %vm2853, %v3011, %v3013
      %v3015 = vrot.slane %v2737, 2
      %v3016 = vrot.slane %v2738, 2
      %v3017 = vsel %vm2853, %v3015, %v3016
      %v3018 = vrot.slane %v2739, 2
      %v3019 = vsel %vm2853, %v3016, %v3018
      %v3020 = vrot.slane %v2740, 2
      %v3021 = vsel %vm2853, %v3018, %v3020
      %v3022 = vrot.slane %v2741, 2
      %v3023 = vrot.slane %v2742, 2
      %v3024 = vsel %vm2853, %v3022, %v3023
      %v3025 = vrot.slane %v2743, 2
      %v3026 = vsel %vm2853, %v3023, %v3025
      %v3027 = vrot.slane %v2744, 2
      %v3028 = vsel %vm2853, %v3025, %v3027
      %v3029 = vrot.slane %v2745, 2
      %v3030 = vrot.slane %v2746, 2
      %v3031 = vsel %vm2853, %v3029, %v3030
      %v3032 = vrot.slane %v2747, 2
      %v3033 = vsel %vm2853, %v3030, %v3032
      %v3034 = vrot.slane %v2748, 2
      %v3035 = vsel %vm2853, %v3032, %v3034
      %v3140 = vadd.f32 %v2538, %v2856
      %v3141 = vadd.f32 %v2539, %v2858
      %v3142 = vadd.f32 %v2540, %v2860
      %v3143 = vadd.f32 %v2541, %v2859
      %v3144 = vadd.f32 %v2542, %v2863
      %v3145 = vadd.f32 %v2543, %v2865
      %v3146 = vadd.f32 %v2544, %v2867
      %v3147 = vadd.f32 %v2545, %v2866
      %v3148 = vadd.f32 %v2546, %v2870
      %v3149 = vadd.f32 %v2547, %v2872
      %v3150 = vadd.f32 %v2548, %v2874
      %v3151 = vadd.f32 %v2549, %v2873
      %v3152 = vadd.f32 %v2550, %v2877
      %v3153 = vadd.f32 %v2551, %v2879
      %v3154 = vadd.f32 %v2552, %v2881
      %v3155 = vadd.f32 %v2553, %v2880
      %v3156 = vadd.f32 %v2554, %v2884
      %v3157 = vadd.f32 %v2555, %v2886
      %v3158 = vadd.f32 %v2556, %v2888
      %v3159 = vadd.f32 %v2557, %v2887
      %v3160 = vadd.f32 %v2558, %v2891
      %v3161 = vadd.f32 %v2559, %v2893
      %v3162 = vadd.f32 %v2560, %v2895
      %v3163 = vadd.f32 %v2561, %v2894
      %v3164 = vadd.f32 %v2562, %v2898
      %v3165 = vadd.f32 %v2563, %v2900
      %v3166 = vadd.f32 %v2564, %v2902
      %v3167 = vadd.f32 %v2565, %v2901
      %v3168 = vadd.f32 %v2566, %v2905
      %v3169 = vadd.f32 %v2567, %v2907
      %v3170 = vadd.f32 %v2568, %v2909
      %v3171 = vadd.f32 %v2569, %v2908
      %v3172 = vadd.f32 %v2570, %v2912
      %v3173 = vadd.f32 %v2571, %v2914
      %v3174 = vadd.f32 %v2572, %v2916
      %v3175 = vadd.f32 %v2573, %v2915
      %v3176 = vadd.f32 %v2574, %v2919
      %v3177 = vadd.f32 %v2575, %v2921
      %v3178 = vadd.f32 %v2576, %v2923
      %v3179 = vadd.f32 %v2577, %v2922
      %v3180 = vadd.f32 %v2578, %v2926
      %v3181 = vadd.f32 %v2579, %v2928
      %v3182 = vadd.f32 %v2580, %v2930
      %v3183 = vadd.f32 %v2581, %v2929
      %v3184 = vadd.f32 %v2582, %v2933
      %v3185 = vadd.f32 %v2583, %v2935
      %v3186 = vadd.f32 %v2584, %v2937
      %v3187 = vadd.f32 %v2585, %v2936
      %v3188 = vadd.f32 %v2586, %v2940
      %v3189 = vadd.f32 %v2587, %v2942
      %v3190 = vadd.f32 %v2588, %v2944
      %v3191 = vadd.f32 %v2589, %v2943
      %v3192 = vadd.f32 %v2590, %v2947
      %v3193 = vadd.f32 %v2591, %v2949
      %v3194 = vadd.f32 %v2592, %v2951
      %v3195 = vadd.f32 %v2593, %v2950
      %v3196 = vadd.f32 %v2594, %v2954
      %v3197 = vadd.f32 %v2595, %v2956
      %v3198 = vadd.f32 %v2596, %v2958
      %v3199 = vadd.f32 %v2597, %v2957
      %v3200 = vadd.f32 %v2598, %v2961
      %v3201 = vadd.f32 %v2599, %v2963
      %v3202 = vadd.f32 %v2600, %v2965
      %v3203 = vadd.f32 %v2601, %v2964
      %v3204 = vadd.f32 %v2602, %v2968
      %v3205 = vadd.f32 %v2603, %v2970
      %v3206 = vadd.f32 %v2604, %v2972
      %v3207 = vadd.f32 %v2605, %v2971
      %v3208 = vadd.f32 %v2606, %v2975
      %v3209 = vadd.f32 %v2607, %v2977
      %v3210 = vadd.f32 %v2608, %v2979
      %v3211 = vadd.f32 %v2609, %v2978
      %v3212 = vadd.f32 %v2610, %v2982
      %v3213 = vadd.f32 %v2611, %v2984
      %v3214 = vadd.f32 %v2612, %v2986
      %v3215 = vadd.f32 %v2613, %v2985
      %v3216 = vadd.f32 %v2614, %v2989
      %v3217 = vadd.f32 %v2615, %v2991
      %v3218 = vadd.f32 %v2616, %v2993
      %v3219 = vadd.f32 %v2617, %v2992
      %v3220 = vadd.f32 %v2618, %v2996
      %v3221 = vadd.f32 %v2619, %v2998
      %v3222 = vadd.f32 %v2620, %v3000
      %v3223 = vadd.f32 %v2621, %v2999
      %v3224 = vadd.f32 %v2622, %v3003
      %v3225 = vadd.f32 %v2623, %v3005
      %v3226 = vadd.f32 %v2624, %v3007
      %v3227 = vadd.f32 %v2625, %v3006
      %v3228 = vadd.f32 %v2626, %v3010
      %v3229 = vadd.f32 %v2627, %v3012
      %v3230 = vadd.f32 %v2628, %v3014
      %v3231 = vadd.f32 %v2629, %v3013
      %v3232 = vadd.f32 %v2630, %v3017
      %v3233 = vadd.f32 %v2631, %v3019
      %v3234 = vadd.f32 %v2632, %v3021
      %v3235 = vadd.f32 %v2633, %v3020
      %v3236 = vadd.f32 %v2634, %v3024
      %v3237 = vadd.f32 %v2635, %v3026
      %v3238 = vadd.f32 %v2636, %v3028
      %v3239 = vadd.f32 %v2637, %v3027
      %v3240 = vadd.f32 %v2638, %v3031
      %v3241 = vadd.f32 %v2639, %v3033
      %v3242 = vadd.f32 %v2640, %v3035
      %v3243 = vadd.f32 %v2641, %v3034
      %s3244 = sadd.s32 %s199, 30
      %s3245 = sld [smem:[#allocation4 + %s3244]]
      %v3246 = vstv %s3245
      %v3247 = vmul.f32 %v90, %v3246
      %v3248 = vmul.f32 %v91, %v3246
      %v3249 = vmul.f32 %v92, %v3246
      %v3250 = vmul.f32 %v93, %v3246
      %v3251 = vmul.f32 %v94, %v3246
      %v3252 = vmul.f32 %v95, %v3246
      %v3253 = vmul.f32 %v96, %v3246
      %v3254 = vmul.f32 %v97, %v3246
      %v3255 = vmul.f32 %v98, %v3246
      %v3256 = vmul.f32 %v99, %v3246
      %v3257 = vmul.f32 %v100, %v3246
      %v3258 = vmul.f32 %v101, %v3246
      %v3259 = vmul.f32 %v102, %v3246
      %v3260 = vmul.f32 %v103, %v3246
      %v3261 = vmul.f32 %v104, %v3246
      %v3262 = vmul.f32 %v105, %v3246
      %v3263 = vmul.f32 %v106, %v3246
      %v3264 = vmul.f32 %v107, %v3246
      %v3265 = vmul.f32 %v108, %v3246
      %v3266 = vmul.f32 %v109, %v3246
      %v3267 = vmul.f32 %v110, %v3246
      %v3268 = vmul.f32 %v111, %v3246
      %v3269 = vmul.f32 %v112, %v3246
      %v3270 = vmul.f32 %v113, %v3246
      %v3271 = vmul.f32 %v114, %v3246
      %v3272 = vmul.f32 %v115, %v3246
      %v3273 = vmul.f32 %v116, %v3246
      %v3274 = vmul.f32 %v117, %v3246
      %v3275 = vmul.f32 %v118, %v3246
      %v3276 = vmul.f32 %v119, %v3246
      %v3277 = vmul.f32 %v120, %v3246
      %v3278 = vmul.f32 %v121, %v3246
      %v3279 = vmul.f32 %v122, %v3246
      %v3280 = vmul.f32 %v123, %v3246
      %v3281 = vmul.f32 %v124, %v3246
      %v3282 = vmul.f32 %v125, %v3246
      %v3283 = vmul.f32 %v126, %v3246
      %v3284 = vmul.f32 %v127, %v3246
      %v3285 = vmul.f32 %v128, %v3246
      %v3286 = vmul.f32 %v129, %v3246
      %v3287 = vmul.f32 %v130, %v3246
      %v3288 = vmul.f32 %v131, %v3246
      %v3289 = vmul.f32 %v132, %v3246
      %v3290 = vmul.f32 %v133, %v3246
      %v3291 = vmul.f32 %v134, %v3246
      %v3292 = vmul.f32 %v135, %v3246
      %v3293 = vmul.f32 %v136, %v3246
      %v3294 = vmul.f32 %v137, %v3246
      %v3295 = vmul.f32 %v138, %v3246
      %v3296 = vmul.f32 %v139, %v3246
      %v3297 = vmul.f32 %v140, %v3246
      %v3298 = vmul.f32 %v141, %v3246
      %v3299 = vmul.f32 %v142, %v3246
      %v3300 = vmul.f32 %v143, %v3246
      %v3301 = vmul.f32 %v144, %v3246
      %v3302 = vmul.f32 %v145, %v3246
      %v3303 = vmul.f32 %v146, %v3246
      %v3304 = vmul.f32 %v147, %v3246
      %v3305 = vmul.f32 %v148, %v3246
      %v3306 = vmul.f32 %v149, %v3246
      %v3307 = vmul.f32 %v150, %v3246
      %v3308 = vmul.f32 %v151, %v3246
      %v3309 = vmul.f32 %v152, %v3246
      %v3310 = vmul.f32 %v153, %v3246
      %v3311 = vmul.f32 %v154, %v3246
      %v3312 = vmul.f32 %v155, %v3246
      %v3313 = vmul.f32 %v156, %v3246
      %v3314 = vmul.f32 %v157, %v3246
      %v3315 = vmul.f32 %v158, %v3246
      %v3316 = vmul.f32 %v159, %v3246
      %v3317 = vmul.f32 %v160, %v3246
      %v3318 = vmul.f32 %v161, %v3246
      %v3319 = vmul.f32 %v162, %v3246
      %v3320 = vmul.f32 %v163, %v3246
      %v3321 = vmul.f32 %v164, %v3246
      %v3322 = vmul.f32 %v165, %v3246
      %v3323 = vmul.f32 %v166, %v3246
      %v3324 = vmul.f32 %v167, %v3246
      %v3325 = vmul.f32 %v168, %v3246
      %v3326 = vmul.f32 %v169, %v3246
      %v3327 = vmul.f32 %v170, %v3246
      %v3328 = vmul.f32 %v171, %v3246
      %v3329 = vmul.f32 %v172, %v3246
      %v3330 = vmul.f32 %v173, %v3246
      %v3331 = vmul.f32 %v174, %v3246
      %v3332 = vmul.f32 %v175, %v3246
      %v3333 = vmul.f32 %v176, %v3246
      %v3334 = vmul.f32 %v177, %v3246
      %v3335 = vmul.f32 %v178, %v3246
      %v3336 = vmul.f32 %v179, %v3246
      %v3337 = vmul.f32 %v180, %v3246
      %v3338 = vmul.f32 %v181, %v3246
      %v3339 = vmul.f32 %v182, %v3246
      %v3340 = vmul.f32 %v183, %v3246
      %v3341 = vmul.f32 %v184, %v3246
      %v3342 = vmul.f32 %v185, %v3246
      %v3343 = vmul.f32 %v186, %v3246
      %v3344 = vmul.f32 %v187, %v3246
      %v3345 = vmul.f32 %v188, %v3246
      %v3346 = vmul.f32 %v189, %v3246
      %v3347 = vmul.f32 %v190, %v3246
      %v3348 = vmul.f32 %v191, %v3246
      %v3349 = vmul.f32 %v192, %v3246
      %v3350 = vmul.f32 %v193, %v3246
      %v3455 = vrot.slane %v3247, 2
      %v3456 = vrot.slane %v3248, 2
      %v3457 = vsel %vm2853, %v3455, %v3456
      %v3458 = vrot.slane %v3249, 2
      %v3459 = vsel %vm2853, %v3456, %v3458
      %v3460 = vrot.slane %v3250, 2
      %v3461 = vsel %vm2853, %v3458, %v3460
      %v3462 = vrot.slane %v3251, 2
      %v3463 = vrot.slane %v3252, 2
      %v3464 = vsel %vm2853, %v3462, %v3463
      %v3465 = vrot.slane %v3253, 2
      %v3466 = vsel %vm2853, %v3463, %v3465
      %v3467 = vrot.slane %v3254, 2
      %v3468 = vsel %vm2853, %v3465, %v3467
      %v3469 = vrot.slane %v3255, 2
      %v3470 = vrot.slane %v3256, 2
      %v3471 = vsel %vm2853, %v3469, %v3470
      %v3472 = vrot.slane %v3257, 2
      %v3473 = vsel %vm2853, %v3470, %v3472
      %v3474 = vrot.slane %v3258, 2
      %v3475 = vsel %vm2853, %v3472, %v3474
      %v3476 = vrot.slane %v3259, 2
      %v3477 = vrot.slane %v3260, 2
      %v3478 = vsel %vm2853, %v3476, %v3477
      %v3479 = vrot.slane %v3261, 2
      %v3480 = vsel %vm2853, %v3477, %v3479
      %v3481 = vrot.slane %v3262, 2
      %v3482 = vsel %vm2853, %v3479, %v3481
      %v3483 = vrot.slane %v3263, 2
      %v3484 = vrot.slane %v3264, 2
      %v3485 = vsel %vm2853, %v3483, %v3484
      %v3486 = vrot.slane %v3265, 2
      %v3487 = vsel %vm2853, %v3484, %v3486
      %v3488 = vrot.slane %v3266, 2
      %v3489 = vsel %vm2853, %v3486, %v3488
      %v3490 = vrot.slane %v3267, 2
      %v3491 = vrot.slane %v3268, 2
      %v3492 = vsel %vm2853, %v3490, %v3491
      %v3493 = vrot.slane %v3269, 2
      %v3494 = vsel %vm2853, %v3491, %v3493
      %v3495 = vrot.slane %v3270, 2
      %v3496 = vsel %vm2853, %v3493, %v3495
      %v3497 = vrot.slane %v3271, 2
      %v3498 = vrot.slane %v3272, 2
      %v3499 = vsel %vm2853, %v3497, %v3498
      %v3500 = vrot.slane %v3273, 2
      %v3501 = vsel %vm2853, %v3498, %v3500
      %v3502 = vrot.slane %v3274, 2
      %v3503 = vsel %vm2853, %v3500, %v3502
      %v3504 = vrot.slane %v3275, 2
      %v3505 = vrot.slane %v3276, 2
      %v3506 = vsel %vm2853, %v3504, %v3505
      %v3507 = vrot.slane %v3277, 2
      %v3508 = vsel %vm2853, %v3505, %v3507
      %v3509 = vrot.slane %v3278, 2
      %v3510 = vsel %vm2853, %v3507, %v3509
      %v3511 = vrot.slane %v3279, 2
      %v3512 = vrot.slane %v3280, 2
      %v3513 = vsel %vm2853, %v3511, %v3512
      %v3514 = vrot.slane %v3281, 2
      %v3515 = vsel %vm2853, %v3512, %v3514
      %v3516 = vrot.slane %v3282, 2
      %v3517 = vsel %vm2853, %v3514, %v3516
      %v3518 = vrot.slane %v3283, 2
      %v3519 = vrot.slane %v3284, 2
      %v3520 = vsel %vm2853, %v3518, %v3519
      %v3521 = vrot.slane %v3285, 2
      %v3522 = vsel %vm2853, %v3519, %v3521
      %v3523 = vrot.slane %v3286, 2
      %v3524 = vsel %vm2853, %v3521, %v3523
      %v3525 = vrot.slane %v3287, 2
      %v3526 = vrot.slane %v3288, 2
      %v3527 = vsel %vm2853, %v3525, %v3526
      %v3528 = vrot.slane %v3289, 2
      %v3529 = vsel %vm2853, %v3526, %v3528
      %v3530 = vrot.slane %v3290, 2
      %v3531 = vsel %vm2853, %v3528, %v3530
      %v3532 = vrot.slane %v3291, 2
      %v3533 = vrot.slane %v3292, 2
      %v3534 = vsel %vm2853, %v3532, %v3533
      %v3535 = vrot.slane %v3293, 2
      %v3536 = vsel %vm2853, %v3533, %v3535
      %v3537 = vrot.slane %v3294, 2
      %v3538 = vsel %vm2853, %v3535, %v3537
      %v3539 = vrot.slane %v3295, 2
      %v3540 = vrot.slane %v3296, 2
      %v3541 = vsel %vm2853, %v3539, %v3540
      %v3542 = vrot.slane %v3297, 2
      %v3543 = vsel %vm2853, %v3540, %v3542
      %v3544 = vrot.slane %v3298, 2
      %v3545 = vsel %vm2853, %v3542, %v3544
      %v3546 = vrot.slane %v3299, 2
      %v3547 = vrot.slane %v3300, 2
      %v3548 = vsel %vm2853, %v3546, %v3547
      %v3549 = vrot.slane %v3301, 2
      %v3550 = vsel %vm2853, %v3547, %v3549
      %v3551 = vrot.slane %v3302, 2
      %v3552 = vsel %vm2853, %v3549, %v3551
      %v3553 = vrot.slane %v3303, 2
      %v3554 = vrot.slane %v3304, 2
      %v3555 = vsel %vm2853, %v3553, %v3554
      %v3556 = vrot.slane %v3305, 2
      %v3557 = vsel %vm2853, %v3554, %v3556
      %v3558 = vrot.slane %v3306, 2
      %v3559 = vsel %vm2853, %v3556, %v3558
      %v3560 = vrot.slane %v3307, 2
      %v3561 = vrot.slane %v3308, 2
      %v3562 = vsel %vm2853, %v3560, %v3561
      %v3563 = vrot.slane %v3309, 2
      %v3564 = vsel %vm2853, %v3561, %v3563
      %v3565 = vrot.slane %v3310, 2
      %v3566 = vsel %vm2853, %v3563, %v3565
      %v3567 = vrot.slane %v3311, 2
      %v3568 = vrot.slane %v3312, 2
      %v3569 = vsel %vm2853, %v3567, %v3568
      %v3570 = vrot.slane %v3313, 2
      %v3571 = vsel %vm2853, %v3568, %v3570
      %v3572 = vrot.slane %v3314, 2
      %v3573 = vsel %vm2853, %v3570, %v3572
      %v3574 = vrot.slane %v3315, 2
      %v3575 = vrot.slane %v3316, 2
      %v3576 = vsel %vm2853, %v3574, %v3575
      %v3577 = vrot.slane %v3317, 2
      %v3578 = vsel %vm2853, %v3575, %v3577
      %v3579 = vrot.slane %v3318, 2
      %v3580 = vsel %vm2853, %v3577, %v3579
      %v3581 = vrot.slane %v3319, 2
      %v3582 = vrot.slane %v3320, 2
      %v3583 = vsel %vm2853, %v3581, %v3582
      %v3584 = vrot.slane %v3321, 2
      %v3585 = vsel %vm2853, %v3582, %v3584
      %v3586 = vrot.slane %v3322, 2
      %v3587 = vsel %vm2853, %v3584, %v3586
      %v3588 = vrot.slane %v3323, 2
      %v3589 = vrot.slane %v3324, 2
      %v3590 = vsel %vm2853, %v3588, %v3589
      %v3591 = vrot.slane %v3325, 2
      %v3592 = vsel %vm2853, %v3589, %v3591
      %v3593 = vrot.slane %v3326, 2
      %v3594 = vsel %vm2853, %v3591, %v3593
      %v3595 = vrot.slane %v3327, 2
      %v3596 = vrot.slane %v3328, 2
      %v3597 = vsel %vm2853, %v3595, %v3596
      %v3598 = vrot.slane %v3329, 2
      %v3599 = vsel %vm2853, %v3596, %v3598
      %v3600 = vrot.slane %v3330, 2
      %v3601 = vsel %vm2853, %v3598, %v3600
      %v3602 = vrot.slane %v3331, 2
      %v3603 = vrot.slane %v3332, 2
      %v3604 = vsel %vm2853, %v3602, %v3603
      %v3605 = vrot.slane %v3333, 2
      %v3606 = vsel %vm2853, %v3603, %v3605
      %v3607 = vrot.slane %v3334, 2
      %v3608 = vsel %vm2853, %v3605, %v3607
      %v3609 = vrot.slane %v3335, 2
      %v3610 = vrot.slane %v3336, 2
      %v3611 = vsel %vm2853, %v3609, %v3610
      %v3612 = vrot.slane %v3337, 2
      %v3613 = vsel %vm2853, %v3610, %v3612
      %v3614 = vrot.slane %v3338, 2
      %v3615 = vsel %vm2853, %v3612, %v3614
      %v3616 = vrot.slane %v3339, 2
      %v3617 = vrot.slane %v3340, 2
      %v3618 = vsel %vm2853, %v3616, %v3617
      %v3619 = vrot.slane %v3341, 2
      %v3620 = vsel %vm2853, %v3617, %v3619
      %v3621 = vrot.slane %v3342, 2
      %v3622 = vsel %vm2853, %v3619, %v3621
      %v3623 = vrot.slane %v3343, 2
      %v3624 = vrot.slane %v3344, 2
      %v3625 = vsel %vm2853, %v3623, %v3624
      %v3626 = vrot.slane %v3345, 2
      %v3627 = vsel %vm2853, %v3624, %v3626
      %v3628 = vrot.slane %v3346, 2
      %v3629 = vsel %vm2853, %v3626, %v3628
      %v3630 = vrot.slane %v3347, 2
      %v3631 = vrot.slane %v3348, 2
      %v3632 = vsel %vm2853, %v3630, %v3631
      %v3633 = vrot.slane %v3349, 2
      %v3634 = vsel %vm2853, %v3631, %v3633
      %v3635 = vrot.slane %v3350, 2
      %v3636 = vsel %vm2853, %v3633, %v3635
      %v3741 = vadd.f32 %v3140, %v3457
      %v3742 = vadd.f32 %v3141, %v3459
      %v3743 = vadd.f32 %v3142, %v3461
      %v3744 = vadd.f32 %v3143, %v3460
      %v3745 = vadd.f32 %v3144, %v3464
      %v3746 = vadd.f32 %v3145, %v3466
      %v3747 = vadd.f32 %v3146, %v3468
      %v3748 = vadd.f32 %v3147, %v3467
      %v3749 = vadd.f32 %v3148, %v3471
      %v3750 = vadd.f32 %v3149, %v3473
      %v3751 = vadd.f32 %v3150, %v3475
      %v3752 = vadd.f32 %v3151, %v3474
      %v3753 = vadd.f32 %v3152, %v3478
      %v3754 = vadd.f32 %v3153, %v3480
      %v3755 = vadd.f32 %v3154, %v3482
      %v3756 = vadd.f32 %v3155, %v3481
      %v3757 = vadd.f32 %v3156, %v3485
      %v3758 = vadd.f32 %v3157, %v3487
      %v3759 = vadd.f32 %v3158, %v3489
      %v3760 = vadd.f32 %v3159, %v3488
      %v3761 = vadd.f32 %v3160, %v3492
      %v3762 = vadd.f32 %v3161, %v3494
      %v3763 = vadd.f32 %v3162, %v3496
      %v3764 = vadd.f32 %v3163, %v3495
      %v3765 = vadd.f32 %v3164, %v3499
      %v3766 = vadd.f32 %v3165, %v3501
      %v3767 = vadd.f32 %v3166, %v3503
      %v3768 = vadd.f32 %v3167, %v3502
      %v3769 = vadd.f32 %v3168, %v3506
      %v3770 = vadd.f32 %v3169, %v3508
      %v3771 = vadd.f32 %v3170, %v3510
      %v3772 = vadd.f32 %v3171, %v3509
      %v3773 = vadd.f32 %v3172, %v3513
      %v3774 = vadd.f32 %v3173, %v3515
      %v3775 = vadd.f32 %v3174, %v3517
      %v3776 = vadd.f32 %v3175, %v3516
      %v3777 = vadd.f32 %v3176, %v3520
      %v3778 = vadd.f32 %v3177, %v3522
      %v3779 = vadd.f32 %v3178, %v3524
      %v3780 = vadd.f32 %v3179, %v3523
      %v3781 = vadd.f32 %v3180, %v3527
      %v3782 = vadd.f32 %v3181, %v3529
      %v3783 = vadd.f32 %v3182, %v3531
      %v3784 = vadd.f32 %v3183, %v3530
      %v3785 = vadd.f32 %v3184, %v3534
      %v3786 = vadd.f32 %v3185, %v3536
      %v3787 = vadd.f32 %v3186, %v3538
      %v3788 = vadd.f32 %v3187, %v3537
      %v3789 = vadd.f32 %v3188, %v3541
      %v3790 = vadd.f32 %v3189, %v3543
      %v3791 = vadd.f32 %v3190, %v3545
      %v3792 = vadd.f32 %v3191, %v3544
      %v3793 = vadd.f32 %v3192, %v3548
      %v3794 = vadd.f32 %v3193, %v3550
      %v3795 = vadd.f32 %v3194, %v3552
      %v3796 = vadd.f32 %v3195, %v3551
      %v3797 = vadd.f32 %v3196, %v3555
      %v3798 = vadd.f32 %v3197, %v3557
      %v3799 = vadd.f32 %v3198, %v3559
      %v3800 = vadd.f32 %v3199, %v3558
      %v3801 = vadd.f32 %v3200, %v3562
      %v3802 = vadd.f32 %v3201, %v3564
      %v3803 = vadd.f32 %v3202, %v3566
      %v3804 = vadd.f32 %v3203, %v3565
      %v3805 = vadd.f32 %v3204, %v3569
      %v3806 = vadd.f32 %v3205, %v3571
      %v3807 = vadd.f32 %v3206, %v3573
      %v3808 = vadd.f32 %v3207, %v3572
      %v3809 = vadd.f32 %v3208, %v3576
      %v3810 = vadd.f32 %v3209, %v3578
      %v3811 = vadd.f32 %v3210, %v3580
      %v3812 = vadd.f32 %v3211, %v3579
      %v3813 = vadd.f32 %v3212, %v3583
      %v3814 = vadd.f32 %v3213, %v3585
      %v3815 = vadd.f32 %v3214, %v3587
      %v3816 = vadd.f32 %v3215, %v3586
      %v3817 = vadd.f32 %v3216, %v3590
      %v3818 = vadd.f32 %v3217, %v3592
      %v3819 = vadd.f32 %v3218, %v3594
      %v3820 = vadd.f32 %v3219, %v3593
      %v3821 = vadd.f32 %v3220, %v3597
      %v3822 = vadd.f32 %v3221, %v3599
      %v3823 = vadd.f32 %v3222, %v3601
      %v3824 = vadd.f32 %v3223, %v3600
      %v3825 = vadd.f32 %v3224, %v3604
      %v3826 = vadd.f32 %v3225, %v3606
      %v3827 = vadd.f32 %v3226, %v3608
      %v3828 = vadd.f32 %v3227, %v3607
      %v3829 = vadd.f32 %v3228, %v3611
      %v3830 = vadd.f32 %v3229, %v3613
      %v3831 = vadd.f32 %v3230, %v3615
      %v3832 = vadd.f32 %v3231, %v3614
      %v3833 = vadd.f32 %v3232, %v3618
      %v3834 = vadd.f32 %v3233, %v3620
      %v3835 = vadd.f32 %v3234, %v3622
      %v3836 = vadd.f32 %v3235, %v3621
      %v3837 = vadd.f32 %v3236, %v3625
      %v3838 = vadd.f32 %v3237, %v3627
      %v3839 = vadd.f32 %v3238, %v3629
      %v3840 = vadd.f32 %v3239, %v3628
      %v3841 = vadd.f32 %v3240, %v3632
      %v3842 = vadd.f32 %v3241, %v3634
      %v3843 = vadd.f32 %v3242, %v3636
      %v3844 = vadd.f32 %v3243, %v3635
      %s3845 = sadd.s32 %s199, 48
      %s3846 = sld [smem:[#allocation4 + %s3845]]
      %v3847 = vstv %s3846
      %v3848 = vmul.f32 %v94, %v3847
      %v3849 = vmul.f32 %v95, %v3847
      %v3850 = vmul.f32 %v96, %v3847
      %v3851 = vmul.f32 %v97, %v3847
      %v3852 = vmul.f32 %v98, %v3847
      %v3853 = vmul.f32 %v99, %v3847
      %v3854 = vmul.f32 %v100, %v3847
      %v3855 = vmul.f32 %v101, %v3847
      %v3856 = vmul.f32 %v102, %v3847
      %v3857 = vmul.f32 %v103, %v3847
      %v3858 = vmul.f32 %v104, %v3847
      %v3859 = vmul.f32 %v105, %v3847
      %v3860 = vmul.f32 %v106, %v3847
      %v3861 = vmul.f32 %v107, %v3847
      %v3862 = vmul.f32 %v108, %v3847
      %v3863 = vmul.f32 %v109, %v3847
      %v3864 = vmul.f32 %v110, %v3847
      %v3865 = vmul.f32 %v111, %v3847
      %v3866 = vmul.f32 %v112, %v3847
      %v3867 = vmul.f32 %v113, %v3847
      %v3868 = vmul.f32 %v114, %v3847
      %v3869 = vmul.f32 %v115, %v3847
      %v3870 = vmul.f32 %v116, %v3847
      %v3871 = vmul.f32 %v117, %v3847
      %v3872 = vmul.f32 %v118, %v3847
      %v3873 = vmul.f32 %v119, %v3847
      %v3874 = vmul.f32 %v120, %v3847
      %v3875 = vmul.f32 %v121, %v3847
      %v3876 = vmul.f32 %v122, %v3847
      %v3877 = vmul.f32 %v123, %v3847
      %v3878 = vmul.f32 %v124, %v3847
      %v3879 = vmul.f32 %v125, %v3847
      %v3880 = vmul.f32 %v126, %v3847
      %v3881 = vmul.f32 %v127, %v3847
      %v3882 = vmul.f32 %v128, %v3847
      %v3883 = vmul.f32 %v129, %v3847
      %v3884 = vmul.f32 %v130, %v3847
      %v3885 = vmul.f32 %v131, %v3847
      %v3886 = vmul.f32 %v132, %v3847
      %v3887 = vmul.f32 %v133, %v3847
      %v3888 = vmul.f32 %v134, %v3847
      %v3889 = vmul.f32 %v135, %v3847
      %v3890 = vmul.f32 %v136, %v3847
      %v3891 = vmul.f32 %v137, %v3847
      %v3892 = vmul.f32 %v138, %v3847
      %v3893 = vmul.f32 %v139, %v3847
      %v3894 = vmul.f32 %v140, %v3847
      %v3895 = vmul.f32 %v141, %v3847
      %v3896 = vmul.f32 %v142, %v3847
      %v3897 = vmul.f32 %v143, %v3847
      %v3898 = vmul.f32 %v144, %v3847
      %v3899 = vmul.f32 %v145, %v3847
      %v3900 = vmul.f32 %v146, %v3847
      %v3901 = vmul.f32 %v147, %v3847
      %v3902 = vmul.f32 %v148, %v3847
      %v3903 = vmul.f32 %v149, %v3847
      %v3904 = vmul.f32 %v150, %v3847
      %v3905 = vmul.f32 %v151, %v3847
      %v3906 = vmul.f32 %v152, %v3847
      %v3907 = vmul.f32 %v153, %v3847
      %v3908 = vmul.f32 %v154, %v3847
      %v3909 = vmul.f32 %v155, %v3847
      %v3910 = vmul.f32 %v156, %v3847
      %v3911 = vmul.f32 %v157, %v3847
      %v3912 = vmul.f32 %v158, %v3847
      %v3913 = vmul.f32 %v159, %v3847
      %v3914 = vmul.f32 %v160, %v3847
      %v3915 = vmul.f32 %v161, %v3847
      %v3916 = vmul.f32 %v162, %v3847
      %v3917 = vmul.f32 %v163, %v3847
      %v3918 = vmul.f32 %v164, %v3847
      %v3919 = vmul.f32 %v165, %v3847
      %v3920 = vmul.f32 %v166, %v3847
      %v3921 = vmul.f32 %v167, %v3847
      %v3922 = vmul.f32 %v168, %v3847
      %v3923 = vmul.f32 %v169, %v3847
      %v3924 = vmul.f32 %v170, %v3847
      %v3925 = vmul.f32 %v171, %v3847
      %v3926 = vmul.f32 %v172, %v3847
      %v3927 = vmul.f32 %v173, %v3847
      %v3928 = vmul.f32 %v174, %v3847
      %v3929 = vmul.f32 %v175, %v3847
      %v3930 = vmul.f32 %v176, %v3847
      %v3931 = vmul.f32 %v177, %v3847
      %v3932 = vmul.f32 %v178, %v3847
      %v3933 = vmul.f32 %v179, %v3847
      %v3934 = vmul.f32 %v180, %v3847
      %v3935 = vmul.f32 %v181, %v3847
      %v3936 = vmul.f32 %v182, %v3847
      %v3937 = vmul.f32 %v183, %v3847
      %v3938 = vmul.f32 %v184, %v3847
      %v3939 = vmul.f32 %v185, %v3847
      %v3940 = vmul.f32 %v186, %v3847
      %v3941 = vmul.f32 %v187, %v3847
      %v3942 = vmul.f32 %v188, %v3847
      %v3943 = vmul.f32 %v189, %v3847
      %v3944 = vmul.f32 %v190, %v3847
      %v3945 = vmul.f32 %v191, %v3847
      %v3946 = vmul.f32 %v192, %v3847
      %v3947 = vmul.f32 %v193, %v3847
      %v3948 = vmul.f32 %v194, %v3847
      %v3949 = vmul.f32 %v195, %v3847
      %v3950 = vmul.f32 %v196, %v3847
      %v3951 = vmul.f32 %v197, %v3847
      %v4056 = vrot.slane %v3848, 2
      %v4057 = vrot.slane %v3849, 2
      %v4058 = vsel %vm2853, %v4056, %v4057
      %v4059 = vrot.slane %v3850, 2
      %v4060 = vsel %vm2853, %v4057, %v4059
      %v4061 = vrot.slane %v3851, 2
      %v4062 = vsel %vm2853, %v4059, %v4061
      %v4063 = vrot.slane %v3852, 2
      %v4064 = vrot.slane %v3853, 2
      %v4065 = vsel %vm2853, %v4063, %v4064
      %v4066 = vrot.slane %v3854, 2
      %v4067 = vsel %vm2853, %v4064, %v4066
      %v4068 = vrot.slane %v3855, 2
      %v4069 = vsel %vm2853, %v4066, %v4068
      %v4070 = vrot.slane %v3856, 2
      %v4071 = vrot.slane %v3857, 2
      %v4072 = vsel %vm2853, %v4070, %v4071
      %v4073 = vrot.slane %v3858, 2
      %v4074 = vsel %vm2853, %v4071, %v4073
      %v4075 = vrot.slane %v3859, 2
      %v4076 = vsel %vm2853, %v4073, %v4075
      %v4077 = vrot.slane %v3860, 2
      %v4078 = vrot.slane %v3861, 2
      %v4079 = vsel %vm2853, %v4077, %v4078
      %v4080 = vrot.slane %v3862, 2
      %v4081 = vsel %vm2853, %v4078, %v4080
      %v4082 = vrot.slane %v3863, 2
      %v4083 = vsel %vm2853, %v4080, %v4082
      %v4084 = vrot.slane %v3864, 2
      %v4085 = vrot.slane %v3865, 2
      %v4086 = vsel %vm2853, %v4084, %v4085
      %v4087 = vrot.slane %v3866, 2
      %v4088 = vsel %vm2853, %v4085, %v4087
      %v4089 = vrot.slane %v3867, 2
      %v4090 = vsel %vm2853, %v4087, %v4089
      %v4091 = vrot.slane %v3868, 2
      %v4092 = vrot.slane %v3869, 2
      %v4093 = vsel %vm2853, %v4091, %v4092
      %v4094 = vrot.slane %v3870, 2
      %v4095 = vsel %vm2853, %v4092, %v4094
      %v4096 = vrot.slane %v3871, 2
      %v4097 = vsel %vm2853, %v4094, %v4096
      %v4098 = vrot.slane %v3872, 2
      %v4099 = vrot.slane %v3873, 2
      %v4100 = vsel %vm2853, %v4098, %v4099
      %v4101 = vrot.slane %v3874, 2
      %v4102 = vsel %vm2853, %v4099, %v4101
      %v4103 = vrot.slane %v3875, 2
      %v4104 = vsel %vm2853, %v4101, %v4103
      %v4105 = vrot.slane %v3876, 2
      %v4106 = vrot.slane %v3877, 2
      %v4107 = vsel %vm2853, %v4105, %v4106
      %v4108 = vrot.slane %v3878, 2
      %v4109 = vsel %vm2853, %v4106, %v4108
      %v4110 = vrot.slane %v3879, 2
      %v4111 = vsel %vm2853, %v4108, %v4110
      %v4112 = vrot.slane %v3880, 2
      %v4113 = vrot.slane %v3881, 2
      %v4114 = vsel %vm2853, %v4112, %v4113
      %v4115 = vrot.slane %v3882, 2
      %v4116 = vsel %vm2853, %v4113, %v4115
      %v4117 = vrot.slane %v3883, 2
      %v4118 = vsel %vm2853, %v4115, %v4117
      %v4119 = vrot.slane %v3884, 2
      %v4120 = vrot.slane %v3885, 2
      %v4121 = vsel %vm2853, %v4119, %v4120
      %v4122 = vrot.slane %v3886, 2
      %v4123 = vsel %vm2853, %v4120, %v4122
      %v4124 = vrot.slane %v3887, 2
      %v4125 = vsel %vm2853, %v4122, %v4124
      %v4126 = vrot.slane %v3888, 2
      %v4127 = vrot.slane %v3889, 2
      %v4128 = vsel %vm2853, %v4126, %v4127
      %v4129 = vrot.slane %v3890, 2
      %v4130 = vsel %vm2853, %v4127, %v4129
      %v4131 = vrot.slane %v3891, 2
      %v4132 = vsel %vm2853, %v4129, %v4131
      %v4133 = vrot.slane %v3892, 2
      %v4134 = vrot.slane %v3893, 2
      %v4135 = vsel %vm2853, %v4133, %v4134
      %v4136 = vrot.slane %v3894, 2
      %v4137 = vsel %vm2853, %v4134, %v4136
      %v4138 = vrot.slane %v3895, 2
      %v4139 = vsel %vm2853, %v4136, %v4138
      %v4140 = vrot.slane %v3896, 2
      %v4141 = vrot.slane %v3897, 2
      %v4142 = vsel %vm2853, %v4140, %v4141
      %v4143 = vrot.slane %v3898, 2
      %v4144 = vsel %vm2853, %v4141, %v4143
      %v4145 = vrot.slane %v3899, 2
      %v4146 = vsel %vm2853, %v4143, %v4145
      %v4147 = vrot.slane %v3900, 2
      %v4148 = vrot.slane %v3901, 2
      %v4149 = vsel %vm2853, %v4147, %v4148
      %v4150 = vrot.slane %v3902, 2
      %v4151 = vsel %vm2853, %v4148, %v4150
      %v4152 = vrot.slane %v3903, 2
      %v4153 = vsel %vm2853, %v4150, %v4152
      %v4154 = vrot.slane %v3904, 2
      %v4155 = vrot.slane %v3905, 2
      %v4156 = vsel %vm2853, %v4154, %v4155
      %v4157 = vrot.slane %v3906, 2
      %v4158 = vsel %vm2853, %v4155, %v4157
      %v4159 = vrot.slane %v3907, 2
      %v4160 = vsel %vm2853, %v4157, %v4159
      %v4161 = vrot.slane %v3908, 2
      %v4162 = vrot.slane %v3909, 2
      %v4163 = vsel %vm2853, %v4161, %v4162
      %v4164 = vrot.slane %v3910, 2
      %v4165 = vsel %vm2853, %v4162, %v4164
      %v4166 = vrot.slane %v3911, 2
      %v4167 = vsel %vm2853, %v4164, %v4166
      %v4168 = vrot.slane %v3912, 2
      %v4169 = vrot.slane %v3913, 2
      %v4170 = vsel %vm2853, %v4168, %v4169
      %v4171 = vrot.slane %v3914, 2
      %v4172 = vsel %vm2853, %v4169, %v4171
      %v4173 = vrot.slane %v3915, 2
      %v4174 = vsel %vm2853, %v4171, %v4173
      %v4175 = vrot.slane %v3916, 2
      %v4176 = vrot.slane %v3917, 2
      %v4177 = vsel %vm2853, %v4175, %v4176
      %v4178 = vrot.slane %v3918, 2
      %v4179 = vsel %vm2853, %v4176, %v4178
      %v4180 = vrot.slane %v3919, 2
      %v4181 = vsel %vm2853, %v4178, %v4180
      %v4182 = vrot.slane %v3920, 2
      %v4183 = vrot.slane %v3921, 2
      %v4184 = vsel %vm2853, %v4182, %v4183
      %v4185 = vrot.slane %v3922, 2
      %v4186 = vsel %vm2853, %v4183, %v4185
      %v4187 = vrot.slane %v3923, 2
      %v4188 = vsel %vm2853, %v4185, %v4187
      %v4189 = vrot.slane %v3924, 2
      %v4190 = vrot.slane %v3925, 2
      %v4191 = vsel %vm2853, %v4189, %v4190
      %v4192 = vrot.slane %v3926, 2
      %v4193 = vsel %vm2853, %v4190, %v4192
      %v4194 = vrot.slane %v3927, 2
      %v4195 = vsel %vm2853, %v4192, %v4194
      %v4196 = vrot.slane %v3928, 2
      %v4197 = vrot.slane %v3929, 2
      %v4198 = vsel %vm2853, %v4196, %v4197
      %v4199 = vrot.slane %v3930, 2
      %v4200 = vsel %vm2853, %v4197, %v4199
      %v4201 = vrot.slane %v3931, 2
      %v4202 = vsel %vm2853, %v4199, %v4201
      %v4203 = vrot.slane %v3932, 2
      %v4204 = vrot.slane %v3933, 2
      %v4205 = vsel %vm2853, %v4203, %v4204
      %v4206 = vrot.slane %v3934, 2
      %v4207 = vsel %vm2853, %v4204, %v4206
      %v4208 = vrot.slane %v3935, 2
      %v4209 = vsel %vm2853, %v4206, %v4208
      %v4210 = vrot.slane %v3936, 2
      %v4211 = vrot.slane %v3937, 2
      %v4212 = vsel %vm2853, %v4210, %v4211
      %v4213 = vrot.slane %v3938, 2
      %v4214 = vsel %vm2853, %v4211, %v4213
      %v4215 = vrot.slane %v3939, 2
      %v4216 = vsel %vm2853, %v4213, %v4215
      %v4217 = vrot.slane %v3940, 2
      %v4218 = vrot.slane %v3941, 2
      %v4219 = vsel %vm2853, %v4217, %v4218
      %v4220 = vrot.slane %v3942, 2
      %v4221 = vsel %vm2853, %v4218, %v4220
      %v4222 = vrot.slane %v3943, 2
      %v4223 = vsel %vm2853, %v4220, %v4222
      %v4224 = vrot.slane %v3944, 2
      %v4225 = vrot.slane %v3945, 2
      %v4226 = vsel %vm2853, %v4224, %v4225
      %v4227 = vrot.slane %v3946, 2
      %v4228 = vsel %vm2853, %v4225, %v4227
      %v4229 = vrot.slane %v3947, 2
      %v4230 = vsel %vm2853, %v4227, %v4229
      %v4231 = vrot.slane %v3948, 2
      %v4232 = vrot.slane %v3949, 2
      %v4233 = vsel %vm2853, %v4231, %v4232
      %v4234 = vrot.slane %v3950, 2
      %v4235 = vsel %vm2853, %v4232, %v4234
      %v4236 = vrot.slane %v3951, 2
      %v4237 = vsel %vm2853, %v4234, %v4236
      %v4342 = vadd.f32 %v3741, %v4058
      %v4343 = vadd.f32 %v3742, %v4060
      %v4344 = vadd.f32 %v3743, %v4062
      %v4345 = vadd.f32 %v3744, %v4061
      %v4346 = vadd.f32 %v3745, %v4065
      %v4347 = vadd.f32 %v3746, %v4067
      %v4348 = vadd.f32 %v3747, %v4069
      %v4349 = vadd.f32 %v3748, %v4068
      %v4350 = vadd.f32 %v3749, %v4072
      %v4351 = vadd.f32 %v3750, %v4074
      %v4352 = vadd.f32 %v3751, %v4076
      %v4353 = vadd.f32 %v3752, %v4075
      %v4354 = vadd.f32 %v3753, %v4079
      %v4355 = vadd.f32 %v3754, %v4081
      %v4356 = vadd.f32 %v3755, %v4083
      %v4357 = vadd.f32 %v3756, %v4082
      %v4358 = vadd.f32 %v3757, %v4086
      %v4359 = vadd.f32 %v3758, %v4088
      %v4360 = vadd.f32 %v3759, %v4090
      %v4361 = vadd.f32 %v3760, %v4089
      %v4362 = vadd.f32 %v3761, %v4093
      %v4363 = vadd.f32 %v3762, %v4095
      %v4364 = vadd.f32 %v3763, %v4097
      %v4365 = vadd.f32 %v3764, %v4096
      %v4366 = vadd.f32 %v3765, %v4100
      %v4367 = vadd.f32 %v3766, %v4102
      %v4368 = vadd.f32 %v3767, %v4104
      %v4369 = vadd.f32 %v3768, %v4103
      %v4370 = vadd.f32 %v3769, %v4107
      %v4371 = vadd.f32 %v3770, %v4109
      %v4372 = vadd.f32 %v3771, %v4111
      %v4373 = vadd.f32 %v3772, %v4110
      %v4374 = vadd.f32 %v3773, %v4114
      %v4375 = vadd.f32 %v3774, %v4116
      %v4376 = vadd.f32 %v3775, %v4118
      %v4377 = vadd.f32 %v3776, %v4117
      %v4378 = vadd.f32 %v3777, %v4121
      %v4379 = vadd.f32 %v3778, %v4123
      %v4380 = vadd.f32 %v3779, %v4125
      %v4381 = vadd.f32 %v3780, %v4124
      %v4382 = vadd.f32 %v3781, %v4128
      %v4383 = vadd.f32 %v3782, %v4130
      %v4384 = vadd.f32 %v3783, %v4132
      %v4385 = vadd.f32 %v3784, %v4131
      %v4386 = vadd.f32 %v3785, %v4135
      %v4387 = vadd.f32 %v3786, %v4137
      %v4388 = vadd.f32 %v3787, %v4139
      %v4389 = vadd.f32 %v3788, %v4138
      %v4390 = vadd.f32 %v3789, %v4142
      %v4391 = vadd.f32 %v3790, %v4144
      %v4392 = vadd.f32 %v3791, %v4146
      %v4393 = vadd.f32 %v3792, %v4145
      %v4394 = vadd.f32 %v3793, %v4149
      %v4395 = vadd.f32 %v3794, %v4151
      %v4396 = vadd.f32 %v3795, %v4153
      %v4397 = vadd.f32 %v3796, %v4152
      %v4398 = vadd.f32 %v3797, %v4156
      %v4399 = vadd.f32 %v3798, %v4158
      %v4400 = vadd.f32 %v3799, %v4160
      %v4401 = vadd.f32 %v3800, %v4159
      %v4402 = vadd.f32 %v3801, %v4163
      %v4403 = vadd.f32 %v3802, %v4165
      %v4404 = vadd.f32 %v3803, %v4167
      %v4405 = vadd.f32 %v3804, %v4166
      %v4406 = vadd.f32 %v3805, %v4170
      %v4407 = vadd.f32 %v3806, %v4172
      %v4408 = vadd.f32 %v3807, %v4174
      %v4409 = vadd.f32 %v3808, %v4173
      %v4410 = vadd.f32 %v3809, %v4177
      %v4411 = vadd.f32 %v3810, %v4179
      %v4412 = vadd.f32 %v3811, %v4181
      %v4413 = vadd.f32 %v3812, %v4180
      %v4414 = vadd.f32 %v3813, %v4184
      %v4415 = vadd.f32 %v3814, %v4186
      %v4416 = vadd.f32 %v3815, %v4188
      %v4417 = vadd.f32 %v3816, %v4187
      %v4418 = vadd.f32 %v3817, %v4191
      %v4419 = vadd.f32 %v3818, %v4193
      %v4420 = vadd.f32 %v3819, %v4195
      %v4421 = vadd.f32 %v3820, %v4194
      %v4422 = vadd.f32 %v3821, %v4198
      %v4423 = vadd.f32 %v3822, %v4200
      %v4424 = vadd.f32 %v3823, %v4202
      %v4425 = vadd.f32 %v3824, %v4201
      %v4426 = vadd.f32 %v3825, %v4205
      %v4427 = vadd.f32 %v3826, %v4207
      %v4428 = vadd.f32 %v3827, %v4209
      %v4429 = vadd.f32 %v3828, %v4208
      %v4430 = vadd.f32 %v3829, %v4212
      %v4431 = vadd.f32 %v3830, %v4214
      %v4432 = vadd.f32 %v3831, %v4216
      %v4433 = vadd.f32 %v3832, %v4215
      %v4434 = vadd.f32 %v3833, %v4219
      %v4435 = vadd.f32 %v3834, %v4221
      %v4436 = vadd.f32 %v3835, %v4223
      %v4437 = vadd.f32 %v3836, %v4222
      %v4438 = vadd.f32 %v3837, %v4226
      %v4439 = vadd.f32 %v3838, %v4228
      %v4440 = vadd.f32 %v3839, %v4230
      %v4441 = vadd.f32 %v3840, %v4229
      %v4442 = vadd.f32 %v3841, %v4233
      %v4443 = vadd.f32 %v3842, %v4235
      %v4444 = vadd.f32 %v3843, %v4237
      %v4445 = vadd.f32 %v3844, %v4236
      %v4446 = vmax.f32 %v4342, 0.0
      %v4447 = vmax.f32 %v4343, 0.0
      %v4448 = vmax.f32 %v4344, 0.0
      %v4449 = vmax.f32 %v4345, 0.0
      %v4450 = vmax.f32 %v4346, 0.0
      %v4451 = vmax.f32 %v4347, 0.0
      %v4452 = vmax.f32 %v4348, 0.0
      %v4453 = vmax.f32 %v4349, 0.0
      %v4454 = vmax.f32 %v4350, 0.0
      %v4455 = vmax.f32 %v4351, 0.0
      %v4456 = vmax.f32 %v4352, 0.0
      %v4457 = vmax.f32 %v4353, 0.0
      %v4458 = vmax.f32 %v4354, 0.0
      %v4459 = vmax.f32 %v4355, 0.0
      %v4460 = vmax.f32 %v4356, 0.0
      %v4461 = vmax.f32 %v4357, 0.0
      %v4462 = vmax.f32 %v4358, 0.0
      %v4463 = vmax.f32 %v4359, 0.0
      %v4464 = vmax.f32 %v4360, 0.0
      %v4465 = vmax.f32 %v4361, 0.0
      %v4466 = vmax.f32 %v4362, 0.0
      %v4467 = vmax.f32 %v4363, 0.0
      %v4468 = vmax.f32 %v4364, 0.0
      %v4469 = vmax.f32 %v4365, 0.0
      %v4470 = vmax.f32 %v4366, 0.0
      %v4471 = vmax.f32 %v4367, 0.0
      %v4472 = vmax.f32 %v4368, 0.0
      %v4473 = vmax.f32 %v4369, 0.0
      %v4474 = vmax.f32 %v4370, 0.0
      %v4475 = vmax.f32 %v4371, 0.0
      %v4476 = vmax.f32 %v4372, 0.0
      %v4477 = vmax.f32 %v4373, 0.0
      %v4478 = vmax.f32 %v4374, 0.0
      %v4479 = vmax.f32 %v4375, 0.0
      %v4480 = vmax.f32 %v4376, 0.0
      %v4481 = vmax.f32 %v4377, 0.0
      %v4482 = vmax.f32 %v4378, 0.0
      %v4483 = vmax.f32 %v4379, 0.0
      %v4484 = vmax.f32 %v4380, 0.0
      %v4485 = vmax.f32 %v4381, 0.0
      %v4486 = vmax.f32 %v4382, 0.0
      %v4487 = vmax.f32 %v4383, 0.0
      %v4488 = vmax.f32 %v4384, 0.0
      %v4489 = vmax.f32 %v4385, 0.0
      %v4490 = vmax.f32 %v4386, 0.0
      %v4491 = vmax.f32 %v4387, 0.0
      %v4492 = vmax.f32 %v4388, 0.0
      %v4493 = vmax.f32 %v4389, 0.0
      %v4494 = vmax.f32 %v4390, 0.0
      %v4495 = vmax.f32 %v4391, 0.0
      %v4496 = vmax.f32 %v4392, 0.0
      %v4497 = vmax.f32 %v4393, 0.0
      %v4498 = vmax.f32 %v4394, 0.0
      %v4499 = vmax.f32 %v4395, 0.0
      %v4500 = vmax.f32 %v4396, 0.0
      %v4501 = vmax.f32 %v4397, 0.0
      %v4502 = vmax.f32 %v4398, 0.0
      %v4503 = vmax.f32 %v4399, 0.0
      %v4504 = vmax.f32 %v4400, 0.0
      %v4505 = vmax.f32 %v4401, 0.0
      %v4506 = vmax.f32 %v4402, 0.0
      %v4507 = vmax.f32 %v4403, 0.0
      %v4508 = vmax.f32 %v4404, 0.0
      %v4509 = vmax.f32 %v4405, 0.0
      %v4510 = vmax.f32 %v4406, 0.0
      %v4511 = vmax.f32 %v4407, 0.0
      %v4512 = vmax.f32 %v4408, 0.0
      %v4513 = vmax.f32 %v4409, 0.0
      %v4514 = vmax.f32 %v4410, 0.0
      %v4515 = vmax.f32 %v4411, 0.0
      %v4516 = vmax.f32 %v4412, 0.0
      %v4517 = vmax.f32 %v4413, 0.0
      %v4518 = vmax.f32 %v4414, 0.0
      %v4519 = vmax.f32 %v4415, 0.0
      %v4520 = vmax.f32 %v4416, 0.0
      %v4521 = vmax.f32 %v4417, 0.0
      %v4522 = vmax.f32 %v4418, 0.0
      %v4523 = vmax.f32 %v4419, 0.0
      %v4524 = vmax.f32 %v4420, 0.0
      %v4525 = vmax.f32 %v4421, 0.0
      %v4526 = vmax.f32 %v4422, 0.0
      %v4527 = vmax.f32 %v4423, 0.0
      %v4528 = vmax.f32 %v4424, 0.0
      %v4529 = vmax.f32 %v4425, 0.0
      %v4530 = vmax.f32 %v4426, 0.0
      %v4531 = vmax.f32 %v4427, 0.0
      %v4532 = vmax.f32 %v4428, 0.0
      %v4533 = vmax.f32 %v4429, 0.0
      %v4534 = vmax.f32 %v4430, 0.0
      %v4535 = vmax.f32 %v4431, 0.0
      %v4536 = vmax.f32 %v4432, 0.0
      %v4537 = vmax.f32 %v4433, 0.0
      %v4538 = vmax.f32 %v4434, 0.0
      %v4539 = vmax.f32 %v4435, 0.0
      %v4540 = vmax.f32 %v4436, 0.0
      %v4541 = vmax.f32 %v4437, 0.0
      %v4542 = vmax.f32 %v4438, 0.0
      %v4543 = vmax.f32 %v4439, 0.0
      %v4544 = vmax.f32 %v4440, 0.0
      %v4545 = vmax.f32 %v4441, 0.0
      %v4546 = vmax.f32 %v4442, 0.0
      %v4547 = vmax.f32 %v4443, 0.0
      %v4548 = vmax.f32 %v4444, 0.0
      %v4549 = vmax.f32 %v4445, 0.0
      %v4550 = vmax.f32 %v4446, %v4450
      %v4551 = vmax.f32 %v4447, %v4451
      %v4552 = vmax.f32 %v4448, %v4452
      %v4553 = vmax.f32 %v4449, %v4453
      %v4554 = vmax.f32 %v4454, %v4458
      %v4555 = vmax.f32 %v4455, %v4459
      %v4556 = vmax.f32 %v4456, %v4460
      %v4557 = vmax.f32 %v4457, %v4461
      %v4558 = vmax.f32 %v4462, %v4466
      %v4559 = vmax.f32 %v4463, %v4467
      %v4560 = vmax.f32 %v4464, %v4468
      %v4561 = vmax.f32 %v4465, %v4469
      %v4562 = vmax.f32 %v4470, %v4474
      %v4563 = vmax.f32 %v4471, %v4475
      %v4564 = vmax.f32 %v4472, %v4476
      %v4565 = vmax.f32 %v4473, %v4477
      %v4566 = vmax.f32 %v4478, %v4482
      %v4567 = vmax.f32 %v4479, %v4483
      %v4568 = vmax.f32 %v4480, %v4484
      %v4569 = vmax.f32 %v4481, %v4485
      %v4570 = vmax.f32 %v4486, %v4490
      %v4571 = vmax.f32 %v4487, %v4491
      %v4572 = vmax.f32 %v4488, %v4492
      %v4573 = vmax.f32 %v4489, %v4493
      %v4574 = vmax.f32 %v4494, %v4498
      %v4575 = vmax.f32 %v4495, %v4499
      %v4576 = vmax.f32 %v4496, %v4500
      %v4577 = vmax.f32 %v4497, %v4501
      %v4578 = vmax.f32 %v4502, %v4506
      %v4579 = vmax.f32 %v4503, %v4507
      %v4580 = vmax.f32 %v4504, %v4508
      %v4581 = vmax.f32 %v4505, %v4509
      %v4582 = vmax.f32 %v4510, %v4514
      %v4583 = vmax.f32 %v4511, %v4515
      %v4584 = vmax.f32 %v4512, %v4516
      %v4585 = vmax.f32 %v4513, %v4517
      %v4586 = vmax.f32 %v4518, %v4522
      %v4587 = vmax.f32 %v4519, %v4523
      %v4588 = vmax.f32 %v4520, %v4524
      %v4589 = vmax.f32 %v4521, %v4525
      %v4590 = vmax.f32 %v4526, %v4530
      %v4591 = vmax.f32 %v4527, %v4531
      %v4592 = vmax.f32 %v4528, %v4532
      %v4593 = vmax.f32 %v4529, %v4533
      %v4594 = vmax.f32 %v4534, %v4538
      %v4595 = vmax.f32 %v4535, %v4539
      %v4596 = vmax.f32 %v4536, %v4540
      %v4597 = vmax.f32 %v4537, %v4541
      %v4598 = vmax.f32 %v4542, %v4546
      %v4599 = vmax.f32 %v4543, %v4547
      %v4600 = vmax.f32 %v4544, %v4548
      %v4601 = vmax.f32 %v4545, %v4549
      %v4654 = vrot.slane %v4550, 1
      %v4655 = vrot.slane %v4551, 1
      %v4656 = vsel %vm1049, %v4654, %v4655
      %v4657 = vrot.slane %v4552, 1
      %v4658 = vsel %vm1049, %v4655, %v4657
      %v4659 = vrot.slane %v4553, 1
      %v4660 = vsel %vm1049, %v4657, %v4659
      %v4661 = vrot.slane %v4554, 1
      %v4662 = vrot.slane %v4555, 1
      %v4663 = vsel %vm1049, %v4661, %v4662
      %v4664 = vrot.slane %v4556, 1
      %v4665 = vsel %vm1049, %v4662, %v4664
      %v4666 = vrot.slane %v4557, 1
      %v4667 = vsel %vm1049, %v4664, %v4666
      %v4668 = vrot.slane %v4558, 1
      %v4669 = vrot.slane %v4559, 1
      %v4670 = vsel %vm1049, %v4668, %v4669
      %v4671 = vrot.slane %v4560, 1
      %v4672 = vsel %vm1049, %v4669, %v4671
      %v4673 = vrot.slane %v4561, 1
      %v4674 = vsel %vm1049, %v4671, %v4673
      %v4675 = vrot.slane %v4562, 1
      %v4676 = vrot.slane %v4563, 1
      %v4677 = vsel %vm1049, %v4675, %v4676
      %v4678 = vrot.slane %v4564, 1
      %v4679 = vsel %vm1049, %v4676, %v4678
      %v4680 = vrot.slane %v4565, 1
      %v4681 = vsel %vm1049, %v4678, %v4680
      %v4682 = vrot.slane %v4566, 1
      %v4683 = vrot.slane %v4567, 1
      %v4684 = vsel %vm1049, %v4682, %v4683
      %v4685 = vrot.slane %v4568, 1
      %v4686 = vsel %vm1049, %v4683, %v4685
      %v4687 = vrot.slane %v4569, 1
      %v4688 = vsel %vm1049, %v4685, %v4687
      %v4689 = vrot.slane %v4570, 1
      %v4690 = vrot.slane %v4571, 1
      %v4691 = vsel %vm1049, %v4689, %v4690
      %v4692 = vrot.slane %v4572, 1
      %v4693 = vsel %vm1049, %v4690, %v4692
      %v4694 = vrot.slane %v4573, 1
      %v4695 = vsel %vm1049, %v4692, %v4694
      %v4696 = vrot.slane %v4574, 1
      %v4697 = vrot.slane %v4575, 1
      %v4698 = vsel %vm1049, %v4696, %v4697
      %v4699 = vrot.slane %v4576, 1
      %v4700 = vsel %vm1049, %v4697, %v4699
      %v4701 = vrot.slane %v4577, 1
      %v4702 = vsel %vm1049, %v4699, %v4701
      %v4703 = vrot.slane %v4578, 1
      %v4704 = vrot.slane %v4579, 1
      %v4705 = vsel %vm1049, %v4703, %v4704
      %v4706 = vrot.slane %v4580, 1
      %v4707 = vsel %vm1049, %v4704, %v4706
      %v4708 = vrot.slane %v4581, 1
      %v4709 = vsel %vm1049, %v4706, %v4708
      %v4710 = vrot.slane %v4582, 1
      %v4711 = vrot.slane %v4583, 1
      %v4712 = vsel %vm1049, %v4710, %v4711
      %v4713 = vrot.slane %v4584, 1
      %v4714 = vsel %vm1049, %v4711, %v4713
      %v4715 = vrot.slane %v4585, 1
      %v4716 = vsel %vm1049, %v4713, %v4715
      %v4717 = vrot.slane %v4586, 1
      %v4718 = vrot.slane %v4587, 1
      %v4719 = vsel %vm1049, %v4717, %v4718
      %v4720 = vrot.slane %v4588, 1
      %v4721 = vsel %vm1049, %v4718, %v4720
      %v4722 = vrot.slane %v4589, 1
      %v4723 = vsel %vm1049, %v4720, %v4722
      %v4724 = vrot.slane %v4590, 1
      %v4725 = vrot.slane %v4591, 1
      %v4726 = vsel %vm1049, %v4724, %v4725
      %v4727 = vrot.slane %v4592, 1
      %v4728 = vsel %vm1049, %v4725, %v4727
      %v4729 = vrot.slane %v4593, 1
      %v4730 = vsel %vm1049, %v4727, %v4729
      %v4731 = vrot.slane %v4594, 1
      %v4732 = vrot.slane %v4595, 1
      %v4733 = vsel %vm1049, %v4731, %v4732
      %v4734 = vrot.slane %v4596, 1
      %v4735 = vsel %vm1049, %v4732, %v4734
      %v4736 = vrot.slane %v4597, 1
      %v4737 = vsel %vm1049, %v4734, %v4736
      %v4738 = vrot.slane %v4598, 1
      %v4739 = vrot.slane %v4599, 1
      %v4740 = vsel %vm1049, %v4738, %v4739
      %v4741 = vrot.slane %v4600, 1
      %v4742 = vsel %vm1049, %v4739, %v4741
      %v4743 = vrot.slane %v4601, 1
      %v4744 = vsel %vm1049, %v4741, %v4743
      %v4797 = vmax.f32 %v4550, %v4656
      %v4798 = vmax.f32 %v4551, %v4658
      %v4799 = vmax.f32 %v4552, %v4660
      %v4800 = vmax.f32 %v4553, %v4659
      %v4801 = vmax.f32 %v4554, %v4663
      %v4802 = vmax.f32 %v4555, %v4665
      %v4803 = vmax.f32 %v4556, %v4667
      %v4804 = vmax.f32 %v4557, %v4666
      %v4805 = vmax.f32 %v4558, %v4670
      %v4806 = vmax.f32 %v4559, %v4672
      %v4807 = vmax.f32 %v4560, %v4674
      %v4808 = vmax.f32 %v4561, %v4673
      %v4809 = vmax.f32 %v4562, %v4677
      %v4810 = vmax.f32 %v4563, %v4679
      %v4811 = vmax.f32 %v4564, %v4681
      %v4812 = vmax.f32 %v4565, %v4680
      %v4813 = vmax.f32 %v4566, %v4684
      %v4814 = vmax.f32 %v4567, %v4686
      %v4815 = vmax.f32 %v4568, %v4688
      %v4816 = vmax.f32 %v4569, %v4687
      %v4817 = vmax.f32 %v4570, %v4691
      %v4818 = vmax.f32 %v4571, %v4693
      %v4819 = vmax.f32 %v4572, %v4695
      %v4820 = vmax.f32 %v4573, %v4694
      %v4821 = vmax.f32 %v4574, %v4698
      %v4822 = vmax.f32 %v4575, %v4700
      %v4823 = vmax.f32 %v4576, %v4702
      %v4824 = vmax.f32 %v4577, %v4701
      %v4825 = vmax.f32 %v4578, %v4705
      %v4826 = vmax.f32 %v4579, %v4707
      %v4827 = vmax.f32 %v4580, %v4709
      %v4828 = vmax.f32 %v4581, %v4708
      %v4829 = vmax.f32 %v4582, %v4712
      %v4830 = vmax.f32 %v4583, %v4714
      %v4831 = vmax.f32 %v4584, %v4716
      %v4832 = vmax.f32 %v4585, %v4715
      %v4833 = vmax.f32 %v4586, %v4719
      %v4834 = vmax.f32 %v4587, %v4721
      %v4835 = vmax.f32 %v4588, %v4723
      %v4836 = vmax.f32 %v4589, %v4722
      %v4837 = vmax.f32 %v4590, %v4726
      %v4838 = vmax.f32 %v4591, %v4728
      %v4839 = vmax.f32 %v4592, %v4730
      %v4840 = vmax.f32 %v4593, %v4729
      %v4841 = vmax.f32 %v4594, %v4733
      %v4842 = vmax.f32 %v4595, %v4735
      %v4843 = vmax.f32 %v4596, %v4737
      %v4844 = vmax.f32 %v4597, %v4736
      %v4845 = vmax.f32 %v4598, %v4740
      %v4846 = vmax.f32 %v4599, %v4742
      %v4847 = vmax.f32 %v4600, %v4744
      %v4848 = vmax.f32 %v4601, %v4743
      %v4862 = vrot.slane %v4797, 1
      %v4863 = vrot.slane %v4801, 1
      %v4864 = vrot.slane %v4805, 1
      %v4865 = vrot.slane %v4809, 1
      %v4866 = vrot.slane %v4813, 1
      %v4867 = vrot.slane %v4817, 1
      %v4868 = vrot.slane %v4821, 1
      %v4869 = vrot.slane %v4825, 1
      %v4870 = vrot.slane %v4829, 1
      %v4871 = vrot.slane %v4833, 1
      %v4872 = vrot.slane %v4837, 1
      %v4873 = vrot.slane %v4841, 1
      %v4874 = vrot.slane %v4845, 1
      %v4888 = vrot.slane %v4797, 2
      %v4889 = vrot.slane %v4801, 2
      %v4890 = vrot.slane %v4805, 2
      %v4891 = vrot.slane %v4809, 2
      %v4892 = vrot.slane %v4813, 2
      %v4893 = vrot.slane %v4817, 2
      %v4894 = vrot.slane %v4821, 2
      %v4895 = vrot.slane %v4825, 2
      %v4896 = vrot.slane %v4829, 2
      %v4897 = vrot.slane %v4833, 2
      %v4898 = vrot.slane %v4837, 2
      %v4899 = vrot.slane %v4841, 2
      %v4900 = vrot.slane %v4845, 2
      %v4914 = vrot.slane %v4797, 3
      %v4915 = vrot.slane %v4801, 3
      %v4916 = vrot.slane %v4805, 3
      %v4917 = vrot.slane %v4809, 3
      %v4918 = vrot.slane %v4813, 3
      %v4919 = vrot.slane %v4817, 3
      %v4920 = vrot.slane %v4821, 3
      %v4921 = vrot.slane %v4825, 3
      %v4922 = vrot.slane %v4829, 3
      %v4923 = vrot.slane %v4833, 3
      %v4924 = vrot.slane %v4837, 3
      %v4925 = vrot.slane %v4841, 3
      %v4926 = vrot.slane %v4845, 3
      %v4953 = vrot.slane %v4798, 4
      %v4954 = vrot.slane %v4802, 4
      %v4955 = vrot.slane %v4806, 4
      %v4956 = vrot.slane %v4810, 4
      %v4957 = vrot.slane %v4814, 4
      %v4958 = vrot.slane %v4818, 4
      %v4959 = vrot.slane %v4822, 4
      %v4960 = vrot.slane %v4826, 4
      %v4961 = vrot.slane %v4830, 4
      %v4962 = vrot.slane %v4834, 4
      %v4963 = vrot.slane %v4838, 4
      %v4964 = vrot.slane %v4842, 4
      %v4965 = vrot.slane %v4846, 4
      %v4979 = vrot.slane %v4798, 5
      %v4980 = vrot.slane %v4802, 5
      %v4981 = vrot.slane %v4806, 5
      %v4982 = vrot.slane %v4810, 5
      %v4983 = vrot.slane %v4814, 5
      %v4984 = vrot.slane %v4818, 5
      %v4985 = vrot.slane %v4822, 5
      %v4986 = vrot.slane %v4826, 5
      %v4987 = vrot.slane %v4830, 5
      %v4988 = vrot.slane %v4834, 5
      %v4989 = vrot.slane %v4838, 5
      %v4990 = vrot.slane %v4842, 5
      %v4991 = vrot.slane %v4846, 5
      %v5005 = vrot.slane %v4798, 6
      %v5006 = vrot.slane %v4802, 6
      %v5007 = vrot.slane %v4806, 6
      %v5008 = vrot.slane %v4810, 6
      %v5009 = vrot.slane %v4814, 6
      %v5010 = vrot.slane %v4818, 6
      %v5011 = vrot.slane %v4822, 6
      %v5012 = vrot.slane %v4826, 6
      %v5013 = vrot.slane %v4830, 6
      %v5014 = vrot.slane %v4834, 6
      %v5015 = vrot.slane %v4838, 6
      %v5016 = vrot.slane %v4842, 6
      %v5017 = vrot.slane %v4846, 6
      %v5031 = vrot.slane %v4798, 7
      %v5032 = vrot.slane %v4802, 7
      %v5033 = vrot.slane %v4806, 7
      %v5034 = vrot.slane %v4810, 7
      %v5035 = vrot.slane %v4814, 7
      %v5036 = vrot.slane %v4818, 7
      %v5037 = vrot.slane %v4822, 7
      %v5038 = vrot.slane %v4826, 7
      %v5039 = vrot.slane %v4830, 7
      %v5040 = vrot.slane %v4834, 7
      %v5041 = vrot.slane %v4838, 7
      %v5042 = vrot.slane %v4842, 7
      %v5043 = vrot.slane %v4846, 7
      %v5070 = vrot.slane %v4799, 1
      %v5071 = vrot.slane %v4803, 1
      %v5072 = vrot.slane %v4807, 1
      %v5073 = vrot.slane %v4811, 1
      %v5074 = vrot.slane %v4815, 1
      %v5075 = vrot.slane %v4819, 1
      %v5076 = vrot.slane %v4823, 1
      %v5077 = vrot.slane %v4827, 1
      %v5078 = vrot.slane %v4831, 1
      %v5079 = vrot.slane %v4835, 1
      %v5080 = vrot.slane %v4839, 1
      %v5081 = vrot.slane %v4843, 1
      %v5082 = vrot.slane %v4847, 1
      %v5096 = vrot.slane %v4799, 2
      %v5097 = vrot.slane %v4803, 2
      %v5098 = vrot.slane %v4807, 2
      %v5099 = vrot.slane %v4811, 2
      %v5100 = vrot.slane %v4815, 2
      %v5101 = vrot.slane %v4819, 2
      %v5102 = vrot.slane %v4823, 2
      %v5103 = vrot.slane %v4827, 2
      %v5104 = vrot.slane %v4831, 2
      %v5105 = vrot.slane %v4835, 2
      %v5106 = vrot.slane %v4839, 2
      %v5107 = vrot.slane %v4843, 2
      %v5108 = vrot.slane %v4847, 2
      %v5122 = vrot.slane %v4799, 3
      %v5123 = vrot.slane %v4803, 3
      %v5124 = vrot.slane %v4807, 3
      %v5125 = vrot.slane %v4811, 3
      %v5126 = vrot.slane %v4815, 3
      %v5127 = vrot.slane %v4819, 3
      %v5128 = vrot.slane %v4823, 3
      %v5129 = vrot.slane %v4827, 3
      %v5130 = vrot.slane %v4831, 3
      %v5131 = vrot.slane %v4835, 3
      %v5132 = vrot.slane %v4839, 3
      %v5133 = vrot.slane %v4843, 3
      %v5134 = vrot.slane %v4847, 3
      %v5161 = vrot.slane %v4800, 4
      %v5162 = vrot.slane %v4804, 4
      %v5163 = vrot.slane %v4808, 4
      %v5164 = vrot.slane %v4812, 4
      %v5165 = vrot.slane %v4816, 4
      %v5166 = vrot.slane %v4820, 4
      %v5167 = vrot.slane %v4824, 4
      %v5168 = vrot.slane %v4828, 4
      %v5169 = vrot.slane %v4832, 4
      %v5170 = vrot.slane %v4836, 4
      %v5171 = vrot.slane %v4840, 4
      %v5172 = vrot.slane %v4844, 4
      %v5173 = vrot.slane %v4848, 4
      %vm5187 = vcmask 1040384
      %v5188 = vsel %vm5187, %v4797, %v4862
      %v5189 = vsel %vm5187, %v4801, %v4863
      %v5190 = vsel %vm5187, %v4805, %v4864
      %v5191 = vsel %vm5187, %v4809, %v4865
      %v5192 = vsel %vm5187, %v4813, %v4866
      %v5193 = vsel %vm5187, %v4817, %v4867
      %v5194 = vsel %vm5187, %v4821, %v4868
      %v5195 = vsel %vm5187, %v4825, %v4869
      %v5196 = vsel %vm5187, %v4829, %v4870
      %v5197 = vsel %vm5187, %v4833, %v4871
      %v5198 = vsel %vm5187, %v4837, %v4872
      %v5199 = vsel %vm5187, %v4841, %v4873
      %v5200 = vsel %vm5187, %v4845, %v4874
      %vm5201 = vcmask 1041408
      %v5202 = vsel %vm5201, %v5188, %v4888
      %v5203 = vsel %vm5201, %v5189, %v4889
      %v5204 = vsel %vm5201, %v5190, %v4890
      %v5205 = vsel %vm5201, %v5191, %v4891
      %v5206 = vsel %vm5201, %v5192, %v4892
      %v5207 = vsel %vm5201, %v5193, %v4893
      %v5208 = vsel %vm5201, %v5194, %v4894
      %v5209 = vsel %vm5201, %v5195, %v4895
      %v5210 = vsel %vm5201, %v5196, %v4896
      %v5211 = vsel %vm5201, %v5197, %v4897
      %v5212 = vsel %vm5201, %v5198, %v4898
      %v5213 = vsel %vm5201, %v5199, %v4899
      %v5214 = vsel %vm5201, %v5200, %v4900
      %vm5215 = vcmask 1042432
      %v5216 = vsel %vm5215, %v5202, %v4914
      %v5217 = vsel %vm5215, %v5203, %v4915
      %v5218 = vsel %vm5215, %v5204, %v4916
      %v5219 = vsel %vm5215, %v5205, %v4917
      %v5220 = vsel %vm5215, %v5206, %v4918
      %v5221 = vsel %vm5215, %v5207, %v4919
      %v5222 = vsel %vm5215, %v5208, %v4920
      %v5223 = vsel %vm5215, %v5209, %v4921
      %v5224 = vsel %vm5215, %v5210, %v4922
      %v5225 = vsel %vm5215, %v5211, %v4923
      %v5226 = vsel %vm5215, %v5212, %v4924
      %v5227 = vsel %vm5215, %v5213, %v4925
      %v5228 = vsel %vm5215, %v5214, %v4926
      %vm5229 = vcmask 1043456
      %v5230 = vsel %vm5229, %v5216, %v4953
      %v5231 = vsel %vm5229, %v5217, %v4954
      %v5232 = vsel %vm5229, %v5218, %v4955
      %v5233 = vsel %vm5229, %v5219, %v4956
      %v5234 = vsel %vm5229, %v5220, %v4957
      %v5235 = vsel %vm5229, %v5221, %v4958
      %v5236 = vsel %vm5229, %v5222, %v4959
      %v5237 = vsel %vm5229, %v5223, %v4960
      %v5238 = vsel %vm5229, %v5224, %v4961
      %v5239 = vsel %vm5229, %v5225, %v4962
      %v5240 = vsel %vm5229, %v5226, %v4963
      %v5241 = vsel %vm5229, %v5227, %v4964
      %v5242 = vsel %vm5229, %v5228, %v4965
      %vm5243 = vcmask 1044480
      %v5244 = vsel %vm5243, %v5230, %v4979
      %v5245 = vsel %vm5243, %v5231, %v4980
      %v5246 = vsel %vm5243, %v5232, %v4981
      %v5247 = vsel %vm5243, %v5233, %v4982
      %v5248 = vsel %vm5243, %v5234, %v4983
      %v5249 = vsel %vm5243, %v5235, %v4984
      %v5250 = vsel %vm5243, %v5236, %v4985
      %v5251 = vsel %vm5243, %v5237, %v4986
      %v5252 = vsel %vm5243, %v5238, %v4987
      %v5253 = vsel %vm5243, %v5239, %v4988
      %v5254 = vsel %vm5243, %v5240, %v4989
      %v5255 = vsel %vm5243, %v5241, %v4990
      %v5256 = vsel %vm5243, %v5242, %v4991
      %v5257 = vsel %vm2853, %v5244, %v5005
      %v5258 = vsel %vm2853, %v5245, %v5006
      %v5259 = vsel %vm2853, %v5246, %v5007
      %v5260 = vsel %vm2853, %v5247, %v5008
      %v5261 = vsel %vm2853, %v5248, %v5009
      %v5262 = vsel %vm2853, %v5249, %v5010
      %v5263 = vsel %vm2853, %v5250, %v5011
      %v5264 = vsel %vm2853, %v5251, %v5012
      %v5265 = vsel %vm2853, %v5252, %v5013
      %v5266 = vsel %vm2853, %v5253, %v5014
      %v5267 = vsel %vm2853, %v5254, %v5015
      %v5268 = vsel %vm2853, %v5255, %v5016
      %v5269 = vsel %vm2853, %v5256, %v5017
      %v5270 = vsel %vm1049, %v5257, %v5031
      %v5271 = vsel %vm1049, %v5258, %v5032
      %v5272 = vsel %vm1049, %v5259, %v5033
      %v5273 = vsel %vm1049, %v5260, %v5034
      %v5274 = vsel %vm1049, %v5261, %v5035
      %v5275 = vsel %vm1049, %v5262, %v5036
      %v5276 = vsel %vm1049, %v5263, %v5037
      %v5277 = vsel %vm1049, %v5264, %v5038
      %v5278 = vsel %vm1049, %v5265, %v5039
      %v5279 = vsel %vm1049, %v5266, %v5040
      %v5280 = vsel %vm1049, %v5267, %v5041
      %v5281 = vsel %vm1049, %v5268, %v5042
      %v5282 = vsel %vm1049, %v5269, %v5043
      %v5283 = vsel %vm5187, %v4799, %v5070
      %v5284 = vsel %vm5187, %v4803, %v5071
      %v5285 = vsel %vm5187, %v4807, %v5072
      %v5286 = vsel %vm5187, %v4811, %v5073
      %v5287 = vsel %vm5187, %v4815, %v5074
      %v5288 = vsel %vm5187, %v4819, %v5075
      %v5289 = vsel %vm5187, %v4823, %v5076
      %v5290 = vsel %vm5187, %v4827, %v5077
      %v5291 = vsel %vm5187, %v4831, %v5078
      %v5292 = vsel %vm5187, %v4835, %v5079
      %v5293 = vsel %vm5187, %v4839, %v5080
      %v5294 = vsel %vm5187, %v4843, %v5081
      %v5295 = vsel %vm5187, %v4847, %v5082
      %v5296 = vsel %vm5201, %v5283, %v5096
      %v5297 = vsel %vm5201, %v5284, %v5097
      %v5298 = vsel %vm5201, %v5285, %v5098
      %v5299 = vsel %vm5201, %v5286, %v5099
      %v5300 = vsel %vm5201, %v5287, %v5100
      %v5301 = vsel %vm5201, %v5288, %v5101
      %v5302 = vsel %vm5201, %v5289, %v5102
      %v5303 = vsel %vm5201, %v5290, %v5103
      %v5304 = vsel %vm5201, %v5291, %v5104
      %v5305 = vsel %vm5201, %v5292, %v5105
      %v5306 = vsel %vm5201, %v5293, %v5106
      %v5307 = vsel %vm5201, %v5294, %v5107
      %v5308 = vsel %vm5201, %v5295, %v5108
      %v5309 = vsel %vm5215, %v5296, %v5122
      %v5310 = vsel %vm5215, %v5297, %v5123
      %v5311 = vsel %vm5215, %v5298, %v5124
      %v5312 = vsel %vm5215, %v5299, %v5125
      %v5313 = vsel %vm5215, %v5300, %v5126
      %v5314 = vsel %vm5215, %v5301, %v5127
      %v5315 = vsel %vm5215, %v5302, %v5128
      %v5316 = vsel %vm5215, %v5303, %v5129
      %v5317 = vsel %vm5215, %v5304, %v5130
      %v5318 = vsel %vm5215, %v5305, %v5131
      %v5319 = vsel %vm5215, %v5306, %v5132
      %v5320 = vsel %vm5215, %v5307, %v5133
      %v5321 = vsel %vm5215, %v5308, %v5134
      %v5322 = vsel %vm5229, %v5309, %v5161
      %v5323 = vsel %vm5229, %v5310, %v5162
      %v5324 = vsel %vm5229, %v5311, %v5163
      %v5325 = vsel %vm5229, %v5312, %v5164
      %v5326 = vsel %vm5229, %v5313, %v5165
      %v5327 = vsel %vm5229, %v5314, %v5166
      %v5328 = vsel %vm5229, %v5315, %v5167
      %v5329 = vsel %vm5229, %v5316, %v5168
      %v5330 = vsel %vm5229, %v5317, %v5169
      %v5331 = vsel %vm5229, %v5318, %v5170
      %v5332 = vsel %vm5229, %v5319, %v5171
      %v5333 = vsel %vm5229, %v5320, %v5172
      %v5334 = vsel %vm5229, %v5321, %v5173
      %s5335 = smul.u32 %s199, 13
      %s5336 = smul.u32 %s5335, 16
      %s5337 = scalar_lea.vmem [#allocation3], %s5336
      %5338 = vst [vmem:[%s5337] sm:$0xff] %v5270
      %5339 = vst [vmem:[%s5337 + $0x8] sm:$0x1f] %v5322
      %5340 = vst [vmem:[%s5337 + $0x10] sm:$0xff] %v5271
      %5341 = vst [vmem:[%s5337 + $0x18] sm:$0x1f] %v5323
      %5342 = vst [vmem:[%s5337 + $0x20] sm:$0xff] %v5272
      %5343 = vst [vmem:[%s5337 + $0x28] sm:$0x1f] %v5324
      %5344 = vst [vmem:[%s5337 + $0x30] sm:$0xff] %v5273
      %5345 = vst [vmem:[%s5337 + $0x38] sm:$0x1f] %v5325
      %5346 = vst [vmem:[%s5337 + $0x40] sm:$0xff] %v5274
      %5347 = vst [vmem:[%s5337 + $0x48] sm:$0x1f] %v5326
      %5348 = vst [vmem:[%s5337 + $0x50] sm:$0xff] %v5275
      %5349 = vst [vmem:[%s5337 + $0x58] sm:$0x1f] %v5327
      %5350 = vst [vmem:[%s5337 + $0x60] sm:$0xff] %v5276
      %5351 = vst [vmem:[%s5337 + $0x68] sm:$0x1f] %v5328
      %5352 = vst [vmem:[%s5337 + $0x70] sm:$0xff] %v5277
      %5353 = vst [vmem:[%s5337 + $0x78] sm:$0x1f] %v5329
      %5354 = vst [vmem:[%s5337 + $0x80] sm:$0xff] %v5278
      %5355 = vst [vmem:[%s5337 + $0x88] sm:$0x1f] %v5330
      %5356 = vst [vmem:[%s5337 + $0x90] sm:$0xff] %v5279
      %5357 = vst [vmem:[%s5337 + $0x98] sm:$0x1f] %v5331
      %5358 = vst [vmem:[%s5337 + $0xa0] sm:$0xff] %v5280
      %5359 = vst [vmem:[%s5337 + $0xa8] sm:$0x1f] %v5332
      %5360 = vst [vmem:[%s5337 + $0xb0] sm:$0xff] %v5281
      %5361 = vst [vmem:[%s5337 + $0xb8] sm:$0x1f] %v5333
      %5362 = vst [vmem:[%s5337 + $0xc0] sm:$0xff] %v5282
      %5363 = vst [vmem:[%s5337 + $0xc8] sm:$0x1f] %v5334
    $region66: #{convnet_forward.1} parent=1 // loop_footer
      %s203 = sadd.s32 1, %s199
    $region67: #{convnet_forward.1} parent=1 // loop_footer_branch
      %198 = sbr.rel target = $region63
    $region68: #{convnet_forward.1} parent=1 // loop_exit
      _
    %v5364 = vld [vmem:[#allocation3] sm:$0xff]
    %v5365 = vld [vmem:[#allocation3 + $0x8] sm:$0x1f]
    %v5366 = vld [vmem:[#allocation3 + $0x10] sm:$0xff]
    %v5367 = vld [vmem:[#allocation3 + $0x18] sm:$0x1f]
    %v5368 = vld [vmem:[#allocation3 + $0x20] sm:$0xff]
    %v5369 = vld [vmem:[#allocation3 + $0x28] sm:$0x1f]
    %v5370 = vld [vmem:[#allocation3 + $0x30] sm:$0xff]
    %v5371 = vld [vmem:[#allocation3 + $0x38] sm:$0x1f]
    %v5372 = vld [vmem:[#allocation3 + $0x40] sm:$0xff]
    %v5373 = vld [vmem:[#allocation3 + $0x48] sm:$0x1f]
    %v5374 = vld [vmem:[#allocation3 + $0x50] sm:$0xff]
    %v5375 = vld [vmem:[#allocation3 + $0x58] sm:$0x1f]
    %v5376 = vld [vmem:[#allocation3 + $0x60] sm:$0xff]
    %v5377 = vld [vmem:[#allocation3 + $0x68] sm:$0x1f]
    %v5378 = vld [vmem:[#allocation3 + $0x70] sm:$0xff]
    %v5379 = vld [vmem:[#allocation3 + $0x78] sm:$0x1f]
    %v5380 = vld [vmem:[#allocation3 + $0x80] sm:$0xff]
    %v5381 = vld [vmem:[#allocation3 + $0x88] sm:$0x1f]
    %v5382 = vld [vmem:[#allocation3 + $0x90] sm:$0xff]
    %v5383 = vld [vmem:[#allocation3 + $0x98] sm:$0x1f]
    %v5384 = vld [vmem:[#allocation3 + $0xa0] sm:$0xff]
    %v5385 = vld [vmem:[#allocation3 + $0xa8] sm:$0x1f]
    %v5386 = vld [vmem:[#allocation3 + $0xb0] sm:$0xff]
    %v5387 = vld [vmem:[#allocation3 + $0xb8] sm:$0x1f]
    %s5388 = scalar_lea.vmem [#allocation3], 208
    %v5389 = vld [vmem:[%s5388] sm:$0xff]
    %v5390 = vld [vmem:[%s5388 + $0x8] sm:$0x1f]
    %v5391 = vld [vmem:[%s5388 + $0x10] sm:$0xff]
    %v5392 = vld [vmem:[%s5388 + $0x18] sm:$0x1f]
    %v5393 = vld [vmem:[%s5388 + $0x20] sm:$0xff]
    %v5394 = vld [vmem:[%s5388 + $0x28] sm:$0x1f]
    %v5395 = vld [vmem:[%s5388 + $0x30] sm:$0xff]
    %v5396 = vld [vmem:[%s5388 + $0x38] sm:$0x1f]
    %v5397 = vld [vmem:[%s5388 + $0x40] sm:$0xff]
    %v5398 = vld [vmem:[%s5388 + $0x48] sm:$0x1f]
    %v5399 = vld [vmem:[%s5388 + $0x50] sm:$0xff]
    %v5400 = vld [vmem:[%s5388 + $0x58] sm:$0x1f]
    %v5401 = vld [vmem:[%s5388 + $0x60] sm:$0xff]
    %v5402 = vld [vmem:[%s5388 + $0x68] sm:$0x1f]
    %v5403 = vld [vmem:[%s5388 + $0x70] sm:$0xff]
    %v5404 = vld [vmem:[%s5388 + $0x78] sm:$0x1f]
    %v5405 = vld [vmem:[%s5388 + $0x80] sm:$0xff]
    %v5406 = vld [vmem:[%s5388 + $0x88] sm:$0x1f]
    %v5407 = vld [vmem:[%s5388 + $0x90] sm:$0xff]
    %v5408 = vld [vmem:[%s5388 + $0x98] sm:$0x1f]
    %v5409 = vld [vmem:[%s5388 + $0xa0] sm:$0xff]
    %v5410 = vld [vmem:[%s5388 + $0xa8] sm:$0x1f]
    %v5411 = vld [vmem:[%s5388 + $0xb0] sm:$0xff]
    %v5412 = vld [vmem:[%s5388 + $0xb8] sm:$0x1f]
    %s5413 = scalar_lea.vmem [#allocation3], 416
    %v5414 = vld [vmem:[%s5413] sm:$0xff]
    %v5415 = vld [vmem:[%s5413 + $0x8] sm:$0x1f]
    %v5416 = vld [vmem:[%s5413 + $0x10] sm:$0xff]
    %v5417 = vld [vmem:[%s5413 + $0x18] sm:$0x1f]
    %v5418 = vld [vmem:[%s5413 + $0x20] sm:$0xff]
    %v5419 = vld [vmem:[%s5413 + $0x28] sm:$0x1f]
    %v5420 = vld [vmem:[%s5413 + $0x30] sm:$0xff]
    %v5421 = vld [vmem:[%s5413 + $0x38] sm:$0x1f]
    %v5422 = vld [vmem:[%s5413 + $0x40] sm:$0xff]
    %v5423 = vld [vmem:[%s5413 + $0x48] sm:$0x1f]
    %v5424 = vld [vmem:[%s5413 + $0x50] sm:$0xff]
    %v5425 = vld [vmem:[%s5413 + $0x58] sm:$0x1f]
    %v5426 = vld [vmem:[%s5413 + $0x60] sm:$0xff]
    %v5427 = vld [vmem:[%s5413 + $0x68] sm:$0x1f]
    %v5428 = vld [vmem:[%s5413 + $0x70] sm:$0xff]
    %v5429 = vld [vmem:[%s5413 + $0x78] sm:$0x1f]
    %v5430 = vld [vmem:[%s5413 + $0x80] sm:$0xff]
    %v5431 = vld [vmem:[%s5413 + $0x88] sm:$0x1f]
    %v5432 = vld [vmem:[%s5413 + $0x90] sm:$0xff]
    %v5433 = vld [vmem:[%s5413 + $0x98] sm:$0x1f]
    %v5434 = vld [vmem:[%s5413 + $0xa0] sm:$0xff]
    %v5435 = vld [vmem:[%s5413 + $0xa8] sm:$0x1f]
    %v5436 = vld [vmem:[%s5413 + $0xb0] sm:$0xff]
    %v5437 = vld [vmem:[%s5413 + $0xb8] sm:$0x1f]
    %s5438 = scalar_lea.vmem [#allocation3], 624
    %v5439 = vld [vmem:[%s5438] sm:$0xff]
    %v5440 = vld [vmem:[%s5438 + $0x8] sm:$0x1f]
    %v5441 = vld [vmem:[%s5438 + $0x10] sm:$0xff]
    %v5442 = vld [vmem:[%s5438 + $0x18] sm:$0x1f]
    %v5443 = vld [vmem:[%s5438 + $0x20] sm:$0xff]
    %v5444 = vld [vmem:[%s5438 + $0x28] sm:$0x1f]
    %v5445 = vld [vmem:[%s5438 + $0x30] sm:$0xff]
    %v5446 = vld [vmem:[%s5438 + $0x38] sm:$0x1f]
    %v5447 = vld [vmem:[%s5438 + $0x40] sm:$0xff]
    %v5448 = vld [vmem:[%s5438 + $0x48] sm:$0x1f]
    %v5449 = vld [vmem:[%s5438 + $0x50] sm:$0xff]
    %v5450 = vld [vmem:[%s5438 + $0x58] sm:$0x1f]
    %v5451 = vld [vmem:[%s5438 + $0x60] sm:$0xff]
    %v5452 = vld [vmem:[%s5438 + $0x68] sm:$0x1f]
    %v5453 = vld [vmem:[%s5438 + $0x70] sm:$0xff]
    %v5454 = vld [vmem:[%s5438 + $0x78] sm:$0x1f]
    %v5455 = vld [vmem:[%s5438 + $0x80] sm:$0xff]
    %v5456 = vld [vmem:[%s5438 + $0x88] sm:$0x1f]
    %v5457 = vld [vmem:[%s5438 + $0x90] sm:$0xff]
    %v5458 = vld [vmem:[%s5438 + $0x98] sm:$0x1f]
    %v5459 = vld [vmem:[%s5438 + $0xa0] sm:$0xff]
    %v5460 = vld [vmem:[%s5438 + $0xa8] sm:$0x1f]
    %v5461 = vld [vmem:[%s5438 + $0xb0] sm:$0xff]
    %v5462 = vld [vmem:[%s5438 + $0xb8] sm:$0x1f]
    %s5463 = scalar_lea.vmem [#allocation3], 832
    %v5464 = vld [vmem:[%s5463] sm:$0xff]
    %v5465 = vld [vmem:[%s5463 + $0x8] sm:$0x1f]
    %v5466 = vld [vmem:[%s5463 + $0x10] sm:$0xff]
    %v5467 = vld [vmem:[%s5463 + $0x18] sm:$0x1f]
    %v5468 = vld [vmem:[%s5463 + $0x20] sm:$0xff]
    %v5469 = vld [vmem:[%s5463 + $0x28] sm:$0x1f]
    %v5470 = vld [vmem:[%s5463 + $0x30] sm:$0xff]
    %v5471 = vld [vmem:[%s5463 + $0x38] sm:$0x1f]
    %v5472 = vld [vmem:[%s5463 + $0x40] sm:$0xff]
    %v5473 = vld [vmem:[%s5463 + $0x48] sm:$0x1f]
    %v5474 = vld [vmem:[%s5463 + $0x50] sm:$0xff]
    %v5475 = vld [vmem:[%s5463 + $0x58] sm:$0x1f]
    %v5476 = vld [vmem:[%s5463 + $0x60] sm:$0xff]
    %v5477 = vld [vmem:[%s5463 + $0x68] sm:$0x1f]
    %v5478 = vld [vmem:[%s5463 + $0x70] sm:$0xff]
    %v5479 = vld [vmem:[%s5463 + $0x78] sm:$0x1f]
    %v5480 = vld [vmem:[%s5463 + $0x80] sm:$0xff]
    %v5481 = vld [vmem:[%s5463 + $0x88] sm:$0x1f]
    %v5482 = vld [vmem:[%s5463 + $0x90] sm:$0xff]
    %v5483 = vld [vmem:[%s5463 + $0x98] sm:$0x1f]
    %v5484 = vld [vmem:[%s5463 + $0xa0] sm:$0xff]
    %v5485 = vld [vmem:[%s5463 + $0xa8] sm:$0x1f]
    %v5486 = vld [vmem:[%s5463 + $0xb0] sm:$0xff]
    %v5487 = vld [vmem:[%s5463 + $0xb8] sm:$0x1f]
    %s5488 = scalar_lea.vmem [#allocation3], 1040
    %v5489 = vld [vmem:[%s5488] sm:$0xff]
    %v5490 = vld [vmem:[%s5488 + $0x8] sm:$0x1f]
    %v5491 = vld [vmem:[%s5488 + $0x10] sm:$0xff]
    %v5492 = vld [vmem:[%s5488 + $0x18] sm:$0x1f]
    %v5493 = vld [vmem:[%s5488 + $0x20] sm:$0xff]
    %v5494 = vld [vmem:[%s5488 + $0x28] sm:$0x1f]
    %v5495 = vld [vmem:[%s5488 + $0x30] sm:$0xff]
    %v5496 = vld [vmem:[%s5488 + $0x38] sm:$0x1f]
    %v5497 = vld [vmem:[%s5488 + $0x40] sm:$0xff]
    %v5498 = vld [vmem:[%s5488 + $0x48] sm:$0x1f]
    %v5499 = vld [vmem:[%s5488 + $0x50] sm:$0xff]
    %v5500 = vld [vmem:[%s5488 + $0x58] sm:$0x1f]
    %v5501 = vld [vmem:[%s5488 + $0x60] sm:$0xff]
    %v5502 = vld [vmem:[%s5488 + $0x68] sm:$0x1f]
    %v5503 = vld [vmem:[%s5488 + $0x70] sm:$0xff]
    %v5504 = vld [vmem:[%s5488 + $0x78] sm:$0x1f]
    %v5505 = vld [vmem:[%s5488 + $0x80] sm:$0xff]
    %v5506 = vld [vmem:[%s5488 + $0x88] sm:$0x1f]
    %v5507 = vld [vmem:[%s5488 + $0x90] sm:$0xff]
    %v5508 = vld [vmem:[%s5488 + $0x98] sm:$0x1f]
    %v5509 = vld [vmem:[%s5488 + $0xa0] sm:$0xff]
    %v5510 = vld [vmem:[%s5488 + $0xa8] sm:$0x1f]
    %v5511 = vld [vmem:[%s5488 + $0xb0] sm:$0xff]
    %v5512 = vld [vmem:[%s5488 + $0xb8] sm:$0x1f]
    loop: start=0, step=1, limit=16
    $region69: #{convnet_forward.1} parent=1 // loop_pre_header
      _
    $region70: #{convnet_forward.1} parent=1 // loop_header
      %s5514 = sphi 0, %s5518
      %p5515 = scmp.ge.s32.totalorder %s5514, 16
    $region71: #{convnet_forward.1} parent=1 // loop_header_branch
      %5517 = sbr.rel (%p5515) target = $region75
    $region72: #{convnet_forward.1} parent=1 // loop_body
      %s5519 = sld [smem:[#allocation9 + %s5514]]
      %v5520 = vstv %s5519
      %s5521 = sld [smem:[#allocation8 + %s5514]]
      %v5522 = vstv %s5521
      %v5523 = vmul.f32 %v5364, %v5522
      %v5524 = vmul.f32 %v5365, %v5522
      %v5525 = vmul.f32 %v5366, %v5522
      %v5526 = vmul.f32 %v5367, %v5522
      %v5527 = vmul.f32 %v5368, %v5522
      %v5528 = vmul.f32 %v5369, %v5522
      %v5529 = vmul.f32 %v5370, %v5522
      %v5530 = vmul.f32 %v5371, %v5522
      %v5531 = vmul.f32 %v5372, %v5522
      %v5532 = vmul.f32 %v5373, %v5522
      %v5533 = vmul.f32 %v5374, %v5522
      %v5534 = vmul.f32 %v5375, %v5522
      %v5535 = vmul.f32 %v5376, %v5522
      %v5536 = vmul.f32 %v5377, %v5522
      %v5537 = vmul.f32 %v5378, %v5522
      %v5538 = vmul.f32 %v5379, %v5522
      %v5539 = vmul.f32 %v5380, %v5522
      %v5540 = vmul.f32 %v5381, %v5522
      %v5541 = vmul.f32 %v5382, %v5522
      %v5542 = vmul.f32 %v5383, %v5522
      %v5543 = vadd.f32 %v5520, %v5523
      %v5544 = vadd.f32 %v5520, %v5524
      %v5545 = vadd.f32 %v5520, %v5525
      %v5546 = vadd.f32 %v5520, %v5526
      %v5547 = vadd.f32 %v5520, %v5527
      %v5548 = vadd.f32 %v5520, %v5528
      %v5549 = vadd.f32 %v5520, %v5529
      %v5550 = vadd.f32 %v5520, %v5530
      %v5551 = vadd.f32 %v5520, %v5531
      %v5552 = vadd.f32 %v5520, %v5532
      %v5553 = vadd.f32 %v5520, %v5533
      %v5554 = vadd.f32 %v5520, %v5534
      %v5555 = vadd.f32 %v5520, %v5535
      %v5556 = vadd.f32 %v5520, %v5536
      %v5557 = vadd.f32 %v5520, %v5537
      %v5558 = vadd.f32 %v5520, %v5538
      %v5559 = vadd.f32 %v5520, %v5539
      %v5560 = vadd.f32 %v5520, %v5540
      %v5561 = vadd.f32 %v5520, %v5541
      %v5562 = vadd.f32 %v5520, %v5542
      %s5563 = sadd.s32 %s5514, 288
      %s5564 = sld [smem:[#allocation8 + %s5563]]
      %v5565 = vstv %s5564
      %v5566 = vmul.f32 %v5366, %v5565
      %v5567 = vmul.f32 %v5367, %v5565
      %v5568 = vmul.f32 %v5368, %v5565
      %v5569 = vmul.f32 %v5369, %v5565
      %v5570 = vmul.f32 %v5370, %v5565
      %v5571 = vmul.f32 %v5371, %v5565
      %v5572 = vmul.f32 %v5372, %v5565
      %v5573 = vmul.f32 %v5373, %v5565
      %v5574 = vmul.f32 %v5374, %v5565
      %v5575 = vmul.f32 %v5375, %v5565
      %v5576 = vmul.f32 %v5376, %v5565
      %v5577 = vmul.f32 %v5377, %v5565
      %v5578 = vmul.f32 %v5378, %v5565
      %v5579 = vmul.f32 %v5379, %v5565
      %v5580 = vmul.f32 %v5380, %v5565
      %v5581 = vmul.f32 %v5381, %v5565
      %v5582 = vmul.f32 %v5382, %v5565
      %v5583 = vmul.f32 %v5383, %v5565
      %v5584 = vmul.f32 %v5384, %v5565
      %v5585 = vmul.f32 %v5385, %v5565
      %v5586 = vadd.f32 %v5543, %v5566
      %v5587 = vadd.f32 %v5544, %v5567
      %v5588 = vadd.f32 %v5545, %v5568
      %v5589 = vadd.f32 %v5546, %v5569
      %v5590 = vadd.f32 %v5547, %v5570
      %v5591 = vadd.f32 %v5548, %v5571
      %v5592 = vadd.f32 %v5549, %v5572
      %v5593 = vadd.f32 %v5550, %v5573
      %v5594 = vadd.f32 %v5551, %v5574
      %v5595 = vadd.f32 %v5552, %v5575
      %v5596 = vadd.f32 %v5553, %v5576
      %v5597 = vadd.f32 %v5554, %v5577
      %v5598 = vadd.f32 %v5555, %v5578
      %v5599 = vadd.f32 %v5556, %v5579
      %v5600 = vadd.f32 %v5557, %v5580
      %v5601 = vadd.f32 %v5558, %v5581
      %v5602 = vadd.f32 %v5559, %v5582
      %v5603 = vadd.f32 %v5560, %v5583
      %v5604 = vadd.f32 %v5561, %v5584
      %v5605 = vadd.f32 %v5562, %v5585
      %s5606 = sadd.s32 %s5514, 576
      %s5607 = sld [smem:[#allocation8 + %s5606]]
      %v5608 = vstv %s5607
      %v5609 = vmul.f32 %v5368, %v5608
      %v5610 = vmul.f32 %v5369, %v5608
      %v5611 = vmul.f32 %v5370, %v5608
      %v5612 = vmul.f32 %v5371, %v5608
      %v5613 = vmul.f32 %v5372, %v5608
      %v5614 = vmul.f32 %v5373, %v5608
      %v5615 = vmul.f32 %v5374, %v5608
      %v5616 = vmul.f32 %v5375, %v5608
      %v5617 = vmul.f32 %v5376, %v5608
      %v5618 = vmul.f32 %v5377, %v5608
      %v5619 = vmul.f32 %v5378, %v5608
      %v5620 = vmul.f32 %v5379, %v5608
      %v5621 = vmul.f32 %v5380, %v5608
      %v5622 = vmul.f32 %v5381, %v5608
      %v5623 = vmul.f32 %v5382, %v5608
      %v5624 = vmul.f32 %v5383, %v5608
      %v5625 = vmul.f32 %v5384, %v5608
      %v5626 = vmul.f32 %v5385, %v5608
      %v5627 = vmul.f32 %v5386, %v5608
      %v5628 = vmul.f32 %v5387, %v5608
      %v5629 = vadd.f32 %v5586, %v5609
      %v5630 = vadd.f32 %v5587, %v5610
      %v5631 = vadd.f32 %v5588, %v5611
      %v5632 = vadd.f32 %v5589, %v5612
      %v5633 = vadd.f32 %v5590, %v5613
      %v5634 = vadd.f32 %v5591, %v5614
      %v5635 = vadd.f32 %v5592, %v5615
      %v5636 = vadd.f32 %v5593, %v5616
      %v5637 = vadd.f32 %v5594, %v5617
      %v5638 = vadd.f32 %v5595, %v5618
      %v5639 = vadd.f32 %v5596, %v5619
      %v5640 = vadd.f32 %v5597, %v5620
      %v5641 = vadd.f32 %v5598, %v5621
      %v5642 = vadd.f32 %v5599, %v5622
      %v5643 = vadd.f32 %v5600, %v5623
      %v5644 = vadd.f32 %v5601, %v5624
      %v5645 = vadd.f32 %v5602, %v5625
      %v5646 = vadd.f32 %v5603, %v5626
      %v5647 = vadd.f32 %v5604, %v5627
      %v5648 = vadd.f32 %v5605, %v5628
      %s5649 = sadd.s32 %s5514, 96
      %s5650 = sld [smem:[#allocation8 + %s5649]]
      %v5651 = vstv %s5650
      %v5652 = vmul.f32 %v5364, %v5651
      %v5653 = vmul.f32 %v5365, %v5651
      %v5654 = vmul.f32 %v5366, %v5651
      %v5655 = vmul.f32 %v5367, %v5651
      %v5656 = vmul.f32 %v5368, %v5651
      %v5657 = vmul.f32 %v5369, %v5651
      %v5658 = vmul.f32 %v5370, %v5651
      %v5659 = vmul.f32 %v5371, %v5651
      %v5660 = vmul.f32 %v5372, %v5651
      %v5661 = vmul.f32 %v5373, %v5651
      %v5662 = vmul.f32 %v5374, %v5651
      %v5663 = vmul.f32 %v5375, %v5651
      %v5664 = vmul.f32 %v5376, %v5651
      %v5665 = vmul.f32 %v5377, %v5651
      %v5666 = vmul.f32 %v5378, %v5651
      %v5667 = vmul.f32 %v5379, %v5651
      %v5668 = vmul.f32 %v5380, %v5651
      %v5669 = vmul.f32 %v5381, %v5651
      %v5670 = vmul.f32 %v5382, %v5651
      %v5671 = vmul.f32 %v5383, %v5651
      %vm5692 = vcmask 1046528
      %v5693 = vrot.slane %v5652, 1
      %v5694 = vrot.slane %v5653, 1
      %v5695 = vsel %vm5692, %v5693, %v5694
      %v5696 = vrot.slane %v5654, 1
      %v5697 = vrot.slane %v5655, 1
      %v5698 = vsel %vm5692, %v5696, %v5697
      %v5699 = vrot.slane %v5656, 1
      %v5700 = vrot.slane %v5657, 1
      %v5701 = vsel %vm5692, %v5699, %v5700
      %v5702 = vrot.slane %v5658, 1
      %v5703 = vrot.slane %v5659, 1
      %v5704 = vsel %vm5692, %v5702, %v5703
      %v5705 = vrot.slane %v5660, 1
      %v5706 = vrot.slane %v5661, 1
      %v5707 = vsel %vm5692, %v5705, %v5706
      %v5708 = vrot.slane %v5662, 1
      %v5709 = vrot.slane %v5663, 1
      %v5710 = vsel %vm5692, %v5708, %v5709
      %v5711 = vrot.slane %v5664, 1
      %v5712 = vrot.slane %v5665, 1
      %v5713 = vsel %vm5692, %v5711, %v5712
      %v5714 = vrot.slane %v5666, 1
      %v5715 = vrot.slane %v5667, 1
      %v5716 = vsel %vm5692, %v5714, %v5715
      %v5717 = vrot.slane %v5668, 1
      %v5718 = vrot.slane %v5669, 1
      %v5719 = vsel %vm5692, %v5717, %v5718
      %v5720 = vrot.slane %v5670, 1
      %v5721 = vrot.slane %v5671, 1
      %v5722 = vsel %vm5692, %v5720, %v5721
      %v5743 = vadd.f32 %v5629, %v5695
      %v5744 = vadd.f32 %v5630, %v5694
      %v5745 = vadd.f32 %v5631, %v5698
      %v5746 = vadd.f32 %v5632, %v5697
      %v5747 = vadd.f32 %v5633, %v5701
      %v5748 = vadd.f32 %v5634, %v5700
      %v5749 = vadd.f32 %v5635, %v5704
      %v5750 = vadd.f32 %v5636, %v5703
      %v5751 = vadd.f32 %v5637, %v5707
      %v5752 = vadd.f32 %v5638, %v5706
      %v5753 = vadd.f32 %v5639, %v5710
      %v5754 = vadd.f32 %v5640, %v5709
      %v5755 = vadd.f32 %v5641, %v5713
      %v5756 = vadd.f32 %v5642, %v5712
      %v5757 = vadd.f32 %v5643, %v5716
      %v5758 = vadd.f32 %v5644, %v5715
      %v5759 = vadd.f32 %v5645, %v5719
      %v5760 = vadd.f32 %v5646, %v5718
      %v5761 = vadd.f32 %v5647, %v5722
      %v5762 = vadd.f32 %v5648, %v5721
      %s5763 = sadd.s32 %s5514, 384
      %s5764 = sld [smem:[#allocation8 + %s5763]]
      %v5765 = vstv %s5764
      %v5766 = vmul.f32 %v5366, %v5765
      %v5767 = vmul.f32 %v5367, %v5765
      %v5768 = vmul.f32 %v5368, %v5765
      %v5769 = vmul.f32 %v5369, %v5765
      %v5770 = vmul.f32 %v5370, %v5765
      %v5771 = vmul.f32 %v5371, %v5765
      %v5772 = vmul.f32 %v5372, %v5765
      %v5773 = vmul.f32 %v5373, %v5765
      %v5774 = vmul.f32 %v5374, %v5765
      %v5775 = vmul.f32 %v5375, %v5765
      %v5776 = vmul.f32 %v5376, %v5765
      %v5777 = vmul.f32 %v5377, %v5765
      %v5778 = vmul.f32 %v5378, %v5765
      %v5779 = vmul.f32 %v5379, %v5765
      %v5780 = vmul.f32 %v5380, %v5765
      %v5781 = vmul.f32 %v5381, %v5765
      %v5782 = vmul.f32 %v5382, %v5765
      %v5783 = vmul.f32 %v5383, %v5765
      %v5784 = vmul.f32 %v5384, %v5765
      %v5785 = vmul.f32 %v5385, %v5765
      %v5806 = vrot.slane %v5766, 1
      %v5807 = vrot.slane %v5767, 1
      %v5808 = vsel %vm5692, %v5806, %v5807
      %v5809 = vrot.slane %v5768, 1
      %v5810 = vrot.slane %v5769, 1
      %v5811 = vsel %vm5692, %v5809, %v5810
      %v5812 = vrot.slane %v5770, 1
      %v5813 = vrot.slane %v5771, 1
      %v5814 = vsel %vm5692, %v5812, %v5813
      %v5815 = vrot.slane %v5772, 1
      %v5816 = vrot.slane %v5773, 1
      %v5817 = vsel %vm5692, %v5815, %v5816
      %v5818 = vrot.slane %v5774, 1
      %v5819 = vrot.slane %v5775, 1
      %v5820 = vsel %vm5692, %v5818, %v5819
      %v5821 = vrot.slane %v5776, 1
      %v5822 = vrot.slane %v5777, 1
      %v5823 = vsel %vm5692, %v5821, %v5822
      %v5824 = vrot.slane %v5778, 1
      %v5825 = vrot.slane %v5779, 1
      %v5826 = vsel %vm5692, %v5824, %v5825
      %v5827 = vrot.slane %v5780, 1
      %v5828 = vrot.slane %v5781, 1
      %v5829 = vsel %vm5692, %v5827, %v5828
      %v5830 = vrot.slane %v5782, 1
      %v5831 = vrot.slane %v5783, 1
      %v5832 = vsel %vm5692, %v5830, %v5831
      %v5833 = vrot.slane %v5784, 1
      %v5834 = vrot.slane %v5785, 1
      %v5835 = vsel %vm5692, %v5833, %v5834
      %v5856 = vadd.f32 %v5743, %v5808
      %v5857 = vadd.f32 %v5744, %v5807
      %v5858 = vadd.f32 %v5745, %v5811
      %v5859 = vadd.f32 %v5746, %v5810
      %v5860 = vadd.f32 %v5747, %v5814
      %v5861 = vadd.f32 %v5748, %v5813
      %v5862 = vadd.f32 %v5749, %v5817
      %v5863 = vadd.f32 %v5750, %v5816
      %v5864 = vadd.f32 %v5751, %v5820
      %v5865 = vadd.f32 %v5752, %v5819
      %v5866 = vadd.f32 %v5753, %v5823
      %v5867 = vadd.f32 %v5754, %v5822
      %v5868 = vadd.f32 %v5755, %v5826
      %v5869 = vadd.f32 %v5756, %v5825
      %v5870 = vadd.f32 %v5757, %v5829
      %v5871 = vadd.f32 %v5758, %v5828
      %v5872 = vadd.f32 %v5759, %v5832
      %v5873 = vadd.f32 %v5760, %v5831
      %v5874 = vadd.f32 %v5761, %v5835
      %v5875 = vadd.f32 %v5762, %v5834
      %s5876 = sadd.s32 %s5514, 672
      %s5877 = sld [smem:[#allocation8 + %s5876]]
      %v5878 = vstv %s5877
      %v5879 = vmul.f32 %v5368, %v5878
      %v5880 = vmul.f32 %v5369, %v5878
      %v5881 = vmul.f32 %v5370, %v5878
      %v5882 = vmul.f32 %v5371, %v5878
      %v5883 = vmul.f32 %v5372, %v5878
      %v5884 = vmul.f32 %v5373, %v5878
      %v5885 = vmul.f32 %v5374, %v5878
      %v5886 = vmul.f32 %v5375, %v5878
      %v5887 = vmul.f32 %v5376, %v5878
      %v5888 = vmul.f32 %v5377, %v5878
      %v5889 = vmul.f32 %v5378, %v5878
      %v5890 = vmul.f32 %v5379, %v5878
      %v5891 = vmul.f32 %v5380, %v5878
      %v5892 = vmul.f32 %v5381, %v5878
      %v5893 = vmul.f32 %v5382, %v5878
      %v5894 = vmul.f32 %v5383, %v5878
      %v5895 = vmul.f32 %v5384, %v5878
      %v5896 = vmul.f32 %v5385, %v5878
      %v5897 = vmul.f32 %v5386, %v5878
      %v5898 = vmul.f32 %v5387, %v5878
      %v5919 = vrot.slane %v5879, 1
      %v5920 = vrot.slane %v5880, 1
      %v5921 = vsel %vm5692, %v5919, %v5920
      %v5922 = vrot.slane %v5881, 1
      %v5923 = vrot.slane %v5882, 1
      %v5924 = vsel %vm5692, %v5922, %v5923
      %v5925 = vrot.slane %v5883, 1
      %v5926 = vrot.slane %v5884, 1
      %v5927 = vsel %vm5692, %v5925, %v5926
      %v5928 = vrot.slane %v5885, 1
      %v5929 = vrot.slane %v5886, 1
      %v5930 = vsel %vm5692, %v5928, %v5929
      %v5931 = vrot.slane %v5887, 1
      %v5932 = vrot.slane %v5888, 1
      %v5933 = vsel %vm5692, %v5931, %v5932
      %v5934 = vrot.slane %v5889, 1
      %v5935 = vrot.slane %v5890, 1
      %v5936 = vsel %vm5692, %v5934, %v5935
      %v5937 = vrot.slane %v5891, 1
      %v5938 = vrot.slane %v5892, 1
      %v5939 = vsel %vm5692, %v5937, %v5938
      %v5940 = vrot.slane %v5893, 1
      %v5941 = vrot.slane %v5894, 1
      %v5942 = vsel %vm5692, %v5940, %v5941
      %v5943 = vrot.slane %v5895, 1
      %v5944 = vrot.slane %v5896, 1
      %v5945 = vsel %vm5692, %v5943, %v5944
      %v5946 = vrot.slane %v5897, 1
      %v5947 = vrot.slane %v5898, 1
      %v5948 = vsel %vm5692, %v5946, %v5947
      %v5969 = vadd.f32 %v5856, %v5921
      %v5970 = vadd.f32 %v5857, %v5920
      %v5971 = vadd.f32 %v5858, %v5924
      %v5972 = vadd.f32 %v5859, %v5923
      %v5973 = vadd.f32 %v5860, %v5927
      %v5974 = vadd.f32 %v5861, %v5926
      %v5975 = vadd.f32 %v5862, %v5930
      %v5976 = vadd.f32 %v5863, %v5929
      %v5977 = vadd.f32 %v5864, %v5933
      %v5978 = vadd.f32 %v5865, %v5932
      %v5979 = vadd.f32 %v5866, %v5936
      %v5980 = vadd.f32 %v5867, %v5935
      %v5981 = vadd.f32 %v5868, %v5939
      %v5982 = vadd.f32 %v5869, %v5938
      %v5983 = vadd.f32 %v5870, %v5942
      %v5984 = vadd.f32 %v5871, %v5941
      %v5985 = vadd.f32 %v5872, %v5945
      %v5986 = vadd.f32 %v5873, %v5944
      %v5987 = vadd.f32 %v5874, %v5948
      %v5988 = vadd.f32 %v5875, %v5947
      %s5989 = sadd.s32 %s5514, 192
      %s5990 = sld [smem:[#allocation8 + %s5989]]
      %v5991 = vstv %s5990
      %v5992 = vmul.f32 %v5364, %v5991
      %v5993 = vmul.f32 %v5365, %v5991
      %v5994 = vmul.f32 %v5366, %v5991
      %v5995 = vmul.f32 %v5367, %v5991
      %v5996 = vmul.f32 %v5368, %v5991
      %v5997 = vmul.f32 %v5369, %v5991
      %v5998 = vmul.f32 %v5370, %v5991
      %v5999 = vmul.f32 %v5371, %v5991
      %v6000 = vmul.f32 %v5372, %v5991
      %v6001 = vmul.f32 %v5373, %v5991
      %v6002 = vmul.f32 %v5374, %v5991
      %v6003 = vmul.f32 %v5375, %v5991
      %v6004 = vmul.f32 %v5376, %v5991
      %v6005 = vmul.f32 %v5377, %v5991
      %v6006 = vmul.f32 %v5378, %v5991
      %v6007 = vmul.f32 %v5379, %v5991
      %v6008 = vmul.f32 %v5380, %v5991
      %v6009 = vmul.f32 %v5381, %v5991
      %v6010 = vmul.f32 %v5382, %v5991
      %v6011 = vmul.f32 %v5383, %v5991
      %vm6032 = vcmask 1045504
      %v6033 = vrot.slane %v5992, 2
      %v6034 = vrot.slane %v5993, 2
      %v6035 = vsel %vm6032, %v6033, %v6034
      %v6036 = vrot.slane %v5994, 2
      %v6037 = vrot.slane %v5995, 2
      %v6038 = vsel %vm6032, %v6036, %v6037
      %v6039 = vrot.slane %v5996, 2
      %v6040 = vrot.slane %v5997, 2
      %v6041 = vsel %vm6032, %v6039, %v6040
      %v6042 = vrot.slane %v5998, 2
      %v6043 = vrot.slane %v5999, 2
      %v6044 = vsel %vm6032, %v6042, %v6043
      %v6045 = vrot.slane %v6000, 2
      %v6046 = vrot.slane %v6001, 2
      %v6047 = vsel %vm6032, %v6045, %v6046
      %v6048 = vrot.slane %v6002, 2
      %v6049 = vrot.slane %v6003, 2
      %v6050 = vsel %vm6032, %v6048, %v6049
      %v6051 = vrot.slane %v6004, 2
      %v6052 = vrot.slane %v6005, 2
      %v6053 = vsel %vm6032, %v6051, %v6052
      %v6054 = vrot.slane %v6006, 2
      %v6055 = vrot.slane %v6007, 2
      %v6056 = vsel %vm6032, %v6054, %v6055
      %v6057 = vrot.slane %v6008, 2
      %v6058 = vrot.slane %v6009, 2
      %v6059 = vsel %vm6032, %v6057, %v6058
      %v6060 = vrot.slane %v6010, 2
      %v6061 = vrot.slane %v6011, 2
      %v6062 = vsel %vm6032, %v6060, %v6061
      %v6083 = vadd.f32 %v5969, %v6035
      %v6084 = vadd.f32 %v5970, %v6034
      %v6085 = vadd.f32 %v5971, %v6038
      %v6086 = vadd.f32 %v5972, %v6037
      %v6087 = vadd.f32 %v5973, %v6041
      %v6088 = vadd.f32 %v5974, %v6040
      %v6089 = vadd.f32 %v5975, %v6044
      %v6090 = vadd.f32 %v5976, %v6043
      %v6091 = vadd.f32 %v5977, %v6047
      %v6092 = vadd.f32 %v5978, %v6046
      %v6093 = vadd.f32 %v5979, %v6050
      %v6094 = vadd.f32 %v5980, %v6049
      %v6095 = vadd.f32 %v5981, %v6053
      %v6096 = vadd.f32 %v5982, %v6052
      %v6097 = vadd.f32 %v5983, %v6056
      %v6098 = vadd.f32 %v5984, %v6055
      %v6099 = vadd.f32 %v5985, %v6059
      %v6100 = vadd.f32 %v5986, %v6058
      %v6101 = vadd.f32 %v5987, %v6062
      %v6102 = vadd.f32 %v5988, %v6061
      %s6103 = sadd.s32 %s5514, 480
      %s6104 = sld [smem:[#allocation8 + %s6103]]
      %v6105 = vstv %s6104
      %v6106 = vmul.f32 %v5366, %v6105
      %v6107 = vmul.f32 %v5367, %v6105
      %v6108 = vmul.f32 %v5368, %v6105
      %v6109 = vmul.f32 %v5369, %v6105
      %v6110 = vmul.f32 %v5370, %v6105
      %v6111 = vmul.f32 %v5371, %v6105
      %v6112 = vmul.f32 %v5372, %v6105
      %v6113 = vmul.f32 %v5373, %v6105
      %v6114 = vmul.f32 %v5374, %v6105
      %v6115 = vmul.f32 %v5375, %v6105
      %v6116 = vmul.f32 %v5376, %v6105
      %v6117 = vmul.f32 %v5377, %v6105
      %v6118 = vmul.f32 %v5378, %v6105
      %v6119 = vmul.f32 %v5379, %v6105
      %v6120 = vmul.f32 %v5380, %v6105
      %v6121 = vmul.f32 %v5381, %v6105
      %v6122 = vmul.f32 %v5382, %v6105
      %v6123 = vmul.f32 %v5383, %v6105
      %v6124 = vmul.f32 %v5384, %v6105
      %v6125 = vmul.f32 %v5385, %v6105
      %v6146 = vrot.slane %v6106, 2
      %v6147 = vrot.slane %v6107, 2
      %v6148 = vsel %vm6032, %v6146, %v6147
      %v6149 = vrot.slane %v6108, 2
      %v6150 = vrot.slane %v6109, 2
      %v6151 = vsel %vm6032, %v6149, %v6150
      %v6152 = vrot.slane %v6110, 2
      %v6153 = vrot.slane %v6111, 2
      %v6154 = vsel %vm6032, %v6152, %v6153
      %v6155 = vrot.slane %v6112, 2
      %v6156 = vrot.slane %v6113, 2
      %v6157 = vsel %vm6032, %v6155, %v6156
      %v6158 = vrot.slane %v6114, 2
      %v6159 = vrot.slane %v6115, 2
      %v6160 = vsel %vm6032, %v6158, %v6159
      %v6161 = vrot.slane %v6116, 2
      %v6162 = vrot.slane %v6117, 2
      %v6163 = vsel %vm6032, %v6161, %v6162
      %v6164 = vrot.slane %v6118, 2
      %v6165 = vrot.slane %v6119, 2
      %v6166 = vsel %vm6032, %v6164, %v6165
      %v6167 = vrot.slane %v6120, 2
      %v6168 = vrot.slane %v6121, 2
      %v6169 = vsel %vm6032, %v6167, %v6168
      %v6170 = vrot.slane %v6122, 2
      %v6171 = vrot.slane %v6123, 2
      %v6172 = vsel %vm6032, %v6170, %v6171
      %v6173 = vrot.slane %v6124, 2
      %v6174 = vrot.slane %v6125, 2
      %v6175 = vsel %vm6032, %v6173, %v6174
      %v6196 = vadd.f32 %v6083, %v6148
      %v6197 = vadd.f32 %v6084, %v6147
      %v6198 = vadd.f32 %v6085, %v6151
      %v6199 = vadd.f32 %v6086, %v6150
      %v6200 = vadd.f32 %v6087, %v6154
      %v6201 = vadd.f32 %v6088, %v6153
      %v6202 = vadd.f32 %v6089, %v6157
      %v6203 = vadd.f32 %v6090, %v6156
      %v6204 = vadd.f32 %v6091, %v6160
      %v6205 = vadd.f32 %v6092, %v6159
      %v6206 = vadd.f32 %v6093, %v6163
      %v6207 = vadd.f32 %v6094, %v6162
      %v6208 = vadd.f32 %v6095, %v6166
      %v6209 = vadd.f32 %v6096, %v6165
      %v6210 = vadd.f32 %v6097, %v6169
      %v6211 = vadd.f32 %v6098, %v6168
      %v6212 = vadd.f32 %v6099, %v6172
      %v6213 = vadd.f32 %v6100, %v6171
      %v6214 = vadd.f32 %v6101, %v6175
      %v6215 = vadd.f32 %v6102, %v6174
      %s6216 = sadd.s32 %s5514, 768
      %s6217 = sld [smem:[#allocation8 + %s6216]]
      %v6218 = vstv %s6217
      %v6219 = vmul.f32 %v5368, %v6218
      %v6220 = vmul.f32 %v5369, %v6218
      %v6221 = vmul.f32 %v5370, %v6218
      %v6222 = vmul.f32 %v5371, %v6218
      %v6223 = vmul.f32 %v5372, %v6218
      %v6224 = vmul.f32 %v5373, %v6218
      %v6225 = vmul.f32 %v5374, %v6218
      %v6226 = vmul.f32 %v5375, %v6218
      %v6227 = vmul.f32 %v5376, %v6218
      %v6228 = vmul.f32 %v5377, %v6218
      %v6229 = vmul.f32 %v5378, %v6218
      %v6230 = vmul.f32 %v5379, %v6218
      %v6231 = vmul.f32 %v5380, %v6218
      %v6232 = vmul.f32 %v5381, %v6218
      %v6233 = vmul.f32 %v5382, %v6218
      %v6234 = vmul.f32 %v5383, %v6218
      %v6235 = vmul.f32 %v5384, %v6218
      %v6236 = vmul.f32 %v5385, %v6218
      %v6237 = vmul.f32 %v5386, %v6218
      %v6238 = vmul.f32 %v5387, %v6218
      %v6259 = vrot.slane %v6219, 2
      %v6260 = vrot.slane %v6220, 2
      %v6261 = vsel %vm6032, %v6259, %v6260
      %v6262 = vrot.slane %v6221, 2
      %v6263 = vrot.slane %v6222, 2
      %v6264 = vsel %vm6032, %v6262, %v6263
      %v6265 = vrot.slane %v6223, 2
      %v6266 = vrot.slane %v6224, 2
      %v6267 = vsel %vm6032, %v6265, %v6266
      %v6268 = vrot.slane %v6225, 2
      %v6269 = vrot.slane %v6226, 2
      %v6270 = vsel %vm6032, %v6268, %v6269
      %v6271 = vrot.slane %v6227, 2
      %v6272 = vrot.slane %v6228, 2
      %v6273 = vsel %vm6032, %v6271, %v6272
      %v6274 = vrot.slane %v6229, 2
      %v6275 = vrot.slane %v6230, 2
      %v6276 = vsel %vm6032, %v6274, %v6275
      %v6277 = vrot.slane %v6231, 2
      %v6278 = vrot.slane %v6232, 2
      %v6279 = vsel %vm6032, %v6277, %v6278
      %v6280 = vrot.slane %v6233, 2
      %v6281 = vrot.slane %v6234, 2
      %v6282 = vsel %vm6032, %v6280, %v6281
      %v6283 = vrot.slane %v6235, 2
      %v6284 = vrot.slane %v6236, 2
      %v6285 = vsel %vm6032, %v6283, %v6284
      %v6286 = vrot.slane %v6237, 2
      %v6287 = vrot.slane %v6238, 2
      %v6288 = vsel %vm6032, %v6286, %v6287
      %v6309 = vadd.f32 %v6196, %v6261
      %v6310 = vadd.f32 %v6197, %v6260
      %v6311 = vadd.f32 %v6198, %v6264
      %v6312 = vadd.f32 %v6199, %v6263
      %v6313 = vadd.f32 %v6200, %v6267
      %v6314 = vadd.f32 %v6201, %v6266
      %v6315 = vadd.f32 %v6202, %v6270
      %v6316 = vadd.f32 %v6203, %v6269
      %v6317 = vadd.f32 %v6204, %v6273
      %v6318 = vadd.f32 %v6205, %v6272
      %v6319 = vadd.f32 %v6206, %v6276
      %v6320 = vadd.f32 %v6207, %v6275
      %v6321 = vadd.f32 %v6208, %v6279
      %v6322 = vadd.f32 %v6209, %v6278
      %v6323 = vadd.f32 %v6210, %v6282
      %v6324 = vadd.f32 %v6211, %v6281
      %v6325 = vadd.f32 %v6212, %v6285
      %v6326 = vadd.f32 %v6213, %v6284
      %v6327 = vadd.f32 %v6214, %v6288
      %v6328 = vadd.f32 %v6215, %v6287
      %s6329 = sadd.s32 %s5514, 16
      %s6330 = sld [smem:[#allocation8 + %s6329]]
      %v6331 = vstv %s6330
      %v6332 = vmul.f32 %v5389, %v6331
      %v6333 = vmul.f32 %v5390, %v6331
      %v6334 = vmul.f32 %v5391, %v6331
      %v6335 = vmul.f32 %v5392, %v6331
      %v6336 = vmul.f32 %v5393, %v6331
      %v6337 = vmul.f32 %v5394, %v6331
      %v6338 = vmul.f32 %v5395, %v6331
      %v6339 = vmul.f32 %v5396, %v6331
      %v6340 = vmul.f32 %v5397, %v6331
      %v6341 = vmul.f32 %v5398, %v6331
      %v6342 = vmul.f32 %v5399, %v6331
      %v6343 = vmul.f32 %v5400, %v6331
      %v6344 = vmul.f32 %v5401, %v6331
      %v6345 = vmul.f32 %v5402, %v6331
      %v6346 = vmul.f32 %v5403, %v6331
      %v6347 = vmul.f32 %v5404, %v6331
      %v6348 = vmul.f32 %v5405, %v6331
      %v6349 = vmul.f32 %v5406, %v6331
      %v6350 = vmul.f32 %v5407, %v6331
      %v6351 = vmul.f32 %v5408, %v6331
      %v6352 = vadd.f32 %v6309, %v6332
      %v6353 = vadd.f32 %v6310, %v6333
      %v6354 = vadd.f32 %v6311, %v6334
      %v6355 = vadd.f32 %v6312, %v6335
      %v6356 = vadd.f32 %v6313, %v6336
      %v6357 = vadd.f32 %v6314, %v6337
      %v6358 = vadd.f32 %v6315, %v6338
      %v6359 = vadd.f32 %v6316, %v6339
      %v6360 = vadd.f32 %v6317, %v6340
      %v6361 = vadd.f32 %v6318, %v6341
      %v6362 = vadd.f32 %v6319, %v6342
      %v6363 = vadd.f32 %v6320, %v6343
      %v6364 = vadd.f32 %v6321, %v6344
      %v6365 = vadd.f32 %v6322, %v6345
      %v6366 = vadd.f32 %v6323, %v6346
      %v6367 = vadd.f32 %v6324, %v6347
      %v6368 = vadd.f32 %v6325, %v6348
      %v6369 = vadd.f32 %v6326, %v6349
      %v6370 = vadd.f32 %v6327, %v6350
      %v6371 = vadd.f32 %v6328, %v6351
      %s6372 = sadd.s32 %s5514, 304
      %s6373 = sld [smem:[#allocation8 + %s6372]]
      %v6374 = vstv %s6373
      %v6375 = vmul.f32 %v5391, %v6374
      %v6376 = vmul.f32 %v5392, %v6374
      %v6377 = vmul.f32 %v5393, %v6374
      %v6378 = vmul.f32 %v5394, %v6374
      %v6379 = vmul.f32 %v5395, %v6374
      %v6380 = vmul.f32 %v5396, %v6374
      %v6381 = vmul.f32 %v5397, %v6374
      %v6382 = vmul.f32 %v5398, %v6374
      %v6383 = vmul.f32 %v5399, %v6374
      %v6384 = vmul.f32 %v5400, %v6374
      %v6385 = vmul.f32 %v5401, %v6374
      %v6386 = vmul.f32 %v5402, %v6374
      %v6387 = vmul.f32 %v5403, %v6374
      %v6388 = vmul.f32 %v5404, %v6374
      %v6389 = vmul.f32 %v5405, %v6374
      %v6390 = vmul.f32 %v5406, %v6374
      %v6391 = vmul.f32 %v5407, %v6374
      %v6392 = vmul.f32 %v5408, %v6374
      %v6393 = vmul.f32 %v5409, %v6374
      %v6394 = vmul.f32 %v5410, %v6374
      %v6395 = vadd.f32 %v6352, %v6375
      %v6396 = vadd.f32 %v6353, %v6376
      %v6397 = vadd.f32 %v6354, %v6377
      %v6398 = vadd.f32 %v6355, %v6378
      %v6399 = vadd.f32 %v6356, %v6379
      %v6400 = vadd.f32 %v6357, %v6380
      %v6401 = vadd.f32 %v6358, %v6381
      %v6402 = vadd.f32 %v6359, %v6382
      %v6403 = vadd.f32 %v6360, %v6383
      %v6404 = vadd.f32 %v6361, %v6384
      %v6405 = vadd.f32 %v6362, %v6385
      %v6406 = vadd.f32 %v6363, %v6386
      %v6407 = vadd.f32 %v6364, %v6387
      %v6408 = vadd.f32 %v6365, %v6388
      %v6409 = vadd.f32 %v6366, %v6389
      %v6410 = vadd.f32 %v6367, %v6390
      %v6411 = vadd.f32 %v6368, %v6391
      %v6412 = vadd.f32 %v6369, %v6392
      %v6413 = vadd.f32 %v6370, %v6393
      %v6414 = vadd.f32 %v6371, %v6394
      %s6415 = sadd.s32 %s5514, 592
      %s6416 = sld [smem:[#allocation8 + %s6415]]
      %v6417 = vstv %s6416
      %v6418 = vmul.f32 %v5393, %v6417
      %v6419 = vmul.f32 %v5394, %v6417
      %v6420 = vmul.f32 %v5395, %v6417
      %v6421 = vmul.f32 %v5396, %v6417
      %v6422 = vmul.f32 %v5397, %v6417
      %v6423 = vmul.f32 %v5398, %v6417
      %v6424 = vmul.f32 %v5399, %v6417
      %v6425 = vmul.f32 %v5400, %v6417
      %v6426 = vmul.f32 %v5401, %v6417
      %v6427 = vmul.f32 %v5402, %v6417
      %v6428 = vmul.f32 %v5403, %v6417
      %v6429 = vmul.f32 %v5404, %v6417
      %v6430 = vmul.f32 %v5405, %v6417
      %v6431 = vmul.f32 %v5406, %v6417
      %v6432 = vmul.f32 %v5407, %v6417
      %v6433 = vmul.f32 %v5408, %v6417
      %v6434 = vmul.f32 %v5409, %v6417
      %v6435 = vmul.f32 %v5410, %v6417
      %v6436 = vmul.f32 %v5411, %v6417
      %v6437 = vmul.f32 %v5412, %v6417
      %v6438 = vadd.f32 %v6395, %v6418
      %v6439 = vadd.f32 %v6396, %v6419
      %v6440 = vadd.f32 %v6397, %v6420
      %v6441 = vadd.f32 %v6398, %v6421
      %v6442 = vadd.f32 %v6399, %v6422
      %v6443 = vadd.f32 %v6400, %v6423
      %v6444 = vadd.f32 %v6401, %v6424
      %v6445 = vadd.f32 %v6402, %v6425
      %v6446 = vadd.f32 %v6403, %v6426
      %v6447 = vadd.f32 %v6404, %v6427
      %v6448 = vadd.f32 %v6405, %v6428
      %v6449 = vadd.f32 %v6406, %v6429
      %v6450 = vadd.f32 %v6407, %v6430
      %v6451 = vadd.f32 %v6408, %v6431
      %v6452 = vadd.f32 %v6409, %v6432
      %v6453 = vadd.f32 %v6410, %v6433
      %v6454 = vadd.f32 %v6411, %v6434
      %v6455 = vadd.f32 %v6412, %v6435
      %v6456 = vadd.f32 %v6413, %v6436
      %v6457 = vadd.f32 %v6414, %v6437
      %s6458 = sadd.s32 %s5514, 112
      %s6459 = sld [smem:[#allocation8 + %s6458]]
      %v6460 = vstv %s6459
      %v6461 = vmul.f32 %v5389, %v6460
      %v6462 = vmul.f32 %v5390, %v6460
      %v6463 = vmul.f32 %v5391, %v6460
      %v6464 = vmul.f32 %v5392, %v6460
      %v6465 = vmul.f32 %v5393, %v6460
      %v6466 = vmul.f32 %v5394, %v6460
      %v6467 = vmul.f32 %v5395, %v6460
      %v6468 = vmul.f32 %v5396, %v6460
      %v6469 = vmul.f32 %v5397, %v6460
      %v6470 = vmul.f32 %v5398, %v6460
      %v6471 = vmul.f32 %v5399, %v6460
      %v6472 = vmul.f32 %v5400, %v6460
      %v6473 = vmul.f32 %v5401, %v6460
      %v6474 = vmul.f32 %v5402, %v6460
      %v6475 = vmul.f32 %v5403, %v6460
      %v6476 = vmul.f32 %v5404, %v6460
      %v6477 = vmul.f32 %v5405, %v6460
      %v6478 = vmul.f32 %v5406, %v6460
      %v6479 = vmul.f32 %v5407, %v6460
      %v6480 = vmul.f32 %v5408, %v6460
      %v6501 = vrot.slane %v6461, 1
      %v6502 = vrot.slane %v6462, 1
      %v6503 = vsel %vm5692, %v6501, %v6502
      %v6504 = vrot.slane %v6463, 1
      %v6505 = vrot.slane %v6464, 1
      %v6506 = vsel %vm5692, %v6504, %v6505
      %v6507 = vrot.slane %v6465, 1
      %v6508 = vrot.slane %v6466, 1
      %v6509 = vsel %vm5692, %v6507, %v6508
      %v6510 = vrot.slane %v6467, 1
      %v6511 = vrot.slane %v6468, 1
      %v6512 = vsel %vm5692, %v6510, %v6511
      %v6513 = vrot.slane %v6469, 1
      %v6514 = vrot.slane %v6470, 1
      %v6515 = vsel %vm5692, %v6513, %v6514
      %v6516 = vrot.slane %v6471, 1
      %v6517 = vrot.slane %v6472, 1
      %v6518 = vsel %vm5692, %v6516, %v6517
      %v6519 = vrot.slane %v6473, 1
      %v6520 = vrot.slane %v6474, 1
      %v6521 = vsel %vm5692, %v6519, %v6520
      %v6522 = vrot.slane %v6475, 1
      %v6523 = vrot.slane %v6476, 1
      %v6524 = vsel %vm5692, %v6522, %v6523
      %v6525 = vrot.slane %v6477, 1
      %v6526 = vrot.slane %v6478, 1
      %v6527 = vsel %vm5692, %v6525, %v6526
      %v6528 = vrot.slane %v6479, 1
      %v6529 = vrot.slane %v6480, 1
      %v6530 = vsel %vm5692, %v6528, %v6529
      %v6551 = vadd.f32 %v6438, %v6503
      %v6552 = vadd.f32 %v6439, %v6502
      %v6553 = vadd.f32 %v6440, %v6506
      %v6554 = vadd.f32 %v6441, %v6505
      %v6555 = vadd.f32 %v6442, %v6509
      %v6556 = vadd.f32 %v6443, %v6508
      %v6557 = vadd.f32 %v6444, %v6512
      %v6558 = vadd.f32 %v6445, %v6511
      %v6559 = vadd.f32 %v6446, %v6515
      %v6560 = vadd.f32 %v6447, %v6514
      %v6561 = vadd.f32 %v6448, %v6518
      %v6562 = vadd.f32 %v6449, %v6517
      %v6563 = vadd.f32 %v6450, %v6521
      %v6564 = vadd.f32 %v6451, %v6520
      %v6565 = vadd.f32 %v6452, %v6524
      %v6566 = vadd.f32 %v6453, %v6523
      %v6567 = vadd.f32 %v6454, %v6527
      %v6568 = vadd.f32 %v6455, %v6526
      %v6569 = vadd.f32 %v6456, %v6530
      %v6570 = vadd.f32 %v6457, %v6529
      %s6571 = sadd.s32 %s5514, 400
      %s6572 = sld [smem:[#allocation8 + %s6571]]
      %v6573 = vstv %s6572
      %v6574 = vmul.f32 %v5391, %v6573
      %v6575 = vmul.f32 %v5392, %v6573
      %v6576 = vmul.f32 %v5393, %v6573
      %v6577 = vmul.f32 %v5394, %v6573
      %v6578 = vmul.f32 %v5395, %v6573
      %v6579 = vmul.f32 %v5396, %v6573
      %v6580 = vmul.f32 %v5397, %v6573
      %v6581 = vmul.f32 %v5398, %v6573
      %v6582 = vmul.f32 %v5399, %v6573
      %v6583 = vmul.f32 %v5400, %v6573
      %v6584 = vmul.f32 %v5401, %v6573
      %v6585 = vmul.f32 %v5402, %v6573
      %v6586 = vmul.f32 %v5403, %v6573
      %v6587 = vmul.f32 %v5404, %v6573
      %v6588 = vmul.f32 %v5405, %v6573
      %v6589 = vmul.f32 %v5406, %v6573
      %v6590 = vmul.f32 %v5407, %v6573
      %v6591 = vmul.f32 %v5408, %v6573
      %v6592 = vmul.f32 %v5409, %v6573
      %v6593 = vmul.f32 %v5410, %v6573
      %v6614 = vrot.slane %v6574, 1
      %v6615 = vrot.slane %v6575, 1
      %v6616 = vsel %vm5692, %v6614, %v6615
      %v6617 = vrot.slane %v6576, 1
      %v6618 = vrot.slane %v6577, 1
      %v6619 = vsel %vm5692, %v6617, %v6618
      %v6620 = vrot.slane %v6578, 1
      %v6621 = vrot.slane %v6579, 1
      %v6622 = vsel %vm5692, %v6620, %v6621
      %v6623 = vrot.slane %v6580, 1
      %v6624 = vrot.slane %v6581, 1
      %v6625 = vsel %vm5692, %v6623, %v6624
      %v6626 = vrot.slane %v6582, 1
      %v6627 = vrot.slane %v6583, 1
      %v6628 = vsel %vm5692, %v6626, %v6627
      %v6629 = vrot.slane %v6584, 1
      %v6630 = vrot.slane %v6585, 1
      %v6631 = vsel %vm5692, %v6629, %v6630
      %v6632 = vrot.slane %v6586, 1
      %v6633 = vrot.slane %v6587, 1
      %v6634 = vsel %vm5692, %v6632, %v6633
      %v6635 = vrot.slane %v6588, 1
      %v6636 = vrot.slane %v6589, 1
      %v6637 = vsel %vm5692, %v6635, %v6636
      %v6638 = vrot.slane %v6590, 1
      %v6639 = vrot.slane %v6591, 1
      %v6640 = vsel %vm5692, %v6638, %v6639
      %v6641 = vrot.slane %v6592, 1
      %v6642 = vrot.slane %v6593, 1
      %v6643 = vsel %vm5692, %v6641, %v6642
      %v6664 = vadd.f32 %v6551, %v6616
      %v6665 = vadd.f32 %v6552, %v6615
      %v6666 = vadd.f32 %v6553, %v6619
      %v6667 = vadd.f32 %v6554, %v6618
      %v6668 = vadd.f32 %v6555, %v6622
      %v6669 = vadd.f32 %v6556, %v6621
      %v6670 = vadd.f32 %v6557, %v6625
      %v6671 = vadd.f32 %v6558, %v6624
      %v6672 = vadd.f32 %v6559, %v6628
      %v6673 = vadd.f32 %v6560, %v6627
      %v6674 = vadd.f32 %v6561, %v6631
      %v6675 = vadd.f32 %v6562, %v6630
      %v6676 = vadd.f32 %v6563, %v6634
      %v6677 = vadd.f32 %v6564, %v6633
      %v6678 = vadd.f32 %v6565, %v6637
      %v6679 = vadd.f32 %v6566, %v6636
      %v6680 = vadd.f32 %v6567, %v6640
      %v6681 = vadd.f32 %v6568, %v6639
      %v6682 = vadd.f32 %v6569, %v6643
      %v6683 = vadd.f32 %v6570, %v6642
      %s6684 = sadd.s32 %s5514, 688
      %s6685 = sld [smem:[#allocation8 + %s6684]]
      %v6686 = vstv %s6685
      %v6687 = vmul.f32 %v5393, %v6686
      %v6688 = vmul.f32 %v5394, %v6686
      %v6689 = vmul.f32 %v5395, %v6686
      %v6690 = vmul.f32 %v5396, %v6686
      %v6691 = vmul.f32 %v5397, %v6686
      %v6692 = vmul.f32 %v5398, %v6686
      %v6693 = vmul.f32 %v5399, %v6686
      %v6694 = vmul.f32 %v5400, %v6686
      %v6695 = vmul.f32 %v5401, %v6686
      %v6696 = vmul.f32 %v5402, %v6686
      %v6697 = vmul.f32 %v5403, %v6686
      %v6698 = vmul.f32 %v5404, %v6686
      %v6699 = vmul.f32 %v5405, %v6686
      %v6700 = vmul.f32 %v5406, %v6686
      %v6701 = vmul.f32 %v5407, %v6686
      %v6702 = vmul.f32 %v5408, %v6686
      %v6703 = vmul.f32 %v5409, %v6686
      %v6704 = vmul.f32 %v5410, %v6686
      %v6705 = vmul.f32 %v5411, %v6686
      %v6706 = vmul.f32 %v5412, %v6686
      %v6727 = vrot.slane %v6687, 1
      %v6728 = vrot.slane %v6688, 1
      %v6729 = vsel %vm5692, %v6727, %v6728
      %v6730 = vrot.slane %v6689, 1
      %v6731 = vrot.slane %v6690, 1
      %v6732 = vsel %vm5692, %v6730, %v6731
      %v6733 = vrot.slane %v6691, 1
      %v6734 = vrot.slane %v6692, 1
      %v6735 = vsel %vm5692, %v6733, %v6734
      %v6736 = vrot.slane %v6693, 1
      %v6737 = vrot.slane %v6694, 1
      %v6738 = vsel %vm5692, %v6736, %v6737
      %v6739 = vrot.slane %v6695, 1
      %v6740 = vrot.slane %v6696, 1
      %v6741 = vsel %vm5692, %v6739, %v6740
      %v6742 = vrot.slane %v6697, 1
      %v6743 = vrot.slane %v6698, 1
      %v6744 = vsel %vm5692, %v6742, %v6743
      %v6745 = vrot.slane %v6699, 1
      %v6746 = vrot.slane %v6700, 1
      %v6747 = vsel %vm5692, %v6745, %v6746
      %v6748 = vrot.slane %v6701, 1
      %v6749 = vrot.slane %v6702, 1
      %v6750 = vsel %vm5692, %v6748, %v6749
      %v6751 = vrot.slane %v6703, 1
      %v6752 = vrot.slane %v6704, 1
      %v6753 = vsel %vm5692, %v6751, %v6752
      %v6754 = vrot.slane %v6705, 1
      %v6755 = vrot.slane %v6706, 1
      %v6756 = vsel %vm5692, %v6754, %v6755
      %v6777 = vadd.f32 %v6664, %v6729
      %v6778 = vadd.f32 %v6665, %v6728
      %v6779 = vadd.f32 %v6666, %v6732
      %v6780 = vadd.f32 %v6667, %v6731
      %v6781 = vadd.f32 %v6668, %v6735
      %v6782 = vadd.f32 %v6669, %v6734
      %v6783 = vadd.f32 %v6670, %v6738
      %v6784 = vadd.f32 %v6671, %v6737
      %v6785 = vadd.f32 %v6672, %v6741
      %v6786 = vadd.f32 %v6673, %v6740
      %v6787 = vadd.f32 %v6674, %v6744
      %v6788 = vadd.f32 %v6675, %v6743
      %v6789 = vadd.f32 %v6676, %v6747
      %v6790 = vadd.f32 %v6677, %v6746
      %v6791 = vadd.f32 %v6678, %v6750
      %v6792 = vadd.f32 %v6679, %v6749
      %v6793 = vadd.f32 %v6680, %v6753
      %v6794 = vadd.f32 %v6681, %v6752
      %v6795 = vadd.f32 %v6682, %v6756
      %v6796 = vadd.f32 %v6683, %v6755
      %s6797 = sadd.s32 %s5514, 208
      %s6798 = sld [smem:[#allocation8 + %s6797]]
      %v6799 = vstv %s6798
      %v6800 = vmul.f32 %v5389, %v6799
      %v6801 = vmul.f32 %v5390, %v6799
      %v6802 = vmul.f32 %v5391, %v6799
      %v6803 = vmul.f32 %v5392, %v6799
      %v6804 = vmul.f32 %v5393, %v6799
      %v6805 = vmul.f32 %v5394, %v6799
      %v6806 = vmul.f32 %v5395, %v6799
      %v6807 = vmul.f32 %v5396, %v6799
      %v6808 = vmul.f32 %v5397, %v6799
      %v6809 = vmul.f32 %v5398, %v6799
      %v6810 = vmul.f32 %v5399, %v6799
      %v6811 = vmul.f32 %v5400, %v6799
      %v6812 = vmul.f32 %v5401, %v6799
      %v6813 = vmul.f32 %v5402, %v6799
      %v6814 = vmul.f32 %v5403, %v6799
      %v6815 = vmul.f32 %v5404, %v6799
      %v6816 = vmul.f32 %v5405, %v6799
      %v6817 = vmul.f32 %v5406, %v6799
      %v6818 = vmul.f32 %v5407, %v6799
      %v6819 = vmul.f32 %v5408, %v6799
      %v6840 = vrot.slane %v6800, 2
      %v6841 = vrot.slane %v6801, 2
      %v6842 = vsel %vm6032, %v6840, %v6841
      %v6843 = vrot.slane %v6802, 2
      %v6844 = vrot.slane %v6803, 2
      %v6845 = vsel %vm6032, %v6843, %v6844
      %v6846 = vrot.slane %v6804, 2
      %v6847 = vrot.slane %v6805, 2
      %v6848 = vsel %vm6032, %v6846, %v6847
      %v6849 = vrot.slane %v6806, 2
      %v6850 = vrot.slane %v6807, 2
      %v6851 = vsel %vm6032, %v6849, %v6850
      %v6852 = vrot.slane %v6808, 2
      %v6853 = vrot.slane %v6809, 2
      %v6854 = vsel %vm6032, %v6852, %v6853
      %v6855 = vrot.slane %v6810, 2
      %v6856 = vrot.slane %v6811, 2
      %v6857 = vsel %vm6032, %v6855, %v6856
      %v6858 = vrot.slane %v6812, 2
      %v6859 = vrot.slane %v6813, 2
      %v6860 = vsel %vm6032, %v6858, %v6859
      %v6861 = vrot.slane %v6814, 2
      %v6862 = vrot.slane %v6815, 2
      %v6863 = vsel %vm6032, %v6861, %v6862
      %v6864 = vrot.slane %v6816, 2
      %v6865 = vrot.slane %v6817, 2
      %v6866 = vsel %vm6032, %v6864, %v6865
      %v6867 = vrot.slane %v6818, 2
      %v6868 = vrot.slane %v6819, 2
      %v6869 = vsel %vm6032, %v6867, %v6868
      %v6890 = vadd.f32 %v6777, %v6842
      %v6891 = vadd.f32 %v6778, %v6841
      %v6892 = vadd.f32 %v6779, %v6845
      %v6893 = vadd.f32 %v6780, %v6844
      %v6894 = vadd.f32 %v6781, %v6848
      %v6895 = vadd.f32 %v6782, %v6847
      %v6896 = vadd.f32 %v6783, %v6851
      %v6897 = vadd.f32 %v6784, %v6850
      %v6898 = vadd.f32 %v6785, %v6854
      %v6899 = vadd.f32 %v6786, %v6853
      %v6900 = vadd.f32 %v6787, %v6857
      %v6901 = vadd.f32 %v6788, %v6856
      %v6902 = vadd.f32 %v6789, %v6860
      %v6903 = vadd.f32 %v6790, %v6859
      %v6904 = vadd.f32 %v6791, %v6863
      %v6905 = vadd.f32 %v6792, %v6862
      %v6906 = vadd.f32 %v6793, %v6866
      %v6907 = vadd.f32 %v6794, %v6865
      %v6908 = vadd.f32 %v6795, %v6869
      %v6909 = vadd.f32 %v6796, %v6868
      %s6910 = sadd.s32 %s5514, 496
      %s6911 = sld [smem:[#allocation8 + %s6910]]
      %v6912 = vstv %s6911
      %v6913 = vmul.f32 %v5391, %v6912
      %v6914 = vmul.f32 %v5392, %v6912
      %v6915 = vmul.f32 %v5393, %v6912
      %v6916 = vmul.f32 %v5394, %v6912
      %v6917 = vmul.f32 %v5395, %v6912
      %v6918 = vmul.f32 %v5396, %v6912
      %v6919 = vmul.f32 %v5397, %v6912
      %v6920 = vmul.f32 %v5398, %v6912
      %v6921 = vmul.f32 %v5399, %v6912
      %v6922 = vmul.f32 %v5400, %v6912
      %v6923 = vmul.f32 %v5401, %v6912
      %v6924 = vmul.f32 %v5402, %v6912
      %v6925 = vmul.f32 %v5403, %v6912
      %v6926 = vmul.f32 %v5404, %v6912
      %v6927 = vmul.f32 %v5405, %v6912
      %v6928 = vmul.f32 %v5406, %v6912
      %v6929 = vmul.f32 %v5407, %v6912
      %v6930 = vmul.f32 %v5408, %v6912
      %v6931 = vmul.f32 %v5409, %v6912
      %v6932 = vmul.f32 %v5410, %v6912
      %v6953 = vrot.slane %v6913, 2
      %v6954 = vrot.slane %v6914, 2
      %v6955 = vsel %vm6032, %v6953, %v6954
      %v6956 = vrot.slane %v6915, 2
      %v6957 = vrot.slane %v6916, 2
      %v6958 = vsel %vm6032, %v6956, %v6957
      %v6959 = vrot.slane %v6917, 2
      %v6960 = vrot.slane %v6918, 2
      %v6961 = vsel %vm6032, %v6959, %v6960
      %v6962 = vrot.slane %v6919, 2
      %v6963 = vrot.slane %v6920, 2
      %v6964 = vsel %vm6032, %v6962, %v6963
      %v6965 = vrot.slane %v6921, 2
      %v6966 = vrot.slane %v6922, 2
      %v6967 = vsel %vm6032, %v6965, %v6966
      %v6968 = vrot.slane %v6923, 2
      %v6969 = vrot.slane %v6924, 2
      %v6970 = vsel %vm6032, %v6968, %v6969
      %v6971 = vrot.slane %v6925, 2
      %v6972 = vrot.slane %v6926, 2
      %v6973 = vsel %vm6032, %v6971, %v6972
      %v6974 = vrot.slane %v6927, 2
      %v6975 = vrot.slane %v6928, 2
      %v6976 = vsel %vm6032, %v6974, %v6975
      %v6977 = vrot.slane %v6929, 2
      %v6978 = vrot.slane %v6930, 2
      %v6979 = vsel %vm6032, %v6977, %v6978
      %v6980 = vrot.slane %v6931, 2
      %v6981 = vrot.slane %v6932, 2
      %v6982 = vsel %vm6032, %v6980, %v6981
      %v7003 = vadd.f32 %v6890, %v6955
      %v7004 = vadd.f32 %v6891, %v6954
      %v7005 = vadd.f32 %v6892, %v6958
      %v7006 = vadd.f32 %v6893, %v6957
      %v7007 = vadd.f32 %v6894, %v6961
      %v7008 = vadd.f32 %v6895, %v6960
      %v7009 = vadd.f32 %v6896, %v6964
      %v7010 = vadd.f32 %v6897, %v6963
      %v7011 = vadd.f32 %v6898, %v6967
      %v7012 = vadd.f32 %v6899, %v6966
      %v7013 = vadd.f32 %v6900, %v6970
      %v7014 = vadd.f32 %v6901, %v6969
      %v7015 = vadd.f32 %v6902, %v6973
      %v7016 = vadd.f32 %v6903, %v6972
      %v7017 = vadd.f32 %v6904, %v6976
      %v7018 = vadd.f32 %v6905, %v6975
      %v7019 = vadd.f32 %v6906, %v6979
      %v7020 = vadd.f32 %v6907, %v6978
      %v7021 = vadd.f32 %v6908, %v6982
      %v7022 = vadd.f32 %v6909, %v6981
      %s7023 = sadd.s32 %s5514, 784
      %s7024 = sld [smem:[#allocation8 + %s7023]]
      %v7025 = vstv %s7024
      %v7026 = vmul.f32 %v5393, %v7025
      %v7027 = vmul.f32 %v5394, %v7025
      %v7028 = vmul.f32 %v5395, %v7025
      %v7029 = vmul.f32 %v5396, %v7025
      %v7030 = vmul.f32 %v5397, %v7025
      %v7031 = vmul.f32 %v5398, %v7025
      %v7032 = vmul.f32 %v5399, %v7025
      %v7033 = vmul.f32 %v5400, %v7025
      %v7034 = vmul.f32 %v5401, %v7025
      %v7035 = vmul.f32 %v5402, %v7025
      %v7036 = vmul.f32 %v5403, %v7025
      %v7037 = vmul.f32 %v5404, %v7025
      %v7038 = vmul.f32 %v5405, %v7025
      %v7039 = vmul.f32 %v5406, %v7025
      %v7040 = vmul.f32 %v5407, %v7025
      %v7041 = vmul.f32 %v5408, %v7025
      %v7042 = vmul.f32 %v5409, %v7025
      %v7043 = vmul.f32 %v5410, %v7025
      %v7044 = vmul.f32 %v5411, %v7025
      %v7045 = vmul.f32 %v5412, %v7025
      %v7066 = vrot.slane %v7026, 2
      %v7067 = vrot.slane %v7027, 2
      %v7068 = vsel %vm6032, %v7066, %v7067
      %v7069 = vrot.slane %v7028, 2
      %v7070 = vrot.slane %v7029, 2
      %v7071 = vsel %vm6032, %v7069, %v7070
      %v7072 = vrot.slane %v7030, 2
      %v7073 = vrot.slane %v7031, 2
      %v7074 = vsel %vm6032, %v7072, %v7073
      %v7075 = vrot.slane %v7032, 2
      %v7076 = vrot.slane %v7033, 2
      %v7077 = vsel %vm6032, %v7075, %v7076
      %v7078 = vrot.slane %v7034, 2
      %v7079 = vrot.slane %v7035, 2
      %v7080 = vsel %vm6032, %v7078, %v7079
      %v7081 = vrot.slane %v7036, 2
      %v7082 = vrot.slane %v7037, 2
      %v7083 = vsel %vm6032, %v7081, %v7082
      %v7084 = vrot.slane %v7038, 2
      %v7085 = vrot.slane %v7039, 2
      %v7086 = vsel %vm6032, %v7084, %v7085
      %v7087 = vrot.slane %v7040, 2
      %v7088 = vrot.slane %v7041, 2
      %v7089 = vsel %vm6032, %v7087, %v7088
      %v7090 = vrot.slane %v7042, 2
      %v7091 = vrot.slane %v7043, 2
      %v7092 = vsel %vm6032, %v7090, %v7091
      %v7093 = vrot.slane %v7044, 2
      %v7094 = vrot.slane %v7045, 2
      %v7095 = vsel %vm6032, %v7093, %v7094
      %v7116 = vadd.f32 %v7003, %v7068
      %v7117 = vadd.f32 %v7004, %v7067
      %v7118 = vadd.f32 %v7005, %v7071
      %v7119 = vadd.f32 %v7006, %v7070
      %v7120 = vadd.f32 %v7007, %v7074
      %v7121 = vadd.f32 %v7008, %v7073
      %v7122 = vadd.f32 %v7009, %v7077
      %v7123 = vadd.f32 %v7010, %v7076
      %v7124 = vadd.f32 %v7011, %v7080
      %v7125 = vadd.f32 %v7012, %v7079
      %v7126 = vadd.f32 %v7013, %v7083
      %v7127 = vadd.f32 %v7014, %v7082
      %v7128 = vadd.f32 %v7015, %v7086
      %v7129 = vadd.f32 %v7016, %v7085
      %v7130 = vadd.f32 %v7017, %v7089
      %v7131 = vadd.f32 %v7018, %v7088
      %v7132 = vadd.f32 %v7019, %v7092
      %v7133 = vadd.f32 %v7020, %v7091
      %v7134 = vadd.f32 %v7021, %v7095
      %v7135 = vadd.f32 %v7022, %v7094
      %s7136 = sadd.s32 %s5514, 32
      %s7137 = sld [smem:[#allocation8 + %s7136]]
      %v7138 = vstv %s7137
      %v7139 = vmul.f32 %v5414, %v7138
      %v7140 = vmul.f32 %v5415, %v7138
      %v7141 = vmul.f32 %v5416, %v7138
      %v7142 = vmul.f32 %v5417, %v7138
      %v7143 = vmul.f32 %v5418, %v7138
      %v7144 = vmul.f32 %v5419, %v7138
      %v7145 = vmul.f32 %v5420, %v7138
      %v7146 = vmul.f32 %v5421, %v7138
      %v7147 = vmul.f32 %v5422, %v7138
      %v7148 = vmul.f32 %v5423, %v7138
      %v7149 = vmul.f32 %v5424, %v7138
      %v7150 = vmul.f32 %v5425, %v7138
      %v7151 = vmul.f32 %v5426, %v7138
      %v7152 = vmul.f32 %v5427, %v7138
      %v7153 = vmul.f32 %v5428, %v7138
      %v7154 = vmul.f32 %v5429, %v7138
      %v7155 = vmul.f32 %v5430, %v7138
      %v7156 = vmul.f32 %v5431, %v7138
      %v7157 = vmul.f32 %v5432, %v7138
      %v7158 = vmul.f32 %v5433, %v7138
      %v7159 = vadd.f32 %v7116, %v7139
      %v7160 = vadd.f32 %v7117, %v7140
      %v7161 = vadd.f32 %v7118, %v7141
      %v7162 = vadd.f32 %v7119, %v7142
      %v7163 = vadd.f32 %v7120, %v7143
      %v7164 = vadd.f32 %v7121, %v7144
      %v7165 = vadd.f32 %v7122, %v7145
      %v7166 = vadd.f32 %v7123, %v7146
      %v7167 = vadd.f32 %v7124, %v7147
      %v7168 = vadd.f32 %v7125, %v7148
      %v7169 = vadd.f32 %v7126, %v7149
      %v7170 = vadd.f32 %v7127, %v7150
      %v7171 = vadd.f32 %v7128, %v7151
      %v7172 = vadd.f32 %v7129, %v7152
      %v7173 = vadd.f32 %v7130, %v7153
      %v7174 = vadd.f32 %v7131, %v7154
      %v7175 = vadd.f32 %v7132, %v7155
      %v7176 = vadd.f32 %v7133, %v7156
      %v7177 = vadd.f32 %v7134, %v7157
      %v7178 = vadd.f32 %v7135, %v7158
      %s7179 = sadd.s32 %s5514, 320
      %s7180 = sld [smem:[#allocation8 + %s7179]]
      %v7181 = vstv %s7180
      %v7182 = vmul.f32 %v5416, %v7181
      %v7183 = vmul.f32 %v5417, %v7181
      %v7184 = vmul.f32 %v5418, %v7181
      %v7185 = vmul.f32 %v5419, %v7181
      %v7186 = vmul.f32 %v5420, %v7181
      %v7187 = vmul.f32 %v5421, %v7181
      %v7188 = vmul.f32 %v5422, %v7181
      %v7189 = vmul.f32 %v5423, %v7181
      %v7190 = vmul.f32 %v5424, %v7181
      %v7191 = vmul.f32 %v5425, %v7181
      %v7192 = vmul.f32 %v5426, %v7181
      %v7193 = vmul.f32 %v5427, %v7181
      %v7194 = vmul.f32 %v5428, %v7181
      %v7195 = vmul.f32 %v5429, %v7181
      %v7196 = vmul.f32 %v5430, %v7181
      %v7197 = vmul.f32 %v5431, %v7181
      %v7198 = vmul.f32 %v5432, %v7181
      %v7199 = vmul.f32 %v5433, %v7181
      %v7200 = vmul.f32 %v5434, %v7181
      %v7201 = vmul.f32 %v5435, %v7181
      %v7202 = vadd.f32 %v7159, %v7182
      %v7203 = vadd.f32 %v7160, %v7183
      %v7204 = vadd.f32 %v7161, %v7184
      %v7205 = vadd.f32 %v7162, %v7185
      %v7206 = vadd.f32 %v7163, %v7186
      %v7207 = vadd.f32 %v7164, %v7187
      %v7208 = vadd.f32 %v7165, %v7188
      %v7209 = vadd.f32 %v7166, %v7189
      %v7210 = vadd.f32 %v7167, %v7190
      %v7211 = vadd.f32 %v7168, %v7191
      %v7212 = vadd.f32 %v7169, %v7192
      %v7213 = vadd.f32 %v7170, %v7193
      %v7214 = vadd.f32 %v7171, %v7194
      %v7215 = vadd.f32 %v7172, %v7195
      %v7216 = vadd.f32 %v7173, %v7196
      %v7217 = vadd.f32 %v7174, %v7197
      %v7218 = vadd.f32 %v7175, %v7198
      %v7219 = vadd.f32 %v7176, %v7199
      %v7220 = vadd.f32 %v7177, %v7200
      %v7221 = vadd.f32 %v7178, %v7201
      %s7222 = sadd.s32 %s5514, 608
      %s7223 = sld [smem:[#allocation8 + %s7222]]
      %v7224 = vstv %s7223
      %v7225 = vmul.f32 %v5418, %v7224
      %v7226 = vmul.f32 %v5419, %v7224
      %v7227 = vmul.f32 %v5420, %v7224
      %v7228 = vmul.f32 %v5421, %v7224
      %v7229 = vmul.f32 %v5422, %v7224
      %v7230 = vmul.f32 %v5423, %v7224
      %v7231 = vmul.f32 %v5424, %v7224
      %v7232 = vmul.f32 %v5425, %v7224
      %v7233 = vmul.f32 %v5426, %v7224
      %v7234 = vmul.f32 %v5427, %v7224
      %v7235 = vmul.f32 %v5428, %v7224
      %v7236 = vmul.f32 %v5429, %v7224
      %v7237 = vmul.f32 %v5430, %v7224
      %v7238 = vmul.f32 %v5431, %v7224
      %v7239 = vmul.f32 %v5432, %v7224
      %v7240 = vmul.f32 %v5433, %v7224
      %v7241 = vmul.f32 %v5434, %v7224
      %v7242 = vmul.f32 %v5435, %v7224
      %v7243 = vmul.f32 %v5436, %v7224
      %v7244 = vmul.f32 %v5437, %v7224
      %v7245 = vadd.f32 %v7202, %v7225
      %v7246 = vadd.f32 %v7203, %v7226
      %v7247 = vadd.f32 %v7204, %v7227
      %v7248 = vadd.f32 %v7205, %v7228
      %v7249 = vadd.f32 %v7206, %v7229
      %v7250 = vadd.f32 %v7207, %v7230
      %v7251 = vadd.f32 %v7208, %v7231
      %v7252 = vadd.f32 %v7209, %v7232
      %v7253 = vadd.f32 %v7210, %v7233
      %v7254 = vadd.f32 %v7211, %v7234
      %v7255 = vadd.f32 %v7212, %v7235
      %v7256 = vadd.f32 %v7213, %v7236
      %v7257 = vadd.f32 %v7214, %v7237
      %v7258 = vadd.f32 %v7215, %v7238
      %v7259 = vadd.f32 %v7216, %v7239
      %v7260 = vadd.f32 %v7217, %v7240
      %v7261 = vadd.f32 %v7218, %v7241
      %v7262 = vadd.f32 %v7219, %v7242
      %v7263 = vadd.f32 %v7220, %v7243
      %v7264 = vadd.f32 %v7221, %v7244
      %s7265 = sadd.s32 %s5514, 128
      %s7266 = sld [smem:[#allocation8 + %s7265]]
      %v7267 = vstv %s7266
      %v7268 = vmul.f32 %v5414, %v7267
      %v7269 = vmul.f32 %v5415, %v7267
      %v7270 = vmul.f32 %v5416, %v7267
      %v7271 = vmul.f32 %v5417, %v7267
      %v7272 = vmul.f32 %v5418, %v7267
      %v7273 = vmul.f32 %v5419, %v7267
      %v7274 = vmul.f32 %v5420, %v7267
      %v7275 = vmul.f32 %v5421, %v7267
      %v7276 = vmul.f32 %v5422, %v7267
      %v7277 = vmul.f32 %v5423, %v7267
      %v7278 = vmul.f32 %v5424, %v7267
      %v7279 = vmul.f32 %v5425, %v7267
      %v7280 = vmul.f32 %v5426, %v7267
      %v7281 = vmul.f32 %v5427, %v7267
      %v7282 = vmul.f32 %v5428, %v7267
      %v7283 = vmul.f32 %v5429, %v7267
      %v7284 = vmul.f32 %v5430, %v7267
      %v7285 = vmul.f32 %v5431, %v7267
      %v7286 = vmul.f32 %v5432, %v7267
      %v7287 = vmul.f32 %v5433, %v7267
      %v7308 = vrot.slane %v7268, 1
      %v7309 = vrot.slane %v7269, 1
      %v7310 = vsel %vm5692, %v7308, %v7309
      %v7311 = vrot.slane %v7270, 1
      %v7312 = vrot.slane %v7271, 1
      %v7313 = vsel %vm5692, %v7311, %v7312
      %v7314 = vrot.slane %v7272, 1
      %v7315 = vrot.slane %v7273, 1
      %v7316 = vsel %vm5692, %v7314, %v7315
      %v7317 = vrot.slane %v7274, 1
      %v7318 = vrot.slane %v7275, 1
      %v7319 = vsel %vm5692, %v7317, %v7318
      %v7320 = vrot.slane %v7276, 1
      %v7321 = vrot.slane %v7277, 1
      %v7322 = vsel %vm5692, %v7320, %v7321
      %v7323 = vrot.slane %v7278, 1
      %v7324 = vrot.slane %v7279, 1
      %v7325 = vsel %vm5692, %v7323, %v7324
      %v7326 = vrot.slane %v7280, 1
      %v7327 = vrot.slane %v7281, 1
      %v7328 = vsel %vm5692, %v7326, %v7327
      %v7329 = vrot.slane %v7282, 1
      %v7330 = vrot.slane %v7283, 1
      %v7331 = vsel %vm5692, %v7329, %v7330
      %v7332 = vrot.slane %v7284, 1
      %v7333 = vrot.slane %v7285, 1
      %v7334 = vsel %vm5692, %v7332, %v7333
      %v7335 = vrot.slane %v7286, 1
      %v7336 = vrot.slane %v7287, 1
      %v7337 = vsel %vm5692, %v7335, %v7336
      %v7358 = vadd.f32 %v7245, %v7310
      %v7359 = vadd.f32 %v7246, %v7309
      %v7360 = vadd.f32 %v7247, %v7313
      %v7361 = vadd.f32 %v7248, %v7312
      %v7362 = vadd.f32 %v7249, %v7316
      %v7363 = vadd.f32 %v7250, %v7315
      %v7364 = vadd.f32 %v7251, %v7319
      %v7365 = vadd.f32 %v7252, %v7318
      %v7366 = vadd.f32 %v7253, %v7322
      %v7367 = vadd.f32 %v7254, %v7321
      %v7368 = vadd.f32 %v7255, %v7325
      %v7369 = vadd.f32 %v7256, %v7324
      %v7370 = vadd.f32 %v7257, %v7328
      %v7371 = vadd.f32 %v7258, %v7327
      %v7372 = vadd.f32 %v7259, %v7331
      %v7373 = vadd.f32 %v7260, %v7330
      %v7374 = vadd.f32 %v7261, %v7334
      %v7375 = vadd.f32 %v7262, %v7333
      %v7376 = vadd.f32 %v7263, %v7337
      %v7377 = vadd.f32 %v7264, %v7336
      %s7378 = sadd.s32 %s5514, 416
      %s7379 = sld [smem:[#allocation8 + %s7378]]
      %v7380 = vstv %s7379
      %v7381 = vmul.f32 %v5416, %v7380
      %v7382 = vmul.f32 %v5417, %v7380
      %v7383 = vmul.f32 %v5418, %v7380
      %v7384 = vmul.f32 %v5419, %v7380
      %v7385 = vmul.f32 %v5420, %v7380
      %v7386 = vmul.f32 %v5421, %v7380
      %v7387 = vmul.f32 %v5422, %v7380
      %v7388 = vmul.f32 %v5423, %v7380
      %v7389 = vmul.f32 %v5424, %v7380
      %v7390 = vmul.f32 %v5425, %v7380
      %v7391 = vmul.f32 %v5426, %v7380
      %v7392 = vmul.f32 %v5427, %v7380
      %v7393 = vmul.f32 %v5428, %v7380
      %v7394 = vmul.f32 %v5429, %v7380
      %v7395 = vmul.f32 %v5430, %v7380
      %v7396 = vmul.f32 %v5431, %v7380
      %v7397 = vmul.f32 %v5432, %v7380
      %v7398 = vmul.f32 %v5433, %v7380
      %v7399 = vmul.f32 %v5434, %v7380
      %v7400 = vmul.f32 %v5435, %v7380
      %v7421 = vrot.slane %v7381, 1
      %v7422 = vrot.slane %v7382, 1
      %v7423 = vsel %vm5692, %v7421, %v7422
      %v7424 = vrot.slane %v7383, 1
      %v7425 = vrot.slane %v7384, 1
      %v7426 = vsel %vm5692, %v7424, %v7425
      %v7427 = vrot.slane %v7385, 1
      %v7428 = vrot.slane %v7386, 1
      %v7429 = vsel %vm5692, %v7427, %v7428
      %v7430 = vrot.slane %v7387, 1
      %v7431 = vrot.slane %v7388, 1
      %v7432 = vsel %vm5692, %v7430, %v7431
      %v7433 = vrot.slane %v7389, 1
      %v7434 = vrot.slane %v7390, 1
      %v7435 = vsel %vm5692, %v7433, %v7434
      %v7436 = vrot.slane %v7391, 1
      %v7437 = vrot.slane %v7392, 1
      %v7438 = vsel %vm5692, %v7436, %v7437
      %v7439 = vrot.slane %v7393, 1
      %v7440 = vrot.slane %v7394, 1
      %v7441 = vsel %vm5692, %v7439, %v7440
      %v7442 = vrot.slane %v7395, 1
      %v7443 = vrot.slane %v7396, 1
      %v7444 = vsel %vm5692, %v7442, %v7443
      %v7445 = vrot.slane %v7397, 1
      %v7446 = vrot.slane %v7398, 1
      %v7447 = vsel %vm5692, %v7445, %v7446
      %v7448 = vrot.slane %v7399, 1
      %v7449 = vrot.slane %v7400, 1
      %v7450 = vsel %vm5692, %v7448, %v7449
      %v7471 = vadd.f32 %v7358, %v7423
      %v7472 = vadd.f32 %v7359, %v7422
      %v7473 = vadd.f32 %v7360, %v7426
      %v7474 = vadd.f32 %v7361, %v7425
      %v7475 = vadd.f32 %v7362, %v7429
      %v7476 = vadd.f32 %v7363, %v7428
      %v7477 = vadd.f32 %v7364, %v7432
      %v7478 = vadd.f32 %v7365, %v7431
      %v7479 = vadd.f32 %v7366, %v7435
      %v7480 = vadd.f32 %v7367, %v7434
      %v7481 = vadd.f32 %v7368, %v7438
      %v7482 = vadd.f32 %v7369, %v7437
      %v7483 = vadd.f32 %v7370, %v7441
      %v7484 = vadd.f32 %v7371, %v7440
      %v7485 = vadd.f32 %v7372, %v7444
      %v7486 = vadd.f32 %v7373, %v7443
      %v7487 = vadd.f32 %v7374, %v7447
      %v7488 = vadd.f32 %v7375, %v7446
      %v7489 = vadd.f32 %v7376, %v7450
      %v7490 = vadd.f32 %v7377, %v7449
      %s7491 = sadd.s32 %s5514, 704
      %s7492 = sld [smem:[#allocation8 + %s7491]]
      %v7493 = vstv %s7492
      %v7494 = vmul.f32 %v5418, %v7493
      %v7495 = vmul.f32 %v5419, %v7493
      %v7496 = vmul.f32 %v5420, %v7493
      %v7497 = vmul.f32 %v5421, %v7493
      %v7498 = vmul.f32 %v5422, %v7493
      %v7499 = vmul.f32 %v5423, %v7493
      %v7500 = vmul.f32 %v5424, %v7493
      %v7501 = vmul.f32 %v5425, %v7493
      %v7502 = vmul.f32 %v5426, %v7493
      %v7503 = vmul.f32 %v5427, %v7493
      %v7504 = vmul.f32 %v5428, %v7493
      %v7505 = vmul.f32 %v5429, %v7493
      %v7506 = vmul.f32 %v5430, %v7493
      %v7507 = vmul.f32 %v5431, %v7493
      %v7508 = vmul.f32 %v5432, %v7493
      %v7509 = vmul.f32 %v5433, %v7493
      %v7510 = vmul.f32 %v5434, %v7493
      %v7511 = vmul.f32 %v5435, %v7493
      %v7512 = vmul.f32 %v5436, %v7493
      %v7513 = vmul.f32 %v5437, %v7493
      %v7534 = vrot.slane %v7494, 1
      %v7535 = vrot.slane %v7495, 1
      %v7536 = vsel %vm5692, %v7534, %v7535
      %v7537 = vrot.slane %v7496, 1
      %v7538 = vrot.slane %v7497, 1
      %v7539 = vsel %vm5692, %v7537, %v7538
      %v7540 = vrot.slane %v7498, 1
      %v7541 = vrot.slane %v7499, 1
      %v7542 = vsel %vm5692, %v7540, %v7541
      %v7543 = vrot.slane %v7500, 1
      %v7544 = vrot.slane %v7501, 1
      %v7545 = vsel %vm5692, %v7543, %v7544
      %v7546 = vrot.slane %v7502, 1
      %v7547 = vrot.slane %v7503, 1
      %v7548 = vsel %vm5692, %v7546, %v7547
      %v7549 = vrot.slane %v7504, 1
      %v7550 = vrot.slane %v7505, 1
      %v7551 = vsel %vm5692, %v7549, %v7550
      %v7552 = vrot.slane %v7506, 1
      %v7553 = vrot.slane %v7507, 1
      %v7554 = vsel %vm5692, %v7552, %v7553
      %v7555 = vrot.slane %v7508, 1
      %v7556 = vrot.slane %v7509, 1
      %v7557 = vsel %vm5692, %v7555, %v7556
      %v7558 = vrot.slane %v7510, 1
      %v7559 = vrot.slane %v7511, 1
      %v7560 = vsel %vm5692, %v7558, %v7559
      %v7561 = vrot.slane %v7512, 1
      %v7562 = vrot.slane %v7513, 1
      %v7563 = vsel %vm5692, %v7561, %v7562
      %v7584 = vadd.f32 %v7471, %v7536
      %v7585 = vadd.f32 %v7472, %v7535
      %v7586 = vadd.f32 %v7473, %v7539
      %v7587 = vadd.f32 %v7474, %v7538
      %v7588 = vadd.f32 %v7475, %v7542
      %v7589 = vadd.f32 %v7476, %v7541
      %v7590 = vadd.f32 %v7477, %v7545
      %v7591 = vadd.f32 %v7478, %v7544
      %v7592 = vadd.f32 %v7479, %v7548
      %v7593 = vadd.f32 %v7480, %v7547
      %v7594 = vadd.f32 %v7481, %v7551
      %v7595 = vadd.f32 %v7482, %v7550
      %v7596 = vadd.f32 %v7483, %v7554
      %v7597 = vadd.f32 %v7484, %v7553
      %v7598 = vadd.f32 %v7485, %v7557
      %v7599 = vadd.f32 %v7486, %v7556
      %v7600 = vadd.f32 %v7487, %v7560
      %v7601 = vadd.f32 %v7488, %v7559
      %v7602 = vadd.f32 %v7489, %v7563
      %v7603 = vadd.f32 %v7490, %v7562
      %s7604 = sadd.s32 %s5514, 224
      %s7605 = sld [smem:[#allocation8 + %s7604]]
      %v7606 = vstv %s7605
      %v7607 = vmul.f32 %v5414, %v7606
      %v7608 = vmul.f32 %v5415, %v7606
      %v7609 = vmul.f32 %v5416, %v7606
      %v7610 = vmul.f32 %v5417, %v7606
      %v7611 = vmul.f32 %v5418, %v7606
      %v7612 = vmul.f32 %v5419, %v7606
      %v7613 = vmul.f32 %v5420, %v7606
      %v7614 = vmul.f32 %v5421, %v7606
      %v7615 = vmul.f32 %v5422, %v7606
      %v7616 = vmul.f32 %v5423, %v7606
      %v7617 = vmul.f32 %v5424, %v7606
      %v7618 = vmul.f32 %v5425, %v7606
      %v7619 = vmul.f32 %v5426, %v7606
      %v7620 = vmul.f32 %v5427, %v7606
      %v7621 = vmul.f32 %v5428, %v7606
      %v7622 = vmul.f32 %v5429, %v7606
      %v7623 = vmul.f32 %v5430, %v7606
      %v7624 = vmul.f32 %v5431, %v7606
      %v7625 = vmul.f32 %v5432, %v7606
      %v7626 = vmul.f32 %v5433, %v7606
      %v7647 = vrot.slane %v7607, 2
      %v7648 = vrot.slane %v7608, 2
      %v7649 = vsel %vm6032, %v7647, %v7648
      %v7650 = vrot.slane %v7609, 2
      %v7651 = vrot.slane %v7610, 2
      %v7652 = vsel %vm6032, %v7650, %v7651
      %v7653 = vrot.slane %v7611, 2
      %v7654 = vrot.slane %v7612, 2
      %v7655 = vsel %vm6032, %v7653, %v7654
      %v7656 = vrot.slane %v7613, 2
      %v7657 = vrot.slane %v7614, 2
      %v7658 = vsel %vm6032, %v7656, %v7657
      %v7659 = vrot.slane %v7615, 2
      %v7660 = vrot.slane %v7616, 2
      %v7661 = vsel %vm6032, %v7659, %v7660
      %v7662 = vrot.slane %v7617, 2
      %v7663 = vrot.slane %v7618, 2
      %v7664 = vsel %vm6032, %v7662, %v7663
      %v7665 = vrot.slane %v7619, 2
      %v7666 = vrot.slane %v7620, 2
      %v7667 = vsel %vm6032, %v7665, %v7666
      %v7668 = vrot.slane %v7621, 2
      %v7669 = vrot.slane %v7622, 2
      %v7670 = vsel %vm6032, %v7668, %v7669
      %v7671 = vrot.slane %v7623, 2
      %v7672 = vrot.slane %v7624, 2
      %v7673 = vsel %vm6032, %v7671, %v7672
      %v7674 = vrot.slane %v7625, 2
      %v7675 = vrot.slane %v7626, 2
      %v7676 = vsel %vm6032, %v7674, %v7675
      %v7697 = vadd.f32 %v7584, %v7649
      %v7698 = vadd.f32 %v7585, %v7648
      %v7699 = vadd.f32 %v7586, %v7652
      %v7700 = vadd.f32 %v7587, %v7651
      %v7701 = vadd.f32 %v7588, %v7655
      %v7702 = vadd.f32 %v7589, %v7654
      %v7703 = vadd.f32 %v7590, %v7658
      %v7704 = vadd.f32 %v7591, %v7657
      %v7705 = vadd.f32 %v7592, %v7661
      %v7706 = vadd.f32 %v7593, %v7660
      %v7707 = vadd.f32 %v7594, %v7664
      %v7708 = vadd.f32 %v7595, %v7663
      %v7709 = vadd.f32 %v7596, %v7667
      %v7710 = vadd.f32 %v7597, %v7666
      %v7711 = vadd.f32 %v7598, %v7670
      %v7712 = vadd.f32 %v7599, %v7669
      %v7713 = vadd.f32 %v7600, %v7673
      %v7714 = vadd.f32 %v7601, %v7672
      %v7715 = vadd.f32 %v7602, %v7676
      %v7716 = vadd.f32 %v7603, %v7675
      %s7717 = sadd.s32 %s5514, 512
      %s7718 = sld [smem:[#allocation8 + %s7717]]
      %v7719 = vstv %s7718
      %v7720 = vmul.f32 %v5416, %v7719
      %v7721 = vmul.f32 %v5417, %v7719
      %v7722 = vmul.f32 %v5418, %v7719
      %v7723 = vmul.f32 %v5419, %v7719
      %v7724 = vmul.f32 %v5420, %v7719
      %v7725 = vmul.f32 %v5421, %v7719
      %v7726 = vmul.f32 %v5422, %v7719
      %v7727 = vmul.f32 %v5423, %v7719
      %v7728 = vmul.f32 %v5424, %v7719
      %v7729 = vmul.f32 %v5425, %v7719
      %v7730 = vmul.f32 %v5426, %v7719
      %v7731 = vmul.f32 %v5427, %v7719
      %v7732 = vmul.f32 %v5428, %v7719
      %v7733 = vmul.f32 %v5429, %v7719
      %v7734 = vmul.f32 %v5430, %v7719
      %v7735 = vmul.f32 %v5431, %v7719
      %v7736 = vmul.f32 %v5432, %v7719
      %v7737 = vmul.f32 %v5433, %v7719
      %v7738 = vmul.f32 %v5434, %v7719
      %v7739 = vmul.f32 %v5435, %v7719
      %v7760 = vrot.slane %v7720, 2
      %v7761 = vrot.slane %v7721, 2
      %v7762 = vsel %vm6032, %v7760, %v7761
      %v7763 = vrot.slane %v7722, 2
      %v7764 = vrot.slane %v7723, 2
      %v7765 = vsel %vm6032, %v7763, %v7764
      %v7766 = vrot.slane %v7724, 2
      %v7767 = vrot.slane %v7725, 2
      %v7768 = vsel %vm6032, %v7766, %v7767
      %v7769 = vrot.slane %v7726, 2
      %v7770 = vrot.slane %v7727, 2
      %v7771 = vsel %vm6032, %v7769, %v7770
      %v7772 = vrot.slane %v7728, 2
      %v7773 = vrot.slane %v7729, 2
      %v7774 = vsel %vm6032, %v7772, %v7773
      %v7775 = vrot.slane %v7730, 2
      %v7776 = vrot.slane %v7731, 2
      %v7777 = vsel %vm6032, %v7775, %v7776
      %v7778 = vrot.slane %v7732, 2
      %v7779 = vrot.slane %v7733, 2
      %v7780 = vsel %vm6032, %v7778, %v7779
      %v7781 = vrot.slane %v7734, 2
      %v7782 = vrot.slane %v7735, 2
      %v7783 = vsel %vm6032, %v7781, %v7782
      %v7784 = vrot.slane %v7736, 2
      %v7785 = vrot.slane %v7737, 2
      %v7786 = vsel %vm6032, %v7784, %v7785
      %v7787 = vrot.slane %v7738, 2
      %v7788 = vrot.slane %v7739, 2
      %v7789 = vsel %vm6032, %v7787, %v7788
      %v7810 = vadd.f32 %v7697, %v7762
      %v7811 = vadd.f32 %v7698, %v7761
      %v7812 = vadd.f32 %v7699, %v7765
      %v7813 = vadd.f32 %v7700, %v7764
      %v7814 = vadd.f32 %v7701, %v7768
      %v7815 = vadd.f32 %v7702, %v7767
      %v7816 = vadd.f32 %v7703, %v7771
      %v7817 = vadd.f32 %v7704, %v7770
      %v7818 = vadd.f32 %v7705, %v7774
      %v7819 = vadd.f32 %v7706, %v7773
      %v7820 = vadd.f32 %v7707, %v7777
      %v7821 = vadd.f32 %v7708, %v7776
      %v7822 = vadd.f32 %v7709, %v7780
      %v7823 = vadd.f32 %v7710, %v7779
      %v7824 = vadd.f32 %v7711, %v7783
      %v7825 = vadd.f32 %v7712, %v7782
      %v7826 = vadd.f32 %v7713, %v7786
      %v7827 = vadd.f32 %v7714, %v7785
      %v7828 = vadd.f32 %v7715, %v7789
      %v7829 = vadd.f32 %v7716, %v7788
      %s7830 = sadd.s32 %s5514, 800
      %s7831 = sld [smem:[#allocation8 + %s7830]]
      %v7832 = vstv %s7831
      %v7833 = vmul.f32 %v5418, %v7832
      %v7834 = vmul.f32 %v5419, %v7832
      %v7835 = vmul.f32 %v5420, %v7832
      %v7836 = vmul.f32 %v5421, %v7832
      %v7837 = vmul.f32 %v5422, %v7832
      %v7838 = vmul.f32 %v5423, %v7832
      %v7839 = vmul.f32 %v5424, %v7832
      %v7840 = vmul.f32 %v5425, %v7832
      %v7841 = vmul.f32 %v5426, %v7832
      %v7842 = vmul.f32 %v5427, %v7832
      %v7843 = vmul.f32 %v5428, %v7832
      %v7844 = vmul.f32 %v5429, %v7832
      %v7845 = vmul.f32 %v5430, %v7832
      %v7846 = vmul.f32 %v5431, %v7832
      %v7847 = vmul.f32 %v5432, %v7832
      %v7848 = vmul.f32 %v5433, %v7832
      %v7849 = vmul.f32 %v5434, %v7832
      %v7850 = vmul.f32 %v5435, %v7832
      %v7851 = vmul.f32 %v5436, %v7832
      %v7852 = vmul.f32 %v5437, %v7832
      %v7873 = vrot.slane %v7833, 2
      %v7874 = vrot.slane %v7834, 2
      %v7875 = vsel %vm6032, %v7873, %v7874
      %v7876 = vrot.slane %v7835, 2
      %v7877 = vrot.slane %v7836, 2
      %v7878 = vsel %vm6032, %v7876, %v7877
      %v7879 = vrot.slane %v7837, 2
      %v7880 = vrot.slane %v7838, 2
      %v7881 = vsel %vm6032, %v7879, %v7880
      %v7882 = vrot.slane %v7839, 2
      %v7883 = vrot.slane %v7840, 2
      %v7884 = vsel %vm6032, %v7882, %v7883
      %v7885 = vrot.slane %v7841, 2
      %v7886 = vrot.slane %v7842, 2
      %v7887 = vsel %vm6032, %v7885, %v7886
      %v7888 = vrot.slane %v7843, 2
      %v7889 = vrot.slane %v7844, 2
      %v7890 = vsel %vm6032, %v7888, %v7889
      %v7891 = vrot.slane %v7845, 2
      %v7892 = vrot.slane %v7846, 2
      %v7893 = vsel %vm6032, %v7891, %v7892
      %v7894 = vrot.slane %v7847, 2
      %v7895 = vrot.slane %v7848, 2
      %v7896 = vsel %vm6032, %v7894, %v7895
      %v7897 = vrot.slane %v7849, 2
      %v7898 = vrot.slane %v7850, 2
      %v7899 = vsel %vm6032, %v7897, %v7898
      %v7900 = vrot.slane %v7851, 2
      %v7901 = vrot.slane %v7852, 2
      %v7902 = vsel %vm6032, %v7900, %v7901
      %v7923 = vadd.f32 %v7810, %v7875
      %v7924 = vadd.f32 %v7811, %v7874
      %v7925 = vadd.f32 %v7812, %v7878
      %v7926 = vadd.f32 %v7813, %v7877
      %v7927 = vadd.f32 %v7814, %v7881
      %v7928 = vadd.f32 %v7815, %v7880
      %v7929 = vadd.f32 %v7816, %v7884
      %v7930 = vadd.f32 %v7817, %v7883
      %v7931 = vadd.f32 %v7818, %v7887
      %v7932 = vadd.f32 %v7819, %v7886
      %v7933 = vadd.f32 %v7820, %v7890
      %v7934 = vadd.f32 %v7821, %v7889
      %v7935 = vadd.f32 %v7822, %v7893
      %v7936 = vadd.f32 %v7823, %v7892
      %v7937 = vadd.f32 %v7824, %v7896
      %v7938 = vadd.f32 %v7825, %v7895
      %v7939 = vadd.f32 %v7826, %v7899
      %v7940 = vadd.f32 %v7827, %v7898
      %v7941 = vadd.f32 %v7828, %v7902
      %v7942 = vadd.f32 %v7829, %v7901
      %s7943 = sadd.s32 %s5514, 48
      %s7944 = sld [smem:[#allocation8 + %s7943]]
      %v7945 = vstv %s7944
      %v7946 = vmul.f32 %v5439, %v7945
      %v7947 = vmul.f32 %v5440, %v7945
      %v7948 = vmul.f32 %v5441, %v7945
      %v7949 = vmul.f32 %v5442, %v7945
      %v7950 = vmul.f32 %v5443, %v7945
      %v7951 = vmul.f32 %v5444, %v7945
      %v7952 = vmul.f32 %v5445, %v7945
      %v7953 = vmul.f32 %v5446, %v7945
      %v7954 = vmul.f32 %v5447, %v7945
      %v7955 = vmul.f32 %v5448, %v7945
      %v7956 = vmul.f32 %v5449, %v7945
      %v7957 = vmul.f32 %v5450, %v7945
      %v7958 = vmul.f32 %v5451, %v7945
      %v7959 = vmul.f32 %v5452, %v7945
      %v7960 = vmul.f32 %v5453, %v7945
      %v7961 = vmul.f32 %v5454, %v7945
      %v7962 = vmul.f32 %v5455, %v7945
      %v7963 = vmul.f32 %v5456, %v7945
      %v7964 = vmul.f32 %v5457, %v7945
      %v7965 = vmul.f32 %v5458, %v7945
      %v7966 = vadd.f32 %v7923, %v7946
      %v7967 = vadd.f32 %v7924, %v7947
      %v7968 = vadd.f32 %v7925, %v7948
      %v7969 = vadd.f32 %v7926, %v7949
      %v7970 = vadd.f32 %v7927, %v7950
      %v7971 = vadd.f32 %v7928, %v7951
      %v7972 = vadd.f32 %v7929, %v7952
      %v7973 = vadd.f32 %v7930, %v7953
      %v7974 = vadd.f32 %v7931, %v7954
      %v7975 = vadd.f32 %v7932, %v7955
      %v7976 = vadd.f32 %v7933, %v7956
      %v7977 = vadd.f32 %v7934, %v7957
      %v7978 = vadd.f32 %v7935, %v7958
      %v7979 = vadd.f32 %v7936, %v7959
      %v7980 = vadd.f32 %v7937, %v7960
      %v7981 = vadd.f32 %v7938, %v7961
      %v7982 = vadd.f32 %v7939, %v7962
      %v7983 = vadd.f32 %v7940, %v7963
      %v7984 = vadd.f32 %v7941, %v7964
      %v7985 = vadd.f32 %v7942, %v7965
      %s7986 = sadd.s32 %s5514, 336
      %s7987 = sld [smem:[#allocation8 + %s7986]]
      %v7988 = vstv %s7987
      %v7989 = vmul.f32 %v5441, %v7988
      %v7990 = vmul.f32 %v5442, %v7988
      %v7991 = vmul.f32 %v5443, %v7988
      %v7992 = vmul.f32 %v5444, %v7988
      %v7993 = vmul.f32 %v5445, %v7988
      %v7994 = vmul.f32 %v5446, %v7988
      %v7995 = vmul.f32 %v5447, %v7988
      %v7996 = vmul.f32 %v5448, %v7988
      %v7997 = vmul.f32 %v5449, %v7988
      %v7998 = vmul.f32 %v5450, %v7988
      %v7999 = vmul.f32 %v5451, %v7988
      %v8000 = vmul.f32 %v5452, %v7988
      %v8001 = vmul.f32 %v5453, %v7988
      %v8002 = vmul.f32 %v5454, %v7988
      %v8003 = vmul.f32 %v5455, %v7988
      %v8004 = vmul.f32 %v5456, %v7988
      %v8005 = vmul.f32 %v5457, %v7988
      %v8006 = vmul.f32 %v5458, %v7988
      %v8007 = vmul.f32 %v5459, %v7988
      %v8008 = vmul.f32 %v5460, %v7988
      %v8009 = vadd.f32 %v7966, %v7989
      %v8010 = vadd.f32 %v7967, %v7990
      %v8011 = vadd.f32 %v7968, %v7991
      %v8012 = vadd.f32 %v7969, %v7992
      %v8013 = vadd.f32 %v7970, %v7993
      %v8014 = vadd.f32 %v7971, %v7994
      %v8015 = vadd.f32 %v7972, %v7995
      %v8016 = vadd.f32 %v7973, %v7996
      %v8017 = vadd.f32 %v7974, %v7997
      %v8018 = vadd.f32 %v7975, %v7998
      %v8019 = vadd.f32 %v7976, %v7999
      %v8020 = vadd.f32 %v7977, %v8000
      %v8021 = vadd.f32 %v7978, %v8001
      %v8022 = vadd.f32 %v7979, %v8002
      %v8023 = vadd.f32 %v7980, %v8003
      %v8024 = vadd.f32 %v7981, %v8004
      %v8025 = vadd.f32 %v7982, %v8005
      %v8026 = vadd.f32 %v7983, %v8006
      %v8027 = vadd.f32 %v7984, %v8007
      %v8028 = vadd.f32 %v7985, %v8008
      %s8029 = sadd.s32 %s5514, 624
      %s8030 = sld [smem:[#allocation8 + %s8029]]
      %v8031 = vstv %s8030
      %v8032 = vmul.f32 %v5443, %v8031
      %v8033 = vmul.f32 %v5444, %v8031
      %v8034 = vmul.f32 %v5445, %v8031
      %v8035 = vmul.f32 %v5446, %v8031
      %v8036 = vmul.f32 %v5447, %v8031
      %v8037 = vmul.f32 %v5448, %v8031
      %v8038 = vmul.f32 %v5449, %v8031
      %v8039 = vmul.f32 %v5450, %v8031
      %v8040 = vmul.f32 %v5451, %v8031
      %v8041 = vmul.f32 %v5452, %v8031
      %v8042 = vmul.f32 %v5453, %v8031
      %v8043 = vmul.f32 %v5454, %v8031
      %v8044 = vmul.f32 %v5455, %v8031
      %v8045 = vmul.f32 %v5456, %v8031
      %v8046 = vmul.f32 %v5457, %v8031
      %v8047 = vmul.f32 %v5458, %v8031
      %v8048 = vmul.f32 %v5459, %v8031
      %v8049 = vmul.f32 %v5460, %v8031
      %v8050 = vmul.f32 %v5461, %v8031
      %v8051 = vmul.f32 %v5462, %v8031
      %v8052 = vadd.f32 %v8009, %v8032
      %v8053 = vadd.f32 %v8010, %v8033
      %v8054 = vadd.f32 %v8011, %v8034
      %v8055 = vadd.f32 %v8012, %v8035
      %v8056 = vadd.f32 %v8013, %v8036
      %v8057 = vadd.f32 %v8014, %v8037
      %v8058 = vadd.f32 %v8015, %v8038
      %v8059 = vadd.f32 %v8016, %v8039
      %v8060 = vadd.f32 %v8017, %v8040
      %v8061 = vadd.f32 %v8018, %v8041
      %v8062 = vadd.f32 %v8019, %v8042
      %v8063 = vadd.f32 %v8020, %v8043
      %v8064 = vadd.f32 %v8021, %v8044
      %v8065 = vadd.f32 %v8022, %v8045
      %v8066 = vadd.f32 %v8023, %v8046
      %v8067 = vadd.f32 %v8024, %v8047
      %v8068 = vadd.f32 %v8025, %v8048
      %v8069 = vadd.f32 %v8026, %v8049
      %v8070 = vadd.f32 %v8027, %v8050
      %v8071 = vadd.f32 %v8028, %v8051
      %s8072 = sadd.s32 %s5514, 144
      %s8073 = sld [smem:[#allocation8 + %s8072]]
      %v8074 = vstv %s8073
      %v8075 = vmul.f32 %v5439, %v8074
      %v8076 = vmul.f32 %v5440, %v8074
      %v8077 = vmul.f32 %v5441, %v8074
      %v8078 = vmul.f32 %v5442, %v8074
      %v8079 = vmul.f32 %v5443, %v8074
      %v8080 = vmul.f32 %v5444, %v8074
      %v8081 = vmul.f32 %v5445, %v8074
      %v8082 = vmul.f32 %v5446, %v8074
      %v8083 = vmul.f32 %v5447, %v8074
      %v8084 = vmul.f32 %v5448, %v8074
      %v8085 = vmul.f32 %v5449, %v8074
      %v8086 = vmul.f32 %v5450, %v8074
      %v8087 = vmul.f32 %v5451, %v8074
      %v8088 = vmul.f32 %v5452, %v8074
      %v8089 = vmul.f32 %v5453, %v8074
      %v8090 = vmul.f32 %v5454, %v8074
      %v8091 = vmul.f32 %v5455, %v8074
      %v8092 = vmul.f32 %v5456, %v8074
      %v8093 = vmul.f32 %v5457, %v8074
      %v8094 = vmul.f32 %v5458, %v8074
      %v8115 = vrot.slane %v8075, 1
      %v8116 = vrot.slane %v8076, 1
      %v8117 = vsel %vm5692, %v8115, %v8116
      %v8118 = vrot.slane %v8077, 1
      %v8119 = vrot.slane %v8078, 1
      %v8120 = vsel %vm5692, %v8118, %v8119
      %v8121 = vrot.slane %v8079, 1
      %v8122 = vrot.slane %v8080, 1
      %v8123 = vsel %vm5692, %v8121, %v8122
      %v8124 = vrot.slane %v8081, 1
      %v8125 = vrot.slane %v8082, 1
      %v8126 = vsel %vm5692, %v8124, %v8125
      %v8127 = vrot.slane %v8083, 1
      %v8128 = vrot.slane %v8084, 1
      %v8129 = vsel %vm5692, %v8127, %v8128
      %v8130 = vrot.slane %v8085, 1
      %v8131 = vrot.slane %v8086, 1
      %v8132 = vsel %vm5692, %v8130, %v8131
      %v8133 = vrot.slane %v8087, 1
      %v8134 = vrot.slane %v8088, 1
      %v8135 = vsel %vm5692, %v8133, %v8134
      %v8136 = vrot.slane %v8089, 1
      %v8137 = vrot.slane %v8090, 1
      %v8138 = vsel %vm5692, %v8136, %v8137
      %v8139 = vrot.slane %v8091, 1
      %v8140 = vrot.slane %v8092, 1
      %v8141 = vsel %vm5692, %v8139, %v8140
      %v8142 = vrot.slane %v8093, 1
      %v8143 = vrot.slane %v8094, 1
      %v8144 = vsel %vm5692, %v8142, %v8143
      %v8165 = vadd.f32 %v8052, %v8117
      %v8166 = vadd.f32 %v8053, %v8116
      %v8167 = vadd.f32 %v8054, %v8120
      %v8168 = vadd.f32 %v8055, %v8119
      %v8169 = vadd.f32 %v8056, %v8123
      %v8170 = vadd.f32 %v8057, %v8122
      %v8171 = vadd.f32 %v8058, %v8126
      %v8172 = vadd.f32 %v8059, %v8125
      %v8173 = vadd.f32 %v8060, %v8129
      %v8174 = vadd.f32 %v8061, %v8128
      %v8175 = vadd.f32 %v8062, %v8132
      %v8176 = vadd.f32 %v8063, %v8131
      %v8177 = vadd.f32 %v8064, %v8135
      %v8178 = vadd.f32 %v8065, %v8134
      %v8179 = vadd.f32 %v8066, %v8138
      %v8180 = vadd.f32 %v8067, %v8137
      %v8181 = vadd.f32 %v8068, %v8141
      %v8182 = vadd.f32 %v8069, %v8140
      %v8183 = vadd.f32 %v8070, %v8144
      %v8184 = vadd.f32 %v8071, %v8143
      %s8185 = sadd.s32 %s5514, 432
      %s8186 = sld [smem:[#allocation8 + %s8185]]
      %v8187 = vstv %s8186
      %v8188 = vmul.f32 %v5441, %v8187
      %v8189 = vmul.f32 %v5442, %v8187
      %v8190 = vmul.f32 %v5443, %v8187
      %v8191 = vmul.f32 %v5444, %v8187
      %v8192 = vmul.f32 %v5445, %v8187
      %v8193 = vmul.f32 %v5446, %v8187
      %v8194 = vmul.f32 %v5447, %v8187
      %v8195 = vmul.f32 %v5448, %v8187
      %v8196 = vmul.f32 %v5449, %v8187
      %v8197 = vmul.f32 %v5450, %v8187
      %v8198 = vmul.f32 %v5451, %v8187
      %v8199 = vmul.f32 %v5452, %v8187
      %v8200 = vmul.f32 %v5453, %v8187
      %v8201 = vmul.f32 %v5454, %v8187
      %v8202 = vmul.f32 %v5455, %v8187
      %v8203 = vmul.f32 %v5456, %v8187
      %v8204 = vmul.f32 %v5457, %v8187
      %v8205 = vmul.f32 %v5458, %v8187
      %v8206 = vmul.f32 %v5459, %v8187
      %v8207 = vmul.f32 %v5460, %v8187
      %v8228 = vrot.slane %v8188, 1
      %v8229 = vrot.slane %v8189, 1
      %v8230 = vsel %vm5692, %v8228, %v8229
      %v8231 = vrot.slane %v8190, 1
      %v8232 = vrot.slane %v8191, 1
      %v8233 = vsel %vm5692, %v8231, %v8232
      %v8234 = vrot.slane %v8192, 1
      %v8235 = vrot.slane %v8193, 1
      %v8236 = vsel %vm5692, %v8234, %v8235
      %v8237 = vrot.slane %v8194, 1
      %v8238 = vrot.slane %v8195, 1
      %v8239 = vsel %vm5692, %v8237, %v8238
      %v8240 = vrot.slane %v8196, 1
      %v8241 = vrot.slane %v8197, 1
      %v8242 = vsel %vm5692, %v8240, %v8241
      %v8243 = vrot.slane %v8198, 1
      %v8244 = vrot.slane %v8199, 1
      %v8245 = vsel %vm5692, %v8243, %v8244
      %v8246 = vrot.slane %v8200, 1
      %v8247 = vrot.slane %v8201, 1
      %v8248 = vsel %vm5692, %v8246, %v8247
      %v8249 = vrot.slane %v8202, 1
      %v8250 = vrot.slane %v8203, 1
      %v8251 = vsel %vm5692, %v8249, %v8250
      %v8252 = vrot.slane %v8204, 1
      %v8253 = vrot.slane %v8205, 1
      %v8254 = vsel %vm5692, %v8252, %v8253
      %v8255 = vrot.slane %v8206, 1
      %v8256 = vrot.slane %v8207, 1
      %v8257 = vsel %vm5692, %v8255, %v8256
      %v8278 = vadd.f32 %v8165, %v8230
      %v8279 = vadd.f32 %v8166, %v8229
      %v8280 = vadd.f32 %v8167, %v8233
      %v8281 = vadd.f32 %v8168, %v8232
      %v8282 = vadd.f32 %v8169, %v8236
      %v8283 = vadd.f32 %v8170, %v8235
      %v8284 = vadd.f32 %v8171, %v8239
      %v8285 = vadd.f32 %v8172, %v8238
      %v8286 = vadd.f32 %v8173, %v8242
      %v8287 = vadd.f32 %v8174, %v8241
      %v8288 = vadd.f32 %v8175, %v8245
      %v8289 = vadd.f32 %v8176, %v8244
      %v8290 = vadd.f32 %v8177, %v8248
      %v8291 = vadd.f32 %v8178, %v8247
      %v8292 = vadd.f32 %v8179, %v8251
      %v8293 = vadd.f32 %v8180, %v8250
      %v8294 = vadd.f32 %v8181, %v8254
      %v8295 = vadd.f32 %v8182, %v8253
      %v8296 = vadd.f32 %v8183, %v8257
      %v8297 = vadd.f32 %v8184, %v8256
      %s8298 = sadd.s32 %s5514, 720
      %s8299 = sld [smem:[#allocation8 + %s8298]]
      %v8300 = vstv %s8299
      %v8301 = vmul.f32 %v5443, %v8300
      %v8302 = vmul.f32 %v5444, %v8300
      %v8303 = vmul.f32 %v5445, %v8300
      %v8304 = vmul.f32 %v5446, %v8300
      %v8305 = vmul.f32 %v5447, %v8300
      %v8306 = vmul.f32 %v5448, %v8300
      %v8307 = vmul.f32 %v5449, %v8300
      %v8308 = vmul.f32 %v5450, %v8300
      %v8309 = vmul.f32 %v5451, %v8300
      %v8310 = vmul.f32 %v5452, %v8300
      %v8311 = vmul.f32 %v5453, %v8300
      %v8312 = vmul.f32 %v5454, %v8300
      %v8313 = vmul.f32 %v5455, %v8300
      %v8314 = vmul.f32 %v5456, %v8300
      %v8315 = vmul.f32 %v5457, %v8300
      %v8316 = vmul.f32 %v5458, %v8300
      %v8317 = vmul.f32 %v5459, %v8300
      %v8318 = vmul.f32 %v5460, %v8300
      %v8319 = vmul.f32 %v5461, %v8300
      %v8320 = vmul.f32 %v5462, %v8300
      %v8341 = vrot.slane %v8301, 1
      %v8342 = vrot.slane %v8302, 1
      %v8343 = vsel %vm5692, %v8341, %v8342
      %v8344 = vrot.slane %v8303, 1
      %v8345 = vrot.slane %v8304, 1
      %v8346 = vsel %vm5692, %v8344, %v8345
      %v8347 = vrot.slane %v8305, 1
      %v8348 = vrot.slane %v8306, 1
      %v8349 = vsel %vm5692, %v8347, %v8348
      %v8350 = vrot.slane %v8307, 1
      %v8351 = vrot.slane %v8308, 1
      %v8352 = vsel %vm5692, %v8350, %v8351
      %v8353 = vrot.slane %v8309, 1
      %v8354 = vrot.slane %v8310, 1
      %v8355 = vsel %vm5692, %v8353, %v8354
      %v8356 = vrot.slane %v8311, 1
      %v8357 = vrot.slane %v8312, 1
      %v8358 = vsel %vm5692, %v8356, %v8357
      %v8359 = vrot.slane %v8313, 1
      %v8360 = vrot.slane %v8314, 1
      %v8361 = vsel %vm5692, %v8359, %v8360
      %v8362 = vrot.slane %v8315, 1
      %v8363 = vrot.slane %v8316, 1
      %v8364 = vsel %vm5692, %v8362, %v8363
      %v8365 = vrot.slane %v8317, 1
      %v8366 = vrot.slane %v8318, 1
      %v8367 = vsel %vm5692, %v8365, %v8366
      %v8368 = vrot.slane %v8319, 1
      %v8369 = vrot.slane %v8320, 1
      %v8370 = vsel %vm5692, %v8368, %v8369
      %v8391 = vadd.f32 %v8278, %v8343
      %v8392 = vadd.f32 %v8279, %v8342
      %v8393 = vadd.f32 %v8280, %v8346
      %v8394 = vadd.f32 %v8281, %v8345
      %v8395 = vadd.f32 %v8282, %v8349
      %v8396 = vadd.f32 %v8283, %v8348
      %v8397 = vadd.f32 %v8284, %v8352
      %v8398 = vadd.f32 %v8285, %v8351
      %v8399 = vadd.f32 %v8286, %v8355
      %v8400 = vadd.f32 %v8287, %v8354
      %v8401 = vadd.f32 %v8288, %v8358
      %v8402 = vadd.f32 %v8289, %v8357
      %v8403 = vadd.f32 %v8290, %v8361
      %v8404 = vadd.f32 %v8291, %v8360
      %v8405 = vadd.f32 %v8292, %v8364
      %v8406 = vadd.f32 %v8293, %v8363
      %v8407 = vadd.f32 %v8294, %v8367
      %v8408 = vadd.f32 %v8295, %v8366
      %v8409 = vadd.f32 %v8296, %v8370
      %v8410 = vadd.f32 %v8297, %v8369
      %s8411 = sadd.s32 %s5514, 240
      %s8412 = sld [smem:[#allocation8 + %s8411]]
      %v8413 = vstv %s8412
      %v8414 = vmul.f32 %v5439, %v8413
      %v8415 = vmul.f32 %v5440, %v8413
      %v8416 = vmul.f32 %v5441, %v8413
      %v8417 = vmul.f32 %v5442, %v8413
      %v8418 = vmul.f32 %v5443, %v8413
      %v8419 = vmul.f32 %v5444, %v8413
      %v8420 = vmul.f32 %v5445, %v8413
      %v8421 = vmul.f32 %v5446, %v8413
      %v8422 = vmul.f32 %v5447, %v8413
      %v8423 = vmul.f32 %v5448, %v8413
      %v8424 = vmul.f32 %v5449, %v8413
      %v8425 = vmul.f32 %v5450, %v8413
      %v8426 = vmul.f32 %v5451, %v8413
      %v8427 = vmul.f32 %v5452, %v8413
      %v8428 = vmul.f32 %v5453, %v8413
      %v8429 = vmul.f32 %v5454, %v8413
      %v8430 = vmul.f32 %v5455, %v8413
      %v8431 = vmul.f32 %v5456, %v8413
      %v8432 = vmul.f32 %v5457, %v8413
      %v8433 = vmul.f32 %v5458, %v8413
      %v8454 = vrot.slane %v8414, 2
      %v8455 = vrot.slane %v8415, 2
      %v8456 = vsel %vm6032, %v8454, %v8455
      %v8457 = vrot.slane %v8416, 2
      %v8458 = vrot.slane %v8417, 2
      %v8459 = vsel %vm6032, %v8457, %v8458
      %v8460 = vrot.slane %v8418, 2
      %v8461 = vrot.slane %v8419, 2
      %v8462 = vsel %vm6032, %v8460, %v8461
      %v8463 = vrot.slane %v8420, 2
      %v8464 = vrot.slane %v8421, 2
      %v8465 = vsel %vm6032, %v8463, %v8464
      %v8466 = vrot.slane %v8422, 2
      %v8467 = vrot.slane %v8423, 2
      %v8468 = vsel %vm6032, %v8466, %v8467
      %v8469 = vrot.slane %v8424, 2
      %v8470 = vrot.slane %v8425, 2
      %v8471 = vsel %vm6032, %v8469, %v8470
      %v8472 = vrot.slane %v8426, 2
      %v8473 = vrot.slane %v8427, 2
      %v8474 = vsel %vm6032, %v8472, %v8473
      %v8475 = vrot.slane %v8428, 2
      %v8476 = vrot.slane %v8429, 2
      %v8477 = vsel %vm6032, %v8475, %v8476
      %v8478 = vrot.slane %v8430, 2
      %v8479 = vrot.slane %v8431, 2
      %v8480 = vsel %vm6032, %v8478, %v8479
      %v8481 = vrot.slane %v8432, 2
      %v8482 = vrot.slane %v8433, 2
      %v8483 = vsel %vm6032, %v8481, %v8482
      %v8504 = vadd.f32 %v8391, %v8456
      %v8505 = vadd.f32 %v8392, %v8455
      %v8506 = vadd.f32 %v8393, %v8459
      %v8507 = vadd.f32 %v8394, %v8458
      %v8508 = vadd.f32 %v8395, %v8462
      %v8509 = vadd.f32 %v8396, %v8461
      %v8510 = vadd.f32 %v8397, %v8465
      %v8511 = vadd.f32 %v8398, %v8464
      %v8512 = vadd.f32 %v8399, %v8468
      %v8513 = vadd.f32 %v8400, %v8467
      %v8514 = vadd.f32 %v8401, %v8471
      %v8515 = vadd.f32 %v8402, %v8470
      %v8516 = vadd.f32 %v8403, %v8474
      %v8517 = vadd.f32 %v8404, %v8473
      %v8518 = vadd.f32 %v8405, %v8477
      %v8519 = vadd.f32 %v8406, %v8476
      %v8520 = vadd.f32 %v8407, %v8480
      %v8521 = vadd.f32 %v8408, %v8479
      %v8522 = vadd.f32 %v8409, %v8483
      %v8523 = vadd.f32 %v8410, %v8482
      %s8524 = sadd.s32 %s5514, 528
      %s8525 = sld [smem:[#allocation8 + %s8524]]
      %v8526 = vstv %s8525
      %v8527 = vmul.f32 %v5441, %v8526
      %v8528 = vmul.f32 %v5442, %v8526
      %v8529 = vmul.f32 %v5443, %v8526
      %v8530 = vmul.f32 %v5444, %v8526
      %v8531 = vmul.f32 %v5445, %v8526
      %v8532 = vmul.f32 %v5446, %v8526
      %v8533 = vmul.f32 %v5447, %v8526
      %v8534 = vmul.f32 %v5448, %v8526
      %v8535 = vmul.f32 %v5449, %v8526
      %v8536 = vmul.f32 %v5450, %v8526
      %v8537 = vmul.f32 %v5451, %v8526
      %v8538 = vmul.f32 %v5452, %v8526
      %v8539 = vmul.f32 %v5453, %v8526
      %v8540 = vmul.f32 %v5454, %v8526
      %v8541 = vmul.f32 %v5455, %v8526
      %v8542 = vmul.f32 %v5456, %v8526
      %v8543 = vmul.f32 %v5457, %v8526
      %v8544 = vmul.f32 %v5458, %v8526
      %v8545 = vmul.f32 %v5459, %v8526
      %v8546 = vmul.f32 %v5460, %v8526
      %v8567 = vrot.slane %v8527, 2
      %v8568 = vrot.slane %v8528, 2
      %v8569 = vsel %vm6032, %v8567, %v8568
      %v8570 = vrot.slane %v8529, 2
      %v8571 = vrot.slane %v8530, 2
      %v8572 = vsel %vm6032, %v8570, %v8571
      %v8573 = vrot.slane %v8531, 2
      %v8574 = vrot.slane %v8532, 2
      %v8575 = vsel %vm6032, %v8573, %v8574
      %v8576 = vrot.slane %v8533, 2
      %v8577 = vrot.slane %v8534, 2
      %v8578 = vsel %vm6032, %v8576, %v8577
      %v8579 = vrot.slane %v8535, 2
      %v8580 = vrot.slane %v8536, 2
      %v8581 = vsel %vm6032, %v8579, %v8580
      %v8582 = vrot.slane %v8537, 2
      %v8583 = vrot.slane %v8538, 2
      %v8584 = vsel %vm6032, %v8582, %v8583
      %v8585 = vrot.slane %v8539, 2
      %v8586 = vrot.slane %v8540, 2
      %v8587 = vsel %vm6032, %v8585, %v8586
      %v8588 = vrot.slane %v8541, 2
      %v8589 = vrot.slane %v8542, 2
      %v8590 = vsel %vm6032, %v8588, %v8589
      %v8591 = vrot.slane %v8543, 2
      %v8592 = vrot.slane %v8544, 2
      %v8593 = vsel %vm6032, %v8591, %v8592
      %v8594 = vrot.slane %v8545, 2
      %v8595 = vrot.slane %v8546, 2
      %v8596 = vsel %vm6032, %v8594, %v8595
      %v8617 = vadd.f32 %v8504, %v8569
      %v8618 = vadd.f32 %v8505, %v8568
      %v8619 = vadd.f32 %v8506, %v8572
      %v8620 = vadd.f32 %v8507, %v8571
      %v8621 = vadd.f32 %v8508, %v8575
      %v8622 = vadd.f32 %v8509, %v8574
      %v8623 = vadd.f32 %v8510, %v8578
      %v8624 = vadd.f32 %v8511, %v8577
      %v8625 = vadd.f32 %v8512, %v8581
      %v8626 = vadd.f32 %v8513, %v8580
      %v8627 = vadd.f32 %v8514, %v8584
      %v8628 = vadd.f32 %v8515, %v8583
      %v8629 = vadd.f32 %v8516, %v8587
      %v8630 = vadd.f32 %v8517, %v8586
      %v8631 = vadd.f32 %v8518, %v8590
      %v8632 = vadd.f32 %v8519, %v8589
      %v8633 = vadd.f32 %v8520, %v8593
      %v8634 = vadd.f32 %v8521, %v8592
      %v8635 = vadd.f32 %v8522, %v8596
      %v8636 = vadd.f32 %v8523, %v8595
      %s8637 = sadd.s32 %s5514, 816
      %s8638 = sld [smem:[#allocation8 + %s8637]]
      %v8639 = vstv %s8638
      %v8640 = vmul.f32 %v5443, %v8639
      %v8641 = vmul.f32 %v5444, %v8639
      %v8642 = vmul.f32 %v5445, %v8639
      %v8643 = vmul.f32 %v5446, %v8639
      %v8644 = vmul.f32 %v5447, %v8639
      %v8645 = vmul.f32 %v5448, %v8639
      %v8646 = vmul.f32 %v5449, %v8639
      %v8647 = vmul.f32 %v5450, %v8639
      %v8648 = vmul.f32 %v5451, %v8639
      %v8649 = vmul.f32 %v5452, %v8639
      %v8650 = vmul.f32 %v5453, %v8639
      %v8651 = vmul.f32 %v5454, %v8639
      %v8652 = vmul.f32 %v5455, %v8639
      %v8653 = vmul.f32 %v5456, %v8639
      %v8654 = vmul.f32 %v5457, %v8639
      %v8655 = vmul.f32 %v5458, %v8639
      %v8656 = vmul.f32 %v5459, %v8639
      %v8657 = vmul.f32 %v5460, %v8639
      %v8658 = vmul.f32 %v5461, %v8639
      %v8659 = vmul.f32 %v5462, %v8639
      %v8680 = vrot.slane %v8640, 2
      %v8681 = vrot.slane %v8641, 2
      %v8682 = vsel %vm6032, %v8680, %v8681
      %v8683 = vrot.slane %v8642, 2
      %v8684 = vrot.slane %v8643, 2
      %v8685 = vsel %vm6032, %v8683, %v8684
      %v8686 = vrot.slane %v8644, 2
      %v8687 = vrot.slane %v8645, 2
      %v8688 = vsel %vm6032, %v8686, %v8687
      %v8689 = vrot.slane %v8646, 2
      %v8690 = vrot.slane %v8647, 2
      %v8691 = vsel %vm6032, %v8689, %v8690
      %v8692 = vrot.slane %v8648, 2
      %v8693 = vrot.slane %v8649, 2
      %v8694 = vsel %vm6032, %v8692, %v8693
      %v8695 = vrot.slane %v8650, 2
      %v8696 = vrot.slane %v8651, 2
      %v8697 = vsel %vm6032, %v8695, %v8696
      %v8698 = vrot.slane %v8652, 2
      %v8699 = vrot.slane %v8653, 2
      %v8700 = vsel %vm6032, %v8698, %v8699
      %v8701 = vrot.slane %v8654, 2
      %v8702 = vrot.slane %v8655, 2
      %v8703 = vsel %vm6032, %v8701, %v8702
      %v8704 = vrot.slane %v8656, 2
      %v8705 = vrot.slane %v8657, 2
      %v8706 = vsel %vm6032, %v8704, %v8705
      %v8707 = vrot.slane %v8658, 2
      %v8708 = vrot.slane %v8659, 2
      %v8709 = vsel %vm6032, %v8707, %v8708
      %v8730 = vadd.f32 %v8617, %v8682
      %v8731 = vadd.f32 %v8618, %v8681
      %v8732 = vadd.f32 %v8619, %v8685
      %v8733 = vadd.f32 %v8620, %v8684
      %v8734 = vadd.f32 %v8621, %v8688
      %v8735 = vadd.f32 %v8622, %v8687
      %v8736 = vadd.f32 %v8623, %v8691
      %v8737 = vadd.f32 %v8624, %v8690
      %v8738 = vadd.f32 %v8625, %v8694
      %v8739 = vadd.f32 %v8626, %v8693
      %v8740 = vadd.f32 %v8627, %v8697
      %v8741 = vadd.f32 %v8628, %v8696
      %v8742 = vadd.f32 %v8629, %v8700
      %v8743 = vadd.f32 %v8630, %v8699
      %v8744 = vadd.f32 %v8631, %v8703
      %v8745 = vadd.f32 %v8632, %v8702
      %v8746 = vadd.f32 %v8633, %v8706
      %v8747 = vadd.f32 %v8634, %v8705
      %v8748 = vadd.f32 %v8635, %v8709
      %v8749 = vadd.f32 %v8636, %v8708
      %s8750 = sadd.s32 %s5514, 64
      %s8751 = sld [smem:[#allocation8 + %s8750]]
      %v8752 = vstv %s8751
      %v8753 = vmul.f32 %v5464, %v8752
      %v8754 = vmul.f32 %v5465, %v8752
      %v8755 = vmul.f32 %v5466, %v8752
      %v8756 = vmul.f32 %v5467, %v8752
      %v8757 = vmul.f32 %v5468, %v8752
      %v8758 = vmul.f32 %v5469, %v8752
      %v8759 = vmul.f32 %v5470, %v8752
      %v8760 = vmul.f32 %v5471, %v8752
      %v8761 = vmul.f32 %v5472, %v8752
      %v8762 = vmul.f32 %v5473, %v8752
      %v8763 = vmul.f32 %v5474, %v8752
      %v8764 = vmul.f32 %v5475, %v8752
      %v8765 = vmul.f32 %v5476, %v8752
      %v8766 = vmul.f32 %v5477, %v8752
      %v8767 = vmul.f32 %v5478, %v8752
      %v8768 = vmul.f32 %v5479, %v8752
      %v8769 = vmul.f32 %v5480, %v8752
      %v8770 = vmul.f32 %v5481, %v8752
      %v8771 = vmul.f32 %v5482, %v8752
      %v8772 = vmul.f32 %v5483, %v8752
      %v8773 = vadd.f32 %v8730, %v8753
      %v8774 = vadd.f32 %v8731, %v8754
      %v8775 = vadd.f32 %v8732, %v8755
      %v8776 = vadd.f32 %v8733, %v8756
      %v8777 = vadd.f32 %v8734, %v8757
      %v8778 = vadd.f32 %v8735, %v8758
      %v8779 = vadd.f32 %v8736, %v8759
      %v8780 = vadd.f32 %v8737, %v8760
      %v8781 = vadd.f32 %v8738, %v8761
      %v8782 = vadd.f32 %v8739, %v8762
      %v8783 = vadd.f32 %v8740, %v8763
      %v8784 = vadd.f32 %v8741, %v8764
      %v8785 = vadd.f32 %v8742, %v8765
      %v8786 = vadd.f32 %v8743, %v8766
      %v8787 = vadd.f32 %v8744, %v8767
      %v8788 = vadd.f32 %v8745, %v8768
      %v8789 = vadd.f32 %v8746, %v8769
      %v8790 = vadd.f32 %v8747, %v8770
      %v8791 = vadd.f32 %v8748, %v8771
      %v8792 = vadd.f32 %v8749, %v8772
      %s8793 = sadd.s32 %s5514, 352
      %s8794 = sld [smem:[#allocation8 + %s8793]]
      %v8795 = vstv %s8794
      %v8796 = vmul.f32 %v5466, %v8795
      %v8797 = vmul.f32 %v5467, %v8795
      %v8798 = vmul.f32 %v5468, %v8795
      %v8799 = vmul.f32 %v5469, %v8795
      %v8800 = vmul.f32 %v5470, %v8795
      %v8801 = vmul.f32 %v5471, %v8795
      %v8802 = vmul.f32 %v5472, %v8795
      %v8803 = vmul.f32 %v5473, %v8795
      %v8804 = vmul.f32 %v5474, %v8795
      %v8805 = vmul.f32 %v5475, %v8795
      %v8806 = vmul.f32 %v5476, %v8795
      %v8807 = vmul.f32 %v5477, %v8795
      %v8808 = vmul.f32 %v5478, %v8795
      %v8809 = vmul.f32 %v5479, %v8795
      %v8810 = vmul.f32 %v5480, %v8795
      %v8811 = vmul.f32 %v5481, %v8795
      %v8812 = vmul.f32 %v5482, %v8795
      %v8813 = vmul.f32 %v5483, %v8795
      %v8814 = vmul.f32 %v5484, %v8795
      %v8815 = vmul.f32 %v5485, %v8795
      %v8816 = vadd.f32 %v8773, %v8796
      %v8817 = vadd.f32 %v8774, %v8797
      %v8818 = vadd.f32 %v8775, %v8798
      %v8819 = vadd.f32 %v8776, %v8799
      %v8820 = vadd.f32 %v8777, %v8800
      %v8821 = vadd.f32 %v8778, %v8801
      %v8822 = vadd.f32 %v8779, %v8802
      %v8823 = vadd.f32 %v8780, %v8803
      %v8824 = vadd.f32 %v8781, %v8804
      %v8825 = vadd.f32 %v8782, %v8805
      %v8826 = vadd.f32 %v8783, %v8806
      %v8827 = vadd.f32 %v8784, %v8807
      %v8828 = vadd.f32 %v8785, %v8808
      %v8829 = vadd.f32 %v8786, %v8809
      %v8830 = vadd.f32 %v8787, %v8810
      %v8831 = vadd.f32 %v8788, %v8811
      %v8832 = vadd.f32 %v8789, %v8812
      %v8833 = vadd.f32 %v8790, %v8813
      %v8834 = vadd.f32 %v8791, %v8814
      %v8835 = vadd.f32 %v8792, %v8815
      %s8836 = sadd.s32 %s5514, 640
      %s8837 = sld [smem:[#allocation8 + %s8836]]
      %v8838 = vstv %s8837
      %v8839 = vmul.f32 %v5468, %v8838
      %v8840 = vmul.f32 %v5469, %v8838
      %v8841 = vmul.f32 %v5470, %v8838
      %v8842 = vmul.f32 %v5471, %v8838
      %v8843 = vmul.f32 %v5472, %v8838
      %v8844 = vmul.f32 %v5473, %v8838
      %v8845 = vmul.f32 %v5474, %v8838
      %v8846 = vmul.f32 %v5475, %v8838
      %v8847 = vmul.f32 %v5476, %v8838
      %v8848 = vmul.f32 %v5477, %v8838
      %v8849 = vmul.f32 %v5478, %v8838
      %v8850 = vmul.f32 %v5479, %v8838
      %v8851 = vmul.f32 %v5480, %v8838
      %v8852 = vmul.f32 %v5481, %v8838
      %v8853 = vmul.f32 %v5482, %v8838
      %v8854 = vmul.f32 %v5483, %v8838
      %v8855 = vmul.f32 %v5484, %v8838
      %v8856 = vmul.f32 %v5485, %v8838
      %v8857 = vmul.f32 %v5486, %v8838
      %v8858 = vmul.f32 %v5487, %v8838
      %v8859 = vadd.f32 %v8816, %v8839
      %v8860 = vadd.f32 %v8817, %v8840
      %v8861 = vadd.f32 %v8818, %v8841
      %v8862 = vadd.f32 %v8819, %v8842
      %v8863 = vadd.f32 %v8820, %v8843
      %v8864 = vadd.f32 %v8821, %v8844
      %v8865 = vadd.f32 %v8822, %v8845
      %v8866 = vadd.f32 %v8823, %v8846
      %v8867 = vadd.f32 %v8824, %v8847
      %v8868 = vadd.f32 %v8825, %v8848
      %v8869 = vadd.f32 %v8826, %v8849
      %v8870 = vadd.f32 %v8827, %v8850
      %v8871 = vadd.f32 %v8828, %v8851
      %v8872 = vadd.f32 %v8829, %v8852
      %v8873 = vadd.f32 %v8830, %v8853
      %v8874 = vadd.f32 %v8831, %v8854
      %v8875 = vadd.f32 %v8832, %v8855
      %v8876 = vadd.f32 %v8833, %v8856
      %v8877 = vadd.f32 %v8834, %v8857
      %v8878 = vadd.f32 %v8835, %v8858
      %s8879 = sadd.s32 %s5514, 160
      %s8880 = sld [smem:[#allocation8 + %s8879]]
      %v8881 = vstv %s8880
      %v8882 = vmul.f32 %v5464, %v8881
      %v8883 = vmul.f32 %v5465, %v8881
      %v8884 = vmul.f32 %v5466, %v8881
      %v8885 = vmul.f32 %v5467, %v8881
      %v8886 = vmul.f32 %v5468, %v8881
      %v8887 = vmul.f32 %v5469, %v8881
      %v8888 = vmul.f32 %v5470, %v8881
      %v8889 = vmul.f32 %v5471, %v8881
      %v8890 = vmul.f32 %v5472, %v8881
      %v8891 = vmul.f32 %v5473, %v8881
      %v8892 = vmul.f32 %v5474, %v8881
      %v8893 = vmul.f32 %v5475, %v8881
      %v8894 = vmul.f32 %v5476, %v8881
      %v8895 = vmul.f32 %v5477, %v8881
      %v8896 = vmul.f32 %v5478, %v8881
      %v8897 = vmul.f32 %v5479, %v8881
      %v8898 = vmul.f32 %v5480, %v8881
      %v8899 = vmul.f32 %v5481, %v8881
      %v8900 = vmul.f32 %v5482, %v8881
      %v8901 = vmul.f32 %v5483, %v8881
      %v8922 = vrot.slane %v8882, 1
      %v8923 = vrot.slane %v8883, 1
      %v8924 = vsel %vm5692, %v8922, %v8923
      %v8925 = vrot.slane %v8884, 1
      %v8926 = vrot.slane %v8885, 1
      %v8927 = vsel %vm5692, %v8925, %v8926
      %v8928 = vrot.slane %v8886, 1
      %v8929 = vrot.slane %v8887, 1
      %v8930 = vsel %vm5692, %v8928, %v8929
      %v8931 = vrot.slane %v8888, 1
      %v8932 = vrot.slane %v8889, 1
      %v8933 = vsel %vm5692, %v8931, %v8932
      %v8934 = vrot.slane %v8890, 1
      %v8935 = vrot.slane %v8891, 1
      %v8936 = vsel %vm5692, %v8934, %v8935
      %v8937 = vrot.slane %v8892, 1
      %v8938 = vrot.slane %v8893, 1
      %v8939 = vsel %vm5692, %v8937, %v8938
      %v8940 = vrot.slane %v8894, 1
      %v8941 = vrot.slane %v8895, 1
      %v8942 = vsel %vm5692, %v8940, %v8941
      %v8943 = vrot.slane %v8896, 1
      %v8944 = vrot.slane %v8897, 1
      %v8945 = vsel %vm5692, %v8943, %v8944
      %v8946 = vrot.slane %v8898, 1
      %v8947 = vrot.slane %v8899, 1
      %v8948 = vsel %vm5692, %v8946, %v8947
      %v8949 = vrot.slane %v8900, 1
      %v8950 = vrot.slane %v8901, 1
      %v8951 = vsel %vm5692, %v8949, %v8950
      %v8972 = vadd.f32 %v8859, %v8924
      %v8973 = vadd.f32 %v8860, %v8923
      %v8974 = vadd.f32 %v8861, %v8927
      %v8975 = vadd.f32 %v8862, %v8926
      %v8976 = vadd.f32 %v8863, %v8930
      %v8977 = vadd.f32 %v8864, %v8929
      %v8978 = vadd.f32 %v8865, %v8933
      %v8979 = vadd.f32 %v8866, %v8932
      %v8980 = vadd.f32 %v8867, %v8936
      %v8981 = vadd.f32 %v8868, %v8935
      %v8982 = vadd.f32 %v8869, %v8939
      %v8983 = vadd.f32 %v8870, %v8938
      %v8984 = vadd.f32 %v8871, %v8942
      %v8985 = vadd.f32 %v8872, %v8941
      %v8986 = vadd.f32 %v8873, %v8945
      %v8987 = vadd.f32 %v8874, %v8944
      %v8988 = vadd.f32 %v8875, %v8948
      %v8989 = vadd.f32 %v8876, %v8947
      %v8990 = vadd.f32 %v8877, %v8951
      %v8991 = vadd.f32 %v8878, %v8950
      %s8992 = sadd.s32 %s5514, 448
      %s8993 = sld [smem:[#allocation8 + %s8992]]
      %v8994 = vstv %s8993
      %v8995 = vmul.f32 %v5466, %v8994
      %v8996 = vmul.f32 %v5467, %v8994
      %v8997 = vmul.f32 %v5468, %v8994
      %v8998 = vmul.f32 %v5469, %v8994
      %v8999 = vmul.f32 %v5470, %v8994
      %v9000 = vmul.f32 %v5471, %v8994
      %v9001 = vmul.f32 %v5472, %v8994
      %v9002 = vmul.f32 %v5473, %v8994
      %v9003 = vmul.f32 %v5474, %v8994
      %v9004 = vmul.f32 %v5475, %v8994
      %v9005 = vmul.f32 %v5476, %v8994
      %v9006 = vmul.f32 %v5477, %v8994
      %v9007 = vmul.f32 %v5478, %v8994
      %v9008 = vmul.f32 %v5479, %v8994
      %v9009 = vmul.f32 %v5480, %v8994
      %v9010 = vmul.f32 %v5481, %v8994
      %v9011 = vmul.f32 %v5482, %v8994
      %v9012 = vmul.f32 %v5483, %v8994
      %v9013 = vmul.f32 %v5484, %v8994
      %v9014 = vmul.f32 %v5485, %v8994
      %v9035 = vrot.slane %v8995, 1
      %v9036 = vrot.slane %v8996, 1
      %v9037 = vsel %vm5692, %v9035, %v9036
      %v9038 = vrot.slane %v8997, 1
      %v9039 = vrot.slane %v8998, 1
      %v9040 = vsel %vm5692, %v9038, %v9039
      %v9041 = vrot.slane %v8999, 1
      %v9042 = vrot.slane %v9000, 1
      %v9043 = vsel %vm5692, %v9041, %v9042
      %v9044 = vrot.slane %v9001, 1
      %v9045 = vrot.slane %v9002, 1
      %v9046 = vsel %vm5692, %v9044, %v9045
      %v9047 = vrot.slane %v9003, 1
      %v9048 = vrot.slane %v9004, 1
      %v9049 = vsel %vm5692, %v9047, %v9048
      %v9050 = vrot.slane %v9005, 1
      %v9051 = vrot.slane %v9006, 1
      %v9052 = vsel %vm5692, %v9050, %v9051
      %v9053 = vrot.slane %v9007, 1
      %v9054 = vrot.slane %v9008, 1
      %v9055 = vsel %vm5692, %v9053, %v9054
      %v9056 = vrot.slane %v9009, 1
      %v9057 = vrot.slane %v9010, 1
      %v9058 = vsel %vm5692, %v9056, %v9057
      %v9059 = vrot.slane %v9011, 1
      %v9060 = vrot.slane %v9012, 1
      %v9061 = vsel %vm5692, %v9059, %v9060
      %v9062 = vrot.slane %v9013, 1
      %v9063 = vrot.slane %v9014, 1
      %v9064 = vsel %vm5692, %v9062, %v9063
      %v9085 = vadd.f32 %v8972, %v9037
      %v9086 = vadd.f32 %v8973, %v9036
      %v9087 = vadd.f32 %v8974, %v9040
      %v9088 = vadd.f32 %v8975, %v9039
      %v9089 = vadd.f32 %v8976, %v9043
      %v9090 = vadd.f32 %v8977, %v9042
      %v9091 = vadd.f32 %v8978, %v9046
      %v9092 = vadd.f32 %v8979, %v9045
      %v9093 = vadd.f32 %v8980, %v9049
      %v9094 = vadd.f32 %v8981, %v9048
      %v9095 = vadd.f32 %v8982, %v9052
      %v9096 = vadd.f32 %v8983, %v9051
      %v9097 = vadd.f32 %v8984, %v9055
      %v9098 = vadd.f32 %v8985, %v9054
      %v9099 = vadd.f32 %v8986, %v9058
      %v9100 = vadd.f32 %v8987, %v9057
      %v9101 = vadd.f32 %v8988, %v9061
      %v9102 = vadd.f32 %v8989, %v9060
      %v9103 = vadd.f32 %v8990, %v9064
      %v9104 = vadd.f32 %v8991, %v9063
      %s9105 = sadd.s32 %s5514, 736
      %s9106 = sld [smem:[#allocation8 + %s9105]]
      %v9107 = vstv %s9106
      %v9108 = vmul.f32 %v5468, %v9107
      %v9109 = vmul.f32 %v5469, %v9107
      %v9110 = vmul.f32 %v5470, %v9107
      %v9111 = vmul.f32 %v5471, %v9107
      %v9112 = vmul.f32 %v5472, %v9107
      %v9113 = vmul.f32 %v5473, %v9107
      %v9114 = vmul.f32 %v5474, %v9107
      %v9115 = vmul.f32 %v5475, %v9107
      %v9116 = vmul.f32 %v5476, %v9107
      %v9117 = vmul.f32 %v5477, %v9107
      %v9118 = vmul.f32 %v5478, %v9107
      %v9119 = vmul.f32 %v5479, %v9107
      %v9120 = vmul.f32 %v5480, %v9107
      %v9121 = vmul.f32 %v5481, %v9107
      %v9122 = vmul.f32 %v5482, %v9107
      %v9123 = vmul.f32 %v5483, %v9107
      %v9124 = vmul.f32 %v5484, %v9107
      %v9125 = vmul.f32 %v5485, %v9107
      %v9126 = vmul.f32 %v5486, %v9107
      %v9127 = vmul.f32 %v5487, %v9107
      %v9148 = vrot.slane %v9108, 1
      %v9149 = vrot.slane %v9109, 1
      %v9150 = vsel %vm5692, %v9148, %v9149
      %v9151 = vrot.slane %v9110, 1
      %v9152 = vrot.slane %v9111, 1
      %v9153 = vsel %vm5692, %v9151, %v9152
      %v9154 = vrot.slane %v9112, 1
      %v9155 = vrot.slane %v9113, 1
      %v9156 = vsel %vm5692, %v9154, %v9155
      %v9157 = vrot.slane %v9114, 1
      %v9158 = vrot.slane %v9115, 1
      %v9159 = vsel %vm5692, %v9157, %v9158
      %v9160 = vrot.slane %v9116, 1
      %v9161 = vrot.slane %v9117, 1
      %v9162 = vsel %vm5692, %v9160, %v9161
      %v9163 = vrot.slane %v9118, 1
      %v9164 = vrot.slane %v9119, 1
      %v9165 = vsel %vm5692, %v9163, %v9164
      %v9166 = vrot.slane %v9120, 1
      %v9167 = vrot.slane %v9121, 1
      %v9168 = vsel %vm5692, %v9166, %v9167
      %v9169 = vrot.slane %v9122, 1
      %v9170 = vrot.slane %v9123, 1
      %v9171 = vsel %vm5692, %v9169, %v9170
      %v9172 = vrot.slane %v9124, 1
      %v9173 = vrot.slane %v9125, 1
      %v9174 = vsel %vm5692, %v9172, %v9173
      %v9175 = vrot.slane %v9126, 1
      %v9176 = vrot.slane %v9127, 1
      %v9177 = vsel %vm5692, %v9175, %v9176
      %v9198 = vadd.f32 %v9085, %v9150
      %v9199 = vadd.f32 %v9086, %v9149
      %v9200 = vadd.f32 %v9087, %v9153
      %v9201 = vadd.f32 %v9088, %v9152
      %v9202 = vadd.f32 %v9089, %v9156
      %v9203 = vadd.f32 %v9090, %v9155
      %v9204 = vadd.f32 %v9091, %v9159
      %v9205 = vadd.f32 %v9092, %v9158
      %v9206 = vadd.f32 %v9093, %v9162
      %v9207 = vadd.f32 %v9094, %v9161
      %v9208 = vadd.f32 %v9095, %v9165
      %v9209 = vadd.f32 %v9096, %v9164
      %v9210 = vadd.f32 %v9097, %v9168
      %v9211 = vadd.f32 %v9098, %v9167
      %v9212 = vadd.f32 %v9099, %v9171
      %v9213 = vadd.f32 %v9100, %v9170
      %v9214 = vadd.f32 %v9101, %v9174
      %v9215 = vadd.f32 %v9102, %v9173
      %v9216 = vadd.f32 %v9103, %v9177
      %v9217 = vadd.f32 %v9104, %v9176
      %s9218 = sadd.s32 %s5514, 256
      %s9219 = sld [smem:[#allocation8 + %s9218]]
      %v9220 = vstv %s9219
      %v9221 = vmul.f32 %v5464, %v9220
      %v9222 = vmul.f32 %v5465, %v9220
      %v9223 = vmul.f32 %v5466, %v9220
      %v9224 = vmul.f32 %v5467, %v9220
      %v9225 = vmul.f32 %v5468, %v9220
      %v9226 = vmul.f32 %v5469, %v9220
      %v9227 = vmul.f32 %v5470, %v9220
      %v9228 = vmul.f32 %v5471, %v9220
      %v9229 = vmul.f32 %v5472, %v9220
      %v9230 = vmul.f32 %v5473, %v9220
      %v9231 = vmul.f32 %v5474, %v9220
      %v9232 = vmul.f32 %v5475, %v9220
      %v9233 = vmul.f32 %v5476, %v9220
      %v9234 = vmul.f32 %v5477, %v9220
      %v9235 = vmul.f32 %v5478, %v9220
      %v9236 = vmul.f32 %v5479, %v9220
      %v9237 = vmul.f32 %v5480, %v9220
      %v9238 = vmul.f32 %v5481, %v9220
      %v9239 = vmul.f32 %v5482, %v9220
      %v9240 = vmul.f32 %v5483, %v9220
      %v9261 = vrot.slane %v9221, 2
      %v9262 = vrot.slane %v9222, 2
      %v9263 = vsel %vm6032, %v9261, %v9262
      %v9264 = vrot.slane %v9223, 2
      %v9265 = vrot.slane %v9224, 2
      %v9266 = vsel %vm6032, %v9264, %v9265
      %v9267 = vrot.slane %v9225, 2
      %v9268 = vrot.slane %v9226, 2
      %v9269 = vsel %vm6032, %v9267, %v9268
      %v9270 = vrot.slane %v9227, 2
      %v9271 = vrot.slane %v9228, 2
      %v9272 = vsel %vm6032, %v9270, %v9271
      %v9273 = vrot.slane %v9229, 2
      %v9274 = vrot.slane %v9230, 2
      %v9275 = vsel %vm6032, %v9273, %v9274
      %v9276 = vrot.slane %v9231, 2
      %v9277 = vrot.slane %v9232, 2
      %v9278 = vsel %vm6032, %v9276, %v9277
      %v9279 = vrot.slane %v9233, 2
      %v9280 = vrot.slane %v9234, 2
      %v9281 = vsel %vm6032, %v9279, %v9280
      %v9282 = vrot.slane %v9235, 2
      %v9283 = vrot.slane %v9236, 2
      %v9284 = vsel %vm6032, %v9282, %v9283
      %v9285 = vrot.slane %v9237, 2
      %v9286 = vrot.slane %v9238, 2
      %v9287 = vsel %vm6032, %v9285, %v9286
      %v9288 = vrot.slane %v9239, 2
      %v9289 = vrot.slane %v9240, 2
      %v9290 = vsel %vm6032, %v9288, %v9289
      %v9311 = vadd.f32 %v9198, %v9263
      %v9312 = vadd.f32 %v9199, %v9262
      %v9313 = vadd.f32 %v9200, %v9266
      %v9314 = vadd.f32 %v9201, %v9265
      %v9315 = vadd.f32 %v9202, %v9269
      %v9316 = vadd.f32 %v9203, %v9268
      %v9317 = vadd.f32 %v9204, %v9272
      %v9318 = vadd.f32 %v9205, %v9271
      %v9319 = vadd.f32 %v9206, %v9275
      %v9320 = vadd.f32 %v9207, %v9274
      %v9321 = vadd.f32 %v9208, %v9278
      %v9322 = vadd.f32 %v9209, %v9277
      %v9323 = vadd.f32 %v9210, %v9281
      %v9324 = vadd.f32 %v9211, %v9280
      %v9325 = vadd.f32 %v9212, %v9284
      %v9326 = vadd.f32 %v9213, %v9283
      %v9327 = vadd.f32 %v9214, %v9287
      %v9328 = vadd.f32 %v9215, %v9286
      %v9329 = vadd.f32 %v9216, %v9290
      %v9330 = vadd.f32 %v9217, %v9289
      %s9331 = sadd.s32 %s5514, 544
      %s9332 = sld [smem:[#allocation8 + %s9331]]
      %v9333 = vstv %s9332
      %v9334 = vmul.f32 %v5466, %v9333
      %v9335 = vmul.f32 %v5467, %v9333
      %v9336 = vmul.f32 %v5468, %v9333
      %v9337 = vmul.f32 %v5469, %v9333
      %v9338 = vmul.f32 %v5470, %v9333
      %v9339 = vmul.f32 %v5471, %v9333
      %v9340 = vmul.f32 %v5472, %v9333
      %v9341 = vmul.f32 %v5473, %v9333
      %v9342 = vmul.f32 %v5474, %v9333
      %v9343 = vmul.f32 %v5475, %v9333
      %v9344 = vmul.f32 %v5476, %v9333
      %v9345 = vmul.f32 %v5477, %v9333
      %v9346 = vmul.f32 %v5478, %v9333
      %v9347 = vmul.f32 %v5479, %v9333
      %v9348 = vmul.f32 %v5480, %v9333
      %v9349 = vmul.f32 %v5481, %v9333
      %v9350 = vmul.f32 %v5482, %v9333
      %v9351 = vmul.f32 %v5483, %v9333
      %v9352 = vmul.f32 %v5484, %v9333
      %v9353 = vmul.f32 %v5485, %v9333
      %v9374 = vrot.slane %v9334, 2
      %v9375 = vrot.slane %v9335, 2
      %v9376 = vsel %vm6032, %v9374, %v9375
      %v9377 = vrot.slane %v9336, 2
      %v9378 = vrot.slane %v9337, 2
      %v9379 = vsel %vm6032, %v9377, %v9378
      %v9380 = vrot.slane %v9338, 2
      %v9381 = vrot.slane %v9339, 2
      %v9382 = vsel %vm6032, %v9380, %v9381
      %v9383 = vrot.slane %v9340, 2
      %v9384 = vrot.slane %v9341, 2
      %v9385 = vsel %vm6032, %v9383, %v9384
      %v9386 = vrot.slane %v9342, 2
      %v9387 = vrot.slane %v9343, 2
      %v9388 = vsel %vm6032, %v9386, %v9387
      %v9389 = vrot.slane %v9344, 2
      %v9390 = vrot.slane %v9345, 2
      %v9391 = vsel %vm6032, %v9389, %v9390
      %v9392 = vrot.slane %v9346, 2
      %v9393 = vrot.slane %v9347, 2
      %v9394 = vsel %vm6032, %v9392, %v9393
      %v9395 = vrot.slane %v9348, 2
      %v9396 = vrot.slane %v9349, 2
      %v9397 = vsel %vm6032, %v9395, %v9396
      %v9398 = vrot.slane %v9350, 2
      %v9399 = vrot.slane %v9351, 2
      %v9400 = vsel %vm6032, %v9398, %v9399
      %v9401 = vrot.slane %v9352, 2
      %v9402 = vrot.slane %v9353, 2
      %v9403 = vsel %vm6032, %v9401, %v9402
      %v9424 = vadd.f32 %v9311, %v9376
      %v9425 = vadd.f32 %v9312, %v9375
      %v9426 = vadd.f32 %v9313, %v9379
      %v9427 = vadd.f32 %v9314, %v9378
      %v9428 = vadd.f32 %v9315, %v9382
      %v9429 = vadd.f32 %v9316, %v9381
      %v9430 = vadd.f32 %v9317, %v9385
      %v9431 = vadd.f32 %v9318, %v9384
      %v9432 = vadd.f32 %v9319, %v9388
      %v9433 = vadd.f32 %v9320, %v9387
      %v9434 = vadd.f32 %v9321, %v9391
      %v9435 = vadd.f32 %v9322, %v9390
      %v9436 = vadd.f32 %v9323, %v9394
      %v9437 = vadd.f32 %v9324, %v9393
      %v9438 = vadd.f32 %v9325, %v9397
      %v9439 = vadd.f32 %v9326, %v9396
      %v9440 = vadd.f32 %v9327, %v9400
      %v9441 = vadd.f32 %v9328, %v9399
      %v9442 = vadd.f32 %v9329, %v9403
      %v9443 = vadd.f32 %v9330, %v9402
      %s9444 = sadd.s32 %s5514, 832
      %s9445 = sld [smem:[#allocation8 + %s9444]]
      %v9446 = vstv %s9445
      %v9447 = vmul.f32 %v5468, %v9446
      %v9448 = vmul.f32 %v5469, %v9446
      %v9449 = vmul.f32 %v5470, %v9446
      %v9450 = vmul.f32 %v5471, %v9446
      %v9451 = vmul.f32 %v5472, %v9446
      %v9452 = vmul.f32 %v5473, %v9446
      %v9453 = vmul.f32 %v5474, %v9446
      %v9454 = vmul.f32 %v5475, %v9446
      %v9455 = vmul.f32 %v5476, %v9446
      %v9456 = vmul.f32 %v5477, %v9446
      %v9457 = vmul.f32 %v5478, %v9446
      %v9458 = vmul.f32 %v5479, %v9446
      %v9459 = vmul.f32 %v5480, %v9446
      %v9460 = vmul.f32 %v5481, %v9446
      %v9461 = vmul.f32 %v5482, %v9446
      %v9462 = vmul.f32 %v5483, %v9446
      %v9463 = vmul.f32 %v5484, %v9446
      %v9464 = vmul.f32 %v5485, %v9446
      %v9465 = vmul.f32 %v5486, %v9446
      %v9466 = vmul.f32 %v5487, %v9446
      %v9487 = vrot.slane %v9447, 2
      %v9488 = vrot.slane %v9448, 2
      %v9489 = vsel %vm6032, %v9487, %v9488
      %v9490 = vrot.slane %v9449, 2
      %v9491 = vrot.slane %v9450, 2
      %v9492 = vsel %vm6032, %v9490, %v9491
      %v9493 = vrot.slane %v9451, 2
      %v9494 = vrot.slane %v9452, 2
      %v9495 = vsel %vm6032, %v9493, %v9494
      %v9496 = vrot.slane %v9453, 2
      %v9497 = vrot.slane %v9454, 2
      %v9498 = vsel %vm6032, %v9496, %v9497
      %v9499 = vrot.slane %v9455, 2
      %v9500 = vrot.slane %v9456, 2
      %v9501 = vsel %vm6032, %v9499, %v9500
      %v9502 = vrot.slane %v9457, 2
      %v9503 = vrot.slane %v9458, 2
      %v9504 = vsel %vm6032, %v9502, %v9503
      %v9505 = vrot.slane %v9459, 2
      %v9506 = vrot.slane %v9460, 2
      %v9507 = vsel %vm6032, %v9505, %v9506
      %v9508 = vrot.slane %v9461, 2
      %v9509 = vrot.slane %v9462, 2
      %v9510 = vsel %vm6032, %v9508, %v9509
      %v9511 = vrot.slane %v9463, 2
      %v9512 = vrot.slane %v9464, 2
      %v9513 = vsel %vm6032, %v9511, %v9512
      %v9514 = vrot.slane %v9465, 2
      %v9515 = vrot.slane %v9466, 2
      %v9516 = vsel %vm6032, %v9514, %v9515
      %v9537 = vadd.f32 %v9424, %v9489
      %v9538 = vadd.f32 %v9425, %v9488
      %v9539 = vadd.f32 %v9426, %v9492
      %v9540 = vadd.f32 %v9427, %v9491
      %v9541 = vadd.f32 %v9428, %v9495
      %v9542 = vadd.f32 %v9429, %v9494
      %v9543 = vadd.f32 %v9430, %v9498
      %v9544 = vadd.f32 %v9431, %v9497
      %v9545 = vadd.f32 %v9432, %v9501
      %v9546 = vadd.f32 %v9433, %v9500
      %v9547 = vadd.f32 %v9434, %v9504
      %v9548 = vadd.f32 %v9435, %v9503
      %v9549 = vadd.f32 %v9436, %v9507
      %v9550 = vadd.f32 %v9437, %v9506
      %v9551 = vadd.f32 %v9438, %v9510
      %v9552 = vadd.f32 %v9439, %v9509
      %v9553 = vadd.f32 %v9440, %v9513
      %v9554 = vadd.f32 %v9441, %v9512
      %v9555 = vadd.f32 %v9442, %v9516
      %v9556 = vadd.f32 %v9443, %v9515
      %s9557 = sadd.s32 %s5514, 80
      %s9558 = sld [smem:[#allocation8 + %s9557]]
      %v9559 = vstv %s9558
      %v9560 = vmul.f32 %v5489, %v9559
      %v9561 = vmul.f32 %v5490, %v9559
      %v9562 = vmul.f32 %v5491, %v9559
      %v9563 = vmul.f32 %v5492, %v9559
      %v9564 = vmul.f32 %v5493, %v9559
      %v9565 = vmul.f32 %v5494, %v9559
      %v9566 = vmul.f32 %v5495, %v9559
      %v9567 = vmul.f32 %v5496, %v9559
      %v9568 = vmul.f32 %v5497, %v9559
      %v9569 = vmul.f32 %v5498, %v9559
      %v9570 = vmul.f32 %v5499, %v9559
      %v9571 = vmul.f32 %v5500, %v9559
      %v9572 = vmul.f32 %v5501, %v9559
      %v9573 = vmul.f32 %v5502, %v9559
      %v9574 = vmul.f32 %v5503, %v9559
      %v9575 = vmul.f32 %v5504, %v9559
      %v9576 = vmul.f32 %v5505, %v9559
      %v9577 = vmul.f32 %v5506, %v9559
      %v9578 = vmul.f32 %v5507, %v9559
      %v9579 = vmul.f32 %v5508, %v9559
      %v9580 = vadd.f32 %v9537, %v9560
      %v9581 = vadd.f32 %v9538, %v9561
      %v9582 = vadd.f32 %v9539, %v9562
      %v9583 = vadd.f32 %v9540, %v9563
      %v9584 = vadd.f32 %v9541, %v9564
      %v9585 = vadd.f32 %v9542, %v9565
      %v9586 = vadd.f32 %v9543, %v9566
      %v9587 = vadd.f32 %v9544, %v9567
      %v9588 = vadd.f32 %v9545, %v9568
      %v9589 = vadd.f32 %v9546, %v9569
      %v9590 = vadd.f32 %v9547, %v9570
      %v9591 = vadd.f32 %v9548, %v9571
      %v9592 = vadd.f32 %v9549, %v9572
      %v9593 = vadd.f32 %v9550, %v9573
      %v9594 = vadd.f32 %v9551, %v9574
      %v9595 = vadd.f32 %v9552, %v9575
      %v9596 = vadd.f32 %v9553, %v9576
      %v9597 = vadd.f32 %v9554, %v9577
      %v9598 = vadd.f32 %v9555, %v9578
      %v9599 = vadd.f32 %v9556, %v9579
      %s9600 = sadd.s32 %s5514, 368
      %s9601 = sld [smem:[#allocation8 + %s9600]]
      %v9602 = vstv %s9601
      %v9603 = vmul.f32 %v5491, %v9602
      %v9604 = vmul.f32 %v5492, %v9602
      %v9605 = vmul.f32 %v5493, %v9602
      %v9606 = vmul.f32 %v5494, %v9602
      %v9607 = vmul.f32 %v5495, %v9602
      %v9608 = vmul.f32 %v5496, %v9602
      %v9609 = vmul.f32 %v5497, %v9602
      %v9610 = vmul.f32 %v5498, %v9602
      %v9611 = vmul.f32 %v5499, %v9602
      %v9612 = vmul.f32 %v5500, %v9602
      %v9613 = vmul.f32 %v5501, %v9602
      %v9614 = vmul.f32 %v5502, %v9602
      %v9615 = vmul.f32 %v5503, %v9602
      %v9616 = vmul.f32 %v5504, %v9602
      %v9617 = vmul.f32 %v5505, %v9602
      %v9618 = vmul.f32 %v5506, %v9602
      %v9619 = vmul.f32 %v5507, %v9602
      %v9620 = vmul.f32 %v5508, %v9602
      %v9621 = vmul.f32 %v5509, %v9602
      %v9622 = vmul.f32 %v5510, %v9602
      %v9623 = vadd.f32 %v9580, %v9603
      %v9624 = vadd.f32 %v9581, %v9604
      %v9625 = vadd.f32 %v9582, %v9605
      %v9626 = vadd.f32 %v9583, %v9606
      %v9627 = vadd.f32 %v9584, %v9607
      %v9628 = vadd.f32 %v9585, %v9608
      %v9629 = vadd.f32 %v9586, %v9609
      %v9630 = vadd.f32 %v9587, %v9610
      %v9631 = vadd.f32 %v9588, %v9611
      %v9632 = vadd.f32 %v9589, %v9612
      %v9633 = vadd.f32 %v9590, %v9613
      %v9634 = vadd.f32 %v9591, %v9614
      %v9635 = vadd.f32 %v9592, %v9615
      %v9636 = vadd.f32 %v9593, %v9616
      %v9637 = vadd.f32 %v9594, %v9617
      %v9638 = vadd.f32 %v9595, %v9618
      %v9639 = vadd.f32 %v9596, %v9619
      %v9640 = vadd.f32 %v9597, %v9620
      %v9641 = vadd.f32 %v9598, %v9621
      %v9642 = vadd.f32 %v9599, %v9622
      %s9643 = sadd.s32 %s5514, 656
      %s9644 = sld [smem:[#allocation8 + %s9643]]
      %v9645 = vstv %s9644
      %v9646 = vmul.f32 %v5493, %v9645
      %v9647 = vmul.f32 %v5494, %v9645
      %v9648 = vmul.f32 %v5495, %v9645
      %v9649 = vmul.f32 %v5496, %v9645
      %v9650 = vmul.f32 %v5497, %v9645
      %v9651 = vmul.f32 %v5498, %v9645
      %v9652 = vmul.f32 %v5499, %v9645
      %v9653 = vmul.f32 %v5500, %v9645
      %v9654 = vmul.f32 %v5501, %v9645
      %v9655 = vmul.f32 %v5502, %v9645
      %v9656 = vmul.f32 %v5503, %v9645
      %v9657 = vmul.f32 %v5504, %v9645
      %v9658 = vmul.f32 %v5505, %v9645
      %v9659 = vmul.f32 %v5506, %v9645
      %v9660 = vmul.f32 %v5507, %v9645
      %v9661 = vmul.f32 %v5508, %v9645
      %v9662 = vmul.f32 %v5509, %v9645
      %v9663 = vmul.f32 %v5510, %v9645
      %v9664 = vmul.f32 %v5511, %v9645
      %v9665 = vmul.f32 %v5512, %v9645
      %v9666 = vadd.f32 %v9623, %v9646
      %v9667 = vadd.f32 %v9624, %v9647
      %v9668 = vadd.f32 %v9625, %v9648
      %v9669 = vadd.f32 %v9626, %v9649
      %v9670 = vadd.f32 %v9627, %v9650
      %v9671 = vadd.f32 %v9628, %v9651
      %v9672 = vadd.f32 %v9629, %v9652
      %v9673 = vadd.f32 %v9630, %v9653
      %v9674 = vadd.f32 %v9631, %v9654
      %v9675 = vadd.f32 %v9632, %v9655
      %v9676 = vadd.f32 %v9633, %v9656
      %v9677 = vadd.f32 %v9634, %v9657
      %v9678 = vadd.f32 %v9635, %v9658
      %v9679 = vadd.f32 %v9636, %v9659
      %v9680 = vadd.f32 %v9637, %v9660
      %v9681 = vadd.f32 %v9638, %v9661
      %v9682 = vadd.f32 %v9639, %v9662
      %v9683 = vadd.f32 %v9640, %v9663
      %v9684 = vadd.f32 %v9641, %v9664
      %v9685 = vadd.f32 %v9642, %v9665
      %s9686 = sadd.s32 %s5514, 176
      %s9687 = sld [smem:[#allocation8 + %s9686]]
      %v9688 = vstv %s9687
      %v9689 = vmul.f32 %v5489, %v9688
      %v9690 = vmul.f32 %v5490, %v9688
      %v9691 = vmul.f32 %v5491, %v9688
      %v9692 = vmul.f32 %v5492, %v9688
      %v9693 = vmul.f32 %v5493, %v9688
      %v9694 = vmul.f32 %v5494, %v9688
      %v9695 = vmul.f32 %v5495, %v9688
      %v9696 = vmul.f32 %v5496, %v9688
      %v9697 = vmul.f32 %v5497, %v9688
      %v9698 = vmul.f32 %v5498, %v9688
      %v9699 = vmul.f32 %v5499, %v9688
      %v9700 = vmul.f32 %v5500, %v9688
      %v9701 = vmul.f32 %v5501, %v9688
      %v9702 = vmul.f32 %v5502, %v9688
      %v9703 = vmul.f32 %v5503, %v9688
      %v9704 = vmul.f32 %v5504, %v9688
      %v9705 = vmul.f32 %v5505, %v9688
      %v9706 = vmul.f32 %v5506, %v9688
      %v9707 = vmul.f32 %v5507, %v9688
      %v9708 = vmul.f32 %v5508, %v9688
      %v9729 = vrot.slane %v9689, 1
      %v9730 = vrot.slane %v9690, 1
      %v9731 = vsel %vm5692, %v9729, %v9730
      %v9732 = vrot.slane %v9691, 1
      %v9733 = vrot.slane %v9692, 1
      %v9734 = vsel %vm5692, %v9732, %v9733
      %v9735 = vrot.slane %v9693, 1
      %v9736 = vrot.slane %v9694, 1
      %v9737 = vsel %vm5692, %v9735, %v9736
      %v9738 = vrot.slane %v9695, 1
      %v9739 = vrot.slane %v9696, 1
      %v9740 = vsel %vm5692, %v9738, %v9739
      %v9741 = vrot.slane %v9697, 1
      %v9742 = vrot.slane %v9698, 1
      %v9743 = vsel %vm5692, %v9741, %v9742
      %v9744 = vrot.slane %v9699, 1
      %v9745 = vrot.slane %v9700, 1
      %v9746 = vsel %vm5692, %v9744, %v9745
      %v9747 = vrot.slane %v9701, 1
      %v9748 = vrot.slane %v9702, 1
      %v9749 = vsel %vm5692, %v9747, %v9748
      %v9750 = vrot.slane %v9703, 1
      %v9751 = vrot.slane %v9704, 1
      %v9752 = vsel %vm5692, %v9750, %v9751
      %v9753 = vrot.slane %v9705, 1
      %v9754 = vrot.slane %v9706, 1
      %v9755 = vsel %vm5692, %v9753, %v9754
      %v9756 = vrot.slane %v9707, 1
      %v9757 = vrot.slane %v9708, 1
      %v9758 = vsel %vm5692, %v9756, %v9757
      %v9779 = vadd.f32 %v9666, %v9731
      %v9780 = vadd.f32 %v9667, %v9730
      %v9781 = vadd.f32 %v9668, %v9734
      %v9782 = vadd.f32 %v9669, %v9733
      %v9783 = vadd.f32 %v9670, %v9737
      %v9784 = vadd.f32 %v9671, %v9736
      %v9785 = vadd.f32 %v9672, %v9740
      %v9786 = vadd.f32 %v9673, %v9739
      %v9787 = vadd.f32 %v9674, %v9743
      %v9788 = vadd.f32 %v9675, %v9742
      %v9789 = vadd.f32 %v9676, %v9746
      %v9790 = vadd.f32 %v9677, %v9745
      %v9791 = vadd.f32 %v9678, %v9749
      %v9792 = vadd.f32 %v9679, %v9748
      %v9793 = vadd.f32 %v9680, %v9752
      %v9794 = vadd.f32 %v9681, %v9751
      %v9795 = vadd.f32 %v9682, %v9755
      %v9796 = vadd.f32 %v9683, %v9754
      %v9797 = vadd.f32 %v9684, %v9758
      %v9798 = vadd.f32 %v9685, %v9757
      %s9799 = sadd.s32 %s5514, 464
      %s9800 = sld [smem:[#allocation8 + %s9799]]
      %v9801 = vstv %s9800
      %v9802 = vmul.f32 %v5491, %v9801
      %v9803 = vmul.f32 %v5492, %v9801
      %v9804 = vmul.f32 %v5493, %v9801
      %v9805 = vmul.f32 %v5494, %v9801
      %v9806 = vmul.f32 %v5495, %v9801
      %v9807 = vmul.f32 %v5496, %v9801
      %v9808 = vmul.f32 %v5497, %v9801
      %v9809 = vmul.f32 %v5498, %v9801
      %v9810 = vmul.f32 %v5499, %v9801
      %v9811 = vmul.f32 %v5500, %v9801
      %v9812 = vmul.f32 %v5501, %v9801
      %v9813 = vmul.f32 %v5502, %v9801
      %v9814 = vmul.f32 %v5503, %v9801
      %v9815 = vmul.f32 %v5504, %v9801
      %v9816 = vmul.f32 %v5505, %v9801
      %v9817 = vmul.f32 %v5506, %v9801
      %v9818 = vmul.f32 %v5507, %v9801
      %v9819 = vmul.f32 %v5508, %v9801
      %v9820 = vmul.f32 %v5509, %v9801
      %v9821 = vmul.f32 %v5510, %v9801
      %v9842 = vrot.slane %v9802, 1
      %v9843 = vrot.slane %v9803, 1
      %v9844 = vsel %vm5692, %v9842, %v9843
      %v9845 = vrot.slane %v9804, 1
      %v9846 = vrot.slane %v9805, 1
      %v9847 = vsel %vm5692, %v9845, %v9846
      %v9848 = vrot.slane %v9806, 1
      %v9849 = vrot.slane %v9807, 1
      %v9850 = vsel %vm5692, %v9848, %v9849
      %v9851 = vrot.slane %v9808, 1
      %v9852 = vrot.slane %v9809, 1
      %v9853 = vsel %vm5692, %v9851, %v9852
      %v9854 = vrot.slane %v9810, 1
      %v9855 = vrot.slane %v9811, 1
      %v9856 = vsel %vm5692, %v9854, %v9855
      %v9857 = vrot.slane %v9812, 1
      %v9858 = vrot.slane %v9813, 1
      %v9859 = vsel %vm5692, %v9857, %v9858
      %v9860 = vrot.slane %v9814, 1
      %v9861 = vrot.slane %v9815, 1
      %v9862 = vsel %vm5692, %v9860, %v9861
      %v9863 = vrot.slane %v9816, 1
      %v9864 = vrot.slane %v9817, 1
      %v9865 = vsel %vm5692, %v9863, %v9864
      %v9866 = vrot.slane %v9818, 1
      %v9867 = vrot.slane %v9819, 1
      %v9868 = vsel %vm5692, %v9866, %v9867
      %v9869 = vrot.slane %v9820, 1
      %v9870 = vrot.slane %v9821, 1
      %v9871 = vsel %vm5692, %v9869, %v9870
      %v9892 = vadd.f32 %v9779, %v9844
      %v9893 = vadd.f32 %v9780, %v9843
      %v9894 = vadd.f32 %v9781, %v9847
      %v9895 = vadd.f32 %v9782, %v9846
      %v9896 = vadd.f32 %v9783, %v9850
      %v9897 = vadd.f32 %v9784, %v9849
      %v9898 = vadd.f32 %v9785, %v9853
      %v9899 = vadd.f32 %v9786, %v9852
      %v9900 = vadd.f32 %v9787, %v9856
      %v9901 = vadd.f32 %v9788, %v9855
      %v9902 = vadd.f32 %v9789, %v9859
      %v9903 = vadd.f32 %v9790, %v9858
      %v9904 = vadd.f32 %v9791, %v9862
      %v9905 = vadd.f32 %v9792, %v9861
      %v9906 = vadd.f32 %v9793, %v9865
      %v9907 = vadd.f32 %v9794, %v9864
      %v9908 = vadd.f32 %v9795, %v9868
      %v9909 = vadd.f32 %v9796, %v9867
      %v9910 = vadd.f32 %v9797, %v9871
      %v9911 = vadd.f32 %v9798, %v9870
      %s9912 = sadd.s32 %s5514, 752
      %s9913 = sld [smem:[#allocation8 + %s9912]]
      %v9914 = vstv %s9913
      %v9915 = vmul.f32 %v5493, %v9914
      %v9916 = vmul.f32 %v5494, %v9914
      %v9917 = vmul.f32 %v5495, %v9914
      %v9918 = vmul.f32 %v5496, %v9914
      %v9919 = vmul.f32 %v5497, %v9914
      %v9920 = vmul.f32 %v5498, %v9914
      %v9921 = vmul.f32 %v5499, %v9914
      %v9922 = vmul.f32 %v5500, %v9914
      %v9923 = vmul.f32 %v5501, %v9914
      %v9924 = vmul.f32 %v5502, %v9914
      %v9925 = vmul.f32 %v5503, %v9914
      %v9926 = vmul.f32 %v5504, %v9914
      %v9927 = vmul.f32 %v5505, %v9914
      %v9928 = vmul.f32 %v5506, %v9914
      %v9929 = vmul.f32 %v5507, %v9914
      %v9930 = vmul.f32 %v5508, %v9914
      %v9931 = vmul.f32 %v5509, %v9914
      %v9932 = vmul.f32 %v5510, %v9914
      %v9933 = vmul.f32 %v5511, %v9914
      %v9934 = vmul.f32 %v5512, %v9914
      %v9955 = vrot.slane %v9915, 1
      %v9956 = vrot.slane %v9916, 1
      %v9957 = vsel %vm5692, %v9955, %v9956
      %v9958 = vrot.slane %v9917, 1
      %v9959 = vrot.slane %v9918, 1
      %v9960 = vsel %vm5692, %v9958, %v9959
      %v9961 = vrot.slane %v9919, 1
      %v9962 = vrot.slane %v9920, 1
      %v9963 = vsel %vm5692, %v9961, %v9962
      %v9964 = vrot.slane %v9921, 1
      %v9965 = vrot.slane %v9922, 1
      %v9966 = vsel %vm5692, %v9964, %v9965
      %v9967 = vrot.slane %v9923, 1
      %v9968 = vrot.slane %v9924, 1
      %v9969 = vsel %vm5692, %v9967, %v9968
      %v9970 = vrot.slane %v9925, 1
      %v9971 = vrot.slane %v9926, 1
      %v9972 = vsel %vm5692, %v9970, %v9971
      %v9973 = vrot.slane %v9927, 1
      %v9974 = vrot.slane %v9928, 1
      %v9975 = vsel %vm5692, %v9973, %v9974
      %v9976 = vrot.slane %v9929, 1
      %v9977 = vrot.slane %v9930, 1
      %v9978 = vsel %vm5692, %v9976, %v9977
      %v9979 = vrot.slane %v9931, 1
      %v9980 = vrot.slane %v9932, 1
      %v9981 = vsel %vm5692, %v9979, %v9980
      %v9982 = vrot.slane %v9933, 1
      %v9983 = vrot.slane %v9934, 1
      %v9984 = vsel %vm5692, %v9982, %v9983
      %v10005 = vadd.f32 %v9892, %v9957
      %v10006 = vadd.f32 %v9893, %v9956
      %v10007 = vadd.f32 %v9894, %v9960
      %v10008 = vadd.f32 %v9895, %v9959
      %v10009 = vadd.f32 %v9896, %v9963
      %v10010 = vadd.f32 %v9897, %v9962
      %v10011 = vadd.f32 %v9898, %v9966
      %v10012 = vadd.f32 %v9899, %v9965
      %v10013 = vadd.f32 %v9900, %v9969
      %v10014 = vadd.f32 %v9901, %v9968
      %v10015 = vadd.f32 %v9902, %v9972
      %v10016 = vadd.f32 %v9903, %v9971
      %v10017 = vadd.f32 %v9904, %v9975
      %v10018 = vadd.f32 %v9905, %v9974
      %v10019 = vadd.f32 %v9906, %v9978
      %v10020 = vadd.f32 %v9907, %v9977
      %v10021 = vadd.f32 %v9908, %v9981
      %v10022 = vadd.f32 %v9909, %v9980
      %v10023 = vadd.f32 %v9910, %v9984
      %v10024 = vadd.f32 %v9911, %v9983
      %s10025 = sadd.s32 %s5514, 272
      %s10026 = sld [smem:[#allocation8 + %s10025]]
      %v10027 = vstv %s10026
      %v10028 = vmul.f32 %v5489, %v10027
      %v10029 = vmul.f32 %v5490, %v10027
      %v10030 = vmul.f32 %v5491, %v10027
      %v10031 = vmul.f32 %v5492, %v10027
      %v10032 = vmul.f32 %v5493, %v10027
      %v10033 = vmul.f32 %v5494, %v10027
      %v10034 = vmul.f32 %v5495, %v10027
      %v10035 = vmul.f32 %v5496, %v10027
      %v10036 = vmul.f32 %v5497, %v10027
      %v10037 = vmul.f32 %v5498, %v10027
      %v10038 = vmul.f32 %v5499, %v10027
      %v10039 = vmul.f32 %v5500, %v10027
      %v10040 = vmul.f32 %v5501, %v10027
      %v10041 = vmul.f32 %v5502, %v10027
      %v10042 = vmul.f32 %v5503, %v10027
      %v10043 = vmul.f32 %v5504, %v10027
      %v10044 = vmul.f32 %v5505, %v10027
      %v10045 = vmul.f32 %v5506, %v10027
      %v10046 = vmul.f32 %v5507, %v10027
      %v10047 = vmul.f32 %v5508, %v10027
      %v10068 = vrot.slane %v10028, 2
      %v10069 = vrot.slane %v10029, 2
      %v10070 = vsel %vm6032, %v10068, %v10069
      %v10071 = vrot.slane %v10030, 2
      %v10072 = vrot.slane %v10031, 2
      %v10073 = vsel %vm6032, %v10071, %v10072
      %v10074 = vrot.slane %v10032, 2
      %v10075 = vrot.slane %v10033, 2
      %v10076 = vsel %vm6032, %v10074, %v10075
      %v10077 = vrot.slane %v10034, 2
      %v10078 = vrot.slane %v10035, 2
      %v10079 = vsel %vm6032, %v10077, %v10078
      %v10080 = vrot.slane %v10036, 2
      %v10081 = vrot.slane %v10037, 2
      %v10082 = vsel %vm6032, %v10080, %v10081
      %v10083 = vrot.slane %v10038, 2
      %v10084 = vrot.slane %v10039, 2
      %v10085 = vsel %vm6032, %v10083, %v10084
      %v10086 = vrot.slane %v10040, 2
      %v10087 = vrot.slane %v10041, 2
      %v10088 = vsel %vm6032, %v10086, %v10087
      %v10089 = vrot.slane %v10042, 2
      %v10090 = vrot.slane %v10043, 2
      %v10091 = vsel %vm6032, %v10089, %v10090
      %v10092 = vrot.slane %v10044, 2
      %v10093 = vrot.slane %v10045, 2
      %v10094 = vsel %vm6032, %v10092, %v10093
      %v10095 = vrot.slane %v10046, 2
      %v10096 = vrot.slane %v10047, 2
      %v10097 = vsel %vm6032, %v10095, %v10096
      %v10118 = vadd.f32 %v10005, %v10070
      %v10119 = vadd.f32 %v10006, %v10069
      %v10120 = vadd.f32 %v10007, %v10073
      %v10121 = vadd.f32 %v10008, %v10072
      %v10122 = vadd.f32 %v10009, %v10076
      %v10123 = vadd.f32 %v10010, %v10075
      %v10124 = vadd.f32 %v10011, %v10079
      %v10125 = vadd.f32 %v10012, %v10078
      %v10126 = vadd.f32 %v10013, %v10082
      %v10127 = vadd.f32 %v10014, %v10081
      %v10128 = vadd.f32 %v10015, %v10085
      %v10129 = vadd.f32 %v10016, %v10084
      %v10130 = vadd.f32 %v10017, %v10088
      %v10131 = vadd.f32 %v10018, %v10087
      %v10132 = vadd.f32 %v10019, %v10091
      %v10133 = vadd.f32 %v10020, %v10090
      %v10134 = vadd.f32 %v10021, %v10094
      %v10135 = vadd.f32 %v10022, %v10093
      %v10136 = vadd.f32 %v10023, %v10097
      %v10137 = vadd.f32 %v10024, %v10096
      %s10138 = sadd.s32 %s5514, 560
      %s10139 = sld [smem:[#allocation8 + %s10138]]
      %v10140 = vstv %s10139
      %v10141 = vmul.f32 %v5491, %v10140
      %v10142 = vmul.f32 %v5492, %v10140
      %v10143 = vmul.f32 %v5493, %v10140
      %v10144 = vmul.f32 %v5494, %v10140
      %v10145 = vmul.f32 %v5495, %v10140
      %v10146 = vmul.f32 %v5496, %v10140
      %v10147 = vmul.f32 %v5497, %v10140
      %v10148 = vmul.f32 %v5498, %v10140
      %v10149 = vmul.f32 %v5499, %v10140
      %v10150 = vmul.f32 %v5500, %v10140
      %v10151 = vmul.f32 %v5501, %v10140
      %v10152 = vmul.f32 %v5502, %v10140
      %v10153 = vmul.f32 %v5503, %v10140
      %v10154 = vmul.f32 %v5504, %v10140
      %v10155 = vmul.f32 %v5505, %v10140
      %v10156 = vmul.f32 %v5506, %v10140
      %v10157 = vmul.f32 %v5507, %v10140
      %v10158 = vmul.f32 %v5508, %v10140
      %v10159 = vmul.f32 %v5509, %v10140
      %v10160 = vmul.f32 %v5510, %v10140
      %v10181 = vrot.slane %v10141, 2
      %v10182 = vrot.slane %v10142, 2
      %v10183 = vsel %vm6032, %v10181, %v10182
      %v10184 = vrot.slane %v10143, 2
      %v10185 = vrot.slane %v10144, 2
      %v10186 = vsel %vm6032, %v10184, %v10185
      %v10187 = vrot.slane %v10145, 2
      %v10188 = vrot.slane %v10146, 2
      %v10189 = vsel %vm6032, %v10187, %v10188
      %v10190 = vrot.slane %v10147, 2
      %v10191 = vrot.slane %v10148, 2
      %v10192 = vsel %vm6032, %v10190, %v10191
      %v10193 = vrot.slane %v10149, 2
      %v10194 = vrot.slane %v10150, 2
      %v10195 = vsel %vm6032, %v10193, %v10194
      %v10196 = vrot.slane %v10151, 2
      %v10197 = vrot.slane %v10152, 2
      %v10198 = vsel %vm6032, %v10196, %v10197
      %v10199 = vrot.slane %v10153, 2
      %v10200 = vrot.slane %v10154, 2
      %v10201 = vsel %vm6032, %v10199, %v10200
      %v10202 = vrot.slane %v10155, 2
      %v10203 = vrot.slane %v10156, 2
      %v10204 = vsel %vm6032, %v10202, %v10203
      %v10205 = vrot.slane %v10157, 2
      %v10206 = vrot.slane %v10158, 2
      %v10207 = vsel %vm6032, %v10205, %v10206
      %v10208 = vrot.slane %v10159, 2
      %v10209 = vrot.slane %v10160, 2
      %v10210 = vsel %vm6032, %v10208, %v10209
      %v10231 = vadd.f32 %v10118, %v10183
      %v10232 = vadd.f32 %v10119, %v10182
      %v10233 = vadd.f32 %v10120, %v10186
      %v10234 = vadd.f32 %v10121, %v10185
      %v10235 = vadd.f32 %v10122, %v10189
      %v10236 = vadd.f32 %v10123, %v10188
      %v10237 = vadd.f32 %v10124, %v10192
      %v10238 = vadd.f32 %v10125, %v10191
      %v10239 = vadd.f32 %v10126, %v10195
      %v10240 = vadd.f32 %v10127, %v10194
      %v10241 = vadd.f32 %v10128, %v10198
      %v10242 = vadd.f32 %v10129, %v10197
      %v10243 = vadd.f32 %v10130, %v10201
      %v10244 = vadd.f32 %v10131, %v10200
      %v10245 = vadd.f32 %v10132, %v10204
      %v10246 = vadd.f32 %v10133, %v10203
      %v10247 = vadd.f32 %v10134, %v10207
      %v10248 = vadd.f32 %v10135, %v10206
      %v10249 = vadd.f32 %v10136, %v10210
      %v10250 = vadd.f32 %v10137, %v10209
      %s10251 = sadd.s32 %s5514, 848
      %s10252 = sld [smem:[#allocation8 + %s10251]]
      %v10253 = vstv %s10252
      %v10254 = vmul.f32 %v5493, %v10253
      %v10255 = vmul.f32 %v5494, %v10253
      %v10256 = vmul.f32 %v5495, %v10253
      %v10257 = vmul.f32 %v5496, %v10253
      %v10258 = vmul.f32 %v5497, %v10253
      %v10259 = vmul.f32 %v5498, %v10253
      %v10260 = vmul.f32 %v5499, %v10253
      %v10261 = vmul.f32 %v5500, %v10253
      %v10262 = vmul.f32 %v5501, %v10253
      %v10263 = vmul.f32 %v5502, %v10253
      %v10264 = vmul.f32 %v5503, %v10253
      %v10265 = vmul.f32 %v5504, %v10253
      %v10266 = vmul.f32 %v5505, %v10253
      %v10267 = vmul.f32 %v5506, %v10253
      %v10268 = vmul.f32 %v5507, %v10253
      %v10269 = vmul.f32 %v5508, %v10253
      %v10270 = vmul.f32 %v5509, %v10253
      %v10271 = vmul.f32 %v5510, %v10253
      %v10272 = vmul.f32 %v5511, %v10253
      %v10273 = vmul.f32 %v5512, %v10253
      %v10294 = vrot.slane %v10254, 2
      %v10295 = vrot.slane %v10255, 2
      %v10296 = vsel %vm6032, %v10294, %v10295
      %v10297 = vrot.slane %v10256, 2
      %v10298 = vrot.slane %v10257, 2
      %v10299 = vsel %vm6032, %v10297, %v10298
      %v10300 = vrot.slane %v10258, 2
      %v10301 = vrot.slane %v10259, 2
      %v10302 = vsel %vm6032, %v10300, %v10301
      %v10303 = vrot.slane %v10260, 2
      %v10304 = vrot.slane %v10261, 2
      %v10305 = vsel %vm6032, %v10303, %v10304
      %v10306 = vrot.slane %v10262, 2
      %v10307 = vrot.slane %v10263, 2
      %v10308 = vsel %vm6032, %v10306, %v10307
      %v10309 = vrot.slane %v10264, 2
      %v10310 = vrot.slane %v10265, 2
      %v10311 = vsel %vm6032, %v10309, %v10310
      %v10312 = vrot.slane %v10266, 2
      %v10313 = vrot.slane %v10267, 2
      %v10314 = vsel %vm6032, %v10312, %v10313
      %v10315 = vrot.slane %v10268, 2
      %v10316 = vrot.slane %v10269, 2
      %v10317 = vsel %vm6032, %v10315, %v10316
      %v10318 = vrot.slane %v10270, 2
      %v10319 = vrot.slane %v10271, 2
      %v10320 = vsel %vm6032, %v10318, %v10319
      %v10321 = vrot.slane %v10272, 2
      %v10322 = vrot.slane %v10273, 2
      %v10323 = vsel %vm6032, %v10321, %v10322
      %v10344 = vadd.f32 %v10231, %v10296
      %v10345 = vadd.f32 %v10232, %v10295
      %v10346 = vadd.f32 %v10233, %v10299
      %v10347 = vadd.f32 %v10234, %v10298
      %v10348 = vadd.f32 %v10235, %v10302
      %v10349 = vadd.f32 %v10236, %v10301
      %v10350 = vadd.f32 %v10237, %v10305
      %v10351 = vadd.f32 %v10238, %v10304
      %v10352 = vadd.f32 %v10239, %v10308
      %v10353 = vadd.f32 %v10240, %v10307
      %v10354 = vadd.f32 %v10241, %v10311
      %v10355 = vadd.f32 %v10242, %v10310
      %v10356 = vadd.f32 %v10243, %v10314
      %v10357 = vadd.f32 %v10244, %v10313
      %v10358 = vadd.f32 %v10245, %v10317
      %v10359 = vadd.f32 %v10246, %v10316
      %v10360 = vadd.f32 %v10247, %v10320
      %v10361 = vadd.f32 %v10248, %v10319
      %v10362 = vadd.f32 %v10249, %v10323
      %v10363 = vadd.f32 %v10250, %v10322
      %v10364 = vmax.f32 %v10344, 0.0
      %v10365 = vmax.f32 %v10345, 0.0
      %v10366 = vmax.f32 %v10346, 0.0
      %v10367 = vmax.f32 %v10347, 0.0
      %v10368 = vmax.f32 %v10348, 0.0
      %v10369 = vmax.f32 %v10349, 0.0
      %v10370 = vmax.f32 %v10350, 0.0
      %v10371 = vmax.f32 %v10351, 0.0
      %v10372 = vmax.f32 %v10352, 0.0
      %v10373 = vmax.f32 %v10353, 0.0
      %v10374 = vmax.f32 %v10354, 0.0
      %v10375 = vmax.f32 %v10355, 0.0
      %v10376 = vmax.f32 %v10356, 0.0
      %v10377 = vmax.f32 %v10357, 0.0
      %v10378 = vmax.f32 %v10358, 0.0
      %v10379 = vmax.f32 %v10359, 0.0
      %v10380 = vmax.f32 %v10360, 0.0
      %v10381 = vmax.f32 %v10361, 0.0
      %v10382 = vmax.f32 %v10362, 0.0
      %v10383 = vmax.f32 %v10363, 0.0
      %v10384 = vmax.f32 %v10364, %v10366
      %v10385 = vmax.f32 %v10365, %v10367
      %v10386 = vmax.f32 %v10368, %v10370
      %v10387 = vmax.f32 %v10369, %v10371
      %v10388 = vmax.f32 %v10372, %v10374
      %v10389 = vmax.f32 %v10373, %v10375
      %v10390 = vmax.f32 %v10376, %v10378
      %v10391 = vmax.f32 %v10377, %v10379
      %v10392 = vmax.f32 %v10380, %v10382
      %v10393 = vmax.f32 %v10381, %v10383
      %v10404 = vrot.slane %v10384, 1
      %v10405 = vrot.slane %v10385, 1
      %v10406 = vsel %vm5692, %v10404, %v10405
      %v10407 = vrot.slane %v10386, 1
      %v10408 = vrot.slane %v10387, 1
      %v10409 = vsel %vm5692, %v10407, %v10408
      %v10410 = vrot.slane %v10388, 1
      %v10411 = vrot.slane %v10389, 1
      %v10412 = vsel %vm5692, %v10410, %v10411
      %v10413 = vrot.slane %v10390, 1
      %v10414 = vrot.slane %v10391, 1
      %v10415 = vsel %vm5692, %v10413, %v10414
      %v10416 = vrot.slane %v10392, 1
      %v10417 = vrot.slane %v10393, 1
      %v10418 = vsel %vm5692, %v10416, %v10417
      %v10429 = vmax.f32 %v10384, %v10406
      %v10430 = vmax.f32 %v10385, %v10405
      %v10431 = vmax.f32 %v10386, %v10409
      %v10432 = vmax.f32 %v10387, %v10408
      %v10433 = vmax.f32 %v10388, %v10412
      %v10434 = vmax.f32 %v10389, %v10411
      %v10435 = vmax.f32 %v10390, %v10415
      %v10436 = vmax.f32 %v10391, %v10414
      %v10437 = vmax.f32 %v10392, %v10418
      %v10438 = vmax.f32 %v10393, %v10417
      %vm10439 = vcmask 1040384
      %v10440 = vsel %vm10439, %v10430, 0.0
      %v10441 = vsel %vm10439, %v10432, 0.0
      %v10442 = vsel %vm10439, %v10434, 0.0
      %v10443 = vsel %vm10439, %v10436, 0.0
      %v10444 = vsel %vm10439, %v10438, 0.0
      %s10445 = smul.u32 %s5514, 80
      %s10446 = scalar_lea.vmem [#allocation2], %s10445
      %10447 = vst [vmem:[%s10446] sm:$0xff] %v10429
      %10448 = vst [vmem:[%s10446 + $0x8] sm:$0xff] %v10440
      %s10449 = smul.u32 %s5514, 5
      %s10450 = sadd.s32 %s10449, 1
      %s10451 = smul.u32 %s10450, 16
      %s10452 = scalar_lea.vmem [#allocation2], %s10451
      %10453 = vst [vmem:[%s10452] sm:$0xff] %v10431
      %10454 = vst [vmem:[%s10452 + $0x8] sm:$0xff] %v10441
      %s10455 = sadd.s32 %s10449, 2
      %s10456 = smul.u32 %s10455, 16
      %s10457 = scalar_lea.vmem [#allocation2], %s10456
      %10458 = vst [vmem:[%s10457] sm:$0xff] %v10433
      %10459 = vst [vmem:[%s10457 + $0x8] sm:$0xff] %v10442
      %s10460 = sadd.s32 %s10449, 3
      %s10461 = smul.u32 %s10460, 16
      %s10462 = scalar_lea.vmem [#allocation2], %s10461
      %10463 = vst [vmem:[%s10462] sm:$0xff] %v10435
      %10464 = vst [vmem:[%s10462 + $0x8] sm:$0xff] %v10443
      %s10465 = sadd.s32 %s10449, 4
      %s10466 = smul.u32 %s10465, 16
      %s10467 = scalar_lea.vmem [#allocation2], %s10466
      %10468 = vst [vmem:[%s10467] sm:$0xff] %v10437
      %10469 = vst [vmem:[%s10467 + $0x8] sm:$0xff] %v10444
    $region73: #{convnet_forward.1} parent=1 // loop_footer
      %s5518 = sadd.s32 1, %s5514
    $region74: #{convnet_forward.1} parent=1 // loop_footer_branch
      %5513 = sbr.rel target = $region70
    $region75: #{convnet_forward.1} parent=1 // loop_exit
      _
    %v10470 = vld [vmem:[#allocation2] sm:$0xff]
    %v10471 = vld [vmem:[#allocation2 + $0x8] sm:$0xff]
    %v10472 = vld [vmem:[#allocation2 + $0x10] sm:$0xff]
    %v10473 = vld [vmem:[#allocation2 + $0x18] sm:$0xff]
    %v10474 = vld [vmem:[#allocation2 + $0x20] sm:$0xff]
    %v10475 = vld [vmem:[#allocation2 + $0x28] sm:$0xff]
    %v10476 = vld [vmem:[#allocation2 + $0x30] sm:$0xff]
    %v10477 = vld [vmem:[#allocation2 + $0x38] sm:$0xff]
    %v10478 = vld [vmem:[#allocation2 + $0x40] sm:$0xff]
    %v10479 = vld [vmem:[#allocation2 + $0x48] sm:$0xff]
    %v10480 = vld [vmem:[#allocation2 + $0x50] sm:$0xff]
    %v10481 = vld [vmem:[#allocation2 + $0x58] sm:$0xff]
    %v10482 = vld [vmem:[#allocation2 + $0x60] sm:$0xff]
    %v10483 = vld [vmem:[#allocation2 + $0x68] sm:$0xff]
    %v10484 = vld [vmem:[#allocation2 + $0x70] sm:$0xff]
    %v10485 = vld [vmem:[#allocation2 + $0x78] sm:$0xff]
    %v10486 = vld [vmem:[#allocation2 + $0x80] sm:$0xff]
    %v10487 = vld [vmem:[#allocation2 + $0x88] sm:$0xff]
    %v10488 = vld [vmem:[#allocation2 + $0x90] sm:$0xff]
    %v10489 = vld [vmem:[#allocation2 + $0x98] sm:$0xff]
    %v10490 = vld [vmem:[#allocation2 + $0xa0] sm:$0xff]
    %v10491 = vld [vmem:[#allocation2 + $0xa8] sm:$0xff]
    %v10492 = vld [vmem:[#allocation2 + $0xb0] sm:$0xff]
    %v10493 = vld [vmem:[#allocation2 + $0xb8] sm:$0xff]
    %v10494 = vld [vmem:[#allocation2 + $0xc0] sm:$0xff]
    %v10495 = vld [vmem:[#allocation2 + $0xc8] sm:$0xff]
    %v10496 = vld [vmem:[#allocation2 + $0xd0] sm:$0xff]
    %v10497 = vld [vmem:[#allocation2 + $0xd8] sm:$0xff]
    %v10498 = vld [vmem:[#allocation2 + $0xe0] sm:$0xff]
    %v10499 = vld [vmem:[#allocation2 + $0xe8] sm:$0xff]
    %v10500 = vld [vmem:[#allocation2 + $0xf0] sm:$0xff]
    %v10501 = vld [vmem:[#allocation2 + $0xf8] sm:$0xff]
    %v10502 = vld [vmem:[#allocation2 + $0x100] sm:$0xff]
    %v10503 = vld [vmem:[#allocation2 + $0x108] sm:$0xff]
    %v10504 = vld [vmem:[#allocation2 + $0x110] sm:$0xff]
    %v10505 = vld [vmem:[#allocation2 + $0x118] sm:$0xff]
    %v10506 = vld [vmem:[#allocation2 + $0x120] sm:$0xff]
    %v10507 = vld [vmem:[#allocation2 + $0x128] sm:$0xff]
    %v10508 = vld [vmem:[#allocation2 + $0x130] sm:$0xff]
    %v10509 = vld [vmem:[#allocation2 + $0x138] sm:$0xff]
    %v10510 = vld [vmem:[#allocation2 + $0x140] sm:$0xff]
    %v10511 = vld [vmem:[#allocation2 + $0x148] sm:$0xff]
    %v10512 = vld [vmem:[#allocation2 + $0x150] sm:$0xff]
    %v10513 = vld [vmem:[#allocation2 + $0x158] sm:$0xff]
    %v10514 = vld [vmem:[#allocation2 + $0x160] sm:$0xff]
    %v10515 = vld [vmem:[#allocation2 + $0x168] sm:$0xff]
    %v10516 = vld [vmem:[#allocation2 + $0x170] sm:$0xff]
    %v10517 = vld [vmem:[#allocation2 + $0x178] sm:$0xff]
    %v10518 = vld [vmem:[#allocation2 + $0x180] sm:$0xff]
    %v10519 = vld [vmem:[#allocation2 + $0x188] sm:$0xff]
    %v10520 = vld [vmem:[#allocation2 + $0x190] sm:$0xff]
    %v10521 = vld [vmem:[#allocation2 + $0x198] sm:$0xff]
    %v10522 = vld [vmem:[#allocation2 + $0x1a0] sm:$0xff]
    %v10523 = vld [vmem:[#allocation2 + $0x1a8] sm:$0xff]
    %v10524 = vld [vmem:[#allocation2 + $0x1b0] sm:$0xff]
    %v10525 = vld [vmem:[#allocation2 + $0x1b8] sm:$0xff]
    %v10526 = vld [vmem:[#allocation2 + $0x1c0] sm:$0xff]
    %v10527 = vld [vmem:[#allocation2 + $0x1c8] sm:$0xff]
    %v10528 = vld [vmem:[#allocation2 + $0x1d0] sm:$0xff]
    %v10529 = vld [vmem:[#allocation2 + $0x1d8] sm:$0xff]
    %v10530 = vld [vmem:[#allocation2 + $0x1e0] sm:$0xff]
    %v10531 = vld [vmem:[#allocation2 + $0x1e8] sm:$0xff]
    %v10532 = vld [vmem:[#allocation2 + $0x1f0] sm:$0xff]
    %v10533 = vld [vmem:[#allocation2 + $0x1f8] sm:$0xff]
    %v10534 = vld [vmem:[#allocation2 + $0x200] sm:$0xff]
    %v10535 = vld [vmem:[#allocation2 + $0x208] sm:$0xff]
    %v10536 = vld [vmem:[#allocation2 + $0x210] sm:$0xff]
    %v10537 = vld [vmem:[#allocation2 + $0x218] sm:$0xff]
    %v10538 = vld [vmem:[#allocation2 + $0x220] sm:$0xff]
    %v10539 = vld [vmem:[#allocation2 + $0x228] sm:$0xff]
    %v10540 = vld [vmem:[#allocation2 + $0x230] sm:$0xff]
    %v10541 = vld [vmem:[#allocation2 + $0x238] sm:$0xff]
    %v10542 = vld [vmem:[#allocation2 + $0x240] sm:$0xff]
    %v10543 = vld [vmem:[#allocation2 + $0x248] sm:$0xff]
    %v10544 = vld [vmem:[#allocation2 + $0x250] sm:$0xff]
    %v10545 = vld [vmem:[#allocation2 + $0x258] sm:$0xff]
    %v10546 = vld [vmem:[#allocation2 + $0x260] sm:$0xff]
    %v10547 = vld [vmem:[#allocation2 + $0x268] sm:$0xff]
    %v10548 = vld [vmem:[#allocation2 + $0x270] sm:$0xff]
    %v10549 = vld [vmem:[#allocation2 + $0x278] sm:$0xff]
    %v10550 = vld [vmem:[#allocation2 + $0x280] sm:$0xff]
    %v10551 = vld [vmem:[#allocation2 + $0x288] sm:$0xff]
    %v10552 = vld [vmem:[#allocation2 + $0x290] sm:$0xff]
    %v10553 = vld [vmem:[#allocation2 + $0x298] sm:$0xff]
    %v10554 = vld [vmem:[#allocation2 + $0x2a0] sm:$0xff]
    %v10555 = vld [vmem:[#allocation2 + $0x2a8] sm:$0xff]
    %v10556 = vld [vmem:[#allocation2 + $0x2b0] sm:$0xff]
    %v10557 = vld [vmem:[#allocation2 + $0x2b8] sm:$0xff]
    %v10558 = vld [vmem:[#allocation2 + $0x2c0] sm:$0xff]
    %v10559 = vld [vmem:[#allocation2 + $0x2c8] sm:$0xff]
    %v10560 = vld [vmem:[#allocation2 + $0x2d0] sm:$0xff]
    %v10561 = vld [vmem:[#allocation2 + $0x2d8] sm:$0xff]
    %v10562 = vld [vmem:[#allocation2 + $0x2e0] sm:$0xff]
    %v10563 = vld [vmem:[#allocation2 + $0x2e8] sm:$0xff]
    %v10564 = vld [vmem:[#allocation2 + $0x2f0] sm:$0xff]
    %v10565 = vld [vmem:[#allocation2 + $0x2f8] sm:$0xff]
    %v10566 = vld [vmem:[#allocation2 + $0x300] sm:$0xff]
    %v10567 = vld [vmem:[#allocation2 + $0x308] sm:$0xff]
    %v10568 = vld [vmem:[#allocation2 + $0x310] sm:$0xff]
    %v10569 = vld [vmem:[#allocation2 + $0x318] sm:$0xff]
    %v10570 = vld [vmem:[#allocation2 + $0x320] sm:$0xff]
    %v10571 = vld [vmem:[#allocation2 + $0x328] sm:$0xff]
    %v10572 = vld [vmem:[#allocation2 + $0x330] sm:$0xff]
    %v10573 = vld [vmem:[#allocation2 + $0x338] sm:$0xff]
    %v10574 = vld [vmem:[#allocation2 + $0x340] sm:$0xff]
    %v10575 = vld [vmem:[#allocation2 + $0x348] sm:$0xff]
    %v10576 = vld [vmem:[#allocation2 + $0x350] sm:$0xff]
    %v10577 = vld [vmem:[#allocation2 + $0x358] sm:$0xff]
    %v10578 = vld [vmem:[#allocation2 + $0x360] sm:$0xff]
    %v10579 = vld [vmem:[#allocation2 + $0x368] sm:$0xff]
    %v10580 = vld [vmem:[#allocation2 + $0x370] sm:$0xff]
    %v10581 = vld [vmem:[#allocation2 + $0x378] sm:$0xff]
    %v10582 = vld [vmem:[#allocation2 + $0x380] sm:$0xff]
    %v10583 = vld [vmem:[#allocation2 + $0x388] sm:$0xff]
    %v10584 = vld [vmem:[#allocation2 + $0x390] sm:$0xff]
    %v10585 = vld [vmem:[#allocation2 + $0x398] sm:$0xff]
    %v10586 = vld [vmem:[#allocation2 + $0x3a0] sm:$0xff]
    %v10587 = vld [vmem:[#allocation2 + $0x3a8] sm:$0xff]
    %v10588 = vld [vmem:[#allocation2 + $0x3b0] sm:$0xff]
    %v10589 = vld [vmem:[#allocation2 + $0x3b8] sm:$0xff]
    %v10590 = vld [vmem:[#allocation2 + $0x3c0] sm:$0xff]
    %v10591 = vld [vmem:[#allocation2 + $0x3c8] sm:$0xff]
    %v10592 = vld [vmem:[#allocation2 + $0x3d0] sm:$0xff]
    %v10593 = vld [vmem:[#allocation2 + $0x3d8] sm:$0xff]
    %v10594 = vld [vmem:[#allocation2 + $0x3e0] sm:$0xff]
    %v10595 = vld [vmem:[#allocation2 + $0x3e8] sm:$0xff]
    %v10596 = vld [vmem:[#allocation2 + $0x3f0] sm:$0xff]
    %v10597 = vld [vmem:[#allocation2 + $0x3f8] sm:$0xff]
    %v10598 = vld [vmem:[#allocation2 + $0x400] sm:$0xff]
    %v10599 = vld [vmem:[#allocation2 + $0x408] sm:$0xff]
    %v10600 = vld [vmem:[#allocation2 + $0x410] sm:$0xff]
    %v10601 = vld [vmem:[#allocation2 + $0x418] sm:$0xff]
    %v10602 = vld [vmem:[#allocation2 + $0x420] sm:$0xff]
    %v10603 = vld [vmem:[#allocation2 + $0x428] sm:$0xff]
    %v10604 = vld [vmem:[#allocation2 + $0x430] sm:$0xff]
    %v10605 = vld [vmem:[#allocation2 + $0x438] sm:$0xff]
    %v10606 = vld [vmem:[#allocation2 + $0x440] sm:$0xff]
    %v10607 = vld [vmem:[#allocation2 + $0x448] sm:$0xff]
    %v10608 = vld [vmem:[#allocation2 + $0x450] sm:$0xff]
    %v10609 = vld [vmem:[#allocation2 + $0x458] sm:$0xff]
    %v10610 = vld [vmem:[#allocation2 + $0x460] sm:$0xff]
    %v10611 = vld [vmem:[#allocation2 + $0x468] sm:$0xff]
    %v10612 = vld [vmem:[#allocation2 + $0x470] sm:$0xff]
    %v10613 = vld [vmem:[#allocation2 + $0x478] sm:$0xff]
    %v10614 = vld [vmem:[#allocation2 + $0x480] sm:$0xff]
    %v10615 = vld [vmem:[#allocation2 + $0x488] sm:$0xff]
    %v10616 = vld [vmem:[#allocation2 + $0x490] sm:$0xff]
    %v10617 = vld [vmem:[#allocation2 + $0x498] sm:$0xff]
    %v10618 = vld [vmem:[#allocation2 + $0x4a0] sm:$0xff]
    %v10619 = vld [vmem:[#allocation2 + $0x4a8] sm:$0xff]
    %v10620 = vld [vmem:[#allocation2 + $0x4b0] sm:$0xff]
    %v10621 = vld [vmem:[#allocation2 + $0x4b8] sm:$0xff]
    %v10622 = vld [vmem:[#allocation2 + $0x4c0] sm:$0xff]
    %v10623 = vld [vmem:[#allocation2 + $0x4c8] sm:$0xff]
    %v10624 = vld [vmem:[#allocation2 + $0x4d0] sm:$0xff]
    %v10625 = vld [vmem:[#allocation2 + $0x4d8] sm:$0xff]
    %v10626 = vld [vmem:[#allocation2 + $0x4e0] sm:$0xff]
    %v10627 = vld [vmem:[#allocation2 + $0x4e8] sm:$0xff]
    %v10628 = vld [vmem:[#allocation2 + $0x4f0] sm:$0xff]
    %v10629 = vld [vmem:[#allocation2 + $0x4f8] sm:$0xff]
    %v10630 = vld [vmem:[%s5] sm:$0xff]
    %v10631 = vld [vmem:[%s5 + $0x8] sm:$0xff]
    %v10632 = vld [vmem:[%s5 + $0x10] sm:$0xff]
    %v10633 = vld [vmem:[%s5 + $0x18] sm:$0xff]
    %v10634 = vld [vmem:[%s5 + $0x20] sm:$0xff]
    %v10635 = vld [vmem:[%s5 + $0x28] sm:$0xff]
    %v10636 = vld [vmem:[%s5 + $0x30] sm:$0xff]
    %v10637 = vld [vmem:[%s5 + $0x38] sm:$0xff]
    %v10638 = vld [vmem:[%s5 + $0x40] sm:$0xff]
    %v10639 = vld [vmem:[%s5 + $0x48] sm:$0xff]
    %v10640 = vld [vmem:[%s5 + $0x50] sm:$0xff]
    %v10641 = vld [vmem:[%s5 + $0x58] sm:$0xff]
    %v10642 = vld [vmem:[%s5 + $0x60] sm:$0xff]
    %v10643 = vld [vmem:[%s5 + $0x68] sm:$0xff]
    %v10644 = vld [vmem:[%s5 + $0x70] sm:$0xff]
    %v10645 = vld [vmem:[%s5 + $0x78] sm:$0xff]
    %v10646 = vld [vmem:[%s5 + $0x80] sm:$0xff]
    %v10647 = vld [vmem:[%s5 + $0x88] sm:$0xff]
    %v10648 = vld [vmem:[%s5 + $0x90] sm:$0xff]
    %v10649 = vld [vmem:[%s5 + $0x98] sm:$0xff]
    %v10650 = vld [vmem:[%s5 + $0xa0] sm:$0xff]
    %v10651 = vld [vmem:[%s5 + $0xa8] sm:$0xff]
    %v10652 = vld [vmem:[%s5 + $0xb0] sm:$0xff]
    %v10653 = vld [vmem:[%s5 + $0xb8] sm:$0xff]
    %v10654 = vld [vmem:[%s5 + $0xc0] sm:$0xff]
    %v10655 = vld [vmem:[%s5 + $0xc8] sm:$0xff]
    %v10656 = vld [vmem:[%s5 + $0xd0] sm:$0xff]
    %v10657 = vld [vmem:[%s5 + $0xd8] sm:$0xff]
    %v10658 = vld [vmem:[%s5 + $0xe0] sm:$0xff]
    %v10659 = vld [vmem:[%s5 + $0xe8] sm:$0xff]
    %v10660 = vld [vmem:[%s5 + $0xf0] sm:$0xff]
    %v10661 = vld [vmem:[%s5 + $0xf8] sm:$0xff]
    %v10662 = vld [vmem:[%s5 + $0x100] sm:$0xff]
    %v10663 = vld [vmem:[%s5 + $0x108] sm:$0xff]
    %v10664 = vld [vmem:[%s5 + $0x110] sm:$0xff]
    %v10665 = vld [vmem:[%s5 + $0x118] sm:$0xff]
    %v10666 = vld [vmem:[%s5 + $0x120] sm:$0xff]
    %v10667 = vld [vmem:[%s5 + $0x128] sm:$0xff]
    %v10668 = vld [vmem:[%s5 + $0x130] sm:$0xff]
    %v10669 = vld [vmem:[%s5 + $0x138] sm:$0xff]
    %v10670 = vld [vmem:[%s5 + $0x140] sm:$0xff]
    %v10671 = vld [vmem:[%s5 + $0x148] sm:$0xff]
    %v10672 = vld [vmem:[%s5 + $0x150] sm:$0xff]
    %v10673 = vld [vmem:[%s5 + $0x158] sm:$0xff]
    %v10674 = vld [vmem:[%s5 + $0x160] sm:$0xff]
    %v10675 = vld [vmem:[%s5 + $0x168] sm:$0xff]
    %v10676 = vld [vmem:[%s5 + $0x170] sm:$0xff]
    %v10677 = vld [vmem:[%s5 + $0x178] sm:$0xff]
    %v10678 = vld [vmem:[%s5 + $0x180] sm:$0xff]
    %v10679 = vld [vmem:[%s5 + $0x188] sm:$0xff]
    %v10680 = vld [vmem:[%s5 + $0x190] sm:$0xff]
    %v10681 = vld [vmem:[%s5 + $0x198] sm:$0xff]
    %v10682 = vld [vmem:[%s5 + $0x1a0] sm:$0xff]
    %v10683 = vld [vmem:[%s5 + $0x1a8] sm:$0xff]
    %v10684 = vld [vmem:[%s5 + $0x1b0] sm:$0xff]
    %v10685 = vld [vmem:[%s5 + $0x1b8] sm:$0xff]
    %v10686 = vld [vmem:[%s5 + $0x1c0] sm:$0xff]
    %v10687 = vld [vmem:[%s5 + $0x1c8] sm:$0xff]
    %v10688 = vld [vmem:[%s5 + $0x1d0] sm:$0xff]
    %v10689 = vld [vmem:[%s5 + $0x1d8] sm:$0xff]
    %v10690 = vld [vmem:[%s5 + $0x1e0] sm:$0xff]
    %v10691 = vld [vmem:[%s5 + $0x1e8] sm:$0xff]
    %v10692 = vld [vmem:[%s5 + $0x1f0] sm:$0xff]
    %v10693 = vld [vmem:[%s5 + $0x1f8] sm:$0xff]
    %v10694 = vld [vmem:[%s5 + $0x200] sm:$0xff]
    %v10695 = vld [vmem:[%s5 + $0x208] sm:$0xff]
    %v10696 = vld [vmem:[%s5 + $0x210] sm:$0xff]
    %v10697 = vld [vmem:[%s5 + $0x218] sm:$0xff]
    %v10698 = vld [vmem:[%s5 + $0x220] sm:$0xff]
    %v10699 = vld [vmem:[%s5 + $0x228] sm:$0xff]
    %v10700 = vld [vmem:[%s5 + $0x230] sm:$0xff]
    %v10701 = vld [vmem:[%s5 + $0x238] sm:$0xff]
    %v10702 = vld [vmem:[%s5 + $0x240] sm:$0xff]
    %v10703 = vld [vmem:[%s5 + $0x248] sm:$0xff]
    %v10704 = vld [vmem:[%s5 + $0x250] sm:$0xff]
    %v10705 = vld [vmem:[%s5 + $0x258] sm:$0xff]
    %v10706 = vld [vmem:[%s5 + $0x260] sm:$0xff]
    %v10707 = vld [vmem:[%s5 + $0x268] sm:$0xff]
    %v10708 = vld [vmem:[%s5 + $0x270] sm:$0xff]
    %v10709 = vld [vmem:[%s5 + $0x278] sm:$0xff]
    %v10710 = vld [vmem:[%s5 + $0x280] sm:$0xff]
    %v10711 = vld [vmem:[%s5 + $0x288] sm:$0xff]
    %v10712 = vld [vmem:[%s5 + $0x290] sm:$0xff]
    %v10713 = vld [vmem:[%s5 + $0x298] sm:$0xff]
    %v10714 = vld [vmem:[%s5 + $0x2a0] sm:$0xff]
    %v10715 = vld [vmem:[%s5 + $0x2a8] sm:$0xff]
    %v10716 = vld [vmem:[%s5 + $0x2b0] sm:$0xff]
    %v10717 = vld [vmem:[%s5 + $0x2b8] sm:$0xff]
    %v10718 = vld [vmem:[%s5 + $0x2c0] sm:$0xff]
    %v10719 = vld [vmem:[%s5 + $0x2c8] sm:$0xff]
    %v10720 = vld [vmem:[%s5 + $0x2d0] sm:$0xff]
    %v10721 = vld [vmem:[%s5 + $0x2d8] sm:$0xff]
    %v10722 = vld [vmem:[%s5 + $0x2e0] sm:$0xff]
    %v10723 = vld [vmem:[%s5 + $0x2e8] sm:$0xff]
    %v10724 = vld [vmem:[%s5 + $0x2f0] sm:$0xff]
    %v10725 = vld [vmem:[%s5 + $0x2f8] sm:$0xff]
    %v10726 = vld [vmem:[%s5 + $0x300] sm:$0xff]
    %v10727 = vld [vmem:[%s5 + $0x308] sm:$0xff]
    %v10728 = vld [vmem:[%s5 + $0x310] sm:$0xff]
    %v10729 = vld [vmem:[%s5 + $0x318] sm:$0xff]
    %v10730 = vld [vmem:[%s5 + $0x320] sm:$0xff]
    %v10731 = vld [vmem:[%s5 + $0x328] sm:$0xff]
    %v10732 = vld [vmem:[%s5 + $0x330] sm:$0xff]
    %v10733 = vld [vmem:[%s5 + $0x338] sm:$0xff]
    %v10734 = vld [vmem:[%s5 + $0x340] sm:$0xff]
    %v10735 = vld [vmem:[%s5 + $0x348] sm:$0xff]
    %v10736 = vld [vmem:[%s5 + $0x350] sm:$0xff]
    %v10737 = vld [vmem:[%s5 + $0x358] sm:$0xff]
    %v10738 = vld [vmem:[%s5 + $0x360] sm:$0xff]
    %v10739 = vld [vmem:[%s5 + $0x368] sm:$0xff]
    %v10740 = vld [vmem:[%s5 + $0x370] sm:$0xff]
    %v10741 = vld [vmem:[%s5 + $0x378] sm:$0xff]
    %v10742 = vld [vmem:[%s5 + $0x380] sm:$0xff]
    %v10743 = vld [vmem:[%s5 + $0x388] sm:$0xff]
    %v10744 = vld [vmem:[%s5 + $0x390] sm:$0xff]
    %v10745 = vld [vmem:[%s5 + $0x398] sm:$0xff]
    %v10746 = vld [vmem:[%s5 + $0x3a0] sm:$0xff]
    %v10747 = vld [vmem:[%s5 + $0x3a8] sm:$0xff]
    %v10748 = vld [vmem:[%s5 + $0x3b0] sm:$0xff]
    %v10749 = vld [vmem:[%s5 + $0x3b8] sm:$0xff]
    %v10750 = vld [vmem:[%s5 + $0x3c0] sm:$0xff]
    %v10751 = vld [vmem:[%s5 + $0x3c8] sm:$0xff]
    %v10752 = vld [vmem:[%s5 + $0x3d0] sm:$0xff]
    %v10753 = vld [vmem:[%s5 + $0x3d8] sm:$0xff]
    %v10754 = vld [vmem:[%s5 + $0x3e0] sm:$0xff]
    %v10755 = vld [vmem:[%s5 + $0x3e8] sm:$0xff]
    %v10756 = vld [vmem:[%s5 + $0x3f0] sm:$0xff]
    %v10757 = vld [vmem:[%s5 + $0x3f8] sm:$0xff]
    %v10758 = vld [vmem:[%s5 + $0x400] sm:$0xff]
    %v10759 = vld [vmem:[%s5 + $0x408] sm:$0xff]
    %v10760 = vld [vmem:[%s5 + $0x410] sm:$0xff]
    %v10761 = vld [vmem:[%s5 + $0x418] sm:$0xff]
    %v10762 = vld [vmem:[%s5 + $0x420] sm:$0xff]
    %v10763 = vld [vmem:[%s5 + $0x428] sm:$0xff]
    %v10764 = vld [vmem:[%s5 + $0x430] sm:$0xff]
    %v10765 = vld [vmem:[%s5 + $0x438] sm:$0xff]
    %v10766 = vld [vmem:[%s5 + $0x440] sm:$0xff]
    %v10767 = vld [vmem:[%s5 + $0x448] sm:$0xff]
    %v10768 = vld [vmem:[%s5 + $0x450] sm:$0xff]
    %v10769 = vld [vmem:[%s5 + $0x458] sm:$0xff]
    %v10770 = vld [vmem:[%s5 + $0x460] sm:$0xff]
    %v10771 = vld [vmem:[%s5 + $0x468] sm:$0xff]
    %v10772 = vld [vmem:[%s5 + $0x470] sm:$0xff]
    %v10773 = vld [vmem:[%s5 + $0x478] sm:$0xff]
    %v10774 = vld [vmem:[%s5 + $0x480] sm:$0xff]
    %v10775 = vld [vmem:[%s5 + $0x488] sm:$0xff]
    %v10776 = vld [vmem:[%s5 + $0x490] sm:$0xff]
    %v10777 = vld [vmem:[%s5 + $0x498] sm:$0xff]
    %v10778 = vld [vmem:[%s5 + $0x4a0] sm:$0xff]
    %v10779 = vld [vmem:[%s5 + $0x4a8] sm:$0xff]
    %v10780 = vld [vmem:[%s5 + $0x4b0] sm:$0xff]
    %v10781 = vld [vmem:[%s5 + $0x4b8] sm:$0xff]
    %v10782 = vld [vmem:[%s5 + $0x4c0] sm:$0xff]
    %v10783 = vld [vmem:[%s5 + $0x4c8] sm:$0xff]
    %v10784 = vld [vmem:[%s5 + $0x4d0] sm:$0xff]
    %v10785 = vld [vmem:[%s5 + $0x4d8] sm:$0xff]
    %v10786 = vld [vmem:[%s5 + $0x4e0] sm:$0xff]
    %v10787 = vld [vmem:[%s5 + $0x4e8] sm:$0xff]
    %v10788 = vld [vmem:[%s5 + $0x4f0] sm:$0xff]
    %v10789 = vld [vmem:[%s5 + $0x4f8] sm:$0xff]
    %v10790 = vld [vmem:[%s6] sm:$0xff]
    %v10791 = vld [vmem:[%s6 + $0x8] sm:$0xff]
    %v10792 = vld [vmem:[%s6 + $0x10] sm:$0xff]
    %v10793 = vld [vmem:[%s6 + $0x18] sm:$0xff]
    %v10794 = vld [vmem:[%s6 + $0x20] sm:$0xff]
    %v10795 = vld [vmem:[%s6 + $0x28] sm:$0xff]
    %v10796 = vld [vmem:[%s6 + $0x30] sm:$0xff]
    %v10797 = vld [vmem:[%s6 + $0x38] sm:$0xff]
    %v10798 = vld [vmem:[%s6 + $0x40] sm:$0xff]
    %v10799 = vld [vmem:[%s6 + $0x48] sm:$0xff]
    %v10800 = vld [vmem:[%s6 + $0x50] sm:$0xff]
    %v10801 = vld [vmem:[%s6 + $0x58] sm:$0xff]
    %v10802 = vld [vmem:[%s6 + $0x60] sm:$0xff]
    %v10803 = vld [vmem:[%s6 + $0x68] sm:$0xff]
    %v10804 = vld [vmem:[%s6 + $0x70] sm:$0xff]
    %v10805 = vld [vmem:[%s6 + $0x78] sm:$0xff]
    %10807 = vset.pattern.permute.xlu0 0
    %10808 = vperm.xlu0 %10807, %v10790
    %v10809 = vpop.permute.xlu0 %10808
    %10812 = vset.pattern.permute.xlu0 0
    %10813 = vperm.xlu0 %10812, %v10791
    %v10814 = vpop.permute.xlu0 %10813
    %10817 = vset.pattern.permute.xlu0 0
    %10818 = vperm.xlu0 %10817, %v10792
    %v10819 = vpop.permute.xlu0 %10818
    %10822 = vset.pattern.permute.xlu0 0
    %10823 = vperm.xlu0 %10822, %v10793
    %v10824 = vpop.permute.xlu0 %10823
    %10827 = vset.pattern.permute.xlu0 0
    %10828 = vperm.xlu0 %10827, %v10794
    %v10829 = vpop.permute.xlu0 %10828
    %10832 = vset.pattern.permute.xlu0 0
    %10833 = vperm.xlu0 %10832, %v10795
    %v10834 = vpop.permute.xlu0 %10833
    %10837 = vset.pattern.permute.xlu0 0
    %10838 = vperm.xlu0 %10837, %v10796
    %v10839 = vpop.permute.xlu0 %10838
    %10842 = vset.pattern.permute.xlu0 0
    %10843 = vperm.xlu0 %10842, %v10797
    %v10844 = vpop.permute.xlu0 %10843
    %10847 = vset.pattern.permute.xlu0 0
    %10848 = vperm.xlu0 %10847, %v10798
    %v10849 = vpop.permute.xlu0 %10848
    %10852 = vset.pattern.permute.xlu0 0
    %10853 = vperm.xlu0 %10852, %v10799
    %v10854 = vpop.permute.xlu0 %10853
    %10857 = vset.pattern.permute.xlu0 0
    %10858 = vperm.xlu0 %10857, %v10800
    %v10859 = vpop.permute.xlu0 %10858
    %10862 = vset.pattern.permute.xlu0 0
    %10863 = vperm.xlu0 %10862, %v10801
    %v10864 = vpop.permute.xlu0 %10863
    %10867 = vset.pattern.permute.xlu0 0
    %10868 = vperm.xlu0 %10867, %v10802
    %v10869 = vpop.permute.xlu0 %10868
    %10872 = vset.pattern.permute.xlu0 0
    %10873 = vperm.xlu0 %10872, %v10803
    %v10874 = vpop.permute.xlu0 %10873
    %10877 = vset.pattern.permute.xlu0 0
    %10878 = vperm.xlu0 %10877, %v10804
    %v10879 = vpop.permute.xlu0 %10878
    %10882 = vset.pattern.permute.xlu0 0
    %10883 = vperm.xlu0 %10882, %v10805
    %v10884 = vpop.permute.xlu0 %10883
    %10886 = vmatprep.subr.mxu0 0.0
    %10887 = vmatpush1.msra.mxu0 %v10470
    %10888 = vmatprep.subr.mxu0 0.0
    %10889 = vmatpush1.msra.mxu0 %v10471
    %10890 = vmatprep.subr.mxu0 0.0
    %10891 = vmatpush1.msra.mxu0 %v10472
    %10892 = vmatprep.subr.mxu0 0.0
    %10893 = vmatpush1.msra.mxu0 %v10473
    %10894 = vmatprep.subr.mxu0 0.0
    %10895 = vmatpush1.msra.mxu0 %v10474
    %10896 = vmatprep.subr.mxu0 0.0
    %10897 = vmatpush1.msra.mxu0 %v10475
    %10898 = vmatprep.subr.mxu0 0.0
    %10899 = vmatpush1.msra.mxu0 %v10476
    %10900 = vmatprep.subr.mxu0 0.0
    %10901 = vmatpush1.msra.mxu0 %v10477
    %10902 = vmatprep.subr.mxu0 0.0
    %10903 = vmatpush1.msra.mxu0 %v10478
    %10904 = vmatprep.subr.mxu0 0.0
    %10905 = vmatpush1.msra.mxu0 %v10479
    %10906 = vmatprep.subr.mxu0 0.0
    %10907 = vmatpush1.msra.mxu0 %v10480
    %10908 = vmatprep.subr.mxu0 0.0
    %10909 = vmatpush1.msra.mxu0 %v10481
    %10910 = vmatprep.subr.mxu0 0.0
    %10911 = vmatpush1.msra.mxu0 %v10482
    %10912 = vmatprep.subr.mxu0 0.0
    %10913 = vmatpush1.msra.mxu0 %v10483
    %10914 = vmatprep.subr.mxu0 0.0
    %10915 = vmatpush1.msra.mxu0 %v10484
    %10916 = vmatprep.subr.mxu0 0.0
    %10917 = vmatpush1.msra.mxu0 %v10485
    %10918 = vmatprep.subr.mxu0 0.0
    %10919 = vmatpush1.msra.mxu0 %v10486
    %10920 = vmatprep.subr.mxu0 0.0
    %10921 = vmatpush1.msra.mxu0 %v10487
    %10922 = vmatprep.subr.mxu0 0.0
    %10923 = vmatpush1.msra.mxu0 %v10488
    %10924 = vmatprep.subr.mxu0 0.0
    %10925 = vmatpush1.msra.mxu0 %v10489
    %10926 = vmatprep.subr.mxu0 0.0
    %10927 = vmatpush1.msra.mxu0 %v10490
    %10928 = vmatprep.subr.mxu0 0.0
    %10929 = vmatpush1.msra.mxu0 %v10491
    %10930 = vmatprep.subr.mxu0 0.0
    %10931 = vmatpush1.msra.mxu0 %v10492
    %10932 = vmatprep.subr.mxu0 0.0
    %10933 = vmatpush1.msra.mxu0 %v10493
    %10934 = vmatprep.subr.mxu0 0.0
    %10935 = vmatpush1.msra.mxu0 %v10494
    %10936 = vmatprep.subr.mxu0 0.0
    %10937 = vmatpush1.msra.mxu0 %v10495
    %10938 = vmatprep.subr.mxu0 0.0
    %10939 = vmatpush1.msra.mxu0 %v10496
    %10940 = vmatprep.subr.mxu0 0.0
    %10941 = vmatpush1.msra.mxu0 %v10497
    %10942 = vmatprep.subr.mxu0 0.0
    %10943 = vmatpush1.msra.mxu0 %v10498
    %10944 = vmatprep.subr.mxu0 0.0
    %10945 = vmatpush1.msra.mxu0 %v10499
    %10946 = vmatprep.subr.mxu0 0.0
    %10947 = vmatpush1.msra.mxu0 %v10500
    %10948 = vmatprep.subr.mxu0 0.0
    %10949 = vmatpush1.msra.mxu0 %v10501
    %10950 = vmatprep.mubr.f32.mxu0 %v10631
    %10951 = vmatmul.mubr.f32.gmra.mrb[0].mxu0 %v10630
    %v10952 = vpop.f32.mrb[0].mxu0
    %v10953 = vadd.f32 %v10809, %v10952
    %v10954 = vpop.f32.mrb[0].mxu0
    %10955 = vmatprep.mubr.f32.mxu0 %v10641
    %10956 = vmatmul.mubr.f32.gmra.mrb[0].mxu0 %v10640
    %v10957 = vpop.f32.mrb[0].mxu0
    %v10958 = vadd.f32 %v10814, %v10957
    %v10959 = vpop.f32.mrb[0].mxu0
    %10960 = vmatprep.mubr.f32.mxu0 %v10651
    %10961 = vmatmul.mubr.f32.gmra.mrb[0].mxu0 %v10650
    %v10962 = vpop.f32.mrb[0].mxu0
    %v10963 = vadd.f32 %v10819, %v10962
    %v10964 = vpop.f32.mrb[0].mxu0
    %10965 = vmatprep.mubr.f32.mxu0 %v10661
    %10966 = vmatmul.mubr.f32.gmra.mrb[0].mxu0 %v10660
    %v10967 = vpop.f32.mrb[0].mxu0
    %v10968 = vadd.f32 %v10824, %v10967
    %v10969 = vpop.f32.mrb[0].mxu0
    %10970 = vmatprep.mubr.f32.mxu0 %v10671
    %10971 = vmatmul.mubr.f32.gmra.mrb[0].mxu0 %v10670
    %v10972 = vpop.f32.mrb[0].mxu0
    %v10973 = vadd.f32 %v10829, %v10972
    %v10974 = vpop.f32.mrb[0].mxu0
    %10975 = vmatprep.mubr.f32.mxu0 %v10681
    %10976 = vmatmul.mubr.f32.gmra.mrb[0].mxu0 %v10680
    %v10977 = vpop.f32.mrb[0].mxu0
    %v10978 = vadd.f32 %v10834, %v10977
    %v10979 = vpop.f32.mrb[0].mxu0
    %10980 = vmatprep.mubr.f32.mxu0 %v10691
    %10981 = vmatmul.mubr.f32.gmra.mrb[0].mxu0 %v10690
    %v10982 = vpop.f32.mrb[0].mxu0
    %v10983 = vadd.f32 %v10839, %v10982
    %v10984 = vpop.f32.mrb[0].mxu0
    %10985 = vmatprep.mubr.f32.mxu0 %v10701
    %10986 = vmatmul.mubr.f32.gmra.mrb[0].mxu0 %v10700
    %v10987 = vpop.f32.mrb[0].mxu0
    %v10988 = vadd.f32 %v10844, %v10987
    %v10989 = vpop.f32.mrb[0].mxu0
    %10990 = vmatprep.mubr.f32.mxu0 %v10711
    %10991 = vmatmul.mubr.f32.gmra.mrb[0].mxu0 %v10710
    %v10992 = vpop.f32.mrb[0].mxu0
    %v10993 = vadd.f32 %v10849, %v10992
    %v10994 = vpop.f32.mrb[0].mxu0
    %10995 = vmatprep.mubr.f32.mxu0 %v10721
    %10996 = vmatmul.mubr.f32.gmra.mrb[0].mxu0 %v10720
    %v10997 = vpop.f32.mrb[0].mxu0
    %v10998 = vadd.f32 %v10854, %v10997
    %v10999 = vpop.f32.mrb[0].mxu0
    %11000 = vmatprep.mubr.f32.mxu0 %v10731
    %11001 = vmatmul.mubr.f32.gmra.mrb[0].mxu0 %v10730
    %v11002 = vpop.f32.mrb[0].mxu0
    %v11003 = vadd.f32 %v10859, %v11002
    %v11004 = vpop.f32.mrb[0].mxu0
    %11005 = vmatprep.mubr.f32.mxu0 %v10741
    %11006 = vmatmul.mubr.f32.gmra.mrb[0].mxu0 %v10740
    %v11007 = vpop.f32.mrb[0].mxu0
    %v11008 = vadd.f32 %v10864, %v11007
    %v11009 = vpop.f32.mrb[0].mxu0
    %11010 = vmatprep.mubr.f32.mxu0 %v10751
    %11011 = vmatmul.mubr.f32.gmra.mrb[0].mxu0 %v10750
    %v11012 = vpop.f32.mrb[0].mxu0
    %v11013 = vadd.f32 %v10869, %v11012
    %v11014 = vpop.f32.mrb[0].mxu0
    %11015 = vmatprep.mubr.f32.mxu0 %v10761
    %11016 = vmatmul.mubr.f32.gmra.mrb[0].mxu0 %v10760
    %v11017 = vpop.f32.mrb[0].mxu0
    %v11018 = vadd.f32 %v10874, %v11017
    %v11019 = vpop.f32.mrb[0].mxu0
    %11020 = vmatprep.mubr.f32.mxu0 %v10771
    %11021 = vmatmul.mubr.f32.gmra.mrb[0].mxu0 %v10770
    %v11022 = vpop.f32.mrb[0].mxu0
    %v11023 = vadd.f32 %v10879, %v11022
    %v11024 = vpop.f32.mrb[0].mxu0
    %11025 = vmatprep.mubr.f32.mxu0 %v10781
    %11026 = vmatmul.mubr.f32.gmra.mrb[0].mxu0 %v10780
    %v11027 = vpop.f32.mrb[0].mxu0
    %v11028 = vadd.f32 %v10884, %v11027
    %v11029 = vpop.f32.mrb[0].mxu0
    %11030 = vdwg.mxu0
    %11031 = vmatprep.subr.mxu0 0.0
    %11032 = vmatpush1.msra.mxu0 %v10502
    %11033 = vmatprep.subr.mxu0 0.0
    %11034 = vmatpush1.msra.mxu0 %v10503
    %11035 = vmatprep.subr.mxu0 0.0
    %11036 = vmatpush1.msra.mxu0 %v10504
    %11037 = vmatprep.subr.mxu0 0.0
    %11038 = vmatpush1.msra.mxu0 %v10505
    %11039 = vmatprep.subr.mxu0 0.0
    %11040 = vmatpush1.msra.mxu0 %v10506
    %11041 = vmatprep.subr.mxu0 0.0
    %11042 = vmatpush1.msra.mxu0 %v10507
    %11043 = vmatprep.subr.mxu0 0.0
    %11044 = vmatpush1.msra.mxu0 %v10508
    %11045 = vmatprep.subr.mxu0 0.0
    %11046 = vmatpush1.msra.mxu0 %v10509
    %11047 = vmatprep.subr.mxu0 0.0
    %11048 = vmatpush1.msra.mxu0 %v10510
    %11049 = vmatprep.subr.mxu0 0.0
    %11050 = vmatpush1.msra.mxu0 %v10511
    %11051 = vmatprep.subr.mxu0 0.0
    %11052 = vmatpush1.msra.mxu0 %v10512
    %11053 = vmatprep.subr.mxu0 0.0
    %11054 = vmatpush1.msra.mxu0 %v10513
    %11055 = vmatprep.subr.mxu0 0.0
    %11056 = vmatpush1.msra.mxu0 %v10514
    %11057 = vmatprep.subr.mxu0 0.0
    %11058 = vmatpush1.msra.mxu0 %v10515
    %11059 = vmatprep.subr.mxu0 0.0
    %11060 = vmatpush1.msra.mxu0 %v10516
    %11061 = vmatprep.subr.mxu0 0.0
    %11062 = vmatpush1.msra.mxu0 %v10517
    %11063 = vmatprep.subr.mxu0 0.0
    %11064 = vmatpush1.msra.mxu0 %v10518
    %11065 = vmatprep.subr.mxu0 0.0
    %11066 = vmatpush1.msra.mxu0 %v10519
    %11067 = vmatprep.subr.mxu0 0.0
    %11068 = vmatpush1.msra.mxu0 %v10520
    %11069 = vmatprep.subr.mxu0 0.0
    %11070 = vmatpush1.msra.mxu0 %v10521
    %11071 = vmatprep.subr.mxu0 0.0
    %11072 = vmatpush1.msra.mxu0 %v10522
    %11073 = vmatprep.subr.mxu0 0.0
    %11074 = vmatpush1.msra.mxu0 %v10523
    %11075 = vmatprep.subr.mxu0 0.0
    %11076 = vmatpush1.msra.mxu0 %v10524
    %11077 = vmatprep.subr.mxu0 0.0
    %11078 = vmatpush1.msra.mxu0 %v10525
    %11079 = vmatprep.subr.mxu0 0.0
    %11080 = vmatpush1.msra.mxu0 %v10526
    %11081 = vmatprep.subr.mxu0 0.0
    %11082 = vmatpush1.msra.mxu0 %v10527
    %11083 = vmatprep.subr.mxu0 0.0
    %11084 = vmatpush1.msra.mxu0 %v10528
    %11085 = vmatprep.subr.mxu0 0.0
    %11086 = vmatpush1.msra.mxu0 %v10529
    %11087 = vmatprep.subr.mxu0 0.0
    %11088 = vmatpush1.msra.mxu0 %v10530
    %11089 = vmatprep.subr.mxu0 0.0
    %11090 = vmatpush1.msra.mxu0 %v10531
    %11091 = vmatprep.subr.mxu0 0.0
    %11092 = vmatpush1.msra.mxu0 %v10532
    %11093 = vmatprep.subr.mxu0 0.0
    %11094 = vmatpush1.msra.mxu0 %v10533
    %11095 = vmatprep.mubr.f32.mxu0 %v10633
    %11096 = vmatmul.mubr.f32.gmra.mrb[0].mxu0 %v10632
    %v11097 = vpop.f32.mrb[0].mxu0
    %v11098 = vadd.f32 %v10953, %v11097
    %v11099 = vpop.f32.mrb[0].mxu0
    %11100 = vmatprep.mubr.f32.mxu0 %v10643
    %11101 = vmatmul.mubr.f32.gmra.mrb[0].mxu0 %v10642
    %v11102 = vpop.f32.mrb[0].mxu0
    %v11103 = vadd.f32 %v10958, %v11102
    %v11104 = vpop.f32.mrb[0].mxu0
    %11105 = vmatprep.mubr.f32.mxu0 %v10653
    %11106 = vmatmul.mubr.f32.gmra.mrb[0].mxu0 %v10652
    %v11107 = vpop.f32.mrb[0].mxu0
    %v11108 = vadd.f32 %v10963, %v11107
    %v11109 = vpop.f32.mrb[0].mxu0
    %11110 = vmatprep.mubr.f32.mxu0 %v10663
    %11111 = vmatmul.mubr.f32.gmra.mrb[0].mxu0 %v10662
    %v11112 = vpop.f32.mrb[0].mxu0
    %v11113 = vadd.f32 %v10968, %v11112
    %v11114 = vpop.f32.mrb[0].mxu0
    %11115 = vmatprep.mubr.f32.mxu0 %v10673
    %11116 = vmatmul.mubr.f32.gmra.mrb[0].mxu0 %v10672
    %v11117 = vpop.f32.mrb[0].mxu0
    %v11118 = vadd.f32 %v10973, %v11117
    %v11119 = vpop.f32.mrb[0].mxu0
    %11120 = vmatprep.mubr.f32.mxu0 %v10683
    %11121 = vmatmul.mubr.f32.gmra.mrb[0].mxu0 %v10682
    %v11122 = vpop.f32.mrb[0].mxu0
    %v11123 = vadd.f32 %v10978, %v11122
    %v11124 = vpop.f32.mrb[0].mxu0
    %11125 = vmatprep.mubr.f32.mxu0 %v10693
    %11126 = vmatmul.mubr.f32.gmra.mrb[0].mxu0 %v10692
    %v11127 = vpop.f32.mrb[0].mxu0
    %v11128 = vadd.f32 %v10983, %v11127
    %v11129 = vpop.f32.mrb[0].mxu0
    %11130 = vmatprep.mubr.f32.mxu0 %v10703
    %11131 = vmatmul.mubr.f32.gmra.mrb[0].mxu0 %v10702
    %v11132 = vpop.f32.mrb[0].mxu0
    %v11133 = vadd.f32 %v10988, %v11132
    %v11134 = vpop.f32.mrb[0].mxu0
    %11135 = vmatprep.mubr.f32.mxu0 %v10713
    %11136 = vmatmul.mubr.f32.gmra.mrb[0].mxu0 %v10712
    %v11137 = vpop.f32.mrb[0].mxu0
    %v11138 = vadd.f32 %v10993, %v11137
    %v11139 = vpop.f32.mrb[0].mxu0
    %11140 = vmatprep.mubr.f32.mxu0 %v10723
    %11141 = vmatmul.mubr.f32.gmra.mrb[0].mxu0 %v10722
    %v11142 = vpop.f32.mrb[0].mxu0
    %v11143 = vadd.f32 %v10998, %v11142
    %v11144 = vpop.f32.mrb[0].mxu0
    %11145 = vmatprep.mubr.f32.mxu0 %v10733
    %11146 = vmatmul.mubr.f32.gmra.mrb[0].mxu0 %v10732
    %v11147 = vpop.f32.mrb[0].mxu0
    %v11148 = vadd.f32 %v11003, %v11147
    %v11149 = vpop.f32.mrb[0].mxu0
    %11150 = vmatprep.mubr.f32.mxu0 %v10743
    %11151 = vmatmul.mubr.f32.gmra.mrb[0].mxu0 %v10742
    %v11152 = vpop.f32.mrb[0].mxu0
    %v11153 = vadd.f32 %v11008, %v11152
    %v11154 = vpop.f32.mrb[0].mxu0
    %11155 = vmatprep.mubr.f32.mxu0 %v10753
    %11156 = vmatmul.mubr.f32.gmra.mrb[0].mxu0 %v10752
    %v11157 = vpop.f32.mrb[0].mxu0
    %v11158 = vadd.f32 %v11013, %v11157
    %v11159 = vpop.f32.mrb[0].mxu0
    %11160 = vmatprep.mubr.f32.mxu0 %v10763
    %11161 = vmatmul.mubr.f32.gmra.mrb[0].mxu0 %v10762
    %v11162 = vpop.f32.mrb[0].mxu0
    %v11163 = vadd.f32 %v11018, %v11162
    %v11164 = vpop.f32.mrb[0].mxu0
    %11165 = vmatprep.mubr.f32.mxu0 %v10773
    %11166 = vmatmul.mubr.f32.gmra.mrb[0].mxu0 %v10772
    %v11167 = vpop.f32.mrb[0].mxu0
    %v11168 = vadd.f32 %v11023, %v11167
    %v11169 = vpop.f32.mrb[0].mxu0
    %11170 = vmatprep.mubr.f32.mxu0 %v10783
    %11171 = vmatmul.mubr.f32.gmra.mrb[0].mxu0 %v10782
    %v11172 = vpop.f32.mrb[0].mxu0
    %v11173 = vadd.f32 %v11028, %v11172
    %v11174 = vpop.f32.mrb[0].mxu0
    %11175 = vdwg.mxu0
    %11176 = vmatprep.subr.mxu0 0.0
    %11177 = vmatpush1.msra.mxu0 %v10534
    %11178 = vmatprep.subr.mxu0 0.0
    %11179 = vmatpush1.msra.mxu0 %v10535
    %11180 = vmatprep.subr.mxu0 0.0
    %11181 = vmatpush1.msra.mxu0 %v10536
    %11182 = vmatprep.subr.mxu0 0.0
    %11183 = vmatpush1.msra.mxu0 %v10537
    %11184 = vmatprep.subr.mxu0 0.0
    %11185 = vmatpush1.msra.mxu0 %v10538
    %11186 = vmatprep.subr.mxu0 0.0
    %11187 = vmatpush1.msra.mxu0 %v10539
    %11188 = vmatprep.subr.mxu0 0.0
    %11189 = vmatpush1.msra.mxu0 %v10540
    %11190 = vmatprep.subr.mxu0 0.0
    %11191 = vmatpush1.msra.mxu0 %v10541
    %11192 = vmatprep.subr.mxu0 0.0
    %11193 = vmatpush1.msra.mxu0 %v10542
    %11194 = vmatprep.subr.mxu0 0.0
    %11195 = vmatpush1.msra.mxu0 %v10543
    %11196 = vmatprep.subr.mxu0 0.0
    %11197 = vmatpush1.msra.mxu0 %v10544
    %11198 = vmatprep.subr.mxu0 0.0
    %11199 = vmatpush1.msra.mxu0 %v10545
    %11200 = vmatprep.subr.mxu0 0.0
    %11201 = vmatpush1.msra.mxu0 %v10546
    %11202 = vmatprep.subr.mxu0 0.0
    %11203 = vmatpush1.msra.mxu0 %v10547
    %11204 = vmatprep.subr.mxu0 0.0
    %11205 = vmatpush1.msra.mxu0 %v10548
    %11206 = vmatprep.subr.mxu0 0.0
    %11207 = vmatpush1.msra.mxu0 %v10549
    %11208 = vmatprep.subr.mxu0 0.0
    %11209 = vmatpush1.msra.mxu0 %v10550
    %11210 = vmatprep.subr.mxu0 0.0
    %11211 = vmatpush1.msra.mxu0 %v10551
    %11212 = vmatprep.subr.mxu0 0.0
    %11213 = vmatpush1.msra.mxu0 %v10552
    %11214 = vmatprep.subr.mxu0 0.0
    %11215 = vmatpush1.msra.mxu0 %v10553
    %11216 = vmatprep.subr.mxu0 0.0
    %11217 = vmatpush1.msra.mxu0 %v10554
    %11218 = vmatprep.subr.mxu0 0.0
    %11219 = vmatpush1.msra.mxu0 %v10555
    %11220 = vmatprep.subr.mxu0 0.0
    %11221 = vmatpush1.msra.mxu0 %v10556
    %11222 = vmatprep.subr.mxu0 0.0
    %11223 = vmatpush1.msra.mxu0 %v10557
    %11224 = vmatprep.subr.mxu0 0.0
    %11225 = vmatpush1.msra.mxu0 %v10558
    %11226 = vmatprep.subr.mxu0 0.0
    %11227 = vmatpush1.msra.mxu0 %v10559
    %11228 = vmatprep.subr.mxu0 0.0
    %11229 = vmatpush1.msra.mxu0 %v10560
    %11230 = vmatprep.subr.mxu0 0.0
    %11231 = vmatpush1.msra.mxu0 %v10561
    %11232 = vmatprep.subr.mxu0 0.0
    %11233 = vmatpush1.msra.mxu0 %v10562
    %11234 = vmatprep.subr.mxu0 0.0
    %11235 = vmatpush1.msra.mxu0 %v10563
    %11236 = vmatprep.subr.mxu0 0.0
    %11237 = vmatpush1.msra.mxu0 %v10564
    %11238 = vmatprep.subr.mxu0 0.0
    %11239 = vmatpush1.msra.mxu0 %v10565
    %11240 = vmatprep.mubr.f32.mxu0 %v10635
    %11241 = vmatmul.mubr.f32.gmra.mrb[0].mxu0 %v10634
    %v11242 = vpop.f32.mrb[0].mxu0
    %v11243 = vadd.f32 %v11098, %v11242
    %v11244 = vpop.f32.mrb[0].mxu0
    %11245 = vmatprep.mubr.f32.mxu0 %v10645
    %11246 = vmatmul.mubr.f32.gmra.mrb[0].mxu0 %v10644
    %v11247 = vpop.f32.mrb[0].mxu0
    %v11248 = vadd.f32 %v11103, %v11247
    %v11249 = vpop.f32.mrb[0].mxu0
    %11250 = vmatprep.mubr.f32.mxu0 %v10655
    %11251 = vmatmul.mubr.f32.gmra.mrb[0].mxu0 %v10654
    %v11252 = vpop.f32.mrb[0].mxu0
    %v11253 = vadd.f32 %v11108, %v11252
    %v11254 = vpop.f32.mrb[0].mxu0
    %11255 = vmatprep.mubr.f32.mxu0 %v10665
    %11256 = vmatmul.mubr.f32.gmra.mrb[0].mxu0 %v10664
    %v11257 = vpop.f32.mrb[0].mxu0
    %v11258 = vadd.f32 %v11113, %v11257
    %v11259 = vpop.f32.mrb[0].mxu0
    %11260 = vmatprep.mubr.f32.mxu0 %v10675
    %11261 = vmatmul.mubr.f32.gmra.mrb[0].mxu0 %v10674
    %v11262 = vpop.f32.mrb[0].mxu0
    %v11263 = vadd.f32 %v11118, %v11262
    %v11264 = vpop.f32.mrb[0].mxu0
    %11265 = vmatprep.mubr.f32.mxu0 %v10685
    %11266 = vmatmul.mubr.f32.gmra.mrb[0].mxu0 %v10684
    %v11267 = vpop.f32.mrb[0].mxu0
    %v11268 = vadd.f32 %v11123, %v11267
    %v11269 = vpop.f32.mrb[0].mxu0
    %11270 = vmatprep.mubr.f32.mxu0 %v10695
    %11271 = vmatmul.mubr.f32.gmra.mrb[0].mxu0 %v10694
    %v11272 = vpop.f32.mrb[0].mxu0
    %v11273 = vadd.f32 %v11128, %v11272
    %v11274 = vpop.f32.mrb[0].mxu0
    %11275 = vmatprep.mubr.f32.mxu0 %v10705
    %11276 = vmatmul.mubr.f32.gmra.mrb[0].mxu0 %v10704
    %v11277 = vpop.f32.mrb[0].mxu0
    %v11278 = vadd.f32 %v11133, %v11277
    %v11279 = vpop.f32.mrb[0].mxu0
    %11280 = vmatprep.mubr.f32.mxu0 %v10715
    %11281 = vmatmul.mubr.f32.gmra.mrb[0].mxu0 %v10714
    %v11282 = vpop.f32.mrb[0].mxu0
    %v11283 = vadd.f32 %v11138, %v11282
    %v11284 = vpop.f32.mrb[0].mxu0
    %11285 = vmatprep.mubr.f32.mxu0 %v10725
    %11286 = vmatmul.mubr.f32.gmra.mrb[0].mxu0 %v10724
    %v11287 = vpop.f32.mrb[0].mxu0
    %v11288 = vadd.f32 %v11143, %v11287
    %v11289 = vpop.f32.mrb[0].mxu0
    %11290 = vmatprep.mubr.f32.mxu0 %v10735
    %11291 = vmatmul.mubr.f32.gmra.mrb[0].mxu0 %v10734
    %v11292 = vpop.f32.mrb[0].mxu0
    %v11293 = vadd.f32 %v11148, %v11292
    %v11294 = vpop.f32.mrb[0].mxu0
    %11295 = vmatprep.mubr.f32.mxu0 %v10745
    %11296 = vmatmul.mubr.f32.gmra.mrb[0].mxu0 %v10744
    %v11297 = vpop.f32.mrb[0].mxu0
    %v11298 = vadd.f32 %v11153, %v11297
    %v11299 = vpop.f32.mrb[0].mxu0
    %11300 = vmatprep.mubr.f32.mxu0 %v10755
    %11301 = vmatmul.mubr.f32.gmra.mrb[0].mxu0 %v10754
    %v11302 = vpop.f32.mrb[0].mxu0
    %v11303 = vadd.f32 %v11158, %v11302
    %v11304 = vpop.f32.mrb[0].mxu0
    %11305 = vmatprep.mubr.f32.mxu0 %v10765
    %11306 = vmatmul.mubr.f32.gmra.mrb[0].mxu0 %v10764
    %v11307 = vpop.f32.mrb[0].mxu0
    %v11308 = vadd.f32 %v11163, %v11307
    %v11309 = vpop.f32.mrb[0].mxu0
    %11310 = vmatprep.mubr.f32.mxu0 %v10775
    %11311 = vmatmul.mubr.f32.gmra.mrb[0].mxu0 %v10774
    %v11312 = vpop.f32.mrb[0].mxu0
    %v11313 = vadd.f32 %v11168, %v11312
    %v11314 = vpop.f32.mrb[0].mxu0
    %11315 = vmatprep.mubr.f32.mxu0 %v10785
    %11316 = vmatmul.mubr.f32.gmra.mrb[0].mxu0 %v10784
    %v11317 = vpop.f32.mrb[0].mxu0
    %v11318 = vadd.f32 %v11173, %v11317
    %v11319 = vpop.f32.mrb[0].mxu0
    %11320 = vdwg.mxu0
    %11321 = vmatprep.subr.mxu0 0.0
    %11322 = vmatpush1.msra.mxu0 %v10566
    %11323 = vmatprep.subr.mxu0 0.0
    %11324 = vmatpush1.msra.mxu0 %v10567
    %11325 = vmatprep.subr.mxu0 0.0
    %11326 = vmatpush1.msra.mxu0 %v10568
    %11327 = vmatprep.subr.mxu0 0.0
    %11328 = vmatpush1.msra.mxu0 %v10569
    %11329 = vmatprep.subr.mxu0 0.0
    %11330 = vmatpush1.msra.mxu0 %v10570
    %11331 = vmatprep.subr.mxu0 0.0
    %11332 = vmatpush1.msra.mxu0 %v10571
    %11333 = vmatprep.subr.mxu0 0.0
    %11334 = vmatpush1.msra.mxu0 %v10572
    %11335 = vmatprep.subr.mxu0 0.0
    %11336 = vmatpush1.msra.mxu0 %v10573
    %11337 = vmatprep.subr.mxu0 0.0
    %11338 = vmatpush1.msra.mxu0 %v10574
    %11339 = vmatprep.subr.mxu0 0.0
    %11340 = vmatpush1.msra.mxu0 %v10575
    %11341 = vmatprep.subr.mxu0 0.0
    %11342 = vmatpush1.msra.mxu0 %v10576
    %11343 = vmatprep.subr.mxu0 0.0
    %11344 = vmatpush1.msra.mxu0 %v10577
    %11345 = vmatprep.subr.mxu0 0.0
    %11346 = vmatpush1.msra.mxu0 %v10578
    %11347 = vmatprep.subr.mxu0 0.0
    %11348 = vmatpush1.msra.mxu0 %v10579
    %11349 = vmatprep.subr.mxu0 0.0
    %11350 = vmatpush1.msra.mxu0 %v10580
    %11351 = vmatprep.subr.mxu0 0.0
    %11352 = vmatpush1.msra.mxu0 %v10581
    %11353 = vmatprep.subr.mxu0 0.0
    %11354 = vmatpush1.msra.mxu0 %v10582
    %11355 = vmatprep.subr.mxu0 0.0
    %11356 = vmatpush1.msra.mxu0 %v10583
    %11357 = vmatprep.subr.mxu0 0.0
    %11358 = vmatpush1.msra.mxu0 %v10584
    %11359 = vmatprep.subr.mxu0 0.0
    %11360 = vmatpush1.msra.mxu0 %v10585
    %11361 = vmatprep.subr.mxu0 0.0
    %11362 = vmatpush1.msra.mxu0 %v10586
    %11363 = vmatprep.subr.mxu0 0.0
    %11364 = vmatpush1.msra.mxu0 %v10587
    %11365 = vmatprep.subr.mxu0 0.0
    %11366 = vmatpush1.msra.mxu0 %v10588
    %11367 = vmatprep.subr.mxu0 0.0
    %11368 = vmatpush1.msra.mxu0 %v10589
    %11369 = vmatprep.subr.mxu0 0.0
    %11370 = vmatpush1.msra.mxu0 %v10590
    %11371 = vmatprep.subr.mxu0 0.0
    %11372 = vmatpush1.msra.mxu0 %v10591
    %11373 = vmatprep.subr.mxu0 0.0
    %11374 = vmatpush1.msra.mxu0 %v10592
    %11375 = vmatprep.subr.mxu0 0.0
    %11376 = vmatpush1.msra.mxu0 %v10593
    %11377 = vmatprep.subr.mxu0 0.0
    %11378 = vmatpush1.msra.mxu0 %v10594
    %11379 = vmatprep.subr.mxu0 0.0
    %11380 = vmatpush1.msra.mxu0 %v10595
    %11381 = vmatprep.subr.mxu0 0.0
    %11382 = vmatpush1.msra.mxu0 %v10596
    %11383 = vmatprep.subr.mxu0 0.0
    %11384 = vmatpush1.msra.mxu0 %v10597
    %11385 = vmatprep.mubr.f32.mxu0 %v10637
    %11386 = vmatmul.mubr.f32.gmra.mrb[0].mxu0 %v10636
    %v11387 = vpop.f32.mrb[0].mxu0
    %v11388 = vadd.f32 %v11243, %v11387
    %v11389 = vpop.f32.mrb[0].mxu0
    %11390 = vmatprep.mubr.f32.mxu0 %v10647
    %11391 = vmatmul.mubr.f32.gmra.mrb[0].mxu0 %v10646
    %v11392 = vpop.f32.mrb[0].mxu0
    %v11393 = vadd.f32 %v11248, %v11392
    %v11394 = vpop.f32.mrb[0].mxu0
    %11395 = vmatprep.mubr.f32.mxu0 %v10657
    %11396 = vmatmul.mubr.f32.gmra.mrb[0].mxu0 %v10656
    %v11397 = vpop.f32.mrb[0].mxu0
    %v11398 = vadd.f32 %v11253, %v11397
    %v11399 = vpop.f32.mrb[0].mxu0
    %11400 = vmatprep.mubr.f32.mxu0 %v10667
    %11401 = vmatmul.mubr.f32.gmra.mrb[0].mxu0 %v10666
    %v11402 = vpop.f32.mrb[0].mxu0
    %v11403 = vadd.f32 %v11258, %v11402
    %v11404 = vpop.f32.mrb[0].mxu0
    %11405 = vmatprep.mubr.f32.mxu0 %v10677
    %11406 = vmatmul.mubr.f32.gmra.mrb[0].mxu0 %v10676
    %v11407 = vpop.f32.mrb[0].mxu0
    %v11408 = vadd.f32 %v11263, %v11407
    %v11409 = vpop.f32.mrb[0].mxu0
    %11410 = vmatprep.mubr.f32.mxu0 %v10687
    %11411 = vmatmul.mubr.f32.gmra.mrb[0].mxu0 %v10686
    %v11412 = vpop.f32.mrb[0].mxu0
    %v11413 = vadd.f32 %v11268, %v11412
    %v11414 = vpop.f32.mrb[0].mxu0
    %11415 = vmatprep.mubr.f32.mxu0 %v10697
    %11416 = vmatmul.mubr.f32.gmra.mrb[0].mxu0 %v10696
    %v11417 = vpop.f32.mrb[0].mxu0
    %v11418 = vadd.f32 %v11273, %v11417
    %v11419 = vpop.f32.mrb[0].mxu0
    %11420 = vmatprep.mubr.f32.mxu0 %v10707
    %11421 = vmatmul.mubr.f32.gmra.mrb[0].mxu0 %v10706
    %v11422 = vpop.f32.mrb[0].mxu0
    %v11423 = vadd.f32 %v11278, %v11422
    %v11424 = vpop.f32.mrb[0].mxu0
    %11425 = vmatprep.mubr.f32.mxu0 %v10717
    %11426 = vmatmul.mubr.f32.gmra.mrb[0].mxu0 %v10716
    %v11427 = vpop.f32.mrb[0].mxu0
    %v11428 = vadd.f32 %v11283, %v11427
    %v11429 = vpop.f32.mrb[0].mxu0
    %11430 = vmatprep.mubr.f32.mxu0 %v10727
    %11431 = vmatmul.mubr.f32.gmra.mrb[0].mxu0 %v10726
    %v11432 = vpop.f32.mrb[0].mxu0
    %v11433 = vadd.f32 %v11288, %v11432
    %v11434 = vpop.f32.mrb[0].mxu0
    %11435 = vmatprep.mubr.f32.mxu0 %v10737
    %11436 = vmatmul.mubr.f32.gmra.mrb[0].mxu0 %v10736
    %v11437 = vpop.f32.mrb[0].mxu0
    %v11438 = vadd.f32 %v11293, %v11437
    %v11439 = vpop.f32.mrb[0].mxu0
    %11440 = vmatprep.mubr.f32.mxu0 %v10747
    %11441 = vmatmul.mubr.f32.gmra.mrb[0].mxu0 %v10746
    %v11442 = vpop.f32.mrb[0].mxu0
    %v11443 = vadd.f32 %v11298, %v11442
    %v11444 = vpop.f32.mrb[0].mxu0
    %11445 = vmatprep.mubr.f32.mxu0 %v10757
    %11446 = vmatmul.mubr.f32.gmra.mrb[0].mxu0 %v10756
    %v11447 = vpop.f32.mrb[0].mxu0
    %v11448 = vadd.f32 %v11303, %v11447
    %v11449 = vpop.f32.mrb[0].mxu0
    %11450 = vmatprep.mubr.f32.mxu0 %v10767
    %11451 = vmatmul.mubr.f32.gmra.mrb[0].mxu0 %v10766
    %v11452 = vpop.f32.mrb[0].mxu0
    %v11453 = vadd.f32 %v11308, %v11452
    %v11454 = vpop.f32.mrb[0].mxu0
    %11455 = vmatprep.mubr.f32.mxu0 %v10777
    %11456 = vmatmul.mubr.f32.gmra.mrb[0].mxu0 %v10776
    %v11457 = vpop.f32.mrb[0].mxu0
    %v11458 = vadd.f32 %v11313, %v11457
    %v11459 = vpop.f32.mrb[0].mxu0
    %11460 = vmatprep.mubr.f32.mxu0 %v10787
    %11461 = vmatmul.mubr.f32.gmra.mrb[0].mxu0 %v10786
    %v11462 = vpop.f32.mrb[0].mxu0
    %v11463 = vadd.f32 %v11318, %v11462
    %v11464 = vpop.f32.mrb[0].mxu0
    %11465 = vdwg.mxu0
    %11466 = vmatprep.subr.mxu0 0.0
    %11467 = vmatpush1.msra.mxu0 %v10598
    %11468 = vmatprep.subr.mxu0 0.0
    %11469 = vmatpush1.msra.mxu0 %v10599
    %11470 = vmatprep.subr.mxu0 0.0
    %11471 = vmatpush1.msra.mxu0 %v10600
    %11472 = vmatprep.subr.mxu0 0.0
    %11473 = vmatpush1.msra.mxu0 %v10601
    %11474 = vmatprep.subr.mxu0 0.0
    %11475 = vmatpush1.msra.mxu0 %v10602
    %11476 = vmatprep.subr.mxu0 0.0
    %11477 = vmatpush1.msra.mxu0 %v10603
    %11478 = vmatprep.subr.mxu0 0.0
    %11479 = vmatpush1.msra.mxu0 %v10604
    %11480 = vmatprep.subr.mxu0 0.0
    %11481 = vmatpush1.msra.mxu0 %v10605
    %11482 = vmatprep.subr.mxu0 0.0
    %11483 = vmatpush1.msra.mxu0 %v10606
    %11484 = vmatprep.subr.mxu0 0.0
    %11485 = vmatpush1.msra.mxu0 %v10607
    %11486 = vmatprep.subr.mxu0 0.0
    %11487 = vmatpush1.msra.mxu0 %v10608
    %11488 = vmatprep.subr.mxu0 0.0
    %11489 = vmatpush1.msra.mxu0 %v10609
    %11490 = vmatprep.subr.mxu0 0.0
    %11491 = vmatpush1.msra.mxu0 %v10610
    %11492 = vmatprep.subr.mxu0 0.0
    %11493 = vmatpush1.msra.mxu0 %v10611
    %11494 = vmatprep.subr.mxu0 0.0
    %11495 = vmatpush1.msra.mxu0 %v10612
    %11496 = vmatprep.subr.mxu0 0.0
    %11497 = vmatpush1.msra.mxu0 %v10613
    %11498 = vmatprep.subr.mxu0 0.0
    %11499 = vmatpush1.msra.mxu0 %v10614
    %11500 = vmatprep.subr.mxu0 0.0
    %11501 = vmatpush1.msra.mxu0 %v10615
    %11502 = vmatprep.subr.mxu0 0.0
    %11503 = vmatpush1.msra.mxu0 %v10616
    %11504 = vmatprep.subr.mxu0 0.0
    %11505 = vmatpush1.msra.mxu0 %v10617
    %11506 = vmatprep.subr.mxu0 0.0
    %11507 = vmatpush1.msra.mxu0 %v10618
    %11508 = vmatprep.subr.mxu0 0.0
    %11509 = vmatpush1.msra.mxu0 %v10619
    %11510 = vmatprep.subr.mxu0 0.0
    %11511 = vmatpush1.msra.mxu0 %v10620
    %11512 = vmatprep.subr.mxu0 0.0
    %11513 = vmatpush1.msra.mxu0 %v10621
    %11514 = vmatprep.subr.mxu0 0.0
    %11515 = vmatpush1.msra.mxu0 %v10622
    %11516 = vmatprep.subr.mxu0 0.0
    %11517 = vmatpush1.msra.mxu0 %v10623
    %11518 = vmatprep.subr.mxu0 0.0
    %11519 = vmatpush1.msra.mxu0 %v10624
    %11520 = vmatprep.subr.mxu0 0.0
    %11521 = vmatpush1.msra.mxu0 %v10625
    %11522 = vmatprep.subr.mxu0 0.0
    %11523 = vmatpush1.msra.mxu0 %v10626
    %11524 = vmatprep.subr.mxu0 0.0
    %11525 = vmatpush1.msra.mxu0 %v10627
    %11526 = vmatprep.subr.mxu0 0.0
    %11527 = vmatpush1.msra.mxu0 %v10628
    %11528 = vmatprep.subr.mxu0 0.0
    %11529 = vmatpush1.msra.mxu0 %v10629
    %11530 = vmatprep.mubr.f32.mxu0 %v10639
    %11531 = vmatmul.mubr.f32.gmra.mrb[0].mxu0 %v10638
    %v11532 = vpop.f32.mrb[0].mxu0
    %v11533 = vadd.f32 %v11388, %v11532
    %v11534 = vpop.f32.mrb[0].mxu0
    %11535 = vmatprep.mubr.f32.mxu0 %v10649
    %11536 = vmatmul.mubr.f32.gmra.mrb[0].mxu0 %v10648
    %v11537 = vpop.f32.mrb[0].mxu0
    %v11538 = vadd.f32 %v11393, %v11537
    %v11539 = vpop.f32.mrb[0].mxu0
    %11540 = vmatprep.mubr.f32.mxu0 %v10659
    %11541 = vmatmul.mubr.f32.gmra.mrb[0].mxu0 %v10658
    %v11542 = vpop.f32.mrb[0].mxu0
    %v11543 = vadd.f32 %v11398, %v11542
    %v11544 = vpop.f32.mrb[0].mxu0
    %11545 = vmatprep.mubr.f32.mxu0 %v10669
    %11546 = vmatmul.mubr.f32.gmra.mrb[0].mxu0 %v10668
    %v11547 = vpop.f32.mrb[0].mxu0
    %v11548 = vadd.f32 %v11403, %v11547
    %v11549 = vpop.f32.mrb[0].mxu0
    %11550 = vmatprep.mubr.f32.mxu0 %v10679
    %11551 = vmatmul.mubr.f32.gmra.mrb[0].mxu0 %v10678
    %v11552 = vpop.f32.mrb[0].mxu0
    %v11553 = vadd.f32 %v11408, %v11552
    %v11554 = vpop.f32.mrb[0].mxu0
    %11555 = vmatprep.mubr.f32.mxu0 %v10689
    %11556 = vmatmul.mubr.f32.gmra.mrb[0].mxu0 %v10688
    %v11557 = vpop.f32.mrb[0].mxu0
    %v11558 = vadd.f32 %v11413, %v11557
    %v11559 = vpop.f32.mrb[0].mxu0
    %11560 = vmatprep.mubr.f32.mxu0 %v10699
    %11561 = vmatmul.mubr.f32.gmra.mrb[0].mxu0 %v10698
    %v11562 = vpop.f32.mrb[0].mxu0
    %v11563 = vadd.f32 %v11418, %v11562
    %v11564 = vpop.f32.mrb[0].mxu0
    %11565 = vmatprep.mubr.f32.mxu0 %v10709
    %11566 = vmatmul.mubr.f32.gmra.mrb[0].mxu0 %v10708
    %v11567 = vpop.f32.mrb[0].mxu0
    %v11568 = vadd.f32 %v11423, %v11567
    %v11569 = vpop.f32.mrb[0].mxu0
    %11570 = vmatprep.mubr.f32.mxu0 %v10719
    %11571 = vmatmul.mubr.f32.gmra.mrb[0].mxu0 %v10718
    %v11572 = vpop.f32.mrb[0].mxu0
    %v11573 = vadd.f32 %v11428, %v11572
    %v11574 = vpop.f32.mrb[0].mxu0
    %11575 = vmatprep.mubr.f32.mxu0 %v10729
    %11576 = vmatmul.mubr.f32.gmra.mrb[0].mxu0 %v10728
    %v11577 = vpop.f32.mrb[0].mxu0
    %v11578 = vadd.f32 %v11433, %v11577
    %v11579 = vpop.f32.mrb[0].mxu0
    %11580 = vmatprep.mubr.f32.mxu0 %v10739
    %11581 = vmatmul.mubr.f32.gmra.mrb[0].mxu0 %v10738
    %v11582 = vpop.f32.mrb[0].mxu0
    %v11583 = vadd.f32 %v11438, %v11582
    %v11584 = vpop.f32.mrb[0].mxu0
    %11585 = vmatprep.mubr.f32.mxu0 %v10749
    %11586 = vmatmul.mubr.f32.gmra.mrb[0].mxu0 %v10748
    %v11587 = vpop.f32.mrb[0].mxu0
    %v11588 = vadd.f32 %v11443, %v11587
    %v11589 = vpop.f32.mrb[0].mxu0
    %11590 = vmatprep.mubr.f32.mxu0 %v10759
    %11591 = vmatmul.mubr.f32.gmra.mrb[0].mxu0 %v10758
    %v11592 = vpop.f32.mrb[0].mxu0
    %v11593 = vadd.f32 %v11448, %v11592
    %v11594 = vpop.f32.mrb[0].mxu0
    %11595 = vmatprep.mubr.f32.mxu0 %v10769
    %11596 = vmatmul.mubr.f32.gmra.mrb[0].mxu0 %v10768
    %v11597 = vpop.f32.mrb[0].mxu0
    %v11598 = vadd.f32 %v11453, %v11597
    %v11599 = vpop.f32.mrb[0].mxu0
    %11600 = vmatprep.mubr.f32.mxu0 %v10779
    %11601 = vmatmul.mubr.f32.gmra.mrb[0].mxu0 %v10778
    %v11602 = vpop.f32.mrb[0].mxu0
    %v11603 = vadd.f32 %v11458, %v11602
    %v11604 = vpop.f32.mrb[0].mxu0
    %11605 = vmatprep.mubr.f32.mxu0 %v10789
    %11606 = vmatmul.mubr.f32.gmra.mrb[0].mxu0 %v10788
    %v11607 = vpop.f32.mrb[0].mxu0
    %v11608 = vadd.f32 %v11463, %v11607
    %v11609 = vpop.f32.mrb[0].mxu0
    %11610 = vdwg.mxu0
    %v11611 = vmax.f32 %v11533, 0.0
    %v11612 = vmax.f32 %v11538, 0.0
    %v11613 = vmax.f32 %v11543, 0.0
    %v11614 = vmax.f32 %v11548, 0.0
    %v11615 = vmax.f32 %v11553, 0.0
    %v11616 = vmax.f32 %v11558, 0.0
    %v11617 = vmax.f32 %v11563, 0.0
    %v11618 = vmax.f32 %v11568, 0.0
    %v11619 = vmax.f32 %v11573, 0.0
    %v11620 = vmax.f32 %v11578, 0.0
    %v11621 = vmax.f32 %v11583, 0.0
    %v11622 = vmax.f32 %v11588, 0.0
    %v11623 = vmax.f32 %v11593, 0.0
    %v11624 = vmax.f32 %v11598, 0.0
    %v11625 = vmax.f32 %v11603, 0.0
    %v11626 = vmax.f32 %v11608, 0.0
    %v11627 = vld [vmem:[%s7] sm:$0xff]
    %v11628 = vld [vmem:[%s7 + $0x8] sm:$0xff]
    %v11629 = vld [vmem:[%s7 + $0x10] sm:$0xff]
    %v11630 = vld [vmem:[%s7 + $0x18] sm:$0xff]
    %v11631 = vld [vmem:[%s7 + $0x20] sm:$0xff]
    %v11632 = vld [vmem:[%s7 + $0x28] sm:$0xff]
    %v11633 = vld [vmem:[%s7 + $0x30] sm:$0xff]
    %v11634 = vld [vmem:[%s7 + $0x38] sm:$0xff]
    %v11635 = vld [vmem:[%s7 + $0x40] sm:$0xff]
    %v11636 = vld [vmem:[%s7 + $0x48] sm:$0xff]
    %v11637 = vld [vmem:[%s7 + $0x50] sm:$0xff]
    %v11638 = vld [vmem:[%s7 + $0x58] sm:$0xff]
    %v11639 = vld [vmem:[%s7 + $0x60] sm:$0xff]
    %v11640 = vld [vmem:[%s7 + $0x68] sm:$0xff]
    %v11641 = vld [vmem:[%s7 + $0x70] sm:$0xff]
    %v11642 = vld [vmem:[%s7 + $0x78] sm:$0xff]
    %v11643 = vld [vmem:[%s8] sm:$0xff]
    %v11644 = vld [vmem:[%s8 + $0x8] sm:$0xff]
    %v11645 = vld [vmem:[%s8 + $0x10] sm:$0xff]
    %v11646 = vld [vmem:[%s8 + $0x18] sm:$0xff]
    %v11647 = vld [vmem:[%s8 + $0x20] sm:$0xff]
    %v11648 = vld [vmem:[%s8 + $0x28] sm:$0xff]
    %v11649 = vld [vmem:[%s8 + $0x30] sm:$0xff]
    %v11650 = vld [vmem:[%s8 + $0x38] sm:$0xff]
    %v11651 = vld [vmem:[%s8 + $0x40] sm:$0xff]
    %v11652 = vld [vmem:[%s8 + $0x48] sm:$0xff]
    %v11653 = vld [vmem:[%s8 + $0x50] sm:$0xff]
    %v11654 = vld [vmem:[%s8 + $0x58] sm:$0xff]
    %v11655 = vld [vmem:[%s8 + $0x60] sm:$0xff]
    %v11656 = vld [vmem:[%s8 + $0x68] sm:$0xff]
    %v11657 = vld [vmem:[%s8 + $0x70] sm:$0xff]
    %v11658 = vld [vmem:[%s8 + $0x78] sm:$0xff]
    %11660 = vset.pattern.permute.xlu0 0
    %11661 = vperm.xlu0 %11660, %v11643
    %v11662 = vpop.permute.xlu0 %11661
    %11665 = vset.pattern.permute.xlu0 0
    %11666 = vperm.xlu0 %11665, %v11644
    %v11667 = vpop.permute.xlu0 %11666
    %11670 = vset.pattern.permute.xlu0 0
    %11671 = vperm.xlu0 %11670, %v11645
    %v11672 = vpop.permute.xlu0 %11671
    %11675 = vset.pattern.permute.xlu0 0
    %11676 = vperm.xlu0 %11675, %v11646
    %v11677 = vpop.permute.xlu0 %11676
    %11680 = vset.pattern.permute.xlu0 0
    %11681 = vperm.xlu0 %11680, %v11647
    %v11682 = vpop.permute.xlu0 %11681
    %11685 = vset.pattern.permute.xlu0 0
    %11686 = vperm.xlu0 %11685, %v11648
    %v11687 = vpop.permute.xlu0 %11686
    %11690 = vset.pattern.permute.xlu0 0
    %11691 = vperm.xlu0 %11690, %v11649
    %v11692 = vpop.permute.xlu0 %11691
    %11695 = vset.pattern.permute.xlu0 0
    %11696 = vperm.xlu0 %11695, %v11650
    %v11697 = vpop.permute.xlu0 %11696
    %11700 = vset.pattern.permute.xlu0 0
    %11701 = vperm.xlu0 %11700, %v11651
    %v11702 = vpop.permute.xlu0 %11701
    %11705 = vset.pattern.permute.xlu0 0
    %11706 = vperm.xlu0 %11705, %v11652
    %v11707 = vpop.permute.xlu0 %11706
    %11710 = vset.pattern.permute.xlu0 0
    %11711 = vperm.xlu0 %11710, %v11653
    %v11712 = vpop.permute.xlu0 %11711
    %11715 = vset.pattern.permute.xlu0 0
    %11716 = vperm.xlu0 %11715, %v11654
    %v11717 = vpop.permute.xlu0 %11716
    %11720 = vset.pattern.permute.xlu0 0
    %11721 = vperm.xlu0 %11720, %v11655
    %v11722 = vpop.permute.xlu0 %11721
    %11725 = vset.pattern.permute.xlu0 0
    %11726 = vperm.xlu0 %11725, %v11656
    %v11727 = vpop.permute.xlu0 %11726
    %11730 = vset.pattern.permute.xlu0 0
    %11731 = vperm.xlu0 %11730, %v11657
    %v11732 = vpop.permute.xlu0 %11731
    %11735 = vset.pattern.permute.xlu0 0
    %11736 = vperm.xlu0 %11735, %v11658
    %v11737 = vpop.permute.xlu0 %11736
    %11739 = vmatprep.subr.mxu0 0.0
    %11740 = vmatpush1.msra.mxu0 %v11611
    %11741 = vmatprep.subr.mxu0 0.0
    %11742 = vmatpush1.msra.mxu0 %v11612
    %11743 = vmatprep.subr.mxu0 0.0
    %11744 = vmatpush1.msra.mxu0 %v11613
    %11745 = vmatprep.subr.mxu0 0.0
    %11746 = vmatpush1.msra.mxu0 %v11614
    %11747 = vmatprep.subr.mxu0 0.0
    %11748 = vmatpush1.msra.mxu0 %v11615
    %11749 = vmatprep.subr.mxu0 0.0
    %11750 = vmatpush1.msra.mxu0 %v11616
    %11751 = vmatprep.subr.mxu0 0.0
    %11752 = vmatpush1.msra.mxu0 %v11617
    %11753 = vmatprep.subr.mxu0 0.0
    %11754 = vmatpush1.msra.mxu0 %v11618
    %11755 = vmatprep.subr.mxu0 0.0
    %11756 = vmatpush1.msra.mxu0 %v11619
    %11757 = vmatprep.subr.mxu0 0.0
    %11758 = vmatpush1.msra.mxu0 %v11620
    %11759 = vmatprep.subr.mxu0 0.0
    %11760 = vmatpush1.msra.mxu0 %v11621
    %11761 = vmatprep.subr.mxu0 0.0
    %11762 = vmatpush1.msra.mxu0 %v11622
    %11763 = vmatprep.subr.mxu0 0.0
    %11764 = vmatpush1.msra.mxu0 %v11623
    %11765 = vmatprep.subr.mxu0 0.0
    %11766 = vmatpush1.msra.mxu0 %v11624
    %11767 = vmatprep.subr.mxu0 0.0
    %11768 = vmatpush1.msra.mxu0 %v11625
    %11769 = vmatprep.subr.mxu0 0.0
    %11770 = vmatpush1.msra.mxu0 %v11626
    %11771 = vmatprep.subr.mxu0 0.0
    %11772 = vmatpush1.msra.mxu0 0.0
    %11773 = vmatprep.subr.mxu0 0.0
    %11774 = vmatpush1.msra.mxu0 0.0
    %11775 = vmatprep.subr.mxu0 0.0
    %11776 = vmatpush1.msra.mxu0 0.0
    %11777 = vmatprep.subr.mxu0 0.0
    %11778 = vmatpush1.msra.mxu0 0.0
    %11779 = vmatprep.subr.mxu0 0.0
    %11780 = vmatpush1.msra.mxu0 0.0
    %11781 = vmatprep.subr.mxu0 0.0
    %11782 = vmatpush1.msra.mxu0 0.0
    %11783 = vmatprep.subr.mxu0 0.0
    %11784 = vmatpush1.msra.mxu0 0.0
    %11785 = vmatprep.subr.mxu0 0.0
    %11786 = vmatpush1.msra.mxu0 0.0
    %11787 = vmatprep.subr.mxu0 0.0
    %11788 = vmatpush1.msra.mxu0 0.0
    %11789 = vmatprep.subr.mxu0 0.0
    %11790 = vmatpush1.msra.mxu0 0.0
    %11791 = vmatprep.subr.mxu0 0.0
    %11792 = vmatpush1.msra.mxu0 0.0
    %11793 = vmatprep.subr.mxu0 0.0
    %11794 = vmatpush1.msra.mxu0 0.0
    %11795 = vmatprep.subr.mxu0 0.0
    %11796 = vmatpush1.msra.mxu0 0.0
    %11797 = vmatprep.subr.mxu0 0.0
    %11798 = vmatpush1.msra.mxu0 0.0
    %11799 = vmatprep.subr.mxu0 0.0
    %11800 = vmatpush1.msra.mxu0 0.0
    %11801 = vmatprep.subr.mxu0 0.0
    %11802 = vmatpush1.msra.mxu0 0.0
    %11803 = vmatprep.mubr.f32.mxu0 0.0
    %11804 = vmatmul.mubr.f32.gmra.mrb[0].mxu0 %v11627
    %v11805 = vpop.f32.mrb[0].mxu0
    %v11806 = vadd.f32 %v11662, %v11805
    %v11807 = vpop.f32.mrb[0].mxu0
    %11808 = vmatprep.mubr.f32.mxu0 0.0
    %11809 = vmatmul.mubr.f32.gmra.mrb[0].mxu0 %v11628
    %v11810 = vpop.f32.mrb[0].mxu0
    %v11811 = vadd.f32 %v11667, %v11810
    %v11812 = vpop.f32.mrb[0].mxu0
    %11813 = vmatprep.mubr.f32.mxu0 0.0
    %11814 = vmatmul.mubr.f32.gmra.mrb[0].mxu0 %v11629
    %v11815 = vpop.f32.mrb[0].mxu0
    %v11816 = vadd.f32 %v11672, %v11815
    %v11817 = vpop.f32.mrb[0].mxu0
    %11818 = vmatprep.mubr.f32.mxu0 0.0
    %11819 = vmatmul.mubr.f32.gmra.mrb[0].mxu0 %v11630
    %v11820 = vpop.f32.mrb[0].mxu0
    %v11821 = vadd.f32 %v11677, %v11820
    %v11822 = vpop.f32.mrb[0].mxu0
    %11823 = vmatprep.mubr.f32.mxu0 0.0
    %11824 = vmatmul.mubr.f32.gmra.mrb[0].mxu0 %v11631
    %v11825 = vpop.f32.mrb[0].mxu0
    %v11826 = vadd.f32 %v11682, %v11825
    %v11827 = vpop.f32.mrb[0].mxu0
    %11828 = vmatprep.mubr.f32.mxu0 0.0
    %11829 = vmatmul.mubr.f32.gmra.mrb[0].mxu0 %v11632
    %v11830 = vpop.f32.mrb[0].mxu0
    %v11831 = vadd.f32 %v11687, %v11830
    %v11832 = vpop.f32.mrb[0].mxu0
    %11833 = vmatprep.mubr.f32.mxu0 0.0
    %11834 = vmatmul.mubr.f32.gmra.mrb[0].mxu0 %v11633
    %v11835 = vpop.f32.mrb[0].mxu0
    %v11836 = vadd.f32 %v11692, %v11835
    %v11837 = vpop.f32.mrb[0].mxu0
    %11838 = vmatprep.mubr.f32.mxu0 0.0
    %11839 = vmatmul.mubr.f32.gmra.mrb[0].mxu0 %v11634
    %v11840 = vpop.f32.mrb[0].mxu0
    %v11841 = vadd.f32 %v11697, %v11840
    %v11842 = vpop.f32.mrb[0].mxu0
    %11843 = vmatprep.mubr.f32.mxu0 0.0
    %11844 = vmatmul.mubr.f32.gmra.mrb[0].mxu0 %v11635
    %v11845 = vpop.f32.mrb[0].mxu0
    %v11846 = vadd.f32 %v11702, %v11845
    %v11847 = vpop.f32.mrb[0].mxu0
    %11848 = vmatprep.mubr.f32.mxu0 0.0
    %11849 = vmatmul.mubr.f32.gmra.mrb[0].mxu0 %v11636
    %v11850 = vpop.f32.mrb[0].mxu0
    %v11851 = vadd.f32 %v11707, %v11850
    %v11852 = vpop.f32.mrb[0].mxu0
    %11853 = vmatprep.mubr.f32.mxu0 0.0
    %11854 = vmatmul.mubr.f32.gmra.mrb[0].mxu0 %v11637
    %v11855 = vpop.f32.mrb[0].mxu0
    %v11856 = vadd.f32 %v11712, %v11855
    %v11857 = vpop.f32.mrb[0].mxu0
    %11858 = vmatprep.mubr.f32.mxu0 0.0
    %11859 = vmatmul.mubr.f32.gmra.mrb[0].mxu0 %v11638
    %v11860 = vpop.f32.mrb[0].mxu0
    %v11861 = vadd.f32 %v11717, %v11860
    %v11862 = vpop.f32.mrb[0].mxu0
    %11863 = vmatprep.mubr.f32.mxu0 0.0
    %11864 = vmatmul.mubr.f32.gmra.mrb[0].mxu0 %v11639
    %v11865 = vpop.f32.mrb[0].mxu0
    %v11866 = vadd.f32 %v11722, %v11865
    %v11867 = vpop.f32.mrb[0].mxu0
    %11868 = vmatprep.mubr.f32.mxu0 0.0
    %11869 = vmatmul.mubr.f32.gmra.mrb[0].mxu0 %v11640
    %v11870 = vpop.f32.mrb[0].mxu0
    %v11871 = vadd.f32 %v11727, %v11870
    %v11872 = vpop.f32.mrb[0].mxu0
    %11873 = vmatprep.mubr.f32.mxu0 0.0
    %11874 = vmatmul.mubr.f32.gmra.mrb[0].mxu0 %v11641
    %v11875 = vpop.f32.mrb[0].mxu0
    %v11876 = vadd.f32 %v11732, %v11875
    %v11877 = vpop.f32.mrb[0].mxu0
    %11878 = vmatprep.mubr.f32.mxu0 0.0
    %11879 = vmatmul.mubr.f32.gmra.mrb[0].mxu0 %v11642
    %v11880 = vpop.f32.mrb[0].mxu0
    %v11881 = vadd.f32 %v11737, %v11880
    %v11882 = vpop.f32.mrb[0].mxu0
    %11883 = vdwg.mxu0
    %v11884 = vmax.f32 %v11806, 0.0
    %v11885 = vmax.f32 %v11811, 0.0
    %v11886 = vmax.f32 %v11816, 0.0
    %v11887 = vmax.f32 %v11821, 0.0
    %v11888 = vmax.f32 %v11826, 0.0
    %v11889 = vmax.f32 %v11831, 0.0
    %v11890 = vmax.f32 %v11836, 0.0
    %v11891 = vmax.f32 %v11841, 0.0
    %v11892 = vmax.f32 %v11846, 0.0
    %v11893 = vmax.f32 %v11851, 0.0
    %v11894 = vmax.f32 %v11856, 0.0
    %v11895 = vmax.f32 %v11861, 0.0
    %v11896 = vmax.f32 %v11866, 0.0
    %v11897 = vmax.f32 %v11871, 0.0
    %v11898 = vmax.f32 %v11876, 0.0
    %v11899 = vmax.f32 %v11881, 0.0
    %v11900 = vld [vmem:[%s9] sm:$0xff]
    %v11901 = vld [vmem:[%s9 + $0x8] sm:$0xff]
    %v11902 = vld [vmem:[%s9 + $0x10] sm:$0xff]
    %v11903 = vld [vmem:[%s9 + $0x18] sm:$0xff]
    %v11904 = vld [vmem:[%s9 + $0x20] sm:$0xff]
    %v11905 = vld [vmem:[%s9 + $0x28] sm:$0xff]
    %v11906 = vld [vmem:[%s9 + $0x30] sm:$0xff]
    %v11907 = vld [vmem:[%s9 + $0x38] sm:$0xff]
    %v11908 = vld [vmem:[%s9 + $0x40] sm:$0xff]
    %v11909 = vld [vmem:[%s9 + $0x48] sm:$0xff]
    %v11910 = vld [vmem:[%s9 + $0x50] sm:$0xff]
    %v11911 = vld [vmem:[%s9 + $0x58] sm:$0xff]
    %v11912 = vld [vmem:[%s9 + $0x60] sm:$0xff]
    %v11913 = vld [vmem:[%s9 + $0x68] sm:$0xff]
    %v11914 = vld [vmem:[%s9 + $0x70] sm:$0xff]
    %v11915 = vld [vmem:[%s9 + $0x78] sm:$0xff]
    %v11916 = vld [vmem:[%s10] sm:$0xff]
    %v11917 = vld [vmem:[%s10 + $0x8] sm:$0xff]
    %v11918 = vld [vmem:[%s10 + $0x10] sm:$0xff]
    %v11919 = vld [vmem:[%s10 + $0x18] sm:$0xff]
    %v11920 = vld [vmem:[%s10 + $0x20] sm:$0xff]
    %v11921 = vld [vmem:[%s10 + $0x28] sm:$0xff]
    %v11922 = vld [vmem:[%s10 + $0x30] sm:$0xff]
    %v11923 = vld [vmem:[%s10 + $0x38] sm:$0xff]
    %v11924 = vld [vmem:[%s10 + $0x40] sm:$0xff]
    %v11925 = vld [vmem:[%s10 + $0x48] sm:$0xff]
    %v11926 = vld [vmem:[%s10 + $0x50] sm:$0xff]
    %v11927 = vld [vmem:[%s10 + $0x58] sm:$0xff]
    %v11928 = vld [vmem:[%s10 + $0x60] sm:$0xff]
    %v11929 = vld [vmem:[%s10 + $0x68] sm:$0xff]
    %v11930 = vld [vmem:[%s10 + $0x70] sm:$0xff]
    %v11931 = vld [vmem:[%s10 + $0x78] sm:$0xff]
    %11933 = vset.pattern.permute.xlu0 0
    %11934 = vperm.xlu0 %11933, %v11916
    %v11935 = vpop.permute.xlu0 %11934
    %11938 = vset.pattern.permute.xlu0 0
    %11939 = vperm.xlu0 %11938, %v11917
    %v11940 = vpop.permute.xlu0 %11939
    %11943 = vset.pattern.permute.xlu0 0
    %11944 = vperm.xlu0 %11943, %v11918
    %v11945 = vpop.permute.xlu0 %11944
    %11948 = vset.pattern.permute.xlu0 0
    %11949 = vperm.xlu0 %11948, %v11919
    %v11950 = vpop.permute.xlu0 %11949
    %11953 = vset.pattern.permute.xlu0 0
    %11954 = vperm.xlu0 %11953, %v11920
    %v11955 = vpop.permute.xlu0 %11954
    %11958 = vset.pattern.permute.xlu0 0
    %11959 = vperm.xlu0 %11958, %v11921
    %v11960 = vpop.permute.xlu0 %11959
    %11963 = vset.pattern.permute.xlu0 0
    %11964 = vperm.xlu0 %11963, %v11922
    %v11965 = vpop.permute.xlu0 %11964
    %11968 = vset.pattern.permute.xlu0 0
    %11969 = vperm.xlu0 %11968, %v11923
    %v11970 = vpop.permute.xlu0 %11969
    %11973 = vset.pattern.permute.xlu0 0
    %11974 = vperm.xlu0 %11973, %v11924
    %v11975 = vpop.permute.xlu0 %11974
    %11978 = vset.pattern.permute.xlu0 0
    %11979 = vperm.xlu0 %11978, %v11925
    %v11980 = vpop.permute.xlu0 %11979
    %11983 = vset.pattern.permute.xlu0 0
    %11984 = vperm.xlu0 %11983, %v11926
    %v11985 = vpop.permute.xlu0 %11984
    %11988 = vset.pattern.permute.xlu0 0
    %11989 = vperm.xlu0 %11988, %v11927
    %v11990 = vpop.permute.xlu0 %11989
    %11993 = vset.pattern.permute.xlu0 0
    %11994 = vperm.xlu0 %11993, %v11928
    %v11995 = vpop.permute.xlu0 %11994
    %11998 = vset.pattern.permute.xlu0 0
    %11999 = vperm.xlu0 %11998, %v11929
    %v12000 = vpop.permute.xlu0 %11999
    %12003 = vset.pattern.permute.xlu0 0
    %12004 = vperm.xlu0 %12003, %v11930
    %v12005 = vpop.permute.xlu0 %12004
    %12008 = vset.pattern.permute.xlu0 0
    %12009 = vperm.xlu0 %12008, %v11931
    %v12010 = vpop.permute.xlu0 %12009
    %12012 = vmatprep.subr.mxu0 0.0
    %12013 = vmatpush1.msra.mxu0 %v11884
    %12014 = vmatprep.subr.mxu0 0.0
    %12015 = vmatpush1.msra.mxu0 %v11885
    %12016 = vmatprep.subr.mxu0 0.0
    %12017 = vmatpush1.msra.mxu0 %v11886
    %12018 = vmatprep.subr.mxu0 0.0
    %12019 = vmatpush1.msra.mxu0 %v11887
    %12020 = vmatprep.subr.mxu0 0.0
    %12021 = vmatpush1.msra.mxu0 %v11888
    %12022 = vmatprep.subr.mxu0 0.0
    %12023 = vmatpush1.msra.mxu0 %v11889
    %12024 = vmatprep.subr.mxu0 0.0
    %12025 = vmatpush1.msra.mxu0 %v11890
    %12026 = vmatprep.subr.mxu0 0.0
    %12027 = vmatpush1.msra.mxu0 %v11891
    %12028 = vmatprep.subr.mxu0 0.0
    %12029 = vmatpush1.msra.mxu0 %v11892
    %12030 = vmatprep.subr.mxu0 0.0
    %12031 = vmatpush1.msra.mxu0 %v11893
    %12032 = vmatprep.subr.mxu0 0.0
    %12033 = vmatpush1.msra.mxu0 %v11894
    %12034 = vmatprep.subr.mxu0 0.0
    %12035 = vmatpush1.msra.mxu0 %v11895
    %12036 = vmatprep.subr.mxu0 0.0
    %12037 = vmatpush1.msra.mxu0 %v11896
    %12038 = vmatprep.subr.mxu0 0.0
    %12039 = vmatpush1.msra.mxu0 %v11897
    %12040 = vmatprep.subr.mxu0 0.0
    %12041 = vmatpush1.msra.mxu0 %v11898
    %12042 = vmatprep.subr.mxu0 0.0
    %12043 = vmatpush1.msra.mxu0 %v11899
    %12044 = vmatprep.subr.mxu0 0.0
    %12045 = vmatpush1.msra.mxu0 0.0
    %12046 = vmatprep.subr.mxu0 0.0
    %12047 = vmatpush1.msra.mxu0 0.0
    %12048 = vmatprep.subr.mxu0 0.0
    %12049 = vmatpush1.msra.mxu0 0.0
    %12050 = vmatprep.subr.mxu0 0.0
    %12051 = vmatpush1.msra.mxu0 0.0
    %12052 = vmatprep.subr.mxu0 0.0
    %12053 = vmatpush1.msra.mxu0 0.0
    %12054 = vmatprep.subr.mxu0 0.0
    %12055 = vmatpush1.msra.mxu0 0.0
    %12056 = vmatprep.subr.mxu0 0.0
    %12057 = vmatpush1.msra.mxu0 0.0
    %12058 = vmatprep.subr.mxu0 0.0
    %12059 = vmatpush1.msra.mxu0 0.0
    %12060 = vmatprep.subr.mxu0 0.0
    %12061 = vmatpush1.msra.mxu0 0.0
    %12062 = vmatprep.subr.mxu0 0.0
    %12063 = vmatpush1.msra.mxu0 0.0
    %12064 = vmatprep.subr.mxu0 0.0
    %12065 = vmatpush1.msra.mxu0 0.0
    %12066 = vmatprep.subr.mxu0 0.0
    %12067 = vmatpush1.msra.mxu0 0.0
    %12068 = vmatprep.subr.mxu0 0.0
    %12069 = vmatpush1.msra.mxu0 0.0
    %12070 = vmatprep.subr.mxu0 0.0
    %12071 = vmatpush1.msra.mxu0 0.0
    %12072 = vmatprep.subr.mxu0 0.0
    %12073 = vmatpush1.msra.mxu0 0.0
    %12074 = vmatprep.subr.mxu0 0.0
    %12075 = vmatpush1.msra.mxu0 0.0
    %12076 = vmatprep.mubr.f32.mxu0 0.0
    %12077 = vmatmul.mubr.f32.gmra.mrb[0].mxu0 %v11900
    %v12078 = vpop.f32.mrb[0].mxu0
    %v12079 = vadd.f32 %v11935, %v12078
    %v12080 = vpop.f32.mrb[0].mxu0
    %12081 = vmatprep.mubr.f32.mxu0 0.0
    %12082 = vmatmul.mubr.f32.gmra.mrb[0].mxu0 %v11901
    %v12083 = vpop.f32.mrb[0].mxu0
    %v12084 = vadd.f32 %v11940, %v12083
    %v12085 = vpop.f32.mrb[0].mxu0
    %12086 = vmatprep.mubr.f32.mxu0 0.0
    %12087 = vmatmul.mubr.f32.gmra.mrb[0].mxu0 %v11902
    %v12088 = vpop.f32.mrb[0].mxu0
    %v12089 = vadd.f32 %v11945, %v12088
    %v12090 = vpop.f32.mrb[0].mxu0
    %12091 = vmatprep.mubr.f32.mxu0 0.0
    %12092 = vmatmul.mubr.f32.gmra.mrb[0].mxu0 %v11903
    %v12093 = vpop.f32.mrb[0].mxu0
    %v12094 = vadd.f32 %v11950, %v12093
    %v12095 = vpop.f32.mrb[0].mxu0
    %12096 = vmatprep.mubr.f32.mxu0 0.0
    %12097 = vmatmul.mubr.f32.gmra.mrb[0].mxu0 %v11904
    %v12098 = vpop.f32.mrb[0].mxu0
    %v12099 = vadd.f32 %v11955, %v12098
    %v12100 = vpop.f32.mrb[0].mxu0
    %12101 = vmatprep.mubr.f32.mxu0 0.0
    %12102 = vmatmul.mubr.f32.gmra.mrb[0].mxu0 %v11905
    %v12103 = vpop.f32.mrb[0].mxu0
    %v12104 = vadd.f32 %v11960, %v12103
    %v12105 = vpop.f32.mrb[0].mxu0
    %12106 = vmatprep.mubr.f32.mxu0 0.0
    %12107 = vmatmul.mubr.f32.gmra.mrb[0].mxu0 %v11906
    %v12108 = vpop.f32.mrb[0].mxu0
    %v12109 = vadd.f32 %v11965, %v12108
    %v12110 = vpop.f32.mrb[0].mxu0
    %12111 = vmatprep.mubr.f32.mxu0 0.0
    %12112 = vmatmul.mubr.f32.gmra.mrb[0].mxu0 %v11907
    %v12113 = vpop.f32.mrb[0].mxu0
    %v12114 = vadd.f32 %v11970, %v12113
    %v12115 = vpop.f32.mrb[0].mxu0
    %12116 = vmatprep.mubr.f32.mxu0 0.0
    %12117 = vmatmul.mubr.f32.gmra.mrb[0].mxu0 %v11908
    %v12118 = vpop.f32.mrb[0].mxu0
    %v12119 = vadd.f32 %v11975, %v12118
    %v12120 = vpop.f32.mrb[0].mxu0
    %12121 = vmatprep.mubr.f32.mxu0 0.0
    %12122 = vmatmul.mubr.f32.gmra.mrb[0].mxu0 %v11909
    %v12123 = vpop.f32.mrb[0].mxu0
    %v12124 = vadd.f32 %v11980, %v12123
    %v12125 = vpop.f32.mrb[0].mxu0
    %12126 = vmatprep.mubr.f32.mxu0 0.0
    %12127 = vmatmul.mubr.f32.gmra.mrb[0].mxu0 %v11910
    %v12128 = vpop.f32.mrb[0].mxu0
    %v12129 = vadd.f32 %v11985, %v12128
    %v12130 = vpop.f32.mrb[0].mxu0
    %12131 = vmatprep.mubr.f32.mxu0 0.0
    %12132 = vmatmul.mubr.f32.gmra.mrb[0].mxu0 %v11911
    %v12133 = vpop.f32.mrb[0].mxu0
    %v12134 = vadd.f32 %v11990, %v12133
    %v12135 = vpop.f32.mrb[0].mxu0
    %12136 = vmatprep.mubr.f32.mxu0 0.0
    %12137 = vmatmul.mubr.f32.gmra.mrb[0].mxu0 %v11912
    %v12138 = vpop.f32.mrb[0].mxu0
    %v12139 = vadd.f32 %v11995, %v12138
    %v12140 = vpop.f32.mrb[0].mxu0
    %12141 = vmatprep.mubr.f32.mxu0 0.0
    %12142 = vmatmul.mubr.f32.gmra.mrb[0].mxu0 %v11913
    %v12143 = vpop.f32.mrb[0].mxu0
    %v12144 = vadd.f32 %v12000, %v12143
    %v12145 = vpop.f32.mrb[0].mxu0
    %12146 = vmatprep.mubr.f32.mxu0 0.0
    %12147 = vmatmul.mubr.f32.gmra.mrb[0].mxu0 %v11914
    %v12148 = vpop.f32.mrb[0].mxu0
    %v12149 = vadd.f32 %v12005, %v12148
    %v12150 = vpop.f32.mrb[0].mxu0
    %12151 = vmatprep.mubr.f32.mxu0 0.0
    %12152 = vmatmul.mubr.f32.gmra.mrb[0].mxu0 %v11915
    %v12153 = vpop.f32.mrb[0].mxu0
    %v12154 = vadd.f32 %v12010, %v12153
    %v12155 = vpop.f32.mrb[0].mxu0
    %12156 = vdwg.mxu0
    %v12157 = vlaneseq
    %v12158 = vshrl.u32 %v12157, 7
    %v12159 = vadd.s32 %v12158, 8
    %v12160 = vadd.s32 %v12158, 16
    %v12161 = vadd.s32 %v12158, 24
    %v12162 = vadd.s32 %v12158, 32
    %v12163 = vadd.s32 %v12158, 40
    %v12164 = vadd.s32 %v12158, 48
    %v12165 = vadd.s32 %v12158, 56
    %v12166 = vadd.s32 %v12158, 64
    %v12167 = vadd.s32 %v12158, 72
    %v12168 = vadd.s32 %v12158, 80
    %v12169 = vadd.s32 %v12158, 88
    %v12170 = vadd.s32 %v12158, 96
    %v12171 = vadd.s32 %v12158, 104
    %v12172 = vadd.s32 %v12158, 112
    %v12173 = vadd.s32 %v12158, 120
    %vm12174 = vcmp.lt.s32.totalorder %v12158, 10
    %vm12175 = vcmp.lt.s32.totalorder %v12159, 10
    %vm12176 = vcmp.lt.s32.totalorder %v12160, 10
    %vm12177 = vcmp.lt.s32.totalorder %v12161, 10
    %vm12178 = vcmp.lt.s32.totalorder %v12162, 10
    %vm12179 = vcmp.lt.s32.totalorder %v12163, 10
    %vm12180 = vcmp.lt.s32.totalorder %v12164, 10
    %vm12181 = vcmp.lt.s32.totalorder %v12165, 10
    %vm12182 = vcmp.lt.s32.totalorder %v12166, 10
    %vm12183 = vcmp.lt.s32.totalorder %v12167, 10
    %vm12184 = vcmp.lt.s32.totalorder %v12168, 10
    %vm12185 = vcmp.lt.s32.totalorder %v12169, 10
    %vm12186 = vcmp.lt.s32.totalorder %v12170, 10
    %vm12187 = vcmp.lt.s32.totalorder %v12171, 10
    %vm12188 = vcmp.lt.s32.totalorder %v12172, 10
    %vm12189 = vcmp.lt.s32.totalorder %v12173, 10
    %v12190 = vsel %vm12174, %v12079, -1e+30
    %v12191 = vsel %vm12175, %v12084, -1e+30
    %v12192 = vsel %vm12176, %v12089, -1e+30
    %v12193 = vsel %vm12177, %v12094, -1e+30
    %v12194 = vsel %vm12178, %v12099, -1e+30
    %v12195 = vsel %vm12179, %v12104, -1e+30
    %v12196 = vsel %vm12180, %v12109, -1e+30
    %v12197 = vsel %vm12181, %v12114, -1e+30
    %v12198 = vsel %vm12182, %v12119, -1e+30
    %v12199 = vsel %vm12183, %v12124, -1e+30
    %v12200 = vsel %vm12184, %v12129, -1e+30
    %v12201 = vsel %vm12185, %v12134, -1e+30
    %v12202 = vsel %vm12186, %v12139, -1e+30
    %v12203 = vsel %vm12187, %v12144, -1e+30
    %v12204 = vsel %vm12188, %v12149, -1e+30
    %v12205 = vsel %vm12189, %v12154, -1e+30
    %v12206 = vmax.f32 %v12190, %v12194
    %v12207 = vmax.f32 %v12191, %v12195
    %v12208 = vmax.f32 %v12192, %v12196
    %v12209 = vmax.f32 %v12193, %v12197
    %v12210 = vmax.f32 %v12206, %v12198
    %v12211 = vmax.f32 %v12207, %v12199
    %v12212 = vmax.f32 %v12208, %v12200
    %v12213 = vmax.f32 %v12209, %v12201
    %v12214 = vmax.f32 %v12210, %v12202
    %v12215 = vmax.f32 %v12211, %v12203
    %v12216 = vmax.f32 %v12212, %v12204
    %v12217 = vmax.f32 %v12213, %v12205
    %v12218 = vmax.f32 %v12214, %v12215
    %v12219 = vmax.f32 %v12216, %v12217
    %v12220 = vmax.f32 %v12218, %v12219
    %v12221 = vrot.slane %v12220, 4
    %v12222 = vmax.f32 %v12220, %v12221
    %v12223 = vrot.slane %v12222, 2
    %v12224 = vmax.f32 %v12222, %v12223
    %v12225 = vrot.slane %v12224, 1
    %v12226 = vmax.f32 %v12224, %v12225
    %v12227 = vsub.f32 %v12190, %v12226
    %v12228 = vsub.f32 %v12191, %v12226
    %v12229 = vsub.f32 %v12192, %v12226
    %v12230 = vsub.f32 %v12193, %v12226
    %v12231 = vsub.f32 %v12194, %v12226
    %v12232 = vsub.f32 %v12195, %v12226
    %v12233 = vsub.f32 %v12196, %v12226
    %v12234 = vsub.f32 %v12197, %v12226
    %v12235 = vsub.f32 %v12198, %v12226
    %v12236 = vsub.f32 %v12199, %v12226
    %v12237 = vsub.f32 %v12200, %v12226
    %v12238 = vsub.f32 %v12201, %v12226
    %v12239 = vsub.f32 %v12202, %v12226
    %v12240 = vsub.f32 %v12203, %v12226
    %v12241 = vsub.f32 %v12204, %v12226
    %v12242 = vsub.f32 %v12205, %v12226
    %v12243 = vmul.f32 %v12227, 1.442695
    %v12244 = vpow.pop %v12243
    %v12245 = vmul.f32 %v12228, 1.442695
    %v12246 = vpow.pop %v12245
    %v12247 = vmul.f32 %v12229, 1.442695
    %v12248 = vpow.pop %v12247
    %v12249 = vmul.f32 %v12230, 1.442695
    %v12250 = vpow.pop %v12249
    %v12251 = vmul.f32 %v12231, 1.442695
    %v12252 = vpow.pop %v12251
    %v12253 = vmul.f32 %v12232, 1.442695
    %v12254 = vpow.pop %v12253
    %v12255 = vmul.f32 %v12233, 1.442695
    %v12256 = vpow.pop %v12255
    %v12257 = vmul.f32 %v12234, 1.442695
    %v12258 = vpow.pop %v12257
    %v12259 = vmul.f32 %v12235, 1.442695
    %v12260 = vpow.pop %v12259
    %v12261 = vmul.f32 %v12236, 1.442695
    %v12262 = vpow.pop %v12261
    %v12263 = vmul.f32 %v12237, 1.442695
    %v12264 = vpow.pop %v12263
    %v12265 = vmul.f32 %v12238, 1.442695
    %v12266 = vpow.pop %v12265
    %v12267 = vmul.f32 %v12239, 1.442695
    %v12268 = vpow.pop %v12267
    %v12269 = vmul.f32 %v12240, 1.442695
    %v12270 = vpow.pop %v12269
    %v12271 = vmul.f32 %v12241, 1.442695
    %v12272 = vpow.pop %v12271
    %v12273 = vmul.f32 %v12242, 1.442695
    %v12274 = vpow.pop %v12273
    %v12275 = vadd.f32 %v12244, %v12246
    %v12276 = vadd.f32 %v12275, %v12248
    %v12277 = vadd.f32 %v12276, %v12250
    %v12278 = vadd.f32 %v12277, %v12252
    %v12279 = vadd.f32 %v12278, %v12254
    %v12280 = vadd.f32 %v12279, %v12256
    %v12281 = vadd.f32 %v12280, %v12258
    %v12282 = vadd.f32 %v12281, %v12260
    %v12283 = vadd.f32 %v12282, %v12262
    %v12284 = vadd.f32 %v12283, %v12264
    %v12285 = vadd.f32 %v12284, %v12266
    %v12286 = vadd.f32 %v12285, %v12268
    %v12287 = vadd.f32 %v12286, %v12270
    %v12288 = vadd.f32 %v12287, %v12272
    %v12289 = vadd.f32 %v12288, %v12274
    %v12290 = vrot.slane %v12289, 4
    %v12291 = vadd.f32 %v12289, %v12290
    %v12292 = vrot.slane %v12291, 2
    %v12293 = vadd.f32 %v12291, %v12292
    %v12294 = vrot.slane %v12293, 1
    %v12295 = vadd.f32 %v12293, %v12294
    %v12296 = vlog2.pop %v12295
    %v12297 = vmul.f32 %v12296, 0.6931472
    %v12298 = vadd.f32 %v12226, %v12297
    %v12299 = vsub.f32 %v12190, %v12298
    %v12300 = vsub.f32 %v12191, %v12298
    %v12301 = vsub.f32 %v12192, %v12298
    %v12302 = vsub.f32 %v12193, %v12298
    %v12303 = vsub.f32 %v12194, %v12298
    %v12304 = vsub.f32 %v12195, %v12298
    %v12305 = vsub.f32 %v12196, %v12298
    %v12306 = vsub.f32 %v12197, %v12298
    %v12307 = vsub.f32 %v12198, %v12298
    %v12308 = vsub.f32 %v12199, %v12298
    %v12309 = vsub.f32 %v12200, %v12298
    %v12310 = vsub.f32 %v12201, %v12298
    %v12311 = vsub.f32 %v12202, %v12298
    %v12312 = vsub.f32 %v12203, %v12298
    %v12313 = vsub.f32 %v12204, %v12298
    %v12314 = vsub.f32 %v12205, %v12298
    %12315 = vst [vmem:[%s11] sm:$0xff] %v12299
    %12316 = vst [vmem:[%s11 + $0x8] sm:$0xff] %v12300
    %12317 = vst [vmem:[%s11 + $0x10] sm:$0xff] %v12301
    %12318 = vst [vmem:[%s11 + $0x18] sm:$0xff] %v12302
    %12319 = vst [vmem:[%s11 + $0x20] sm:$0xff] %v12303
    %12320 = vst [vmem:[%s11 + $0x28] sm:$0xff] %v12304
    %12321 = vst [vmem:[%s11 + $0x30] sm:$0xff] %v12305
    %12322 = vst [vmem:[%s11 + $0x38] sm:$0xff] %v12306
    %12323 = vst [vmem:[%s11 + $0x40] sm:$0xff] %v12307
    %12324 = vst [vmem:[%s11 + $0x48] sm:$0xff] %v12308
    %12325 = vst [vmem:[%s11 + $0x50] sm:$0xff] %v12309
    %12326 = vst [vmem:[%s11 + $0x58] sm:$0xff] %v12310
    %12327 = vst [vmem:[%s11 + $0x60] sm:$0xff] %v12311
    %12328 = vst [vmem:[%s11 + $0x68] sm:$0xff] %v12312
    %12329 = vst [vmem:[%s11 + $0x70] sm:$0xff] %v12313
    %12330 = vst [vmem:[%s11 + $0x78] sm:$0xff] %v12314
    // Predicated region
    $region76: #{convnet_forward.1} parent=1 // pred_check
      _
    $region77: #{convnet_forward.1} parent=1 // pred_check_branch
      %12332 = sbr.rel (0) target = $region79
    $region78: #{convnet_forward.1} parent=1 // pred_region
      _
    $region79: #{convnet_forward.1} parent=1 // pred_fallthru
      _
    // Predicated region
    $region80: #{convnet_forward.1} parent=1 // pred_check
      _
    $region81: #{convnet_forward.1} parent=1 // pred_check_branch
      %12334 = sbr.rel (0) target = $region83
    $region82: #{convnet_forward.1} parent=1 // pred_region
      _
    $region83: #{convnet_forward.1} parent=1 // pred_fallthru
      _
    %12335 = vsyncpa [#allocation5], 1
    %12336 = vsyncpa [#allocation7], 1
    %12337 = vsyncpa [#allocation10], 1

</llo_original>
